<compile_context>
chip_gen: v6e
topology: v6e:2x2x1
jax: 0.10.0
libtpu: 0.0.40
codegen_flags: <defaults>
</compile_context>

<pallas_src>
import math

import jax
import jax.numpy as jnp
from jax.experimental import pallas as pl
from jax.experimental.pallas import tpu as pltpu

# Small, module-consistent shapes.
BATCH = 2
SEQ = 8        # L
DIM = 32       # embedding dim
HEADS = 4
HEAD_DIM = DIM // HEADS
LN_EPS = 1e-5
HP = jax.lax.Precision.HIGHEST   # strict fp32 MXU passes (PyTorch fp32 parity)


def make_tsa_kernel(need_weights):
    """Builds the fused attention+LayerNorm kernel; `need_weights` is a static config flag."""

    def tsa_kernel(x_ref, wqkv_ref, bqkv_ref, wo_ref, misc_ref, *out_refs):
        y_ref = out_refs[0]
        B, L, D = x_ref.shape
        H, Hd = HEADS, HEAD_DIM
        x2 = x_ref[...].reshape(B * L, D)          # leading-dim merge, layout-trivial

        # Fused QKV projection: ONE (B*L, D) x (D, 3D) MXU matmul + one bias row.
        # 1/sqrt(Hd) is already folded into the Q columns of wqkv/bqkv (prepare_params).
        qkv = jnp.dot(x2, wqkv_ref[...], preferred_element_type=jnp.float32,
                      precision=HP) + bqkv_ref[...]

        # Stack per-head lane groups along a NEW leading axis -> (H*B, L, Hd).
        # Only static lane slices + leading-dim concats (no lane-dim reshape, no 4-D transpose),
        # so all heads then share a single batched matmul sequence.
        def head_stack(base):
            parts = [qkv[:, base + h * Hd: base + (h + 1) * Hd].reshape(B, L, Hd)
                     for h in range(H)]
            return jnp.stack(parts, axis=0).reshape(H * B, L, Hd)

        qh = head_stack(0)          # Q (pre-scaled)
        kh = head_stack(D)          # K
        vh = head_stack(2 * D)      # V

        # One batched score matmul + one softmax + one batched PV matmul for ALL heads.
        s = jnp.einsum("bld,bmd->blm", qh, kh,
                       preferred_element_type=jnp.float32, precision=HP)      # (H*B, L, L)
        s = s - jnp.max(s, axis=-1, keepdims=True)
        e = jnp.exp(s)
        p = e * pl.reciprocal(jnp.sum(e, axis=-1, keepdims=True), approx=False)

        ctx = jnp.einsum("blm,bmd->bld", p, vh,
                         preferred_element_type=jnp.float32, precision=HP)    # (H*B, L, Hd)

        # Output projection folded per head (avoids transposing heads back into lanes):
        #   attn_out @ Wo == sum_h ctx_h @ Wo[h*Hd:(h+1)*Hd, :]
        ctx = ctx.reshape(H, B * L, Hd)            # leading-dim regroup only
        out = jnp.dot(ctx[0], wo_ref[0:Hd, :],
                      preferred_element_type=jnp.float32, precision=HP)
        for h in range(1, H):
            out = out + jnp.dot(ctx[h], wo_ref[h * Hd:(h + 1) * Hd, :],
                                preferred_element_type=jnp.float32, precision=HP)

        bo    = misc_ref[0:1, :]                   # (1, D) out-proj bias
        gamma = misc_ref[1:2, :]                   # (1, D) LN weight
        beta  = misc_ref[2:3, :]                   # (1, D) LN bias

        # Residual + LayerNorm (biased variance, matching torch.nn.LayerNorm).
        y = x2 + out + bo
        mean = jnp.mean(y, axis=-1, keepdims=True)
        var = jnp.mean((y - mean) ** 2, axis=-1, keepdims=True)
        y = (y - mean) * jax.lax.rsqrt(var + LN_EPS) * gamma + beta
        y_ref[...] = y.reshape(B, L, D)

        if need_weights:
            # Head-averaged attention weights (PyTorch average_attn_weights=True default).
            out_refs[1][...] = jnp.mean(p.reshape(H, B, L, L), axis=0)

    return tsa_kernel


def temporal_self_attention(x, params, need_weights=True):
    """y = LayerNorm(x + MHA(x,x,x)), plus head-averaged attention weights if requested.

    Single kernel invocation (no grid): at these sizes the kernel is fixed-cost bound, so there
    is nothing to pipeline and no reason to double-buffer.  Callers amortize launch overhead by
    stacking independent instances along B; add a grid axis over B and an explicit
    vmem_limit_bytes only when the whole-problem VMEM footprint nears v7x's 32 MiB scoped limit.
    """
    B, L, D = x.shape
    vmem = pl.BlockSpec(memory_space=pltpu.MemorySpace.VMEM)

    out_shape = (jax.ShapeDtypeStruct((B, L, D), jnp.float32),)
    if need_weights:
        out_shape += (jax.ShapeDtypeStruct((B, L, L), jnp.float32),)

    fn = pl.pallas_call(
        make_tsa_kernel(need_weights),
        out_shape=out_shape,
        in_specs=[vmem] * 5,
        out_specs=tuple([vmem] * len(out_shape)),
    )
    outs = fn(x, params["w_qkv"], params["b_qkv"], params["wo"], params["bo_gamma_beta"])
    return outs if need_weights else (outs[0], None)


def prepare_params(p):
    """One-time parameter transform: fold 1/sqrt(HEAD_DIM) into the Q columns of wqkv/bqkv."""
    scale = 1.0 / math.sqrt(HEAD_DIM)
    col_scale = jnp.concatenate(
        [jnp.full((1, DIM), scale, jnp.float32), jnp.ones((1, 2 * DIM), jnp.float32)], axis=1)
    return {
        "w_qkv": p["w_qkv"] * col_scale,
        "b_qkv": p["b_qkv"] * col_scale,
        "wo": p["wo"],
        "bo_gamma_beta": p["bo_gamma_beta"],
    }


def reference_forward(x, p):
    """Pure-JAX reference mirroring torch.nn.MultiheadAttention + residual LayerNorm."""
    B, L, D = x.shape
    qkv = jnp.einsum("bld,de->ble", x, p["w_qkv"], precision=HP) + p["b_qkv"]
    q, k, v = qkv[..., :D], qkv[..., D:2 * D], qkv[..., 2 * D:]

    def split(t):  # (B, L, D) -> (B, H, L, Hd)
        return t.reshape(B, L, HEADS, HEAD_DIM).transpose(0, 2, 1, 3)

    qh, kh, vh = split(q), split(k), split(v)
    s = jnp.einsum("bhld,bhmd->bhlm", qh, kh, precision=HP) / math.sqrt(HEAD_DIM)
    p_attn = jax.nn.softmax(s, axis=-1)                    # (B, H, L, L)
    ao = jnp.einsum("bhlm,bhmd->bhld", p_attn, vh, precision=HP)
    ao = ao.transpose(0, 2, 1, 3).reshape(B, L, D)

    bo, gamma, beta = (p["bo_gamma_beta"][0], p["bo_gamma_beta"][1], p["bo_gamma_beta"][2])
    out = jnp.einsum("bld,de->ble", ao, p["wo"], precision=HP) + bo

    y = x + out
    mean = jnp.mean(y, axis=-1, keepdims=True)
    var = jnp.mean((y - mean) ** 2, axis=-1, keepdims=True)
    y = (y - mean) / jnp.sqrt(var + LN_EPS) * gamma + beta
    w = jnp.mean(p_attn, axis=1)                           # head-averaged weights
    return y, w


def init_params(key):
    # NOTE: "x @ W" orientation with column-packed [Wq | Wk | Wv].  Real torch checkpoints store
    # in_proj_weight as (3D, D) row-packed applied as x @ W.T (same for out_proj.weight); importing
    # them requires a transpose + block reorder before prepare_params().
    ks = jax.random.split(key, 4)
    s = 0.1
    return {
        "w_qkv": s * jax.random.normal(ks[0], (DIM, 3 * DIM), jnp.float32),
        "b_qkv": s * jax.random.normal(ks[1], (1, 3 * DIM), jnp.float32),
        "wo":    s * jax.random.normal(ks[2], (DIM, DIM), jnp.float32),
        # Packed small vectors: row0 = out-proj bias, row1 = LN weight (=1), row2 = LN bias (=0).
        "bo_gamma_beta": jnp.concatenate(
            [s * jax.random.normal(ks[3], (1, DIM), jnp.float32),
             jnp.ones((1, DIM), jnp.float32),
             jnp.zeros((1, DIM), jnp.float32)], axis=0),
    }


if __name__ == "__main__":
    key = jax.random.PRNGKey(0)
    k_x, k_p = jax.random.split(key)
    x = jax.random.normal(k_x, (BATCH, SEQ, DIM), jnp.float32)
    params = init_params(k_p)
    kparams = prepare_params(params)       # one-time fold of the softmax scale into the weights

    # need_weights=True: full module semantics (out, w).
    y, w = temporal_self_attention(x, kparams, need_weights=True)
    y, w = jax.block_until_ready(y), jax.block_until_ready(w)

    y_ref, w_ref = reference_forward(x, params)
    assert jnp.allclose(y, y_ref, atol=1e-4, rtol=1e-4), "output mismatch"
    assert jnp.allclose(w, w_ref, atol=1e-4, rtol=1e-4), "attn-weight mismatch"
    assert jnp.allclose(jnp.sum(w, axis=-1), 1.0, atol=1e-5)

    # need_weights=False path: drops the lane-sparse (B, L, L) store, its accumulation and DMA.
    y2, w2 = temporal_self_attention(x, kparams, need_weights=False)
    y2 = jax.block_until_ready(y2)
    assert w2 is None
    assert jnp.allclose(y2, y_ref, atol=1e-4, rtol=1e-4), "output mismatch (need_weights=False)"

    print("KERNEL_OK")
</pallas_src>

<mosaic_0001>
module attributes {stable_mosaic.version = 11 : i64} {
  func.func @tsa_kernel(%arg0: memref<2x8x32xf32, #tpu.memory_space<vmem>>, %arg1: memref<32x96xf32, #tpu.memory_space<vmem>>, %arg2: memref<1x96xf32, #tpu.memory_space<vmem>>, %arg3: memref<32x32xf32, #tpu.memory_space<vmem>>, %arg4: memref<3x32xf32, #tpu.memory_space<vmem>>, %arg5: memref<2x8x32xf32, #tpu.memory_space<vmem>>, %arg6: memref<2x8x8xf32, #tpu.memory_space<vmem>>) attributes {dimension_semantics = [], scalar_prefetch = 0 : i64, scratch_operands = 0 : i64, tpu.core_type = #tpu.core_type<tc>} {
    %c0 = arith.constant 0 : index
    %c0_0 = arith.constant 0 : index
    %c0_1 = arith.constant 0 : index
    %0 = vector.load %arg0[%c0, %c0_0, %c0_1] : memref<2x8x32xf32, #tpu.memory_space<vmem>>, vector<2x8x32xf32>
    %1 = vector.shape_cast %0 : vector<2x8x32xf32> to vector<16x32xf32>
    %c0_2 = arith.constant 0 : index
    %c0_3 = arith.constant 0 : index
    %2 = vector.load %arg1[%c0_2, %c0_3] : memref<32x96xf32, #tpu.memory_space<vmem>>, vector<32x96xf32>
    %cst = arith.constant dense<0.000000e+00> : vector<16x96xf32>
    %3 = tpu.matmul %1, %2, %cst {dimension_numbers = #tpu.dot_dimension_numbers<[1], [0], [0], [1], [0, 0, 1, 1], [], []>, precision = #tpu.contract_precision<fp32>} : vector<16x32xf32>, vector<32x96xf32>, vector<16x96xf32> -> vector<16x96xf32>
    %c0_4 = arith.constant 0 : index
    %c0_5 = arith.constant 0 : index
    %4 = vector.load %arg2[%c0_4, %c0_5] : memref<1x96xf32, #tpu.memory_space<vmem>>, vector<1x96xf32>
    %5 = vector.broadcast %4 : vector<1x96xf32> to vector<16x96xf32>
    %6 = arith.addf %3, %5 : vector<16x96xf32>
    %7 = vector.extract_strided_slice %6 {offsets = [0, 0], sizes = [16, 8], strides = [1, 1]} : vector<16x96xf32> to vector<16x8xf32>
    %8 = vector.shape_cast %7 : vector<16x8xf32> to vector<2x8x8xf32>
    %9 = vector.extract_strided_slice %6 {offsets = [0, 8], sizes = [16, 8], strides = [1, 1]} : vector<16x96xf32> to vector<16x8xf32>
    %10 = vector.shape_cast %9 : vector<16x8xf32> to vector<2x8x8xf32>
    %11 = vector.extract_strided_slice %6 {offsets = [0, 16], sizes = [16, 8], strides = [1, 1]} : vector<16x96xf32> to vector<16x8xf32>
    %12 = vector.shape_cast %11 : vector<16x8xf32> to vector<2x8x8xf32>
    %13 = vector.extract_strided_slice %6 {offsets = [0, 24], sizes = [16, 8], strides = [1, 1]} : vector<16x96xf32> to vector<16x8xf32>
    %14 = vector.shape_cast %13 : vector<16x8xf32> to vector<2x8x8xf32>
    %15 = vector.shape_cast %8 : vector<2x8x8xf32> to vector<1x2x8x8xf32>
    %16 = vector.shape_cast %10 : vector<2x8x8xf32> to vector<1x2x8x8xf32>
    %17 = vector.shape_cast %12 : vector<2x8x8xf32> to vector<1x2x8x8xf32>
    %18 = vector.shape_cast %14 : vector<2x8x8xf32> to vector<1x2x8x8xf32>
    %19 = tpu.concatenate %15, %16, %17, %18 in 0 : vector<1x2x8x8xf32>, vector<1x2x8x8xf32>, vector<1x2x8x8xf32>, vector<1x2x8x8xf32> -> vector<4x2x8x8xf32>
    %20 = vector.shape_cast %19 : vector<4x2x8x8xf32> to vector<8x8x8xf32>
    %21 = vector.extract_strided_slice %6 {offsets = [0, 32], sizes = [16, 8], strides = [1, 1]} : vector<16x96xf32> to vector<16x8xf32>
    %22 = vector.shape_cast %21 : vector<16x8xf32> to vector<2x8x8xf32>
    %23 = vector.extract_strided_slice %6 {offsets = [0, 40], sizes = [16, 8], strides = [1, 1]} : vector<16x96xf32> to vector<16x8xf32>
    %24 = vector.shape_cast %23 : vector<16x8xf32> to vector<2x8x8xf32>
    %25 = vector.extract_strided_slice %6 {offsets = [0, 48], sizes = [16, 8], strides = [1, 1]} : vector<16x96xf32> to vector<16x8xf32>
    %26 = vector.shape_cast %25 : vector<16x8xf32> to vector<2x8x8xf32>
    %27 = vector.extract_strided_slice %6 {offsets = [0, 56], sizes = [16, 8], strides = [1, 1]} : vector<16x96xf32> to vector<16x8xf32>
    %28 = vector.shape_cast %27 : vector<16x8xf32> to vector<2x8x8xf32>
    %29 = vector.shape_cast %22 : vector<2x8x8xf32> to vector<1x2x8x8xf32>
    %30 = vector.shape_cast %24 : vector<2x8x8xf32> to vector<1x2x8x8xf32>
    %31 = vector.shape_cast %26 : vector<2x8x8xf32> to vector<1x2x8x8xf32>
    %32 = vector.shape_cast %28 : vector<2x8x8xf32> to vector<1x2x8x8xf32>
    %33 = tpu.concatenate %29, %30, %31, %32 in 0 : vector<1x2x8x8xf32>, vector<1x2x8x8xf32>, vector<1x2x8x8xf32>, vector<1x2x8x8xf32> -> vector<4x2x8x8xf32>
    %34 = vector.shape_cast %33 : vector<4x2x8x8xf32> to vector<8x8x8xf32>
    %35 = vector.extract_strided_slice %6 {offsets = [0, 64], sizes = [16, 8], strides = [1, 1]} : vector<16x96xf32> to vector<16x8xf32>
    %36 = vector.shape_cast %35 : vector<16x8xf32> to vector<2x8x8xf32>
    %37 = vector.extract_strided_slice %6 {offsets = [0, 72], sizes = [16, 8], strides = [1, 1]} : vector<16x96xf32> to vector<16x8xf32>
    %38 = vector.shape_cast %37 : vector<16x8xf32> to vector<2x8x8xf32>
    %39 = vector.extract_strided_slice %6 {offsets = [0, 80], sizes = [16, 8], strides = [1, 1]} : vector<16x96xf32> to vector<16x8xf32>
    %40 = vector.shape_cast %39 : vector<16x8xf32> to vector<2x8x8xf32>
    %41 = vector.extract_strided_slice %6 {offsets = [0, 88], sizes = [16, 8], strides = [1, 1]} : vector<16x96xf32> to vector<16x8xf32>
    %42 = vector.shape_cast %41 : vector<16x8xf32> to vector<2x8x8xf32>
    %43 = vector.shape_cast %36 : vector<2x8x8xf32> to vector<1x2x8x8xf32>
    %44 = vector.shape_cast %38 : vector<2x8x8xf32> to vector<1x2x8x8xf32>
    %45 = vector.shape_cast %40 : vector<2x8x8xf32> to vector<1x2x8x8xf32>
    %46 = vector.shape_cast %42 : vector<2x8x8xf32> to vector<1x2x8x8xf32>
    %47 = tpu.concatenate %43, %44, %45, %46 in 0 : vector<1x2x8x8xf32>, vector<1x2x8x8xf32>, vector<1x2x8x8xf32>, vector<1x2x8x8xf32> -> vector<4x2x8x8xf32>
    %48 = vector.shape_cast %47 : vector<4x2x8x8xf32> to vector<8x8x8xf32>
    "tpu.trace_start"() <{level = 10 : i32, message = "bld,bmd->blm"}> : () -> ()
    %cst_6 = arith.constant dense<0.000000e+00> : vector<8x8x8xf32>
    %49 = tpu.matmul %20, %34, %cst_6 {dimension_numbers = #tpu.dot_dimension_numbers<[2], [2], [1], [1], [0, 0, 0, 1, 1, 1], [0], [0]>, precision = #tpu.contract_precision<fp32>} : vector<8x8x8xf32>, vector<8x8x8xf32>, vector<8x8x8xf32> -> vector<8x8x8xf32>
    "tpu.trace_stop"() : () -> ()
    %cst_7 = arith.constant dense<0xFF800000> : vector<8x8xf32>
    %50 = vector.multi_reduction <maximumf>, %49, %cst_7 [2] : vector<8x8x8xf32> to vector<8x8xf32>
    %51 = vector.shape_cast %50 : vector<8x8xf32> to vector<8x8x1xf32>
    %52 = vector.broadcast %51 : vector<8x8x1xf32> to vector<8x8x8xf32>
    %53 = arith.subf %49, %52 : vector<8x8x8xf32>
    %54 = math.exp %53 : vector<8x8x8xf32>
    %cst_8 = arith.constant dense<0.000000e+00> : vector<8x8xf32>
    %55 = vector.multi_reduction <add>, %54, %cst_8 [2] : vector<8x8x8xf32> to vector<8x8xf32>
    %56 = vector.shape_cast %55 : vector<8x8xf32> to vector<8x8x1xf32>
    %57 = tpu.reciprocal %56 : vector<8x8x1xf32> -> vector<8x8x1xf32>
    %58 = vector.broadcast %57 : vector<8x8x1xf32> to vector<8x8x8xf32>
    %59 = arith.mulf %54, %58 : vector<8x8x8xf32>
    "tpu.trace_start"() <{level = 10 : i32, message = "blm,bmd->bld"}> : () -> ()
    %cst_9 = arith.constant dense<0.000000e+00> : vector<8x8x8xf32>
    %60 = tpu.matmul %59, %48, %cst_9 {dimension_numbers = #tpu.dot_dimension_numbers<[2], [1], [1], [2], [0, 0, 0, 1, 1, 2], [0], [0]>, precision = #tpu.contract_precision<fp32>} : vector<8x8x8xf32>, vector<8x8x8xf32>, vector<8x8x8xf32> -> vector<8x8x8xf32>
    "tpu.trace_stop"() : () -> ()
    %61 = vector.shape_cast %60 : vector<8x8x8xf32> to vector<4x16x8xf32>
    %62 = vector.extract_strided_slice %61 {offsets = [0, 0, 0], sizes = [1, 16, 8], strides = [1, 1, 1]} : vector<4x16x8xf32> to vector<1x16x8xf32>
    %63 = vector.shape_cast %62 : vector<1x16x8xf32> to vector<16x8xf32>
    %c0_10 = arith.constant 0 : index
    %c0_11 = arith.constant 0 : index
    %64 = vector.load %arg3[%c0_10, %c0_11] : memref<32x32xf32, #tpu.memory_space<vmem>>, vector<8x32xf32>
    %cst_12 = arith.constant dense<0.000000e+00> : vector<16x32xf32>
    %65 = tpu.matmul %63, %64, %cst_12 {dimension_numbers = #tpu.dot_dimension_numbers<[1], [0], [0], [1], [0, 0, 1, 1], [], []>, precision = #tpu.contract_precision<fp32>} : vector<16x8xf32>, vector<8x32xf32>, vector<16x32xf32> -> vector<16x32xf32>
    %66 = vector.extract_strided_slice %61 {offsets = [1, 0, 0], sizes = [1, 16, 8], strides = [1, 1, 1]} : vector<4x16x8xf32> to vector<1x16x8xf32>
    %67 = vector.shape_cast %66 : vector<1x16x8xf32> to vector<16x8xf32>
    %c8 = arith.constant 8 : index
    %c0_13 = arith.constant 0 : index
    %68 = vector.load %arg3[%c8, %c0_13] : memref<32x32xf32, #tpu.memory_space<vmem>>, vector<8x32xf32>
    %cst_14 = arith.constant dense<0.000000e+00> : vector<16x32xf32>
    %69 = tpu.matmul %67, %68, %cst_14 {dimension_numbers = #tpu.dot_dimension_numbers<[1], [0], [0], [1], [0, 0, 1, 1], [], []>, precision = #tpu.contract_precision<fp32>} : vector<16x8xf32>, vector<8x32xf32>, vector<16x32xf32> -> vector<16x32xf32>
    %70 = arith.addf %65, %69 : vector<16x32xf32>
    %71 = vector.extract_strided_slice %61 {offsets = [2, 0, 0], sizes = [1, 16, 8], strides = [1, 1, 1]} : vector<4x16x8xf32> to vector<1x16x8xf32>
    %72 = vector.shape_cast %71 : vector<1x16x8xf32> to vector<16x8xf32>
    %c16 = arith.constant 16 : index
    %c0_15 = arith.constant 0 : index
    %73 = vector.load %arg3[%c16, %c0_15] : memref<32x32xf32, #tpu.memory_space<vmem>>, vector<8x32xf32>
    %cst_16 = arith.constant dense<0.000000e+00> : vector<16x32xf32>
    %74 = tpu.matmul %72, %73, %cst_16 {dimension_numbers = #tpu.dot_dimension_numbers<[1], [0], [0], [1], [0, 0, 1, 1], [], []>, precision = #tpu.contract_precision<fp32>} : vector<16x8xf32>, vector<8x32xf32>, vector<16x32xf32> -> vector<16x32xf32>
    %75 = arith.addf %70, %74 : vector<16x32xf32>
    %76 = vector.extract_strided_slice %61 {offsets = [3, 0, 0], sizes = [1, 16, 8], strides = [1, 1, 1]} : vector<4x16x8xf32> to vector<1x16x8xf32>
    %77 = vector.shape_cast %76 : vector<1x16x8xf32> to vector<16x8xf32>
    %c24 = arith.constant 24 : index
    %c0_17 = arith.constant 0 : index
    %78 = vector.load %arg3[%c24, %c0_17] : memref<32x32xf32, #tpu.memory_space<vmem>>, vector<8x32xf32>
    %cst_18 = arith.constant dense<0.000000e+00> : vector<16x32xf32>
    %79 = tpu.matmul %77, %78, %cst_18 {dimension_numbers = #tpu.dot_dimension_numbers<[1], [0], [0], [1], [0, 0, 1, 1], [], []>, precision = #tpu.contract_precision<fp32>} : vector<16x8xf32>, vector<8x32xf32>, vector<16x32xf32> -> vector<16x32xf32>
    %80 = arith.addf %75, %79 : vector<16x32xf32>
    %c0_19 = arith.constant 0 : index
    %c0_20 = arith.constant 0 : index
    %81 = vector.load %arg4[%c0_19, %c0_20] : memref<3x32xf32, #tpu.memory_space<vmem>>, vector<1x32xf32>
    %c1 = arith.constant 1 : index
    %c0_21 = arith.constant 0 : index
    %82 = vector.load %arg4[%c1, %c0_21] : memref<3x32xf32, #tpu.memory_space<vmem>>, vector<1x32xf32>
    %c2 = arith.constant 2 : index
    %c0_22 = arith.constant 0 : index
    %83 = vector.load %arg4[%c2, %c0_22] : memref<3x32xf32, #tpu.memory_space<vmem>>, vector<1x32xf32>
    %84 = arith.addf %1, %80 : vector<16x32xf32>
    %85 = vector.broadcast %81 : vector<1x32xf32> to vector<16x32xf32>
    %86 = arith.addf %84, %85 : vector<16x32xf32>
    %cst_23 = arith.constant dense<0.000000e+00> : vector<16xf32>
    %87 = vector.multi_reduction <add>, %86, %cst_23 [1] : vector<16x32xf32> to vector<16xf32>
    %88 = vector.shape_cast %87 : vector<16xf32> to vector<16x1xf32>
    %cst_24 = arith.constant 3.200000e+01 : f32
    %89 = vector.broadcast %cst_24 : f32 to vector<16x1xf32>
    %90 = arith.divf %88, %89 : vector<16x1xf32>
    %91 = vector.broadcast %90 : vector<16x1xf32> to vector<16x32xf32>
    %92 = arith.subf %86, %91 : vector<16x32xf32>
    %93 = arith.mulf %92, %92 : vector<16x32xf32>
    %cst_25 = arith.constant dense<0.000000e+00> : vector<16xf32>
    %94 = vector.multi_reduction <add>, %93, %cst_25 [1] : vector<16x32xf32> to vector<16xf32>
    %95 = vector.shape_cast %94 : vector<16xf32> to vector<16x1xf32>
    %cst_26 = arith.constant 3.200000e+01 : f32
    %96 = vector.broadcast %cst_26 : f32 to vector<16x1xf32>
    %97 = arith.divf %95, %96 : vector<16x1xf32>
    %98 = vector.broadcast %90 : vector<16x1xf32> to vector<16x32xf32>
    %99 = arith.subf %86, %98 : vector<16x32xf32>
    %cst_27 = arith.constant 9.99999974E-6 : f32
    %100 = vector.broadcast %cst_27 : f32 to vector<16x1xf32>
    %101 = arith.addf %97, %100 : vector<16x1xf32>
    %102 = math.rsqrt %101 : vector<16x1xf32>
    %103 = vector.broadcast %102 : vector<16x1xf32> to vector<16x32xf32>
    %104 = arith.mulf %99, %103 : vector<16x32xf32>
    %105 = vector.broadcast %82 : vector<1x32xf32> to vector<16x32xf32>
    %106 = arith.mulf %104, %105 : vector<16x32xf32>
    %107 = vector.broadcast %83 : vector<1x32xf32> to vector<16x32xf32>
    %108 = arith.addf %106, %107 : vector<16x32xf32>
    %109 = vector.shape_cast %108 : vector<16x32xf32> to vector<2x8x32xf32>
    %c0_28 = arith.constant 0 : index
    %c0_29 = arith.constant 0 : index
    %c0_30 = arith.constant 0 : index
    %110 = vector.load %arg5[%c0_28, %c0_29, %c0_30] : memref<2x8x32xf32, #tpu.memory_space<vmem>>, vector<2x8x32xf32>
    tpu.vector_store %arg5[%c0_28, %c0_29, %c0_30], %109 {strides = array<i32>} : memref<2x8x32xf32, #tpu.memory_space<vmem>>, vector<2x8x32xf32>,
    %111 = vector.shape_cast %59 : vector<8x8x8xf32> to vector<4x2x8x8xf32>
    %cst_31 = arith.constant dense<0.000000e+00> : vector<2x8x8xf32>
    %112 = vector.multi_reduction <add>, %111, %cst_31 [0] : vector<4x2x8x8xf32> to vector<2x8x8xf32>
    %cst_32 = arith.constant 4.000000e+00 : f32
    %113 = vector.broadcast %cst_32 : f32 to vector<2x8x8xf32>
    %114 = arith.divf %112, %113 : vector<2x8x8xf32>
    %c0_33 = arith.constant 0 : index
    %c0_34 = arith.constant 0 : index
    %c0_35 = arith.constant 0 : index
    %115 = vector.load %arg6[%c0_33, %c0_34, %c0_35] : memref<2x8x8xf32, #tpu.memory_space<vmem>>, vector<2x8x8xf32>
    tpu.vector_store %arg6[%c0_33, %c0_34, %c0_35], %114 {strides = array<i32>} : memref<2x8x8xf32, #tpu.memory_space<vmem>>, vector<2x8x8xf32>,
    return
  }
}

</mosaic_0001>

<llo_original>
// kernel: tpu_custom_call.1
$region0: #{tpu_custom_call.1}
  #allocation0 [shape = 'u32[]', space=smem, size = 0x4, offset = 0x4, fixed_abs, tag = 'smem constant byte address 0x4 - core index']
  #allocation1 [shape = 'u32[144,128]{1,0:T(1,128)}', space=vmem, size = 0x12000, scoped, tag = 'internal scratch']
  %s0 = inlined_call_operand.hbm [shape: f32[2,8,32], index: 0, kind: input, shape index: {}]
  %s1 = inlined_call_operand.hbm [shape: f32[32,96], index: 1, kind: input, shape index: {}]
  %s2 = inlined_call_operand.vmem [shape: f32[1,96], index: 2, kind: input, shape index: {}]
  %s3 = inlined_call_operand.hbm [shape: f32[32,32], index: 3, kind: input, shape index: {}]
  %s4 = inlined_call_operand.vmem [shape: f32[3,32], index: 4, kind: input, shape index: {}]
  %s5 = inlined_call_operand.hbm [shape: f32[2,8,32], index: 5, kind: output, shape index: {0}]
  %s6 = inlined_call_operand.hbm [shape: f32[2,8,8], index: 6, kind: output, shape index: {1}]
  %7 = xla_tuple %s5, %s6
  %s8 = sld [smem:[#allocation0]]
  $region50: #{tpu_custom_call.1} parent=0
    _
  %s10 = ssub.s32 1, %s8
  %s11 = scalar_select 0, %s10, %s8
  $region1: #{tpu_custom_call.1} parent=0
    #allocation2 [shape = 'u8[8192]{0}', space=vmem, size = 0x2000, scoped, tag = 'input window, operand 0, single buffered']
    #allocation3 [shape = 's32[1]{0}', space=sflag, size = 0x4, scoped, tag = 'scoped memory for tpu_custom_call.1']
    #allocation4 [shape = 's32[1]{0}', space=sflag, size = 0x4, scoped, tag = 'scoped memory for tpu_custom_call.1']
    #allocation5 [shape = 'u8[16384]{0}', space=vmem, size = 0x4000, scoped, tag = 'input window, operand 1, single buffered']
    #allocation6 [shape = 's32[1]{0}', space=sflag, size = 0x4, scoped, tag = 'scoped memory for tpu_custom_call.1']
    #allocation7 [shape = 'u8[16384]{0}', space=vmem, size = 0x4000, scoped, tag = 'input window, operand 3, single buffered']
    #allocation8 [shape = 'u8[8192]{0}', space=vmem, size = 0x2000, scoped, tag = 'output window, operand 0, single buffered']
    #allocation9 [shape = 'u8[8192]{0}', space=vmem, size = 0x2000, scoped, tag = 'output window, operand 1, single buffered']
    #allocation10 [shape = 's32[1]{0}', space=sflag, size = 0x4, scoped, tag = 'scoped memory for tpu_custom_call.1']
    %12 = vsyncpa [#allocation3], 0
    %13 = vsyncpa [#allocation6], 0
    %14 = vsyncpa [#allocation4], 0
    %15 = vsyncpa [#allocation10], 0
    // Predicated region
    $region2: #{tpu_custom_call.1} parent=1 // pred_check
      _
    $region3: #{tpu_custom_call.1} parent=1 // pred_check_branch
      %17 = sbr.rel (0) target = $region5
    $region4: #{tpu_custom_call.1} parent=1 // pred_region
      %s19 = ssub.s32 256, 256
      %20 = vsyncadd [#allocation3], %s19
      %s21 = sshll.u32 [#allocation2], 4
      %s22 = int_to_ptr.vmem [resolvable:$true] %s21
      %27 = dma.hbm_to_vmem [thread:$0]  %s0, 256, %s22, [#allocation3], 128, 128, 8
    $region5: #{tpu_custom_call.1} parent=1 // pred_fallthru
      _
    // Predicated region
    $region6: #{tpu_custom_call.1} parent=1 // pred_check
      _
    $region7: #{tpu_custom_call.1} parent=1 // pred_check_branch
      %29 = sbr.rel (0) target = $region9
    $region8: #{tpu_custom_call.1} parent=1 // pred_region
      %s31 = ssub.s32 512, 512
      %32 = vsyncadd [#allocation6], %s31
      %s33 = sshll.u32 [#allocation5], 4
      %s34 = int_to_ptr.vmem [resolvable:$true] %s33
      %39 = dma.hbm_to_vmem [thread:$0]  %s1, 512, %s34, [#allocation6], 128, 128, 8
    $region9: #{tpu_custom_call.1} parent=1 // pred_fallthru
      _
    // Predicated region
    $region10: #{tpu_custom_call.1} parent=1 // pred_check
      _
    $region11: #{tpu_custom_call.1} parent=1 // pred_check_branch
      %41 = sbr.rel (0) target = $region13
    $region12: #{tpu_custom_call.1} parent=1 // pred_region
      _
    $region13: #{tpu_custom_call.1} parent=1 // pred_fallthru
      _
    // Predicated region
    $region14: #{tpu_custom_call.1} parent=1 // pred_check
      _
    $region15: #{tpu_custom_call.1} parent=1 // pred_check_branch
      %43 = sbr.rel (0) target = $region17
    $region16: #{tpu_custom_call.1} parent=1 // pred_region
      %s45 = ssub.s32 512, 512
      %46 = vsyncadd [#allocation6], %s45
      %s47 = sshll.u32 [#allocation7], 4
      %s48 = int_to_ptr.vmem [resolvable:$true] %s47
      %53 = dma.hbm_to_vmem [thread:$0]  %s3, 512, %s48, [#allocation6], 128, 128, 8
    $region17: #{tpu_custom_call.1} parent=1 // pred_fallthru
      _
    // Predicated region
    $region18: #{tpu_custom_call.1} parent=1 // pred_check
      _
    $region19: #{tpu_custom_call.1} parent=1 // pred_check_branch
      %55 = sbr.rel (0) target = $region21
    $region20: #{tpu_custom_call.1} parent=1 // pred_region
      _
    $region21: #{tpu_custom_call.1} parent=1 // pred_fallthru
      _
    // Predicated region
    $region22: #{tpu_custom_call.1} parent=1 // pred_check
      _
    $region23: #{tpu_custom_call.1} parent=1 // pred_check_branch
      %57 = sbr.rel (0) target = $region25
    $region24: #{tpu_custom_call.1} parent=1 // pred_region
      %58 = dma.done [#allocation3], 256
    $region25: #{tpu_custom_call.1} parent=1 // pred_fallthru
      _
    // Predicated region
    $region26: #{tpu_custom_call.1} parent=1 // pred_check
      _
    $region27: #{tpu_custom_call.1} parent=1 // pred_check_branch
      %60 = sbr.rel (0) target = $region29
    $region28: #{tpu_custom_call.1} parent=1 // pred_region
      %61 = dma.done [#allocation6], 512
    $region29: #{tpu_custom_call.1} parent=1 // pred_fallthru
      _
    // Predicated region
    $region30: #{tpu_custom_call.1} parent=1 // pred_check
      _
    $region31: #{tpu_custom_call.1} parent=1 // pred_check_branch
      %63 = sbr.rel (0) target = $region33
    $region32: #{tpu_custom_call.1} parent=1 // pred_region
      %64 = dma.done [#allocation6], 512
    $region33: #{tpu_custom_call.1} parent=1 // pred_fallthru
      _
    %v65 = vld [vmem:[#allocation2] sm:$0xff]
    %v66 = vld [vmem:[#allocation2 + $0x8] sm:$0xff]
    %v67 = vld [vmem:[#allocation5] sm:$0xff]
    %v68 = vld [vmem:[#allocation5 + $0x8] sm:$0xff]
    %v69 = vld [vmem:[#allocation5 + $0x10] sm:$0xff]
    %v70 = vld [vmem:[#allocation5 + $0x18] sm:$0xff]
    %v71 = vld [vmem:[%s2] sm:$0x1]
    %v73 = vlaneseq
    %v74 = vshrl.u32 %v73, 7
    %v75 = vsub.s32 0, %v74
    %v76 = vrot.slane %v71, %v75
    %vm78 = vcmask 261120
    %v80 = vsel %vm78, %v65, 0
    %v83 = vsel %vm78, %v66, 0
    %85 = vmatprep.subr.mxu0 0.0
    %86 = vmatpush1.msra.mxu0 0.0
    %87 = vmatprep.subr.mxu0 0.0
    %88 = vmatpush1.msra.mxu0 0.0
    %89 = vmatprep.subr.mxu0 0.0
    %90 = vmatpush1.msra.mxu0 0.0
    %91 = vmatprep.subr.mxu0 0.0
    %92 = vmatpush1.msra.mxu0 0.0
    %93 = vmatprep.subr.mxu0 0.0
    %94 = vmatpush1.msra.mxu0 0.0
    %95 = vmatprep.subr.mxu0 0.0
    %96 = vmatpush1.msra.mxu0 0.0
    %97 = vmatprep.subr.mxu0 0.0
    %98 = vmatpush1.msra.mxu0 0.0
    %99 = vmatprep.subr.mxu0 0.0
    %100 = vmatpush1.msra.mxu0 0.0
    %101 = vmatprep.subr.mxu0 0.0
    %102 = vmatpush1.msra.mxu0 0.0
    %103 = vmatprep.subr.mxu0 0.0
    %104 = vmatpush1.msra.mxu0 0.0
    %105 = vmatprep.subr.mxu0 0.0
    %106 = vmatpush1.msra.mxu0 0.0
    %107 = vmatprep.subr.mxu0 0.0
    %108 = vmatpush1.msra.mxu0 0.0
    %109 = vmatprep.subr.mxu0 0.0
    %v110 = vand.u32 %v70, 4294901760
    %111 = vmatpush1.msra.mxu0 %v110
    %112 = vmatprep.subr.mxu0 0.0
    %v113 = vand.u32 %v69, 4294901760
    %114 = vmatpush1.msra.mxu0 %v113
    %115 = vmatprep.subr.mxu0 0.0
    %v116 = vand.u32 %v68, 4294901760
    %117 = vmatpush1.msra.mxu0 %v116
    %118 = vmatprep.subr.mxu0 0.0
    %v119 = vand.u32 %v67, 4294901760
    %120 = vmatpush1.msra.mxu0 %v119
    %121 = vmatprep.subr.mxu0 0.0
    %122 = vmatpush2.msra.mxu0 0.0
    %123 = vmatprep.subr.mxu0 0.0
    %124 = vmatpush2.msra.mxu0 0.0
    %125 = vmatprep.subr.mxu0 0.0
    %126 = vmatpush2.msra.mxu0 0.0
    %127 = vmatprep.subr.mxu0 0.0
    %128 = vmatpush2.msra.mxu0 0.0
    %129 = vmatprep.subr.mxu0 0.0
    %130 = vmatpush2.msra.mxu0 0.0
    %131 = vmatprep.subr.mxu0 0.0
    %132 = vmatpush2.msra.mxu0 0.0
    %133 = vmatprep.subr.mxu0 0.0
    %134 = vmatpush2.msra.mxu0 0.0
    %135 = vmatprep.subr.mxu0 0.0
    %136 = vmatpush2.msra.mxu0 0.0
    %137 = vmatprep.subr.mxu0 0.0
    %138 = vmatpush2.msra.mxu0 0.0
    %139 = vmatprep.subr.mxu0 0.0
    %140 = vmatpush2.msra.mxu0 0.0
    %141 = vmatprep.subr.mxu0 0.0
    %142 = vmatpush2.msra.mxu0 0.0
    %143 = vmatprep.subr.mxu0 0.0
    %144 = vmatpush2.msra.mxu0 0.0
    %145 = vmatprep.subr.mxu0 0.0
    %146 = vmatpush2.msra.mxu0 0.0
    %147 = vmatprep.subr.mxu0 0.0
    %148 = vmatpush2.msra.mxu0 0.0
    %149 = vmatprep.subr.mxu0 0.0
    %150 = vmatpush2.msra.mxu0 0.0
    %151 = vmatprep.subr.mxu0 0.0
    %152 = vmatpush2.msra.mxu0 0.0
    %153 = vmatprep.mubr.f32.mxu0 0.0
    %v154 = vand.u32 %v80, 4294901760
    %v155 = vsub.f32 %v80, %v154
    %v156 = vand.u32 %v155, 4294901760
    %v157 = vsub.f32 %v155, %v156
    %v158 = vand.u32 %v157, 4294901760
    %159 = vmatmul.mubr.f32.gmra.mxu0 %v158
    %v160 = vpop.f32.mrf.mxu0
    %v161 = vadd.f32 %v76, %v160
    %v162 = vpop.f32.mrf.mxu0
    %163 = vmatprep.mubr.f32.mxu0 0.0
    %v164 = vand.u32 %v83, 4294901760
    %v165 = vsub.f32 %v83, %v164
    %v166 = vand.u32 %v165, 4294901760
    %v167 = vsub.f32 %v165, %v166
    %v168 = vand.u32 %v167, 4294901760
    %169 = vmatmul.mubr.f32.gmra.mxu0 %v168
    %v170 = vpop.f32.mrf.mxu0
    %v171 = vadd.f32 %v76, %v170
    %v172 = vpop.f32.mrf.mxu0
    %173 = vdwg.mxu0
    %174 = vmatprep.subr.mxu0 0.0
    %175 = vmatpush1.msra.mxu0 0.0
    %176 = vmatprep.subr.mxu0 0.0
    %177 = vmatpush1.msra.mxu0 0.0
    %178 = vmatprep.subr.mxu0 0.0
    %179 = vmatpush1.msra.mxu0 0.0
    %180 = vmatprep.subr.mxu0 0.0
    %181 = vmatpush1.msra.mxu0 0.0
    %182 = vmatprep.subr.mxu0 0.0
    %183 = vmatpush1.msra.mxu0 0.0
    %184 = vmatprep.subr.mxu0 0.0
    %185 = vmatpush1.msra.mxu0 0.0
    %186 = vmatprep.subr.mxu0 0.0
    %187 = vmatpush1.msra.mxu0 0.0
    %188 = vmatprep.subr.mxu0 0.0
    %189 = vmatpush1.msra.mxu0 0.0
    %190 = vmatprep.subr.mxu0 0.0
    %191 = vmatpush1.msra.mxu0 0.0
    %192 = vmatprep.subr.mxu0 0.0
    %193 = vmatpush1.msra.mxu0 0.0
    %194 = vmatprep.subr.mxu0 0.0
    %195 = vmatpush1.msra.mxu0 0.0
    %196 = vmatprep.subr.mxu0 0.0
    %197 = vmatpush1.msra.mxu0 0.0
    %198 = vmatprep.subr.mxu0 0.0
    %v199 = vand.u32 %v70, 4294901760
    %v200 = vsub.f32 %v70, %v199
    %v201 = vand.u32 %v200, 4294901760
    %v202 = vsub.f32 %v200, %v201
    %v203 = vand.u32 %v202, 4294901760
    %204 = vmatpush1.msra.mxu0 %v203
    %205 = vmatprep.subr.mxu0 0.0
    %v206 = vand.u32 %v69, 4294901760
    %v207 = vsub.f32 %v69, %v206
    %v208 = vand.u32 %v207, 4294901760
    %v209 = vsub.f32 %v207, %v208
    %v210 = vand.u32 %v209, 4294901760
    %211 = vmatpush1.msra.mxu0 %v210
    %212 = vmatprep.subr.mxu0 0.0
    %v213 = vand.u32 %v68, 4294901760
    %v214 = vsub.f32 %v68, %v213
    %v215 = vand.u32 %v214, 4294901760
    %v216 = vsub.f32 %v214, %v215
    %v217 = vand.u32 %v216, 4294901760
    %218 = vmatpush1.msra.mxu0 %v217
    %219 = vmatprep.subr.mxu0 0.0
    %v220 = vand.u32 %v67, 4294901760
    %v221 = vsub.f32 %v67, %v220
    %v222 = vand.u32 %v221, 4294901760
    %v223 = vsub.f32 %v221, %v222
    %v224 = vand.u32 %v223, 4294901760
    %225 = vmatpush1.msra.mxu0 %v224
    %226 = vmatprep.subr.mxu0 0.0
    %227 = vmatpush2.msra.mxu0 0.0
    %228 = vmatprep.subr.mxu0 0.0
    %229 = vmatpush2.msra.mxu0 0.0
    %230 = vmatprep.subr.mxu0 0.0
    %231 = vmatpush2.msra.mxu0 0.0
    %232 = vmatprep.subr.mxu0 0.0
    %233 = vmatpush2.msra.mxu0 0.0
    %234 = vmatprep.subr.mxu0 0.0
    %235 = vmatpush2.msra.mxu0 0.0
    %236 = vmatprep.subr.mxu0 0.0
    %237 = vmatpush2.msra.mxu0 0.0
    %238 = vmatprep.subr.mxu0 0.0
    %239 = vmatpush2.msra.mxu0 0.0
    %240 = vmatprep.subr.mxu0 0.0
    %241 = vmatpush2.msra.mxu0 0.0
    %242 = vmatprep.subr.mxu0 0.0
    %243 = vmatpush2.msra.mxu0 0.0
    %244 = vmatprep.subr.mxu0 0.0
    %245 = vmatpush2.msra.mxu0 0.0
    %246 = vmatprep.subr.mxu0 0.0
    %247 = vmatpush2.msra.mxu0 0.0
    %248 = vmatprep.subr.mxu0 0.0
    %249 = vmatpush2.msra.mxu0 0.0
    %250 = vmatprep.subr.mxu0 0.0
    %251 = vmatpush2.msra.mxu0 0.0
    %252 = vmatprep.subr.mxu0 0.0
    %253 = vmatpush2.msra.mxu0 0.0
    %254 = vmatprep.subr.mxu0 0.0
    %255 = vmatpush2.msra.mxu0 0.0
    %256 = vmatprep.subr.mxu0 0.0
    %257 = vmatpush2.msra.mxu0 0.0
    %258 = vmatprep.mubr.f32.mxu0 0.0
    %v259 = vand.u32 %v80, 4294901760
    %260 = vmatmul.mubr.f32.gmra.mxu0 %v259
    %v261 = vpop.f32.mrf.mxu0
    %v262 = vadd.f32 %v161, %v261
    %v263 = vpop.f32.mrf.mxu0
    %264 = vmatprep.mubr.f32.mxu0 0.0
    %v265 = vand.u32 %v83, 4294901760
    %266 = vmatmul.mubr.f32.gmra.mxu0 %v265
    %v267 = vpop.f32.mrf.mxu0
    %v268 = vadd.f32 %v171, %v267
    %v269 = vpop.f32.mrf.mxu0
    %270 = vdwg.mxu0
    %271 = vmatprep.subr.mxu0 0.0
    %272 = vmatpush1.msra.mxu0 0.0
    %273 = vmatprep.subr.mxu0 0.0
    %274 = vmatpush1.msra.mxu0 0.0
    %275 = vmatprep.subr.mxu0 0.0
    %276 = vmatpush1.msra.mxu0 0.0
    %277 = vmatprep.subr.mxu0 0.0
    %278 = vmatpush1.msra.mxu0 0.0
    %279 = vmatprep.subr.mxu0 0.0
    %280 = vmatpush1.msra.mxu0 0.0
    %281 = vmatprep.subr.mxu0 0.0
    %282 = vmatpush1.msra.mxu0 0.0
    %283 = vmatprep.subr.mxu0 0.0
    %284 = vmatpush1.msra.mxu0 0.0
    %285 = vmatprep.subr.mxu0 0.0
    %286 = vmatpush1.msra.mxu0 0.0
    %287 = vmatprep.subr.mxu0 0.0
    %288 = vmatpush1.msra.mxu0 0.0
    %289 = vmatprep.subr.mxu0 0.0
    %290 = vmatpush1.msra.mxu0 0.0
    %291 = vmatprep.subr.mxu0 0.0
    %292 = vmatpush1.msra.mxu0 0.0
    %293 = vmatprep.subr.mxu0 0.0
    %294 = vmatpush1.msra.mxu0 0.0
    %295 = vmatprep.subr.mxu0 0.0
    %v296 = vand.u32 %v70, 4294901760
    %v297 = vsub.f32 %v70, %v296
    %298 = vmatpush1.msra.mxu0 %v297
    %299 = vmatprep.subr.mxu0 0.0
    %v300 = vand.u32 %v69, 4294901760
    %v301 = vsub.f32 %v69, %v300
    %302 = vmatpush1.msra.mxu0 %v301
    %303 = vmatprep.subr.mxu0 0.0
    %v304 = vand.u32 %v68, 4294901760
    %v305 = vsub.f32 %v68, %v304
    %306 = vmatpush1.msra.mxu0 %v305
    %307 = vmatprep.subr.mxu0 0.0
    %v308 = vand.u32 %v67, 4294901760
    %v309 = vsub.f32 %v67, %v308
    %310 = vmatpush1.msra.mxu0 %v309
    %311 = vmatprep.subr.mxu0 0.0
    %312 = vmatpush2.msra.mxu0 0.0
    %313 = vmatprep.subr.mxu0 0.0
    %314 = vmatpush2.msra.mxu0 0.0
    %315 = vmatprep.subr.mxu0 0.0
    %316 = vmatpush2.msra.mxu0 0.0
    %317 = vmatprep.subr.mxu0 0.0
    %318 = vmatpush2.msra.mxu0 0.0
    %319 = vmatprep.subr.mxu0 0.0
    %320 = vmatpush2.msra.mxu0 0.0
    %321 = vmatprep.subr.mxu0 0.0
    %322 = vmatpush2.msra.mxu0 0.0
    %323 = vmatprep.subr.mxu0 0.0
    %324 = vmatpush2.msra.mxu0 0.0
    %325 = vmatprep.subr.mxu0 0.0
    %326 = vmatpush2.msra.mxu0 0.0
    %327 = vmatprep.subr.mxu0 0.0
    %328 = vmatpush2.msra.mxu0 0.0
    %329 = vmatprep.subr.mxu0 0.0
    %330 = vmatpush2.msra.mxu0 0.0
    %331 = vmatprep.subr.mxu0 0.0
    %332 = vmatpush2.msra.mxu0 0.0
    %333 = vmatprep.subr.mxu0 0.0
    %334 = vmatpush2.msra.mxu0 0.0
    %335 = vmatprep.subr.mxu0 0.0
    %336 = vmatpush2.msra.mxu0 0.0
    %337 = vmatprep.subr.mxu0 0.0
    %338 = vmatpush2.msra.mxu0 0.0
    %339 = vmatprep.subr.mxu0 0.0
    %340 = vmatpush2.msra.mxu0 0.0
    %341 = vmatprep.subr.mxu0 0.0
    %342 = vmatpush2.msra.mxu0 0.0
    %343 = vmatprep.mubr.f32.mxu0 0.0
    %v344 = vand.u32 %v80, 4294901760
    %v345 = vsub.f32 %v80, %v344
    %346 = vmatmul.mubr.f32.gmra.mxu0 %v345
    %v347 = vpop.f32.mrf.mxu0
    %v348 = vadd.f32 %v262, %v347
    %v349 = vpop.f32.mrf.mxu0
    %350 = vmatprep.mubr.f32.mxu0 0.0
    %v351 = vand.u32 %v83, 4294901760
    %v352 = vsub.f32 %v83, %v351
    %353 = vmatmul.mubr.f32.gmra.mxu0 %v352
    %v354 = vpop.f32.mrf.mxu0
    %v355 = vadd.f32 %v268, %v354
    %v356 = vpop.f32.mrf.mxu0
    %357 = vdwg.mxu0
    %358 = vmatprep.subr.mxu0 0.0
    %359 = vmatpush1.msra.mxu0 0.0
    %360 = vmatprep.subr.mxu0 0.0
    %361 = vmatpush1.msra.mxu0 0.0
    %362 = vmatprep.subr.mxu0 0.0
    %363 = vmatpush1.msra.mxu0 0.0
    %364 = vmatprep.subr.mxu0 0.0
    %365 = vmatpush1.msra.mxu0 0.0
    %366 = vmatprep.subr.mxu0 0.0
    %367 = vmatpush1.msra.mxu0 0.0
    %368 = vmatprep.subr.mxu0 0.0
    %369 = vmatpush1.msra.mxu0 0.0
    %370 = vmatprep.subr.mxu0 0.0
    %371 = vmatpush1.msra.mxu0 0.0
    %372 = vmatprep.subr.mxu0 0.0
    %373 = vmatpush1.msra.mxu0 0.0
    %374 = vmatprep.subr.mxu0 0.0
    %375 = vmatpush1.msra.mxu0 0.0
    %376 = vmatprep.subr.mxu0 0.0
    %377 = vmatpush1.msra.mxu0 0.0
    %378 = vmatprep.subr.mxu0 0.0
    %379 = vmatpush1.msra.mxu0 0.0
    %380 = vmatprep.subr.mxu0 0.0
    %381 = vmatpush1.msra.mxu0 0.0
    %382 = vmatprep.subr.mxu0 0.0
    %v383 = vand.u32 %v70, 4294901760
    %384 = vmatpush1.msra.mxu0 %v383
    %385 = vmatprep.subr.mxu0 0.0
    %v386 = vand.u32 %v69, 4294901760
    %387 = vmatpush1.msra.mxu0 %v386
    %388 = vmatprep.subr.mxu0 0.0
    %v389 = vand.u32 %v68, 4294901760
    %390 = vmatpush1.msra.mxu0 %v389
    %391 = vmatprep.subr.mxu0 0.0
    %v392 = vand.u32 %v67, 4294901760
    %393 = vmatpush1.msra.mxu0 %v392
    %394 = vmatprep.subr.mxu0 0.0
    %395 = vmatpush2.msra.mxu0 0.0
    %396 = vmatprep.subr.mxu0 0.0
    %397 = vmatpush2.msra.mxu0 0.0
    %398 = vmatprep.subr.mxu0 0.0
    %399 = vmatpush2.msra.mxu0 0.0
    %400 = vmatprep.subr.mxu0 0.0
    %401 = vmatpush2.msra.mxu0 0.0
    %402 = vmatprep.subr.mxu0 0.0
    %403 = vmatpush2.msra.mxu0 0.0
    %404 = vmatprep.subr.mxu0 0.0
    %405 = vmatpush2.msra.mxu0 0.0
    %406 = vmatprep.subr.mxu0 0.0
    %407 = vmatpush2.msra.mxu0 0.0
    %408 = vmatprep.subr.mxu0 0.0
    %409 = vmatpush2.msra.mxu0 0.0
    %410 = vmatprep.subr.mxu0 0.0
    %411 = vmatpush2.msra.mxu0 0.0
    %412 = vmatprep.subr.mxu0 0.0
    %413 = vmatpush2.msra.mxu0 0.0
    %414 = vmatprep.subr.mxu0 0.0
    %415 = vmatpush2.msra.mxu0 0.0
    %416 = vmatprep.subr.mxu0 0.0
    %417 = vmatpush2.msra.mxu0 0.0
    %418 = vmatprep.subr.mxu0 0.0
    %419 = vmatpush2.msra.mxu0 0.0
    %420 = vmatprep.subr.mxu0 0.0
    %421 = vmatpush2.msra.mxu0 0.0
    %422 = vmatprep.subr.mxu0 0.0
    %423 = vmatpush2.msra.mxu0 0.0
    %424 = vmatprep.subr.mxu0 0.0
    %425 = vmatpush2.msra.mxu0 0.0
    %426 = vmatprep.mubr.f32.mxu0 0.0
    %v427 = vand.u32 %v80, 4294901760
    %v428 = vsub.f32 %v80, %v427
    %v429 = vand.u32 %v428, 4294901760
    %430 = vmatmul.mubr.f32.gmra.mxu0 %v429
    %v431 = vpop.f32.mrf.mxu0
    %v432 = vadd.f32 %v348, %v431
    %v433 = vpop.f32.mrf.mxu0
    %434 = vmatprep.mubr.f32.mxu0 0.0
    %v435 = vand.u32 %v83, 4294901760
    %v436 = vsub.f32 %v83, %v435
    %v437 = vand.u32 %v436, 4294901760
    %438 = vmatmul.mubr.f32.gmra.mxu0 %v437
    %v439 = vpop.f32.mrf.mxu0
    %v440 = vadd.f32 %v355, %v439
    %v441 = vpop.f32.mrf.mxu0
    %442 = vdwg.mxu0
    %443 = vmatprep.subr.mxu0 0.0
    %444 = vmatpush1.msra.mxu0 0.0
    %445 = vmatprep.subr.mxu0 0.0
    %446 = vmatpush1.msra.mxu0 0.0
    %447 = vmatprep.subr.mxu0 0.0
    %448 = vmatpush1.msra.mxu0 0.0
    %449 = vmatprep.subr.mxu0 0.0
    %450 = vmatpush1.msra.mxu0 0.0
    %451 = vmatprep.subr.mxu0 0.0
    %452 = vmatpush1.msra.mxu0 0.0
    %453 = vmatprep.subr.mxu0 0.0
    %454 = vmatpush1.msra.mxu0 0.0
    %455 = vmatprep.subr.mxu0 0.0
    %456 = vmatpush1.msra.mxu0 0.0
    %457 = vmatprep.subr.mxu0 0.0
    %458 = vmatpush1.msra.mxu0 0.0
    %459 = vmatprep.subr.mxu0 0.0
    %460 = vmatpush1.msra.mxu0 0.0
    %461 = vmatprep.subr.mxu0 0.0
    %462 = vmatpush1.msra.mxu0 0.0
    %463 = vmatprep.subr.mxu0 0.0
    %464 = vmatpush1.msra.mxu0 0.0
    %465 = vmatprep.subr.mxu0 0.0
    %466 = vmatpush1.msra.mxu0 0.0
    %467 = vmatprep.subr.mxu0 0.0
    %v468 = vand.u32 %v70, 4294901760
    %v469 = vsub.f32 %v70, %v468
    %v470 = vand.u32 %v469, 4294901760
    %471 = vmatpush1.msra.mxu0 %v470
    %472 = vmatprep.subr.mxu0 0.0
    %v473 = vand.u32 %v69, 4294901760
    %v474 = vsub.f32 %v69, %v473
    %v475 = vand.u32 %v474, 4294901760
    %476 = vmatpush1.msra.mxu0 %v475
    %477 = vmatprep.subr.mxu0 0.0
    %v478 = vand.u32 %v68, 4294901760
    %v479 = vsub.f32 %v68, %v478
    %v480 = vand.u32 %v479, 4294901760
    %481 = vmatpush1.msra.mxu0 %v480
    %482 = vmatprep.subr.mxu0 0.0
    %v483 = vand.u32 %v67, 4294901760
    %v484 = vsub.f32 %v67, %v483
    %v485 = vand.u32 %v484, 4294901760
    %486 = vmatpush1.msra.mxu0 %v485
    %487 = vmatprep.subr.mxu0 0.0
    %488 = vmatpush2.msra.mxu0 0.0
    %489 = vmatprep.subr.mxu0 0.0
    %490 = vmatpush2.msra.mxu0 0.0
    %491 = vmatprep.subr.mxu0 0.0
    %492 = vmatpush2.msra.mxu0 0.0
    %493 = vmatprep.subr.mxu0 0.0
    %494 = vmatpush2.msra.mxu0 0.0
    %495 = vmatprep.subr.mxu0 0.0
    %496 = vmatpush2.msra.mxu0 0.0
    %497 = vmatprep.subr.mxu0 0.0
    %498 = vmatpush2.msra.mxu0 0.0
    %499 = vmatprep.subr.mxu0 0.0
    %500 = vmatpush2.msra.mxu0 0.0
    %501 = vmatprep.subr.mxu0 0.0
    %502 = vmatpush2.msra.mxu0 0.0
    %503 = vmatprep.subr.mxu0 0.0
    %504 = vmatpush2.msra.mxu0 0.0
    %505 = vmatprep.subr.mxu0 0.0
    %506 = vmatpush2.msra.mxu0 0.0
    %507 = vmatprep.subr.mxu0 0.0
    %508 = vmatpush2.msra.mxu0 0.0
    %509 = vmatprep.subr.mxu0 0.0
    %510 = vmatpush2.msra.mxu0 0.0
    %511 = vmatprep.subr.mxu0 0.0
    %512 = vmatpush2.msra.mxu0 0.0
    %513 = vmatprep.subr.mxu0 0.0
    %514 = vmatpush2.msra.mxu0 0.0
    %515 = vmatprep.subr.mxu0 0.0
    %516 = vmatpush2.msra.mxu0 0.0
    %517 = vmatprep.subr.mxu0 0.0
    %518 = vmatpush2.msra.mxu0 0.0
    %519 = vmatprep.mubr.f32.mxu0 0.0
    %v520 = vand.u32 %v80, 4294901760
    %521 = vmatmul.mubr.f32.gmra.mxu0 %v520
    %v522 = vpop.f32.mrf.mxu0
    %v523 = vadd.f32 %v432, %v522
    %v524 = vpop.f32.mrf.mxu0
    %525 = vmatprep.mubr.f32.mxu0 0.0
    %v526 = vand.u32 %v83, 4294901760
    %527 = vmatmul.mubr.f32.gmra.mxu0 %v526
    %v528 = vpop.f32.mrf.mxu0
    %v529 = vadd.f32 %v440, %v528
    %v530 = vpop.f32.mrf.mxu0
    %531 = vdwg.mxu0
    %532 = vmatprep.subr.mxu0 0.0
    %533 = vmatpush1.msra.mxu0 0.0
    %534 = vmatprep.subr.mxu0 0.0
    %535 = vmatpush1.msra.mxu0 0.0
    %536 = vmatprep.subr.mxu0 0.0
    %537 = vmatpush1.msra.mxu0 0.0
    %538 = vmatprep.subr.mxu0 0.0
    %539 = vmatpush1.msra.mxu0 0.0
    %540 = vmatprep.subr.mxu0 0.0
    %541 = vmatpush1.msra.mxu0 0.0
    %542 = vmatprep.subr.mxu0 0.0
    %543 = vmatpush1.msra.mxu0 0.0
    %544 = vmatprep.subr.mxu0 0.0
    %545 = vmatpush1.msra.mxu0 0.0
    %546 = vmatprep.subr.mxu0 0.0
    %547 = vmatpush1.msra.mxu0 0.0
    %548 = vmatprep.subr.mxu0 0.0
    %549 = vmatpush1.msra.mxu0 0.0
    %550 = vmatprep.subr.mxu0 0.0
    %551 = vmatpush1.msra.mxu0 0.0
    %552 = vmatprep.subr.mxu0 0.0
    %553 = vmatpush1.msra.mxu0 0.0
    %554 = vmatprep.subr.mxu0 0.0
    %555 = vmatpush1.msra.mxu0 0.0
    %556 = vmatprep.subr.mxu0 0.0
    %v557 = vand.u32 %v70, 4294901760
    %558 = vmatpush1.msra.mxu0 %v557
    %559 = vmatprep.subr.mxu0 0.0
    %v560 = vand.u32 %v69, 4294901760
    %561 = vmatpush1.msra.mxu0 %v560
    %562 = vmatprep.subr.mxu0 0.0
    %v563 = vand.u32 %v68, 4294901760
    %564 = vmatpush1.msra.mxu0 %v563
    %565 = vmatprep.subr.mxu0 0.0
    %v566 = vand.u32 %v67, 4294901760
    %567 = vmatpush1.msra.mxu0 %v566
    %568 = vmatprep.subr.mxu0 0.0
    %569 = vmatpush2.msra.mxu0 0.0
    %570 = vmatprep.subr.mxu0 0.0
    %571 = vmatpush2.msra.mxu0 0.0
    %572 = vmatprep.subr.mxu0 0.0
    %573 = vmatpush2.msra.mxu0 0.0
    %574 = vmatprep.subr.mxu0 0.0
    %575 = vmatpush2.msra.mxu0 0.0
    %576 = vmatprep.subr.mxu0 0.0
    %577 = vmatpush2.msra.mxu0 0.0
    %578 = vmatprep.subr.mxu0 0.0
    %579 = vmatpush2.msra.mxu0 0.0
    %580 = vmatprep.subr.mxu0 0.0
    %581 = vmatpush2.msra.mxu0 0.0
    %582 = vmatprep.subr.mxu0 0.0
    %583 = vmatpush2.msra.mxu0 0.0
    %584 = vmatprep.subr.mxu0 0.0
    %585 = vmatpush2.msra.mxu0 0.0
    %586 = vmatprep.subr.mxu0 0.0
    %587 = vmatpush2.msra.mxu0 0.0
    %588 = vmatprep.subr.mxu0 0.0
    %589 = vmatpush2.msra.mxu0 0.0
    %590 = vmatprep.subr.mxu0 0.0
    %591 = vmatpush2.msra.mxu0 0.0
    %592 = vmatprep.subr.mxu0 0.0
    %593 = vmatpush2.msra.mxu0 0.0
    %594 = vmatprep.subr.mxu0 0.0
    %595 = vmatpush2.msra.mxu0 0.0
    %596 = vmatprep.subr.mxu0 0.0
    %597 = vmatpush2.msra.mxu0 0.0
    %598 = vmatprep.subr.mxu0 0.0
    %599 = vmatpush2.msra.mxu0 0.0
    %600 = vmatprep.mubr.f32.mxu0 0.0
    %v601 = vand.u32 %v80, 4294901760
    %602 = vmatmul.mubr.f32.gmra.mxu0 %v601
    %v603 = vpop.f32.mrf.mxu0
    %v604 = vadd.f32 %v523, %v603
    %v605 = vpop.f32.mrf.mxu0
    %606 = vmatprep.mubr.f32.mxu0 0.0
    %v607 = vand.u32 %v83, 4294901760
    %608 = vmatmul.mubr.f32.gmra.mxu0 %v607
    %v609 = vpop.f32.mrf.mxu0
    %v610 = vadd.f32 %v529, %v609
    %v611 = vpop.f32.mrf.mxu0
    %612 = vdwg.mxu0
    %615 = vrot.lane.b32.xlu0 %v604, 120
    %v616 = vpop.permute.xlu0 %615
    %617 = vrot.lane.b32.xlu0 %v610, 120
    %v618 = vpop.permute.xlu0 %617
    %619 = vrot.lane.b32.xlu0 %v604, 112
    %v620 = vpop.permute.xlu0 %619
    %621 = vrot.lane.b32.xlu0 %v610, 112
    %v622 = vpop.permute.xlu0 %621
    %623 = vrot.lane.b32.xlu0 %v604, 104
    %v624 = vpop.permute.xlu0 %623
    %625 = vrot.lane.b32.xlu0 %v610, 104
    %v626 = vpop.permute.xlu0 %625
    %627 = vrot.lane.b32.xlu0 %v604, 96
    %v628 = vpop.permute.xlu0 %627
    %vm629 = vcmask 64512
    %v630 = vsel %vm629, %v604, 0
    %v632 = vsel %vm629, %v628, 0
    %634 = vmatprep.subr.mxu0 0.0
    %635 = vmatpush1.xpose.msra.mxu0 0.0
    %636 = vmatprep.subr.mxu0 0.0
    %637 = vmatpush1.xpose.msra.mxu0 0.0
    %638 = vmatprep.subr.mxu0 0.0
    %639 = vmatpush1.xpose.msra.mxu0 0.0
    %640 = vmatprep.subr.mxu0 0.0
    %641 = vmatpush1.xpose.msra.mxu0 0.0
    %642 = vmatprep.subr.mxu0 0.0
    %643 = vmatpush1.xpose.msra.mxu0 0.0
    %644 = vmatprep.subr.mxu0 0.0
    %645 = vmatpush1.xpose.msra.mxu0 0.0
    %646 = vmatprep.subr.mxu0 0.0
    %647 = vmatpush1.xpose.msra.mxu0 0.0
    %648 = vmatprep.subr.mxu0 0.0
    %649 = vmatpush1.xpose.msra.mxu0 0.0
    %650 = vmatprep.subr.mxu0 0.0
    %651 = vmatpush1.xpose.msra.mxu0 0.0
    %652 = vmatprep.subr.mxu0 0.0
    %653 = vmatpush1.xpose.msra.mxu0 0.0
    %654 = vmatprep.subr.mxu0 0.0
    %655 = vmatpush1.xpose.msra.mxu0 0.0
    %656 = vmatprep.subr.mxu0 0.0
    %657 = vmatpush1.xpose.msra.mxu0 0.0
    %658 = vmatprep.subr.mxu0 0.0
    %659 = vmatpush1.xpose.msra.mxu0 0.0
    %660 = vmatprep.subr.mxu0 0.0
    %661 = vmatpush1.xpose.msra.mxu0 0.0
    %662 = vmatprep.subr.mxu0 0.0
    %663 = vmatpush1.xpose.msra.mxu0 0.0
    %664 = vmatprep.subr.mxu0 0.0
    %v665 = vand.u32 %v632, 4294901760
    %666 = vmatpush1.xpose.msra.mxu0 %v665
    %667 = vmatprep.subr.mxu0 0.0
    %668 = vmatpush2.xpose.msra.mxu0 0.0
    %669 = vmatprep.subr.mxu0 0.0
    %670 = vmatpush2.xpose.msra.mxu0 0.0
    %671 = vmatprep.subr.mxu0 0.0
    %672 = vmatpush2.xpose.msra.mxu0 0.0
    %673 = vmatprep.subr.mxu0 0.0
    %674 = vmatpush2.xpose.msra.mxu0 0.0
    %675 = vmatprep.subr.mxu0 0.0
    %676 = vmatpush2.xpose.msra.mxu0 0.0
    %677 = vmatprep.subr.mxu0 0.0
    %678 = vmatpush2.xpose.msra.mxu0 0.0
    %679 = vmatprep.subr.mxu0 0.0
    %680 = vmatpush2.xpose.msra.mxu0 0.0
    %681 = vmatprep.subr.mxu0 0.0
    %682 = vmatpush2.xpose.msra.mxu0 0.0
    %683 = vmatprep.subr.mxu0 0.0
    %684 = vmatpush2.xpose.msra.mxu0 0.0
    %685 = vmatprep.subr.mxu0 0.0
    %686 = vmatpush2.xpose.msra.mxu0 0.0
    %687 = vmatprep.subr.mxu0 0.0
    %688 = vmatpush2.xpose.msra.mxu0 0.0
    %689 = vmatprep.subr.mxu0 0.0
    %690 = vmatpush2.xpose.msra.mxu0 0.0
    %691 = vmatprep.subr.mxu0 0.0
    %692 = vmatpush2.xpose.msra.mxu0 0.0
    %693 = vmatprep.subr.mxu0 0.0
    %694 = vmatpush2.xpose.msra.mxu0 0.0
    %695 = vmatprep.subr.mxu0 0.0
    %696 = vmatpush2.xpose.msra.mxu0 0.0
    %697 = vmatprep.subr.mxu0 0.0
    %698 = vmatpush2.xpose.msra.mxu0 0.0
    %699 = vmatprep.mubr.f32.mxu0 0.0
    %v700 = vand.u32 %v630, 4294901760
    %v701 = vsub.f32 %v630, %v700
    %v702 = vand.u32 %v701, 4294901760
    %v703 = vsub.f32 %v701, %v702
    %v704 = vand.u32 %v703, 4294901760
    %705 = vmatmul.mubr.f32.gmra.mxu0 %v704
    %v706 = vpop.f32.mrf.mxu0
    %v707 = vadd.f32 0.0, %v706
    %v708 = vpop.f32.mrf.mxu0
    %709 = vdwg.mxu0
    %710 = vmatprep.subr.mxu0 0.0
    %711 = vmatpush1.xpose.msra.mxu0 0.0
    %712 = vmatprep.subr.mxu0 0.0
    %713 = vmatpush1.xpose.msra.mxu0 0.0
    %714 = vmatprep.subr.mxu0 0.0
    %715 = vmatpush1.xpose.msra.mxu0 0.0
    %716 = vmatprep.subr.mxu0 0.0
    %717 = vmatpush1.xpose.msra.mxu0 0.0
    %718 = vmatprep.subr.mxu0 0.0
    %719 = vmatpush1.xpose.msra.mxu0 0.0
    %720 = vmatprep.subr.mxu0 0.0
    %721 = vmatpush1.xpose.msra.mxu0 0.0
    %722 = vmatprep.subr.mxu0 0.0
    %723 = vmatpush1.xpose.msra.mxu0 0.0
    %724 = vmatprep.subr.mxu0 0.0
    %725 = vmatpush1.xpose.msra.mxu0 0.0
    %726 = vmatprep.subr.mxu0 0.0
    %727 = vmatpush1.xpose.msra.mxu0 0.0
    %728 = vmatprep.subr.mxu0 0.0
    %729 = vmatpush1.xpose.msra.mxu0 0.0
    %730 = vmatprep.subr.mxu0 0.0
    %731 = vmatpush1.xpose.msra.mxu0 0.0
    %732 = vmatprep.subr.mxu0 0.0
    %733 = vmatpush1.xpose.msra.mxu0 0.0
    %734 = vmatprep.subr.mxu0 0.0
    %735 = vmatpush1.xpose.msra.mxu0 0.0
    %736 = vmatprep.subr.mxu0 0.0
    %737 = vmatpush1.xpose.msra.mxu0 0.0
    %738 = vmatprep.subr.mxu0 0.0
    %739 = vmatpush1.xpose.msra.mxu0 0.0
    %740 = vmatprep.subr.mxu0 0.0
    %v741 = vand.u32 %v632, 4294901760
    %v742 = vsub.f32 %v632, %v741
    %v743 = vand.u32 %v742, 4294901760
    %v744 = vsub.f32 %v742, %v743
    %v745 = vand.u32 %v744, 4294901760
    %746 = vmatpush1.xpose.msra.mxu0 %v745
    %747 = vmatprep.subr.mxu0 0.0
    %748 = vmatpush2.xpose.msra.mxu0 0.0
    %749 = vmatprep.subr.mxu0 0.0
    %750 = vmatpush2.xpose.msra.mxu0 0.0
    %751 = vmatprep.subr.mxu0 0.0
    %752 = vmatpush2.xpose.msra.mxu0 0.0
    %753 = vmatprep.subr.mxu0 0.0
    %754 = vmatpush2.xpose.msra.mxu0 0.0
    %755 = vmatprep.subr.mxu0 0.0
    %756 = vmatpush2.xpose.msra.mxu0 0.0
    %757 = vmatprep.subr.mxu0 0.0
    %758 = vmatpush2.xpose.msra.mxu0 0.0
    %759 = vmatprep.subr.mxu0 0.0
    %760 = vmatpush2.xpose.msra.mxu0 0.0
    %761 = vmatprep.subr.mxu0 0.0
    %762 = vmatpush2.xpose.msra.mxu0 0.0
    %763 = vmatprep.subr.mxu0 0.0
    %764 = vmatpush2.xpose.msra.mxu0 0.0
    %765 = vmatprep.subr.mxu0 0.0
    %766 = vmatpush2.xpose.msra.mxu0 0.0
    %767 = vmatprep.subr.mxu0 0.0
    %768 = vmatpush2.xpose.msra.mxu0 0.0
    %769 = vmatprep.subr.mxu0 0.0
    %770 = vmatpush2.xpose.msra.mxu0 0.0
    %771 = vmatprep.subr.mxu0 0.0
    %772 = vmatpush2.xpose.msra.mxu0 0.0
    %773 = vmatprep.subr.mxu0 0.0
    %774 = vmatpush2.xpose.msra.mxu0 0.0
    %775 = vmatprep.subr.mxu0 0.0
    %776 = vmatpush2.xpose.msra.mxu0 0.0
    %777 = vmatprep.subr.mxu0 0.0
    %778 = vmatpush2.xpose.msra.mxu0 0.0
    %779 = vmatprep.mubr.f32.mxu0 0.0
    %v780 = vand.u32 %v630, 4294901760
    %781 = vmatmul.mubr.f32.gmra.mxu0 %v780
    %v782 = vpop.f32.mrf.mxu0
    %v783 = vadd.f32 %v707, %v782
    %v784 = vpop.f32.mrf.mxu0
    %785 = vdwg.mxu0
    %786 = vmatprep.subr.mxu0 0.0
    %787 = vmatpush1.xpose.msra.mxu0 0.0
    %788 = vmatprep.subr.mxu0 0.0
    %789 = vmatpush1.xpose.msra.mxu0 0.0
    %790 = vmatprep.subr.mxu0 0.0
    %791 = vmatpush1.xpose.msra.mxu0 0.0
    %792 = vmatprep.subr.mxu0 0.0
    %793 = vmatpush1.xpose.msra.mxu0 0.0
    %794 = vmatprep.subr.mxu0 0.0
    %795 = vmatpush1.xpose.msra.mxu0 0.0
    %796 = vmatprep.subr.mxu0 0.0
    %797 = vmatpush1.xpose.msra.mxu0 0.0
    %798 = vmatprep.subr.mxu0 0.0
    %799 = vmatpush1.xpose.msra.mxu0 0.0
    %800 = vmatprep.subr.mxu0 0.0
    %801 = vmatpush1.xpose.msra.mxu0 0.0
    %802 = vmatprep.subr.mxu0 0.0
    %803 = vmatpush1.xpose.msra.mxu0 0.0
    %804 = vmatprep.subr.mxu0 0.0
    %805 = vmatpush1.xpose.msra.mxu0 0.0
    %806 = vmatprep.subr.mxu0 0.0
    %807 = vmatpush1.xpose.msra.mxu0 0.0
    %808 = vmatprep.subr.mxu0 0.0
    %809 = vmatpush1.xpose.msra.mxu0 0.0
    %810 = vmatprep.subr.mxu0 0.0
    %811 = vmatpush1.xpose.msra.mxu0 0.0
    %812 = vmatprep.subr.mxu0 0.0
    %813 = vmatpush1.xpose.msra.mxu0 0.0
    %814 = vmatprep.subr.mxu0 0.0
    %815 = vmatpush1.xpose.msra.mxu0 0.0
    %816 = vmatprep.subr.mxu0 0.0
    %v817 = vand.u32 %v632, 4294901760
    %v818 = vsub.f32 %v632, %v817
    %819 = vmatpush1.xpose.msra.mxu0 %v818
    %820 = vmatprep.subr.mxu0 0.0
    %821 = vmatpush2.xpose.msra.mxu0 0.0
    %822 = vmatprep.subr.mxu0 0.0
    %823 = vmatpush2.xpose.msra.mxu0 0.0
    %824 = vmatprep.subr.mxu0 0.0
    %825 = vmatpush2.xpose.msra.mxu0 0.0
    %826 = vmatprep.subr.mxu0 0.0
    %827 = vmatpush2.xpose.msra.mxu0 0.0
    %828 = vmatprep.subr.mxu0 0.0
    %829 = vmatpush2.xpose.msra.mxu0 0.0
    %830 = vmatprep.subr.mxu0 0.0
    %831 = vmatpush2.xpose.msra.mxu0 0.0
    %832 = vmatprep.subr.mxu0 0.0
    %833 = vmatpush2.xpose.msra.mxu0 0.0
    %834 = vmatprep.subr.mxu0 0.0
    %835 = vmatpush2.xpose.msra.mxu0 0.0
    %836 = vmatprep.subr.mxu0 0.0
    %837 = vmatpush2.xpose.msra.mxu0 0.0
    %838 = vmatprep.subr.mxu0 0.0
    %839 = vmatpush2.xpose.msra.mxu0 0.0
    %840 = vmatprep.subr.mxu0 0.0
    %841 = vmatpush2.xpose.msra.mxu0 0.0
    %842 = vmatprep.subr.mxu0 0.0
    %843 = vmatpush2.xpose.msra.mxu0 0.0
    %844 = vmatprep.subr.mxu0 0.0
    %845 = vmatpush2.xpose.msra.mxu0 0.0
    %846 = vmatprep.subr.mxu0 0.0
    %847 = vmatpush2.xpose.msra.mxu0 0.0
    %848 = vmatprep.subr.mxu0 0.0
    %849 = vmatpush2.xpose.msra.mxu0 0.0
    %850 = vmatprep.subr.mxu0 0.0
    %851 = vmatpush2.xpose.msra.mxu0 0.0
    %852 = vmatprep.mubr.f32.mxu0 0.0
    %v853 = vand.u32 %v630, 4294901760
    %v854 = vsub.f32 %v630, %v853
    %855 = vmatmul.mubr.f32.gmra.mxu0 %v854
    %v856 = vpop.f32.mrf.mxu0
    %v857 = vadd.f32 %v783, %v856
    %v858 = vpop.f32.mrf.mxu0
    %859 = vdwg.mxu0
    %860 = vmatprep.subr.mxu0 0.0
    %861 = vmatpush1.xpose.msra.mxu0 0.0
    %862 = vmatprep.subr.mxu0 0.0
    %863 = vmatpush1.xpose.msra.mxu0 0.0
    %864 = vmatprep.subr.mxu0 0.0
    %865 = vmatpush1.xpose.msra.mxu0 0.0
    %866 = vmatprep.subr.mxu0 0.0
    %867 = vmatpush1.xpose.msra.mxu0 0.0
    %868 = vmatprep.subr.mxu0 0.0
    %869 = vmatpush1.xpose.msra.mxu0 0.0
    %870 = vmatprep.subr.mxu0 0.0
    %871 = vmatpush1.xpose.msra.mxu0 0.0
    %872 = vmatprep.subr.mxu0 0.0
    %873 = vmatpush1.xpose.msra.mxu0 0.0
    %874 = vmatprep.subr.mxu0 0.0
    %875 = vmatpush1.xpose.msra.mxu0 0.0
    %876 = vmatprep.subr.mxu0 0.0
    %877 = vmatpush1.xpose.msra.mxu0 0.0
    %878 = vmatprep.subr.mxu0 0.0
    %879 = vmatpush1.xpose.msra.mxu0 0.0
    %880 = vmatprep.subr.mxu0 0.0
    %881 = vmatpush1.xpose.msra.mxu0 0.0
    %882 = vmatprep.subr.mxu0 0.0
    %883 = vmatpush1.xpose.msra.mxu0 0.0
    %884 = vmatprep.subr.mxu0 0.0
    %885 = vmatpush1.xpose.msra.mxu0 0.0
    %886 = vmatprep.subr.mxu0 0.0
    %887 = vmatpush1.xpose.msra.mxu0 0.0
    %888 = vmatprep.subr.mxu0 0.0
    %889 = vmatpush1.xpose.msra.mxu0 0.0
    %890 = vmatprep.subr.mxu0 0.0
    %v891 = vand.u32 %v632, 4294901760
    %892 = vmatpush1.xpose.msra.mxu0 %v891
    %893 = vmatprep.subr.mxu0 0.0
    %894 = vmatpush2.xpose.msra.mxu0 0.0
    %895 = vmatprep.subr.mxu0 0.0
    %896 = vmatpush2.xpose.msra.mxu0 0.0
    %897 = vmatprep.subr.mxu0 0.0
    %898 = vmatpush2.xpose.msra.mxu0 0.0
    %899 = vmatprep.subr.mxu0 0.0
    %900 = vmatpush2.xpose.msra.mxu0 0.0
    %901 = vmatprep.subr.mxu0 0.0
    %902 = vmatpush2.xpose.msra.mxu0 0.0
    %903 = vmatprep.subr.mxu0 0.0
    %904 = vmatpush2.xpose.msra.mxu0 0.0
    %905 = vmatprep.subr.mxu0 0.0
    %906 = vmatpush2.xpose.msra.mxu0 0.0
    %907 = vmatprep.subr.mxu0 0.0
    %908 = vmatpush2.xpose.msra.mxu0 0.0
    %909 = vmatprep.subr.mxu0 0.0
    %910 = vmatpush2.xpose.msra.mxu0 0.0
    %911 = vmatprep.subr.mxu0 0.0
    %912 = vmatpush2.xpose.msra.mxu0 0.0
    %913 = vmatprep.subr.mxu0 0.0
    %914 = vmatpush2.xpose.msra.mxu0 0.0
    %915 = vmatprep.subr.mxu0 0.0
    %916 = vmatpush2.xpose.msra.mxu0 0.0
    %917 = vmatprep.subr.mxu0 0.0
    %918 = vmatpush2.xpose.msra.mxu0 0.0
    %919 = vmatprep.subr.mxu0 0.0
    %920 = vmatpush2.xpose.msra.mxu0 0.0
    %921 = vmatprep.subr.mxu0 0.0
    %922 = vmatpush2.xpose.msra.mxu0 0.0
    %923 = vmatprep.subr.mxu0 0.0
    %924 = vmatpush2.xpose.msra.mxu0 0.0
    %925 = vmatprep.mubr.f32.mxu0 0.0
    %v926 = vand.u32 %v630, 4294901760
    %v927 = vsub.f32 %v630, %v926
    %v928 = vand.u32 %v927, 4294901760
    %929 = vmatmul.mubr.f32.gmra.mxu0 %v928
    %v930 = vpop.f32.mrf.mxu0
    %v931 = vadd.f32 %v857, %v930
    %v932 = vpop.f32.mrf.mxu0
    %933 = vdwg.mxu0
    %934 = vmatprep.subr.mxu0 0.0
    %935 = vmatpush1.xpose.msra.mxu0 0.0
    %936 = vmatprep.subr.mxu0 0.0
    %937 = vmatpush1.xpose.msra.mxu0 0.0
    %938 = vmatprep.subr.mxu0 0.0
    %939 = vmatpush1.xpose.msra.mxu0 0.0
    %940 = vmatprep.subr.mxu0 0.0
    %941 = vmatpush1.xpose.msra.mxu0 0.0
    %942 = vmatprep.subr.mxu0 0.0
    %943 = vmatpush1.xpose.msra.mxu0 0.0
    %944 = vmatprep.subr.mxu0 0.0
    %945 = vmatpush1.xpose.msra.mxu0 0.0
    %946 = vmatprep.subr.mxu0 0.0
    %947 = vmatpush1.xpose.msra.mxu0 0.0
    %948 = vmatprep.subr.mxu0 0.0
    %949 = vmatpush1.xpose.msra.mxu0 0.0
    %950 = vmatprep.subr.mxu0 0.0
    %951 = vmatpush1.xpose.msra.mxu0 0.0
    %952 = vmatprep.subr.mxu0 0.0
    %953 = vmatpush1.xpose.msra.mxu0 0.0
    %954 = vmatprep.subr.mxu0 0.0
    %955 = vmatpush1.xpose.msra.mxu0 0.0
    %956 = vmatprep.subr.mxu0 0.0
    %957 = vmatpush1.xpose.msra.mxu0 0.0
    %958 = vmatprep.subr.mxu0 0.0
    %959 = vmatpush1.xpose.msra.mxu0 0.0
    %960 = vmatprep.subr.mxu0 0.0
    %961 = vmatpush1.xpose.msra.mxu0 0.0
    %962 = vmatprep.subr.mxu0 0.0
    %963 = vmatpush1.xpose.msra.mxu0 0.0
    %964 = vmatprep.subr.mxu0 0.0
    %v965 = vand.u32 %v632, 4294901760
    %v966 = vsub.f32 %v632, %v965
    %v967 = vand.u32 %v966, 4294901760
    %968 = vmatpush1.xpose.msra.mxu0 %v967
    %969 = vmatprep.subr.mxu0 0.0
    %970 = vmatpush2.xpose.msra.mxu0 0.0
    %971 = vmatprep.subr.mxu0 0.0
    %972 = vmatpush2.xpose.msra.mxu0 0.0
    %973 = vmatprep.subr.mxu0 0.0
    %974 = vmatpush2.xpose.msra.mxu0 0.0
    %975 = vmatprep.subr.mxu0 0.0
    %976 = vmatpush2.xpose.msra.mxu0 0.0
    %977 = vmatprep.subr.mxu0 0.0
    %978 = vmatpush2.xpose.msra.mxu0 0.0
    %979 = vmatprep.subr.mxu0 0.0
    %980 = vmatpush2.xpose.msra.mxu0 0.0
    %981 = vmatprep.subr.mxu0 0.0
    %982 = vmatpush2.xpose.msra.mxu0 0.0
    %983 = vmatprep.subr.mxu0 0.0
    %984 = vmatpush2.xpose.msra.mxu0 0.0
    %985 = vmatprep.subr.mxu0 0.0
    %986 = vmatpush2.xpose.msra.mxu0 0.0
    %987 = vmatprep.subr.mxu0 0.0
    %988 = vmatpush2.xpose.msra.mxu0 0.0
    %989 = vmatprep.subr.mxu0 0.0
    %990 = vmatpush2.xpose.msra.mxu0 0.0
    %991 = vmatprep.subr.mxu0 0.0
    %992 = vmatpush2.xpose.msra.mxu0 0.0
    %993 = vmatprep.subr.mxu0 0.0
    %994 = vmatpush2.xpose.msra.mxu0 0.0
    %995 = vmatprep.subr.mxu0 0.0
    %996 = vmatpush2.xpose.msra.mxu0 0.0
    %997 = vmatprep.subr.mxu0 0.0
    %998 = vmatpush2.xpose.msra.mxu0 0.0
    %999 = vmatprep.subr.mxu0 0.0
    %1000 = vmatpush2.xpose.msra.mxu0 0.0
    %1001 = vmatprep.mubr.f32.mxu0 0.0
    %v1002 = vand.u32 %v630, 4294901760
    %1003 = vmatmul.mubr.f32.gmra.mxu0 %v1002
    %v1004 = vpop.f32.mrf.mxu0
    %v1005 = vadd.f32 %v931, %v1004
    %v1006 = vpop.f32.mrf.mxu0
    %1007 = vdwg.mxu0
    %1008 = vmatprep.subr.mxu0 0.0
    %1009 = vmatpush1.xpose.msra.mxu0 0.0
    %1010 = vmatprep.subr.mxu0 0.0
    %1011 = vmatpush1.xpose.msra.mxu0 0.0
    %1012 = vmatprep.subr.mxu0 0.0
    %1013 = vmatpush1.xpose.msra.mxu0 0.0
    %1014 = vmatprep.subr.mxu0 0.0
    %1015 = vmatpush1.xpose.msra.mxu0 0.0
    %1016 = vmatprep.subr.mxu0 0.0
    %1017 = vmatpush1.xpose.msra.mxu0 0.0
    %1018 = vmatprep.subr.mxu0 0.0
    %1019 = vmatpush1.xpose.msra.mxu0 0.0
    %1020 = vmatprep.subr.mxu0 0.0
    %1021 = vmatpush1.xpose.msra.mxu0 0.0
    %1022 = vmatprep.subr.mxu0 0.0
    %1023 = vmatpush1.xpose.msra.mxu0 0.0
    %1024 = vmatprep.subr.mxu0 0.0
    %1025 = vmatpush1.xpose.msra.mxu0 0.0
    %1026 = vmatprep.subr.mxu0 0.0
    %1027 = vmatpush1.xpose.msra.mxu0 0.0
    %1028 = vmatprep.subr.mxu0 0.0
    %1029 = vmatpush1.xpose.msra.mxu0 0.0
    %1030 = vmatprep.subr.mxu0 0.0
    %1031 = vmatpush1.xpose.msra.mxu0 0.0
    %1032 = vmatprep.subr.mxu0 0.0
    %1033 = vmatpush1.xpose.msra.mxu0 0.0
    %1034 = vmatprep.subr.mxu0 0.0
    %1035 = vmatpush1.xpose.msra.mxu0 0.0
    %1036 = vmatprep.subr.mxu0 0.0
    %1037 = vmatpush1.xpose.msra.mxu0 0.0
    %1038 = vmatprep.subr.mxu0 0.0
    %v1039 = vand.u32 %v632, 4294901760
    %1040 = vmatpush1.xpose.msra.mxu0 %v1039
    %1041 = vmatprep.subr.mxu0 0.0
    %1042 = vmatpush2.xpose.msra.mxu0 0.0
    %1043 = vmatprep.subr.mxu0 0.0
    %1044 = vmatpush2.xpose.msra.mxu0 0.0
    %1045 = vmatprep.subr.mxu0 0.0
    %1046 = vmatpush2.xpose.msra.mxu0 0.0
    %1047 = vmatprep.subr.mxu0 0.0
    %1048 = vmatpush2.xpose.msra.mxu0 0.0
    %1049 = vmatprep.subr.mxu0 0.0
    %1050 = vmatpush2.xpose.msra.mxu0 0.0
    %1051 = vmatprep.subr.mxu0 0.0
    %1052 = vmatpush2.xpose.msra.mxu0 0.0
    %1053 = vmatprep.subr.mxu0 0.0
    %1054 = vmatpush2.xpose.msra.mxu0 0.0
    %1055 = vmatprep.subr.mxu0 0.0
    %1056 = vmatpush2.xpose.msra.mxu0 0.0
    %1057 = vmatprep.subr.mxu0 0.0
    %1058 = vmatpush2.xpose.msra.mxu0 0.0
    %1059 = vmatprep.subr.mxu0 0.0
    %1060 = vmatpush2.xpose.msra.mxu0 0.0
    %1061 = vmatprep.subr.mxu0 0.0
    %1062 = vmatpush2.xpose.msra.mxu0 0.0
    %1063 = vmatprep.subr.mxu0 0.0
    %1064 = vmatpush2.xpose.msra.mxu0 0.0
    %1065 = vmatprep.subr.mxu0 0.0
    %1066 = vmatpush2.xpose.msra.mxu0 0.0
    %1067 = vmatprep.subr.mxu0 0.0
    %1068 = vmatpush2.xpose.msra.mxu0 0.0
    %1069 = vmatprep.subr.mxu0 0.0
    %1070 = vmatpush2.xpose.msra.mxu0 0.0
    %1071 = vmatprep.subr.mxu0 0.0
    %1072 = vmatpush2.xpose.msra.mxu0 0.0
    %1073 = vmatprep.mubr.f32.mxu0 0.0
    %v1074 = vand.u32 %v630, 4294901760
    %1075 = vmatmul.mubr.f32.gmra.mxu0 %v1074
    %v1076 = vpop.f32.mrf.mxu0
    %v1077 = vadd.f32 %v1005, %v1076
    %v1078 = vpop.f32.mrf.mxu0
    %1079 = vdwg.mxu0
    %1080 = vrot.lane.b32.xlu0 %v610, 96
    %v1081 = vpop.permute.xlu0 %1080
    %v1082 = vsel %vm629, %v610, 0
    %v1084 = vsel %vm629, %v1081, 0
    %1086 = vmatprep.subr.mxu0 0.0
    %1087 = vmatpush1.xpose.msra.mxu0 0.0
    %1088 = vmatprep.subr.mxu0 0.0
    %1089 = vmatpush1.xpose.msra.mxu0 0.0
    %1090 = vmatprep.subr.mxu0 0.0
    %1091 = vmatpush1.xpose.msra.mxu0 0.0
    %1092 = vmatprep.subr.mxu0 0.0
    %1093 = vmatpush1.xpose.msra.mxu0 0.0
    %1094 = vmatprep.subr.mxu0 0.0
    %1095 = vmatpush1.xpose.msra.mxu0 0.0
    %1096 = vmatprep.subr.mxu0 0.0
    %1097 = vmatpush1.xpose.msra.mxu0 0.0
    %1098 = vmatprep.subr.mxu0 0.0
    %1099 = vmatpush1.xpose.msra.mxu0 0.0
    %1100 = vmatprep.subr.mxu0 0.0
    %1101 = vmatpush1.xpose.msra.mxu0 0.0
    %1102 = vmatprep.subr.mxu0 0.0
    %1103 = vmatpush1.xpose.msra.mxu0 0.0
    %1104 = vmatprep.subr.mxu0 0.0
    %1105 = vmatpush1.xpose.msra.mxu0 0.0
    %1106 = vmatprep.subr.mxu0 0.0
    %1107 = vmatpush1.xpose.msra.mxu0 0.0
    %1108 = vmatprep.subr.mxu0 0.0
    %1109 = vmatpush1.xpose.msra.mxu0 0.0
    %1110 = vmatprep.subr.mxu0 0.0
    %1111 = vmatpush1.xpose.msra.mxu0 0.0
    %1112 = vmatprep.subr.mxu0 0.0
    %1113 = vmatpush1.xpose.msra.mxu0 0.0
    %1114 = vmatprep.subr.mxu0 0.0
    %1115 = vmatpush1.xpose.msra.mxu0 0.0
    %1116 = vmatprep.subr.mxu0 0.0
    %v1117 = vand.u32 %v1084, 4294901760
    %1118 = vmatpush1.xpose.msra.mxu0 %v1117
    %1119 = vmatprep.subr.mxu0 0.0
    %1120 = vmatpush2.xpose.msra.mxu0 0.0
    %1121 = vmatprep.subr.mxu0 0.0
    %1122 = vmatpush2.xpose.msra.mxu0 0.0
    %1123 = vmatprep.subr.mxu0 0.0
    %1124 = vmatpush2.xpose.msra.mxu0 0.0
    %1125 = vmatprep.subr.mxu0 0.0
    %1126 = vmatpush2.xpose.msra.mxu0 0.0
    %1127 = vmatprep.subr.mxu0 0.0
    %1128 = vmatpush2.xpose.msra.mxu0 0.0
    %1129 = vmatprep.subr.mxu0 0.0
    %1130 = vmatpush2.xpose.msra.mxu0 0.0
    %1131 = vmatprep.subr.mxu0 0.0
    %1132 = vmatpush2.xpose.msra.mxu0 0.0
    %1133 = vmatprep.subr.mxu0 0.0
    %1134 = vmatpush2.xpose.msra.mxu0 0.0
    %1135 = vmatprep.subr.mxu0 0.0
    %1136 = vmatpush2.xpose.msra.mxu0 0.0
    %1137 = vmatprep.subr.mxu0 0.0
    %1138 = vmatpush2.xpose.msra.mxu0 0.0
    %1139 = vmatprep.subr.mxu0 0.0
    %1140 = vmatpush2.xpose.msra.mxu0 0.0
    %1141 = vmatprep.subr.mxu0 0.0
    %1142 = vmatpush2.xpose.msra.mxu0 0.0
    %1143 = vmatprep.subr.mxu0 0.0
    %1144 = vmatpush2.xpose.msra.mxu0 0.0
    %1145 = vmatprep.subr.mxu0 0.0
    %1146 = vmatpush2.xpose.msra.mxu0 0.0
    %1147 = vmatprep.subr.mxu0 0.0
    %1148 = vmatpush2.xpose.msra.mxu0 0.0
    %1149 = vmatprep.subr.mxu0 0.0
    %1150 = vmatpush2.xpose.msra.mxu0 0.0
    %1151 = vmatprep.mubr.f32.mxu0 0.0
    %v1152 = vand.u32 %v1082, 4294901760
    %v1153 = vsub.f32 %v1082, %v1152
    %v1154 = vand.u32 %v1153, 4294901760
    %v1155 = vsub.f32 %v1153, %v1154
    %v1156 = vand.u32 %v1155, 4294901760
    %1157 = vmatmul.mubr.f32.gmra.mxu0 %v1156
    %v1158 = vpop.f32.mrf.mxu0
    %v1159 = vadd.f32 0.0, %v1158
    %v1160 = vpop.f32.mrf.mxu0
    %1161 = vdwg.mxu0
    %1162 = vmatprep.subr.mxu0 0.0
    %1163 = vmatpush1.xpose.msra.mxu0 0.0
    %1164 = vmatprep.subr.mxu0 0.0
    %1165 = vmatpush1.xpose.msra.mxu0 0.0
    %1166 = vmatprep.subr.mxu0 0.0
    %1167 = vmatpush1.xpose.msra.mxu0 0.0
    %1168 = vmatprep.subr.mxu0 0.0
    %1169 = vmatpush1.xpose.msra.mxu0 0.0
    %1170 = vmatprep.subr.mxu0 0.0
    %1171 = vmatpush1.xpose.msra.mxu0 0.0
    %1172 = vmatprep.subr.mxu0 0.0
    %1173 = vmatpush1.xpose.msra.mxu0 0.0
    %1174 = vmatprep.subr.mxu0 0.0
    %1175 = vmatpush1.xpose.msra.mxu0 0.0
    %1176 = vmatprep.subr.mxu0 0.0
    %1177 = vmatpush1.xpose.msra.mxu0 0.0
    %1178 = vmatprep.subr.mxu0 0.0
    %1179 = vmatpush1.xpose.msra.mxu0 0.0
    %1180 = vmatprep.subr.mxu0 0.0
    %1181 = vmatpush1.xpose.msra.mxu0 0.0
    %1182 = vmatprep.subr.mxu0 0.0
    %1183 = vmatpush1.xpose.msra.mxu0 0.0
    %1184 = vmatprep.subr.mxu0 0.0
    %1185 = vmatpush1.xpose.msra.mxu0 0.0
    %1186 = vmatprep.subr.mxu0 0.0
    %1187 = vmatpush1.xpose.msra.mxu0 0.0
    %1188 = vmatprep.subr.mxu0 0.0
    %1189 = vmatpush1.xpose.msra.mxu0 0.0
    %1190 = vmatprep.subr.mxu0 0.0
    %1191 = vmatpush1.xpose.msra.mxu0 0.0
    %1192 = vmatprep.subr.mxu0 0.0
    %v1193 = vand.u32 %v1084, 4294901760
    %v1194 = vsub.f32 %v1084, %v1193
    %v1195 = vand.u32 %v1194, 4294901760
    %v1196 = vsub.f32 %v1194, %v1195
    %v1197 = vand.u32 %v1196, 4294901760
    %1198 = vmatpush1.xpose.msra.mxu0 %v1197
    %1199 = vmatprep.subr.mxu0 0.0
    %1200 = vmatpush2.xpose.msra.mxu0 0.0
    %1201 = vmatprep.subr.mxu0 0.0
    %1202 = vmatpush2.xpose.msra.mxu0 0.0
    %1203 = vmatprep.subr.mxu0 0.0
    %1204 = vmatpush2.xpose.msra.mxu0 0.0
    %1205 = vmatprep.subr.mxu0 0.0
    %1206 = vmatpush2.xpose.msra.mxu0 0.0
    %1207 = vmatprep.subr.mxu0 0.0
    %1208 = vmatpush2.xpose.msra.mxu0 0.0
    %1209 = vmatprep.subr.mxu0 0.0
    %1210 = vmatpush2.xpose.msra.mxu0 0.0
    %1211 = vmatprep.subr.mxu0 0.0
    %1212 = vmatpush2.xpose.msra.mxu0 0.0
    %1213 = vmatprep.subr.mxu0 0.0
    %1214 = vmatpush2.xpose.msra.mxu0 0.0
    %1215 = vmatprep.subr.mxu0 0.0
    %1216 = vmatpush2.xpose.msra.mxu0 0.0
    %1217 = vmatprep.subr.mxu0 0.0
    %1218 = vmatpush2.xpose.msra.mxu0 0.0
    %1219 = vmatprep.subr.mxu0 0.0
    %1220 = vmatpush2.xpose.msra.mxu0 0.0
    %1221 = vmatprep.subr.mxu0 0.0
    %1222 = vmatpush2.xpose.msra.mxu0 0.0
    %1223 = vmatprep.subr.mxu0 0.0
    %1224 = vmatpush2.xpose.msra.mxu0 0.0
    %1225 = vmatprep.subr.mxu0 0.0
    %1226 = vmatpush2.xpose.msra.mxu0 0.0
    %1227 = vmatprep.subr.mxu0 0.0
    %1228 = vmatpush2.xpose.msra.mxu0 0.0
    %1229 = vmatprep.subr.mxu0 0.0
    %1230 = vmatpush2.xpose.msra.mxu0 0.0
    %1231 = vmatprep.mubr.f32.mxu0 0.0
    %v1232 = vand.u32 %v1082, 4294901760
    %1233 = vmatmul.mubr.f32.gmra.mxu0 %v1232
    %v1234 = vpop.f32.mrf.mxu0
    %v1235 = vadd.f32 %v1159, %v1234
    %v1236 = vpop.f32.mrf.mxu0
    %1237 = vdwg.mxu0
    %1238 = vmatprep.subr.mxu0 0.0
    %1239 = vmatpush1.xpose.msra.mxu0 0.0
    %1240 = vmatprep.subr.mxu0 0.0
    %1241 = vmatpush1.xpose.msra.mxu0 0.0
    %1242 = vmatprep.subr.mxu0 0.0
    %1243 = vmatpush1.xpose.msra.mxu0 0.0
    %1244 = vmatprep.subr.mxu0 0.0
    %1245 = vmatpush1.xpose.msra.mxu0 0.0
    %1246 = vmatprep.subr.mxu0 0.0
    %1247 = vmatpush1.xpose.msra.mxu0 0.0
    %1248 = vmatprep.subr.mxu0 0.0
    %1249 = vmatpush1.xpose.msra.mxu0 0.0
    %1250 = vmatprep.subr.mxu0 0.0
    %1251 = vmatpush1.xpose.msra.mxu0 0.0
    %1252 = vmatprep.subr.mxu0 0.0
    %1253 = vmatpush1.xpose.msra.mxu0 0.0
    %1254 = vmatprep.subr.mxu0 0.0
    %1255 = vmatpush1.xpose.msra.mxu0 0.0
    %1256 = vmatprep.subr.mxu0 0.0
    %1257 = vmatpush1.xpose.msra.mxu0 0.0
    %1258 = vmatprep.subr.mxu0 0.0
    %1259 = vmatpush1.xpose.msra.mxu0 0.0
    %1260 = vmatprep.subr.mxu0 0.0
    %1261 = vmatpush1.xpose.msra.mxu0 0.0
    %1262 = vmatprep.subr.mxu0 0.0
    %1263 = vmatpush1.xpose.msra.mxu0 0.0
    %1264 = vmatprep.subr.mxu0 0.0
    %1265 = vmatpush1.xpose.msra.mxu0 0.0
    %1266 = vmatprep.subr.mxu0 0.0
    %1267 = vmatpush1.xpose.msra.mxu0 0.0
    %1268 = vmatprep.subr.mxu0 0.0
    %v1269 = vand.u32 %v1084, 4294901760
    %v1270 = vsub.f32 %v1084, %v1269
    %1271 = vmatpush1.xpose.msra.mxu0 %v1270
    %1272 = vmatprep.subr.mxu0 0.0
    %1273 = vmatpush2.xpose.msra.mxu0 0.0
    %1274 = vmatprep.subr.mxu0 0.0
    %1275 = vmatpush2.xpose.msra.mxu0 0.0
    %1276 = vmatprep.subr.mxu0 0.0
    %1277 = vmatpush2.xpose.msra.mxu0 0.0
    %1278 = vmatprep.subr.mxu0 0.0
    %1279 = vmatpush2.xpose.msra.mxu0 0.0
    %1280 = vmatprep.subr.mxu0 0.0
    %1281 = vmatpush2.xpose.msra.mxu0 0.0
    %1282 = vmatprep.subr.mxu0 0.0
    %1283 = vmatpush2.xpose.msra.mxu0 0.0
    %1284 = vmatprep.subr.mxu0 0.0
    %1285 = vmatpush2.xpose.msra.mxu0 0.0
    %1286 = vmatprep.subr.mxu0 0.0
    %1287 = vmatpush2.xpose.msra.mxu0 0.0
    %1288 = vmatprep.subr.mxu0 0.0
    %1289 = vmatpush2.xpose.msra.mxu0 0.0
    %1290 = vmatprep.subr.mxu0 0.0
    %1291 = vmatpush2.xpose.msra.mxu0 0.0
    %1292 = vmatprep.subr.mxu0 0.0
    %1293 = vmatpush2.xpose.msra.mxu0 0.0
    %1294 = vmatprep.subr.mxu0 0.0
    %1295 = vmatpush2.xpose.msra.mxu0 0.0
    %1296 = vmatprep.subr.mxu0 0.0
    %1297 = vmatpush2.xpose.msra.mxu0 0.0
    %1298 = vmatprep.subr.mxu0 0.0
    %1299 = vmatpush2.xpose.msra.mxu0 0.0
    %1300 = vmatprep.subr.mxu0 0.0
    %1301 = vmatpush2.xpose.msra.mxu0 0.0
    %1302 = vmatprep.subr.mxu0 0.0
    %1303 = vmatpush2.xpose.msra.mxu0 0.0
    %1304 = vmatprep.mubr.f32.mxu0 0.0
    %v1305 = vand.u32 %v1082, 4294901760
    %v1306 = vsub.f32 %v1082, %v1305
    %1307 = vmatmul.mubr.f32.gmra.mxu0 %v1306
    %v1308 = vpop.f32.mrf.mxu0
    %v1309 = vadd.f32 %v1235, %v1308
    %v1310 = vpop.f32.mrf.mxu0
    %1311 = vdwg.mxu0
    %1312 = vmatprep.subr.mxu0 0.0
    %1313 = vmatpush1.xpose.msra.mxu0 0.0
    %1314 = vmatprep.subr.mxu0 0.0
    %1315 = vmatpush1.xpose.msra.mxu0 0.0
    %1316 = vmatprep.subr.mxu0 0.0
    %1317 = vmatpush1.xpose.msra.mxu0 0.0
    %1318 = vmatprep.subr.mxu0 0.0
    %1319 = vmatpush1.xpose.msra.mxu0 0.0
    %1320 = vmatprep.subr.mxu0 0.0
    %1321 = vmatpush1.xpose.msra.mxu0 0.0
    %1322 = vmatprep.subr.mxu0 0.0
    %1323 = vmatpush1.xpose.msra.mxu0 0.0
    %1324 = vmatprep.subr.mxu0 0.0
    %1325 = vmatpush1.xpose.msra.mxu0 0.0
    %1326 = vmatprep.subr.mxu0 0.0
    %1327 = vmatpush1.xpose.msra.mxu0 0.0
    %1328 = vmatprep.subr.mxu0 0.0
    %1329 = vmatpush1.xpose.msra.mxu0 0.0
    %1330 = vmatprep.subr.mxu0 0.0
    %1331 = vmatpush1.xpose.msra.mxu0 0.0
    %1332 = vmatprep.subr.mxu0 0.0
    %1333 = vmatpush1.xpose.msra.mxu0 0.0
    %1334 = vmatprep.subr.mxu0 0.0
    %1335 = vmatpush1.xpose.msra.mxu0 0.0
    %1336 = vmatprep.subr.mxu0 0.0
    %1337 = vmatpush1.xpose.msra.mxu0 0.0
    %1338 = vmatprep.subr.mxu0 0.0
    %1339 = vmatpush1.xpose.msra.mxu0 0.0
    %1340 = vmatprep.subr.mxu0 0.0
    %1341 = vmatpush1.xpose.msra.mxu0 0.0
    %1342 = vmatprep.subr.mxu0 0.0
    %v1343 = vand.u32 %v1084, 4294901760
    %1344 = vmatpush1.xpose.msra.mxu0 %v1343
    %1345 = vmatprep.subr.mxu0 0.0
    %1346 = vmatpush2.xpose.msra.mxu0 0.0
    %1347 = vmatprep.subr.mxu0 0.0
    %1348 = vmatpush2.xpose.msra.mxu0 0.0
    %1349 = vmatprep.subr.mxu0 0.0
    %1350 = vmatpush2.xpose.msra.mxu0 0.0
    %1351 = vmatprep.subr.mxu0 0.0
    %1352 = vmatpush2.xpose.msra.mxu0 0.0
    %1353 = vmatprep.subr.mxu0 0.0
    %1354 = vmatpush2.xpose.msra.mxu0 0.0
    %1355 = vmatprep.subr.mxu0 0.0
    %1356 = vmatpush2.xpose.msra.mxu0 0.0
    %1357 = vmatprep.subr.mxu0 0.0
    %1358 = vmatpush2.xpose.msra.mxu0 0.0
    %1359 = vmatprep.subr.mxu0 0.0
    %1360 = vmatpush2.xpose.msra.mxu0 0.0
    %1361 = vmatprep.subr.mxu0 0.0
    %1362 = vmatpush2.xpose.msra.mxu0 0.0
    %1363 = vmatprep.subr.mxu0 0.0
    %1364 = vmatpush2.xpose.msra.mxu0 0.0
    %1365 = vmatprep.subr.mxu0 0.0
    %1366 = vmatpush2.xpose.msra.mxu0 0.0
    %1367 = vmatprep.subr.mxu0 0.0
    %1368 = vmatpush2.xpose.msra.mxu0 0.0
    %1369 = vmatprep.subr.mxu0 0.0
    %1370 = vmatpush2.xpose.msra.mxu0 0.0
    %1371 = vmatprep.subr.mxu0 0.0
    %1372 = vmatpush2.xpose.msra.mxu0 0.0
    %1373 = vmatprep.subr.mxu0 0.0
    %1374 = vmatpush2.xpose.msra.mxu0 0.0
    %1375 = vmatprep.subr.mxu0 0.0
    %1376 = vmatpush2.xpose.msra.mxu0 0.0
    %1377 = vmatprep.mubr.f32.mxu0 0.0
    %v1378 = vand.u32 %v1082, 4294901760
    %v1379 = vsub.f32 %v1082, %v1378
    %v1380 = vand.u32 %v1379, 4294901760
    %1381 = vmatmul.mubr.f32.gmra.mxu0 %v1380
    %v1382 = vpop.f32.mrf.mxu0
    %v1383 = vadd.f32 %v1309, %v1382
    %v1384 = vpop.f32.mrf.mxu0
    %1385 = vdwg.mxu0
    %1386 = vmatprep.subr.mxu0 0.0
    %1387 = vmatpush1.xpose.msra.mxu0 0.0
    %1388 = vmatprep.subr.mxu0 0.0
    %1389 = vmatpush1.xpose.msra.mxu0 0.0
    %1390 = vmatprep.subr.mxu0 0.0
    %1391 = vmatpush1.xpose.msra.mxu0 0.0
    %1392 = vmatprep.subr.mxu0 0.0
    %1393 = vmatpush1.xpose.msra.mxu0 0.0
    %1394 = vmatprep.subr.mxu0 0.0
    %1395 = vmatpush1.xpose.msra.mxu0 0.0
    %1396 = vmatprep.subr.mxu0 0.0
    %1397 = vmatpush1.xpose.msra.mxu0 0.0
    %1398 = vmatprep.subr.mxu0 0.0
    %1399 = vmatpush1.xpose.msra.mxu0 0.0
    %1400 = vmatprep.subr.mxu0 0.0
    %1401 = vmatpush1.xpose.msra.mxu0 0.0
    %1402 = vmatprep.subr.mxu0 0.0
    %1403 = vmatpush1.xpose.msra.mxu0 0.0
    %1404 = vmatprep.subr.mxu0 0.0
    %1405 = vmatpush1.xpose.msra.mxu0 0.0
    %1406 = vmatprep.subr.mxu0 0.0
    %1407 = vmatpush1.xpose.msra.mxu0 0.0
    %1408 = vmatprep.subr.mxu0 0.0
    %1409 = vmatpush1.xpose.msra.mxu0 0.0
    %1410 = vmatprep.subr.mxu0 0.0
    %1411 = vmatpush1.xpose.msra.mxu0 0.0
    %1412 = vmatprep.subr.mxu0 0.0
    %1413 = vmatpush1.xpose.msra.mxu0 0.0
    %1414 = vmatprep.subr.mxu0 0.0
    %1415 = vmatpush1.xpose.msra.mxu0 0.0
    %1416 = vmatprep.subr.mxu0 0.0
    %v1417 = vand.u32 %v1084, 4294901760
    %v1418 = vsub.f32 %v1084, %v1417
    %v1419 = vand.u32 %v1418, 4294901760
    %1420 = vmatpush1.xpose.msra.mxu0 %v1419
    %1421 = vmatprep.subr.mxu0 0.0
    %1422 = vmatpush2.xpose.msra.mxu0 0.0
    %1423 = vmatprep.subr.mxu0 0.0
    %1424 = vmatpush2.xpose.msra.mxu0 0.0
    %1425 = vmatprep.subr.mxu0 0.0
    %1426 = vmatpush2.xpose.msra.mxu0 0.0
    %1427 = vmatprep.subr.mxu0 0.0
    %1428 = vmatpush2.xpose.msra.mxu0 0.0
    %1429 = vmatprep.subr.mxu0 0.0
    %1430 = vmatpush2.xpose.msra.mxu0 0.0
    %1431 = vmatprep.subr.mxu0 0.0
    %1432 = vmatpush2.xpose.msra.mxu0 0.0
    %1433 = vmatprep.subr.mxu0 0.0
    %1434 = vmatpush2.xpose.msra.mxu0 0.0
    %1435 = vmatprep.subr.mxu0 0.0
    %1436 = vmatpush2.xpose.msra.mxu0 0.0
    %1437 = vmatprep.subr.mxu0 0.0
    %1438 = vmatpush2.xpose.msra.mxu0 0.0
    %1439 = vmatprep.subr.mxu0 0.0
    %1440 = vmatpush2.xpose.msra.mxu0 0.0
    %1441 = vmatprep.subr.mxu0 0.0
    %1442 = vmatpush2.xpose.msra.mxu0 0.0
    %1443 = vmatprep.subr.mxu0 0.0
    %1444 = vmatpush2.xpose.msra.mxu0 0.0
    %1445 = vmatprep.subr.mxu0 0.0
    %1446 = vmatpush2.xpose.msra.mxu0 0.0
    %1447 = vmatprep.subr.mxu0 0.0
    %1448 = vmatpush2.xpose.msra.mxu0 0.0
    %1449 = vmatprep.subr.mxu0 0.0
    %1450 = vmatpush2.xpose.msra.mxu0 0.0
    %1451 = vmatprep.subr.mxu0 0.0
    %1452 = vmatpush2.xpose.msra.mxu0 0.0
    %1453 = vmatprep.mubr.f32.mxu0 0.0
    %v1454 = vand.u32 %v1082, 4294901760
    %1455 = vmatmul.mubr.f32.gmra.mxu0 %v1454
    %v1456 = vpop.f32.mrf.mxu0
    %v1457 = vadd.f32 %v1383, %v1456
    %v1458 = vpop.f32.mrf.mxu0
    %1459 = vdwg.mxu0
    %1460 = vmatprep.subr.mxu0 0.0
    %1461 = vmatpush1.xpose.msra.mxu0 0.0
    %1462 = vmatprep.subr.mxu0 0.0
    %1463 = vmatpush1.xpose.msra.mxu0 0.0
    %1464 = vmatprep.subr.mxu0 0.0
    %1465 = vmatpush1.xpose.msra.mxu0 0.0
    %1466 = vmatprep.subr.mxu0 0.0
    %1467 = vmatpush1.xpose.msra.mxu0 0.0
    %1468 = vmatprep.subr.mxu0 0.0
    %1469 = vmatpush1.xpose.msra.mxu0 0.0
    %1470 = vmatprep.subr.mxu0 0.0
    %1471 = vmatpush1.xpose.msra.mxu0 0.0
    %1472 = vmatprep.subr.mxu0 0.0
    %1473 = vmatpush1.xpose.msra.mxu0 0.0
    %1474 = vmatprep.subr.mxu0 0.0
    %1475 = vmatpush1.xpose.msra.mxu0 0.0
    %1476 = vmatprep.subr.mxu0 0.0
    %1477 = vmatpush1.xpose.msra.mxu0 0.0
    %1478 = vmatprep.subr.mxu0 0.0
    %1479 = vmatpush1.xpose.msra.mxu0 0.0
    %1480 = vmatprep.subr.mxu0 0.0
    %1481 = vmatpush1.xpose.msra.mxu0 0.0
    %1482 = vmatprep.subr.mxu0 0.0
    %1483 = vmatpush1.xpose.msra.mxu0 0.0
    %1484 = vmatprep.subr.mxu0 0.0
    %1485 = vmatpush1.xpose.msra.mxu0 0.0
    %1486 = vmatprep.subr.mxu0 0.0
    %1487 = vmatpush1.xpose.msra.mxu0 0.0
    %1488 = vmatprep.subr.mxu0 0.0
    %1489 = vmatpush1.xpose.msra.mxu0 0.0
    %1490 = vmatprep.subr.mxu0 0.0
    %v1491 = vand.u32 %v1084, 4294901760
    %1492 = vmatpush1.xpose.msra.mxu0 %v1491
    %1493 = vmatprep.subr.mxu0 0.0
    %1494 = vmatpush2.xpose.msra.mxu0 0.0
    %1495 = vmatprep.subr.mxu0 0.0
    %1496 = vmatpush2.xpose.msra.mxu0 0.0
    %1497 = vmatprep.subr.mxu0 0.0
    %1498 = vmatpush2.xpose.msra.mxu0 0.0
    %1499 = vmatprep.subr.mxu0 0.0
    %1500 = vmatpush2.xpose.msra.mxu0 0.0
    %1501 = vmatprep.subr.mxu0 0.0
    %1502 = vmatpush2.xpose.msra.mxu0 0.0
    %1503 = vmatprep.subr.mxu0 0.0
    %1504 = vmatpush2.xpose.msra.mxu0 0.0
    %1505 = vmatprep.subr.mxu0 0.0
    %1506 = vmatpush2.xpose.msra.mxu0 0.0
    %1507 = vmatprep.subr.mxu0 0.0
    %1508 = vmatpush2.xpose.msra.mxu0 0.0
    %1509 = vmatprep.subr.mxu0 0.0
    %1510 = vmatpush2.xpose.msra.mxu0 0.0
    %1511 = vmatprep.subr.mxu0 0.0
    %1512 = vmatpush2.xpose.msra.mxu0 0.0
    %1513 = vmatprep.subr.mxu0 0.0
    %1514 = vmatpush2.xpose.msra.mxu0 0.0
    %1515 = vmatprep.subr.mxu0 0.0
    %1516 = vmatpush2.xpose.msra.mxu0 0.0
    %1517 = vmatprep.subr.mxu0 0.0
    %1518 = vmatpush2.xpose.msra.mxu0 0.0
    %1519 = vmatprep.subr.mxu0 0.0
    %1520 = vmatpush2.xpose.msra.mxu0 0.0
    %1521 = vmatprep.subr.mxu0 0.0
    %1522 = vmatpush2.xpose.msra.mxu0 0.0
    %1523 = vmatprep.subr.mxu0 0.0
    %1524 = vmatpush2.xpose.msra.mxu0 0.0
    %1525 = vmatprep.mubr.f32.mxu0 0.0
    %v1526 = vand.u32 %v1082, 4294901760
    %1527 = vmatmul.mubr.f32.gmra.mxu0 %v1526
    %v1528 = vpop.f32.mrf.mxu0
    %v1529 = vadd.f32 %v1457, %v1528
    %v1530 = vpop.f32.mrf.mxu0
    %1531 = vdwg.mxu0
    %1532 = vrot.lane.b32.xlu0 %v616, 96
    %v1533 = vpop.permute.xlu0 %1532
    %v1534 = vsel %vm629, %v616, 0
    %v1536 = vsel %vm629, %v1533, 0
    %1538 = vmatprep.subr.mxu0 0.0
    %1539 = vmatpush1.xpose.msra.mxu0 0.0
    %1540 = vmatprep.subr.mxu0 0.0
    %1541 = vmatpush1.xpose.msra.mxu0 0.0
    %1542 = vmatprep.subr.mxu0 0.0
    %1543 = vmatpush1.xpose.msra.mxu0 0.0
    %1544 = vmatprep.subr.mxu0 0.0
    %1545 = vmatpush1.xpose.msra.mxu0 0.0
    %1546 = vmatprep.subr.mxu0 0.0
    %1547 = vmatpush1.xpose.msra.mxu0 0.0
    %1548 = vmatprep.subr.mxu0 0.0
    %1549 = vmatpush1.xpose.msra.mxu0 0.0
    %1550 = vmatprep.subr.mxu0 0.0
    %1551 = vmatpush1.xpose.msra.mxu0 0.0
    %1552 = vmatprep.subr.mxu0 0.0
    %1553 = vmatpush1.xpose.msra.mxu0 0.0
    %1554 = vmatprep.subr.mxu0 0.0
    %1555 = vmatpush1.xpose.msra.mxu0 0.0
    %1556 = vmatprep.subr.mxu0 0.0
    %1557 = vmatpush1.xpose.msra.mxu0 0.0
    %1558 = vmatprep.subr.mxu0 0.0
    %1559 = vmatpush1.xpose.msra.mxu0 0.0
    %1560 = vmatprep.subr.mxu0 0.0
    %1561 = vmatpush1.xpose.msra.mxu0 0.0
    %1562 = vmatprep.subr.mxu0 0.0
    %1563 = vmatpush1.xpose.msra.mxu0 0.0
    %1564 = vmatprep.subr.mxu0 0.0
    %1565 = vmatpush1.xpose.msra.mxu0 0.0
    %1566 = vmatprep.subr.mxu0 0.0
    %1567 = vmatpush1.xpose.msra.mxu0 0.0
    %1568 = vmatprep.subr.mxu0 0.0
    %v1569 = vand.u32 %v1536, 4294901760
    %1570 = vmatpush1.xpose.msra.mxu0 %v1569
    %1571 = vmatprep.subr.mxu0 0.0
    %1572 = vmatpush2.xpose.msra.mxu0 0.0
    %1573 = vmatprep.subr.mxu0 0.0
    %1574 = vmatpush2.xpose.msra.mxu0 0.0
    %1575 = vmatprep.subr.mxu0 0.0
    %1576 = vmatpush2.xpose.msra.mxu0 0.0
    %1577 = vmatprep.subr.mxu0 0.0
    %1578 = vmatpush2.xpose.msra.mxu0 0.0
    %1579 = vmatprep.subr.mxu0 0.0
    %1580 = vmatpush2.xpose.msra.mxu0 0.0
    %1581 = vmatprep.subr.mxu0 0.0
    %1582 = vmatpush2.xpose.msra.mxu0 0.0
    %1583 = vmatprep.subr.mxu0 0.0
    %1584 = vmatpush2.xpose.msra.mxu0 0.0
    %1585 = vmatprep.subr.mxu0 0.0
    %1586 = vmatpush2.xpose.msra.mxu0 0.0
    %1587 = vmatprep.subr.mxu0 0.0
    %1588 = vmatpush2.xpose.msra.mxu0 0.0
    %1589 = vmatprep.subr.mxu0 0.0
    %1590 = vmatpush2.xpose.msra.mxu0 0.0
    %1591 = vmatprep.subr.mxu0 0.0
    %1592 = vmatpush2.xpose.msra.mxu0 0.0
    %1593 = vmatprep.subr.mxu0 0.0
    %1594 = vmatpush2.xpose.msra.mxu0 0.0
    %1595 = vmatprep.subr.mxu0 0.0
    %1596 = vmatpush2.xpose.msra.mxu0 0.0
    %1597 = vmatprep.subr.mxu0 0.0
    %1598 = vmatpush2.xpose.msra.mxu0 0.0
    %1599 = vmatprep.subr.mxu0 0.0
    %1600 = vmatpush2.xpose.msra.mxu0 0.0
    %1601 = vmatprep.subr.mxu0 0.0
    %1602 = vmatpush2.xpose.msra.mxu0 0.0
    %1603 = vmatprep.mubr.f32.mxu0 0.0
    %v1604 = vand.u32 %v1534, 4294901760
    %v1605 = vsub.f32 %v1534, %v1604
    %v1606 = vand.u32 %v1605, 4294901760
    %v1607 = vsub.f32 %v1605, %v1606
    %v1608 = vand.u32 %v1607, 4294901760
    %1609 = vmatmul.mubr.f32.gmra.mxu0 %v1608
    %v1610 = vpop.f32.mrf.mxu0
    %v1611 = vadd.f32 0.0, %v1610
    %v1612 = vpop.f32.mrf.mxu0
    %1613 = vdwg.mxu0
    %1614 = vmatprep.subr.mxu0 0.0
    %1615 = vmatpush1.xpose.msra.mxu0 0.0
    %1616 = vmatprep.subr.mxu0 0.0
    %1617 = vmatpush1.xpose.msra.mxu0 0.0
    %1618 = vmatprep.subr.mxu0 0.0
    %1619 = vmatpush1.xpose.msra.mxu0 0.0
    %1620 = vmatprep.subr.mxu0 0.0
    %1621 = vmatpush1.xpose.msra.mxu0 0.0
    %1622 = vmatprep.subr.mxu0 0.0
    %1623 = vmatpush1.xpose.msra.mxu0 0.0
    %1624 = vmatprep.subr.mxu0 0.0
    %1625 = vmatpush1.xpose.msra.mxu0 0.0
    %1626 = vmatprep.subr.mxu0 0.0
    %1627 = vmatpush1.xpose.msra.mxu0 0.0
    %1628 = vmatprep.subr.mxu0 0.0
    %1629 = vmatpush1.xpose.msra.mxu0 0.0
    %1630 = vmatprep.subr.mxu0 0.0
    %1631 = vmatpush1.xpose.msra.mxu0 0.0
    %1632 = vmatprep.subr.mxu0 0.0
    %1633 = vmatpush1.xpose.msra.mxu0 0.0
    %1634 = vmatprep.subr.mxu0 0.0
    %1635 = vmatpush1.xpose.msra.mxu0 0.0
    %1636 = vmatprep.subr.mxu0 0.0
    %1637 = vmatpush1.xpose.msra.mxu0 0.0
    %1638 = vmatprep.subr.mxu0 0.0
    %1639 = vmatpush1.xpose.msra.mxu0 0.0
    %1640 = vmatprep.subr.mxu0 0.0
    %1641 = vmatpush1.xpose.msra.mxu0 0.0
    %1642 = vmatprep.subr.mxu0 0.0
    %1643 = vmatpush1.xpose.msra.mxu0 0.0
    %1644 = vmatprep.subr.mxu0 0.0
    %v1645 = vand.u32 %v1536, 4294901760
    %v1646 = vsub.f32 %v1536, %v1645
    %v1647 = vand.u32 %v1646, 4294901760
    %v1648 = vsub.f32 %v1646, %v1647
    %v1649 = vand.u32 %v1648, 4294901760
    %1650 = vmatpush1.xpose.msra.mxu0 %v1649
    %1651 = vmatprep.subr.mxu0 0.0
    %1652 = vmatpush2.xpose.msra.mxu0 0.0
    %1653 = vmatprep.subr.mxu0 0.0
    %1654 = vmatpush2.xpose.msra.mxu0 0.0
    %1655 = vmatprep.subr.mxu0 0.0
    %1656 = vmatpush2.xpose.msra.mxu0 0.0
    %1657 = vmatprep.subr.mxu0 0.0
    %1658 = vmatpush2.xpose.msra.mxu0 0.0
    %1659 = vmatprep.subr.mxu0 0.0
    %1660 = vmatpush2.xpose.msra.mxu0 0.0
    %1661 = vmatprep.subr.mxu0 0.0
    %1662 = vmatpush2.xpose.msra.mxu0 0.0
    %1663 = vmatprep.subr.mxu0 0.0
    %1664 = vmatpush2.xpose.msra.mxu0 0.0
    %1665 = vmatprep.subr.mxu0 0.0
    %1666 = vmatpush2.xpose.msra.mxu0 0.0
    %1667 = vmatprep.subr.mxu0 0.0
    %1668 = vmatpush2.xpose.msra.mxu0 0.0
    %1669 = vmatprep.subr.mxu0 0.0
    %1670 = vmatpush2.xpose.msra.mxu0 0.0
    %1671 = vmatprep.subr.mxu0 0.0
    %1672 = vmatpush2.xpose.msra.mxu0 0.0
    %1673 = vmatprep.subr.mxu0 0.0
    %1674 = vmatpush2.xpose.msra.mxu0 0.0
    %1675 = vmatprep.subr.mxu0 0.0
    %1676 = vmatpush2.xpose.msra.mxu0 0.0
    %1677 = vmatprep.subr.mxu0 0.0
    %1678 = vmatpush2.xpose.msra.mxu0 0.0
    %1679 = vmatprep.subr.mxu0 0.0
    %1680 = vmatpush2.xpose.msra.mxu0 0.0
    %1681 = vmatprep.subr.mxu0 0.0
    %1682 = vmatpush2.xpose.msra.mxu0 0.0
    %1683 = vmatprep.mubr.f32.mxu0 0.0
    %v1684 = vand.u32 %v1534, 4294901760
    %1685 = vmatmul.mubr.f32.gmra.mxu0 %v1684
    %v1686 = vpop.f32.mrf.mxu0
    %v1687 = vadd.f32 %v1611, %v1686
    %v1688 = vpop.f32.mrf.mxu0
    %1689 = vdwg.mxu0
    %1690 = vmatprep.subr.mxu0 0.0
    %1691 = vmatpush1.xpose.msra.mxu0 0.0
    %1692 = vmatprep.subr.mxu0 0.0
    %1693 = vmatpush1.xpose.msra.mxu0 0.0
    %1694 = vmatprep.subr.mxu0 0.0
    %1695 = vmatpush1.xpose.msra.mxu0 0.0
    %1696 = vmatprep.subr.mxu0 0.0
    %1697 = vmatpush1.xpose.msra.mxu0 0.0
    %1698 = vmatprep.subr.mxu0 0.0
    %1699 = vmatpush1.xpose.msra.mxu0 0.0
    %1700 = vmatprep.subr.mxu0 0.0
    %1701 = vmatpush1.xpose.msra.mxu0 0.0
    %1702 = vmatprep.subr.mxu0 0.0
    %1703 = vmatpush1.xpose.msra.mxu0 0.0
    %1704 = vmatprep.subr.mxu0 0.0
    %1705 = vmatpush1.xpose.msra.mxu0 0.0
    %1706 = vmatprep.subr.mxu0 0.0
    %1707 = vmatpush1.xpose.msra.mxu0 0.0
    %1708 = vmatprep.subr.mxu0 0.0
    %1709 = vmatpush1.xpose.msra.mxu0 0.0
    %1710 = vmatprep.subr.mxu0 0.0
    %1711 = vmatpush1.xpose.msra.mxu0 0.0
    %1712 = vmatprep.subr.mxu0 0.0
    %1713 = vmatpush1.xpose.msra.mxu0 0.0
    %1714 = vmatprep.subr.mxu0 0.0
    %1715 = vmatpush1.xpose.msra.mxu0 0.0
    %1716 = vmatprep.subr.mxu0 0.0
    %1717 = vmatpush1.xpose.msra.mxu0 0.0
    %1718 = vmatprep.subr.mxu0 0.0
    %1719 = vmatpush1.xpose.msra.mxu0 0.0
    %1720 = vmatprep.subr.mxu0 0.0
    %v1721 = vand.u32 %v1536, 4294901760
    %v1722 = vsub.f32 %v1536, %v1721
    %1723 = vmatpush1.xpose.msra.mxu0 %v1722
    %1724 = vmatprep.subr.mxu0 0.0
    %1725 = vmatpush2.xpose.msra.mxu0 0.0
    %1726 = vmatprep.subr.mxu0 0.0
    %1727 = vmatpush2.xpose.msra.mxu0 0.0
    %1728 = vmatprep.subr.mxu0 0.0
    %1729 = vmatpush2.xpose.msra.mxu0 0.0
    %1730 = vmatprep.subr.mxu0 0.0
    %1731 = vmatpush2.xpose.msra.mxu0 0.0
    %1732 = vmatprep.subr.mxu0 0.0
    %1733 = vmatpush2.xpose.msra.mxu0 0.0
    %1734 = vmatprep.subr.mxu0 0.0
    %1735 = vmatpush2.xpose.msra.mxu0 0.0
    %1736 = vmatprep.subr.mxu0 0.0
    %1737 = vmatpush2.xpose.msra.mxu0 0.0
    %1738 = vmatprep.subr.mxu0 0.0
    %1739 = vmatpush2.xpose.msra.mxu0 0.0
    %1740 = vmatprep.subr.mxu0 0.0
    %1741 = vmatpush2.xpose.msra.mxu0 0.0
    %1742 = vmatprep.subr.mxu0 0.0
    %1743 = vmatpush2.xpose.msra.mxu0 0.0
    %1744 = vmatprep.subr.mxu0 0.0
    %1745 = vmatpush2.xpose.msra.mxu0 0.0
    %1746 = vmatprep.subr.mxu0 0.0
    %1747 = vmatpush2.xpose.msra.mxu0 0.0
    %1748 = vmatprep.subr.mxu0 0.0
    %1749 = vmatpush2.xpose.msra.mxu0 0.0
    %1750 = vmatprep.subr.mxu0 0.0
    %1751 = vmatpush2.xpose.msra.mxu0 0.0
    %1752 = vmatprep.subr.mxu0 0.0
    %1753 = vmatpush2.xpose.msra.mxu0 0.0
    %1754 = vmatprep.subr.mxu0 0.0
    %1755 = vmatpush2.xpose.msra.mxu0 0.0
    %1756 = vmatprep.mubr.f32.mxu0 0.0
    %v1757 = vand.u32 %v1534, 4294901760
    %v1758 = vsub.f32 %v1534, %v1757
    %1759 = vmatmul.mubr.f32.gmra.mxu0 %v1758
    %v1760 = vpop.f32.mrf.mxu0
    %v1761 = vadd.f32 %v1687, %v1760
    %v1762 = vpop.f32.mrf.mxu0
    %1763 = vdwg.mxu0
    %1764 = vmatprep.subr.mxu0 0.0
    %1765 = vmatpush1.xpose.msra.mxu0 0.0
    %1766 = vmatprep.subr.mxu0 0.0
    %1767 = vmatpush1.xpose.msra.mxu0 0.0
    %1768 = vmatprep.subr.mxu0 0.0
    %1769 = vmatpush1.xpose.msra.mxu0 0.0
    %1770 = vmatprep.subr.mxu0 0.0
    %1771 = vmatpush1.xpose.msra.mxu0 0.0
    %1772 = vmatprep.subr.mxu0 0.0
    %1773 = vmatpush1.xpose.msra.mxu0 0.0
    %1774 = vmatprep.subr.mxu0 0.0
    %1775 = vmatpush1.xpose.msra.mxu0 0.0
    %1776 = vmatprep.subr.mxu0 0.0
    %1777 = vmatpush1.xpose.msra.mxu0 0.0
    %1778 = vmatprep.subr.mxu0 0.0
    %1779 = vmatpush1.xpose.msra.mxu0 0.0
    %1780 = vmatprep.subr.mxu0 0.0
    %1781 = vmatpush1.xpose.msra.mxu0 0.0
    %1782 = vmatprep.subr.mxu0 0.0
    %1783 = vmatpush1.xpose.msra.mxu0 0.0
    %1784 = vmatprep.subr.mxu0 0.0
    %1785 = vmatpush1.xpose.msra.mxu0 0.0
    %1786 = vmatprep.subr.mxu0 0.0
    %1787 = vmatpush1.xpose.msra.mxu0 0.0
    %1788 = vmatprep.subr.mxu0 0.0
    %1789 = vmatpush1.xpose.msra.mxu0 0.0
    %1790 = vmatprep.subr.mxu0 0.0
    %1791 = vmatpush1.xpose.msra.mxu0 0.0
    %1792 = vmatprep.subr.mxu0 0.0
    %1793 = vmatpush1.xpose.msra.mxu0 0.0
    %1794 = vmatprep.subr.mxu0 0.0
    %v1795 = vand.u32 %v1536, 4294901760
    %1796 = vmatpush1.xpose.msra.mxu0 %v1795
    %1797 = vmatprep.subr.mxu0 0.0
    %1798 = vmatpush2.xpose.msra.mxu0 0.0
    %1799 = vmatprep.subr.mxu0 0.0
    %1800 = vmatpush2.xpose.msra.mxu0 0.0
    %1801 = vmatprep.subr.mxu0 0.0
    %1802 = vmatpush2.xpose.msra.mxu0 0.0
    %1803 = vmatprep.subr.mxu0 0.0
    %1804 = vmatpush2.xpose.msra.mxu0 0.0
    %1805 = vmatprep.subr.mxu0 0.0
    %1806 = vmatpush2.xpose.msra.mxu0 0.0
    %1807 = vmatprep.subr.mxu0 0.0
    %1808 = vmatpush2.xpose.msra.mxu0 0.0
    %1809 = vmatprep.subr.mxu0 0.0
    %1810 = vmatpush2.xpose.msra.mxu0 0.0
    %1811 = vmatprep.subr.mxu0 0.0
    %1812 = vmatpush2.xpose.msra.mxu0 0.0
    %1813 = vmatprep.subr.mxu0 0.0
    %1814 = vmatpush2.xpose.msra.mxu0 0.0
    %1815 = vmatprep.subr.mxu0 0.0
    %1816 = vmatpush2.xpose.msra.mxu0 0.0
    %1817 = vmatprep.subr.mxu0 0.0
    %1818 = vmatpush2.xpose.msra.mxu0 0.0
    %1819 = vmatprep.subr.mxu0 0.0
    %1820 = vmatpush2.xpose.msra.mxu0 0.0
    %1821 = vmatprep.subr.mxu0 0.0
    %1822 = vmatpush2.xpose.msra.mxu0 0.0
    %1823 = vmatprep.subr.mxu0 0.0
    %1824 = vmatpush2.xpose.msra.mxu0 0.0
    %1825 = vmatprep.subr.mxu0 0.0
    %1826 = vmatpush2.xpose.msra.mxu0 0.0
    %1827 = vmatprep.subr.mxu0 0.0
    %1828 = vmatpush2.xpose.msra.mxu0 0.0
    %1829 = vmatprep.mubr.f32.mxu0 0.0
    %v1830 = vand.u32 %v1534, 4294901760
    %v1831 = vsub.f32 %v1534, %v1830
    %v1832 = vand.u32 %v1831, 4294901760
    %1833 = vmatmul.mubr.f32.gmra.mxu0 %v1832
    %v1834 = vpop.f32.mrf.mxu0
    %v1835 = vadd.f32 %v1761, %v1834
    %v1836 = vpop.f32.mrf.mxu0
    %1837 = vdwg.mxu0
    %1838 = vmatprep.subr.mxu0 0.0
    %1839 = vmatpush1.xpose.msra.mxu0 0.0
    %1840 = vmatprep.subr.mxu0 0.0
    %1841 = vmatpush1.xpose.msra.mxu0 0.0
    %1842 = vmatprep.subr.mxu0 0.0
    %1843 = vmatpush1.xpose.msra.mxu0 0.0
    %1844 = vmatprep.subr.mxu0 0.0
    %1845 = vmatpush1.xpose.msra.mxu0 0.0
    %1846 = vmatprep.subr.mxu0 0.0
    %1847 = vmatpush1.xpose.msra.mxu0 0.0
    %1848 = vmatprep.subr.mxu0 0.0
    %1849 = vmatpush1.xpose.msra.mxu0 0.0
    %1850 = vmatprep.subr.mxu0 0.0
    %1851 = vmatpush1.xpose.msra.mxu0 0.0
    %1852 = vmatprep.subr.mxu0 0.0
    %1853 = vmatpush1.xpose.msra.mxu0 0.0
    %1854 = vmatprep.subr.mxu0 0.0
    %1855 = vmatpush1.xpose.msra.mxu0 0.0
    %1856 = vmatprep.subr.mxu0 0.0
    %1857 = vmatpush1.xpose.msra.mxu0 0.0
    %1858 = vmatprep.subr.mxu0 0.0
    %1859 = vmatpush1.xpose.msra.mxu0 0.0
    %1860 = vmatprep.subr.mxu0 0.0
    %1861 = vmatpush1.xpose.msra.mxu0 0.0
    %1862 = vmatprep.subr.mxu0 0.0
    %1863 = vmatpush1.xpose.msra.mxu0 0.0
    %1864 = vmatprep.subr.mxu0 0.0
    %1865 = vmatpush1.xpose.msra.mxu0 0.0
    %1866 = vmatprep.subr.mxu0 0.0
    %1867 = vmatpush1.xpose.msra.mxu0 0.0
    %1868 = vmatprep.subr.mxu0 0.0
    %v1869 = vand.u32 %v1536, 4294901760
    %v1870 = vsub.f32 %v1536, %v1869
    %v1871 = vand.u32 %v1870, 4294901760
    %1872 = vmatpush1.xpose.msra.mxu0 %v1871
    %1873 = vmatprep.subr.mxu0 0.0
    %1874 = vmatpush2.xpose.msra.mxu0 0.0
    %1875 = vmatprep.subr.mxu0 0.0
    %1876 = vmatpush2.xpose.msra.mxu0 0.0
    %1877 = vmatprep.subr.mxu0 0.0
    %1878 = vmatpush2.xpose.msra.mxu0 0.0
    %1879 = vmatprep.subr.mxu0 0.0
    %1880 = vmatpush2.xpose.msra.mxu0 0.0
    %1881 = vmatprep.subr.mxu0 0.0
    %1882 = vmatpush2.xpose.msra.mxu0 0.0
    %1883 = vmatprep.subr.mxu0 0.0
    %1884 = vmatpush2.xpose.msra.mxu0 0.0
    %1885 = vmatprep.subr.mxu0 0.0
    %1886 = vmatpush2.xpose.msra.mxu0 0.0
    %1887 = vmatprep.subr.mxu0 0.0
    %1888 = vmatpush2.xpose.msra.mxu0 0.0
    %1889 = vmatprep.subr.mxu0 0.0
    %1890 = vmatpush2.xpose.msra.mxu0 0.0
    %1891 = vmatprep.subr.mxu0 0.0
    %1892 = vmatpush2.xpose.msra.mxu0 0.0
    %1893 = vmatprep.subr.mxu0 0.0
    %1894 = vmatpush2.xpose.msra.mxu0 0.0
    %1895 = vmatprep.subr.mxu0 0.0
    %1896 = vmatpush2.xpose.msra.mxu0 0.0
    %1897 = vmatprep.subr.mxu0 0.0
    %1898 = vmatpush2.xpose.msra.mxu0 0.0
    %1899 = vmatprep.subr.mxu0 0.0
    %1900 = vmatpush2.xpose.msra.mxu0 0.0
    %1901 = vmatprep.subr.mxu0 0.0
    %1902 = vmatpush2.xpose.msra.mxu0 0.0
    %1903 = vmatprep.subr.mxu0 0.0
    %1904 = vmatpush2.xpose.msra.mxu0 0.0
    %1905 = vmatprep.mubr.f32.mxu0 0.0
    %v1906 = vand.u32 %v1534, 4294901760
    %1907 = vmatmul.mubr.f32.gmra.mxu0 %v1906
    %v1908 = vpop.f32.mrf.mxu0
    %v1909 = vadd.f32 %v1835, %v1908
    %v1910 = vpop.f32.mrf.mxu0
    %1911 = vdwg.mxu0
    %1912 = vmatprep.subr.mxu0 0.0
    %1913 = vmatpush1.xpose.msra.mxu0 0.0
    %1914 = vmatprep.subr.mxu0 0.0
    %1915 = vmatpush1.xpose.msra.mxu0 0.0
    %1916 = vmatprep.subr.mxu0 0.0
    %1917 = vmatpush1.xpose.msra.mxu0 0.0
    %1918 = vmatprep.subr.mxu0 0.0
    %1919 = vmatpush1.xpose.msra.mxu0 0.0
    %1920 = vmatprep.subr.mxu0 0.0
    %1921 = vmatpush1.xpose.msra.mxu0 0.0
    %1922 = vmatprep.subr.mxu0 0.0
    %1923 = vmatpush1.xpose.msra.mxu0 0.0
    %1924 = vmatprep.subr.mxu0 0.0
    %1925 = vmatpush1.xpose.msra.mxu0 0.0
    %1926 = vmatprep.subr.mxu0 0.0
    %1927 = vmatpush1.xpose.msra.mxu0 0.0
    %1928 = vmatprep.subr.mxu0 0.0
    %1929 = vmatpush1.xpose.msra.mxu0 0.0
    %1930 = vmatprep.subr.mxu0 0.0
    %1931 = vmatpush1.xpose.msra.mxu0 0.0
    %1932 = vmatprep.subr.mxu0 0.0
    %1933 = vmatpush1.xpose.msra.mxu0 0.0
    %1934 = vmatprep.subr.mxu0 0.0
    %1935 = vmatpush1.xpose.msra.mxu0 0.0
    %1936 = vmatprep.subr.mxu0 0.0
    %1937 = vmatpush1.xpose.msra.mxu0 0.0
    %1938 = vmatprep.subr.mxu0 0.0
    %1939 = vmatpush1.xpose.msra.mxu0 0.0
    %1940 = vmatprep.subr.mxu0 0.0
    %1941 = vmatpush1.xpose.msra.mxu0 0.0
    %1942 = vmatprep.subr.mxu0 0.0
    %v1943 = vand.u32 %v1536, 4294901760
    %1944 = vmatpush1.xpose.msra.mxu0 %v1943
    %1945 = vmatprep.subr.mxu0 0.0
    %1946 = vmatpush2.xpose.msra.mxu0 0.0
    %1947 = vmatprep.subr.mxu0 0.0
    %1948 = vmatpush2.xpose.msra.mxu0 0.0
    %1949 = vmatprep.subr.mxu0 0.0
    %1950 = vmatpush2.xpose.msra.mxu0 0.0
    %1951 = vmatprep.subr.mxu0 0.0
    %1952 = vmatpush2.xpose.msra.mxu0 0.0
    %1953 = vmatprep.subr.mxu0 0.0
    %1954 = vmatpush2.xpose.msra.mxu0 0.0
    %1955 = vmatprep.subr.mxu0 0.0
    %1956 = vmatpush2.xpose.msra.mxu0 0.0
    %1957 = vmatprep.subr.mxu0 0.0
    %1958 = vmatpush2.xpose.msra.mxu0 0.0
    %1959 = vmatprep.subr.mxu0 0.0
    %1960 = vmatpush2.xpose.msra.mxu0 0.0
    %1961 = vmatprep.subr.mxu0 0.0
    %1962 = vmatpush2.xpose.msra.mxu0 0.0
    %1963 = vmatprep.subr.mxu0 0.0
    %1964 = vmatpush2.xpose.msra.mxu0 0.0
    %1965 = vmatprep.subr.mxu0 0.0
    %1966 = vmatpush2.xpose.msra.mxu0 0.0
    %1967 = vmatprep.subr.mxu0 0.0
    %1968 = vmatpush2.xpose.msra.mxu0 0.0
    %1969 = vmatprep.subr.mxu0 0.0
    %1970 = vmatpush2.xpose.msra.mxu0 0.0
    %1971 = vmatprep.subr.mxu0 0.0
    %1972 = vmatpush2.xpose.msra.mxu0 0.0
    %1973 = vmatprep.subr.mxu0 0.0
    %1974 = vmatpush2.xpose.msra.mxu0 0.0
    %1975 = vmatprep.subr.mxu0 0.0
    %1976 = vmatpush2.xpose.msra.mxu0 0.0
    %1977 = vmatprep.mubr.f32.mxu0 0.0
    %v1978 = vand.u32 %v1534, 4294901760
    %1979 = vmatmul.mubr.f32.gmra.mxu0 %v1978
    %v1980 = vpop.f32.mrf.mxu0
    %v1981 = vadd.f32 %v1909, %v1980
    %v1982 = vpop.f32.mrf.mxu0
    %1983 = vdwg.mxu0
    %1984 = vrot.lane.b32.xlu0 %v618, 96
    %v1985 = vpop.permute.xlu0 %1984
    %v1986 = vsel %vm629, %v618, 0
    %v1988 = vsel %vm629, %v1985, 0
    %1990 = vmatprep.subr.mxu0 0.0
    %1991 = vmatpush1.xpose.msra.mxu0 0.0
    %1992 = vmatprep.subr.mxu0 0.0
    %1993 = vmatpush1.xpose.msra.mxu0 0.0
    %1994 = vmatprep.subr.mxu0 0.0
    %1995 = vmatpush1.xpose.msra.mxu0 0.0
    %1996 = vmatprep.subr.mxu0 0.0
    %1997 = vmatpush1.xpose.msra.mxu0 0.0
    %1998 = vmatprep.subr.mxu0 0.0
    %1999 = vmatpush1.xpose.msra.mxu0 0.0
    %2000 = vmatprep.subr.mxu0 0.0
    %2001 = vmatpush1.xpose.msra.mxu0 0.0
    %2002 = vmatprep.subr.mxu0 0.0
    %2003 = vmatpush1.xpose.msra.mxu0 0.0
    %2004 = vmatprep.subr.mxu0 0.0
    %2005 = vmatpush1.xpose.msra.mxu0 0.0
    %2006 = vmatprep.subr.mxu0 0.0
    %2007 = vmatpush1.xpose.msra.mxu0 0.0
    %2008 = vmatprep.subr.mxu0 0.0
    %2009 = vmatpush1.xpose.msra.mxu0 0.0
    %2010 = vmatprep.subr.mxu0 0.0
    %2011 = vmatpush1.xpose.msra.mxu0 0.0
    %2012 = vmatprep.subr.mxu0 0.0
    %2013 = vmatpush1.xpose.msra.mxu0 0.0
    %2014 = vmatprep.subr.mxu0 0.0
    %2015 = vmatpush1.xpose.msra.mxu0 0.0
    %2016 = vmatprep.subr.mxu0 0.0
    %2017 = vmatpush1.xpose.msra.mxu0 0.0
    %2018 = vmatprep.subr.mxu0 0.0
    %2019 = vmatpush1.xpose.msra.mxu0 0.0
    %2020 = vmatprep.subr.mxu0 0.0
    %v2021 = vand.u32 %v1988, 4294901760
    %2022 = vmatpush1.xpose.msra.mxu0 %v2021
    %2023 = vmatprep.subr.mxu0 0.0
    %2024 = vmatpush2.xpose.msra.mxu0 0.0
    %2025 = vmatprep.subr.mxu0 0.0
    %2026 = vmatpush2.xpose.msra.mxu0 0.0
    %2027 = vmatprep.subr.mxu0 0.0
    %2028 = vmatpush2.xpose.msra.mxu0 0.0
    %2029 = vmatprep.subr.mxu0 0.0
    %2030 = vmatpush2.xpose.msra.mxu0 0.0
    %2031 = vmatprep.subr.mxu0 0.0
    %2032 = vmatpush2.xpose.msra.mxu0 0.0
    %2033 = vmatprep.subr.mxu0 0.0
    %2034 = vmatpush2.xpose.msra.mxu0 0.0
    %2035 = vmatprep.subr.mxu0 0.0
    %2036 = vmatpush2.xpose.msra.mxu0 0.0
    %2037 = vmatprep.subr.mxu0 0.0
    %2038 = vmatpush2.xpose.msra.mxu0 0.0
    %2039 = vmatprep.subr.mxu0 0.0
    %2040 = vmatpush2.xpose.msra.mxu0 0.0
    %2041 = vmatprep.subr.mxu0 0.0
    %2042 = vmatpush2.xpose.msra.mxu0 0.0
    %2043 = vmatprep.subr.mxu0 0.0
    %2044 = vmatpush2.xpose.msra.mxu0 0.0
    %2045 = vmatprep.subr.mxu0 0.0
    %2046 = vmatpush2.xpose.msra.mxu0 0.0
    %2047 = vmatprep.subr.mxu0 0.0
    %2048 = vmatpush2.xpose.msra.mxu0 0.0
    %2049 = vmatprep.subr.mxu0 0.0
    %2050 = vmatpush2.xpose.msra.mxu0 0.0
    %2051 = vmatprep.subr.mxu0 0.0
    %2052 = vmatpush2.xpose.msra.mxu0 0.0
    %2053 = vmatprep.subr.mxu0 0.0
    %2054 = vmatpush2.xpose.msra.mxu0 0.0
    %2055 = vmatprep.mubr.f32.mxu0 0.0
    %v2056 = vand.u32 %v1986, 4294901760
    %v2057 = vsub.f32 %v1986, %v2056
    %v2058 = vand.u32 %v2057, 4294901760
    %v2059 = vsub.f32 %v2057, %v2058
    %v2060 = vand.u32 %v2059, 4294901760
    %2061 = vmatmul.mubr.f32.gmra.mxu0 %v2060
    %v2062 = vpop.f32.mrf.mxu0
    %v2063 = vadd.f32 0.0, %v2062
    %v2064 = vpop.f32.mrf.mxu0
    %2065 = vdwg.mxu0
    %2066 = vmatprep.subr.mxu0 0.0
    %2067 = vmatpush1.xpose.msra.mxu0 0.0
    %2068 = vmatprep.subr.mxu0 0.0
    %2069 = vmatpush1.xpose.msra.mxu0 0.0
    %2070 = vmatprep.subr.mxu0 0.0
    %2071 = vmatpush1.xpose.msra.mxu0 0.0
    %2072 = vmatprep.subr.mxu0 0.0
    %2073 = vmatpush1.xpose.msra.mxu0 0.0
    %2074 = vmatprep.subr.mxu0 0.0
    %2075 = vmatpush1.xpose.msra.mxu0 0.0
    %2076 = vmatprep.subr.mxu0 0.0
    %2077 = vmatpush1.xpose.msra.mxu0 0.0
    %2078 = vmatprep.subr.mxu0 0.0
    %2079 = vmatpush1.xpose.msra.mxu0 0.0
    %2080 = vmatprep.subr.mxu0 0.0
    %2081 = vmatpush1.xpose.msra.mxu0 0.0
    %2082 = vmatprep.subr.mxu0 0.0
    %2083 = vmatpush1.xpose.msra.mxu0 0.0
    %2084 = vmatprep.subr.mxu0 0.0
    %2085 = vmatpush1.xpose.msra.mxu0 0.0
    %2086 = vmatprep.subr.mxu0 0.0
    %2087 = vmatpush1.xpose.msra.mxu0 0.0
    %2088 = vmatprep.subr.mxu0 0.0
    %2089 = vmatpush1.xpose.msra.mxu0 0.0
    %2090 = vmatprep.subr.mxu0 0.0
    %2091 = vmatpush1.xpose.msra.mxu0 0.0
    %2092 = vmatprep.subr.mxu0 0.0
    %2093 = vmatpush1.xpose.msra.mxu0 0.0
    %2094 = vmatprep.subr.mxu0 0.0
    %2095 = vmatpush1.xpose.msra.mxu0 0.0
    %2096 = vmatprep.subr.mxu0 0.0
    %v2097 = vand.u32 %v1988, 4294901760
    %v2098 = vsub.f32 %v1988, %v2097
    %v2099 = vand.u32 %v2098, 4294901760
    %v2100 = vsub.f32 %v2098, %v2099
    %v2101 = vand.u32 %v2100, 4294901760
    %2102 = vmatpush1.xpose.msra.mxu0 %v2101
    %2103 = vmatprep.subr.mxu0 0.0
    %2104 = vmatpush2.xpose.msra.mxu0 0.0
    %2105 = vmatprep.subr.mxu0 0.0
    %2106 = vmatpush2.xpose.msra.mxu0 0.0
    %2107 = vmatprep.subr.mxu0 0.0
    %2108 = vmatpush2.xpose.msra.mxu0 0.0
    %2109 = vmatprep.subr.mxu0 0.0
    %2110 = vmatpush2.xpose.msra.mxu0 0.0
    %2111 = vmatprep.subr.mxu0 0.0
    %2112 = vmatpush2.xpose.msra.mxu0 0.0
    %2113 = vmatprep.subr.mxu0 0.0
    %2114 = vmatpush2.xpose.msra.mxu0 0.0
    %2115 = vmatprep.subr.mxu0 0.0
    %2116 = vmatpush2.xpose.msra.mxu0 0.0
    %2117 = vmatprep.subr.mxu0 0.0
    %2118 = vmatpush2.xpose.msra.mxu0 0.0
    %2119 = vmatprep.subr.mxu0 0.0
    %2120 = vmatpush2.xpose.msra.mxu0 0.0
    %2121 = vmatprep.subr.mxu0 0.0
    %2122 = vmatpush2.xpose.msra.mxu0 0.0
    %2123 = vmatprep.subr.mxu0 0.0
    %2124 = vmatpush2.xpose.msra.mxu0 0.0
    %2125 = vmatprep.subr.mxu0 0.0
    %2126 = vmatpush2.xpose.msra.mxu0 0.0
    %2127 = vmatprep.subr.mxu0 0.0
    %2128 = vmatpush2.xpose.msra.mxu0 0.0
    %2129 = vmatprep.subr.mxu0 0.0
    %2130 = vmatpush2.xpose.msra.mxu0 0.0
    %2131 = vmatprep.subr.mxu0 0.0
    %2132 = vmatpush2.xpose.msra.mxu0 0.0
    %2133 = vmatprep.subr.mxu0 0.0
    %2134 = vmatpush2.xpose.msra.mxu0 0.0
    %2135 = vmatprep.mubr.f32.mxu0 0.0
    %v2136 = vand.u32 %v1986, 4294901760
    %2137 = vmatmul.mubr.f32.gmra.mxu0 %v2136
    %v2138 = vpop.f32.mrf.mxu0
    %v2139 = vadd.f32 %v2063, %v2138
    %v2140 = vpop.f32.mrf.mxu0
    %2141 = vdwg.mxu0
    %2142 = vmatprep.subr.mxu0 0.0
    %2143 = vmatpush1.xpose.msra.mxu0 0.0
    %2144 = vmatprep.subr.mxu0 0.0
    %2145 = vmatpush1.xpose.msra.mxu0 0.0
    %2146 = vmatprep.subr.mxu0 0.0
    %2147 = vmatpush1.xpose.msra.mxu0 0.0
    %2148 = vmatprep.subr.mxu0 0.0
    %2149 = vmatpush1.xpose.msra.mxu0 0.0
    %2150 = vmatprep.subr.mxu0 0.0
    %2151 = vmatpush1.xpose.msra.mxu0 0.0
    %2152 = vmatprep.subr.mxu0 0.0
    %2153 = vmatpush1.xpose.msra.mxu0 0.0
    %2154 = vmatprep.subr.mxu0 0.0
    %2155 = vmatpush1.xpose.msra.mxu0 0.0
    %2156 = vmatprep.subr.mxu0 0.0
    %2157 = vmatpush1.xpose.msra.mxu0 0.0
    %2158 = vmatprep.subr.mxu0 0.0
    %2159 = vmatpush1.xpose.msra.mxu0 0.0
    %2160 = vmatprep.subr.mxu0 0.0
    %2161 = vmatpush1.xpose.msra.mxu0 0.0
    %2162 = vmatprep.subr.mxu0 0.0
    %2163 = vmatpush1.xpose.msra.mxu0 0.0
    %2164 = vmatprep.subr.mxu0 0.0
    %2165 = vmatpush1.xpose.msra.mxu0 0.0
    %2166 = vmatprep.subr.mxu0 0.0
    %2167 = vmatpush1.xpose.msra.mxu0 0.0
    %2168 = vmatprep.subr.mxu0 0.0
    %2169 = vmatpush1.xpose.msra.mxu0 0.0
    %2170 = vmatprep.subr.mxu0 0.0
    %2171 = vmatpush1.xpose.msra.mxu0 0.0
    %2172 = vmatprep.subr.mxu0 0.0
    %v2173 = vand.u32 %v1988, 4294901760
    %v2174 = vsub.f32 %v1988, %v2173
    %2175 = vmatpush1.xpose.msra.mxu0 %v2174
    %2176 = vmatprep.subr.mxu0 0.0
    %2177 = vmatpush2.xpose.msra.mxu0 0.0
    %2178 = vmatprep.subr.mxu0 0.0
    %2179 = vmatpush2.xpose.msra.mxu0 0.0
    %2180 = vmatprep.subr.mxu0 0.0
    %2181 = vmatpush2.xpose.msra.mxu0 0.0
    %2182 = vmatprep.subr.mxu0 0.0
    %2183 = vmatpush2.xpose.msra.mxu0 0.0
    %2184 = vmatprep.subr.mxu0 0.0
    %2185 = vmatpush2.xpose.msra.mxu0 0.0
    %2186 = vmatprep.subr.mxu0 0.0
    %2187 = vmatpush2.xpose.msra.mxu0 0.0
    %2188 = vmatprep.subr.mxu0 0.0
    %2189 = vmatpush2.xpose.msra.mxu0 0.0
    %2190 = vmatprep.subr.mxu0 0.0
    %2191 = vmatpush2.xpose.msra.mxu0 0.0
    %2192 = vmatprep.subr.mxu0 0.0
    %2193 = vmatpush2.xpose.msra.mxu0 0.0
    %2194 = vmatprep.subr.mxu0 0.0
    %2195 = vmatpush2.xpose.msra.mxu0 0.0
    %2196 = vmatprep.subr.mxu0 0.0
    %2197 = vmatpush2.xpose.msra.mxu0 0.0
    %2198 = vmatprep.subr.mxu0 0.0
    %2199 = vmatpush2.xpose.msra.mxu0 0.0
    %2200 = vmatprep.subr.mxu0 0.0
    %2201 = vmatpush2.xpose.msra.mxu0 0.0
    %2202 = vmatprep.subr.mxu0 0.0
    %2203 = vmatpush2.xpose.msra.mxu0 0.0
    %2204 = vmatprep.subr.mxu0 0.0
    %2205 = vmatpush2.xpose.msra.mxu0 0.0
    %2206 = vmatprep.subr.mxu0 0.0
    %2207 = vmatpush2.xpose.msra.mxu0 0.0
    %2208 = vmatprep.mubr.f32.mxu0 0.0
    %v2209 = vand.u32 %v1986, 4294901760
    %v2210 = vsub.f32 %v1986, %v2209
    %2211 = vmatmul.mubr.f32.gmra.mxu0 %v2210
    %v2212 = vpop.f32.mrf.mxu0
    %v2213 = vadd.f32 %v2139, %v2212
    %v2214 = vpop.f32.mrf.mxu0
    %2215 = vdwg.mxu0
    %2216 = vmatprep.subr.mxu0 0.0
    %2217 = vmatpush1.xpose.msra.mxu0 0.0
    %2218 = vmatprep.subr.mxu0 0.0
    %2219 = vmatpush1.xpose.msra.mxu0 0.0
    %2220 = vmatprep.subr.mxu0 0.0
    %2221 = vmatpush1.xpose.msra.mxu0 0.0
    %2222 = vmatprep.subr.mxu0 0.0
    %2223 = vmatpush1.xpose.msra.mxu0 0.0
    %2224 = vmatprep.subr.mxu0 0.0
    %2225 = vmatpush1.xpose.msra.mxu0 0.0
    %2226 = vmatprep.subr.mxu0 0.0
    %2227 = vmatpush1.xpose.msra.mxu0 0.0
    %2228 = vmatprep.subr.mxu0 0.0
    %2229 = vmatpush1.xpose.msra.mxu0 0.0
    %2230 = vmatprep.subr.mxu0 0.0
    %2231 = vmatpush1.xpose.msra.mxu0 0.0
    %2232 = vmatprep.subr.mxu0 0.0
    %2233 = vmatpush1.xpose.msra.mxu0 0.0
    %2234 = vmatprep.subr.mxu0 0.0
    %2235 = vmatpush1.xpose.msra.mxu0 0.0
    %2236 = vmatprep.subr.mxu0 0.0
    %2237 = vmatpush1.xpose.msra.mxu0 0.0
    %2238 = vmatprep.subr.mxu0 0.0
    %2239 = vmatpush1.xpose.msra.mxu0 0.0
    %2240 = vmatprep.subr.mxu0 0.0
    %2241 = vmatpush1.xpose.msra.mxu0 0.0
    %2242 = vmatprep.subr.mxu0 0.0
    %2243 = vmatpush1.xpose.msra.mxu0 0.0
    %2244 = vmatprep.subr.mxu0 0.0
    %2245 = vmatpush1.xpose.msra.mxu0 0.0
    %2246 = vmatprep.subr.mxu0 0.0
    %v2247 = vand.u32 %v1988, 4294901760
    %2248 = vmatpush1.xpose.msra.mxu0 %v2247
    %2249 = vmatprep.subr.mxu0 0.0
    %2250 = vmatpush2.xpose.msra.mxu0 0.0
    %2251 = vmatprep.subr.mxu0 0.0
    %2252 = vmatpush2.xpose.msra.mxu0 0.0
    %2253 = vmatprep.subr.mxu0 0.0
    %2254 = vmatpush2.xpose.msra.mxu0 0.0
    %2255 = vmatprep.subr.mxu0 0.0
    %2256 = vmatpush2.xpose.msra.mxu0 0.0
    %2257 = vmatprep.subr.mxu0 0.0
    %2258 = vmatpush2.xpose.msra.mxu0 0.0
    %2259 = vmatprep.subr.mxu0 0.0
    %2260 = vmatpush2.xpose.msra.mxu0 0.0
    %2261 = vmatprep.subr.mxu0 0.0
    %2262 = vmatpush2.xpose.msra.mxu0 0.0
    %2263 = vmatprep.subr.mxu0 0.0
    %2264 = vmatpush2.xpose.msra.mxu0 0.0
    %2265 = vmatprep.subr.mxu0 0.0
    %2266 = vmatpush2.xpose.msra.mxu0 0.0
    %2267 = vmatprep.subr.mxu0 0.0
    %2268 = vmatpush2.xpose.msra.mxu0 0.0
    %2269 = vmatprep.subr.mxu0 0.0
    %2270 = vmatpush2.xpose.msra.mxu0 0.0
    %2271 = vmatprep.subr.mxu0 0.0
    %2272 = vmatpush2.xpose.msra.mxu0 0.0
    %2273 = vmatprep.subr.mxu0 0.0
    %2274 = vmatpush2.xpose.msra.mxu0 0.0
    %2275 = vmatprep.subr.mxu0 0.0
    %2276 = vmatpush2.xpose.msra.mxu0 0.0
    %2277 = vmatprep.subr.mxu0 0.0
    %2278 = vmatpush2.xpose.msra.mxu0 0.0
    %2279 = vmatprep.subr.mxu0 0.0
    %2280 = vmatpush2.xpose.msra.mxu0 0.0
    %2281 = vmatprep.mubr.f32.mxu0 0.0
    %v2282 = vand.u32 %v1986, 4294901760
    %v2283 = vsub.f32 %v1986, %v2282
    %v2284 = vand.u32 %v2283, 4294901760
    %2285 = vmatmul.mubr.f32.gmra.mxu0 %v2284
    %v2286 = vpop.f32.mrf.mxu0
    %v2287 = vadd.f32 %v2213, %v2286
    %v2288 = vpop.f32.mrf.mxu0
    %2289 = vdwg.mxu0
    %2290 = vmatprep.subr.mxu0 0.0
    %2291 = vmatpush1.xpose.msra.mxu0 0.0
    %2292 = vmatprep.subr.mxu0 0.0
    %2293 = vmatpush1.xpose.msra.mxu0 0.0
    %2294 = vmatprep.subr.mxu0 0.0
    %2295 = vmatpush1.xpose.msra.mxu0 0.0
    %2296 = vmatprep.subr.mxu0 0.0
    %2297 = vmatpush1.xpose.msra.mxu0 0.0
    %2298 = vmatprep.subr.mxu0 0.0
    %2299 = vmatpush1.xpose.msra.mxu0 0.0
    %2300 = vmatprep.subr.mxu0 0.0
    %2301 = vmatpush1.xpose.msra.mxu0 0.0
    %2302 = vmatprep.subr.mxu0 0.0
    %2303 = vmatpush1.xpose.msra.mxu0 0.0
    %2304 = vmatprep.subr.mxu0 0.0
    %2305 = vmatpush1.xpose.msra.mxu0 0.0
    %2306 = vmatprep.subr.mxu0 0.0
    %2307 = vmatpush1.xpose.msra.mxu0 0.0
    %2308 = vmatprep.subr.mxu0 0.0
    %2309 = vmatpush1.xpose.msra.mxu0 0.0
    %2310 = vmatprep.subr.mxu0 0.0
    %2311 = vmatpush1.xpose.msra.mxu0 0.0
    %2312 = vmatprep.subr.mxu0 0.0
    %2313 = vmatpush1.xpose.msra.mxu0 0.0
    %2314 = vmatprep.subr.mxu0 0.0
    %2315 = vmatpush1.xpose.msra.mxu0 0.0
    %2316 = vmatprep.subr.mxu0 0.0
    %2317 = vmatpush1.xpose.msra.mxu0 0.0
    %2318 = vmatprep.subr.mxu0 0.0
    %2319 = vmatpush1.xpose.msra.mxu0 0.0
    %2320 = vmatprep.subr.mxu0 0.0
    %v2321 = vand.u32 %v1988, 4294901760
    %v2322 = vsub.f32 %v1988, %v2321
    %v2323 = vand.u32 %v2322, 4294901760
    %2324 = vmatpush1.xpose.msra.mxu0 %v2323
    %2325 = vmatprep.subr.mxu0 0.0
    %2326 = vmatpush2.xpose.msra.mxu0 0.0
    %2327 = vmatprep.subr.mxu0 0.0
    %2328 = vmatpush2.xpose.msra.mxu0 0.0
    %2329 = vmatprep.subr.mxu0 0.0
    %2330 = vmatpush2.xpose.msra.mxu0 0.0
    %2331 = vmatprep.subr.mxu0 0.0
    %2332 = vmatpush2.xpose.msra.mxu0 0.0
    %2333 = vmatprep.subr.mxu0 0.0
    %2334 = vmatpush2.xpose.msra.mxu0 0.0
    %2335 = vmatprep.subr.mxu0 0.0
    %2336 = vmatpush2.xpose.msra.mxu0 0.0
    %2337 = vmatprep.subr.mxu0 0.0
    %2338 = vmatpush2.xpose.msra.mxu0 0.0
    %2339 = vmatprep.subr.mxu0 0.0
    %2340 = vmatpush2.xpose.msra.mxu0 0.0
    %2341 = vmatprep.subr.mxu0 0.0
    %2342 = vmatpush2.xpose.msra.mxu0 0.0
    %2343 = vmatprep.subr.mxu0 0.0
    %2344 = vmatpush2.xpose.msra.mxu0 0.0
    %2345 = vmatprep.subr.mxu0 0.0
    %2346 = vmatpush2.xpose.msra.mxu0 0.0
    %2347 = vmatprep.subr.mxu0 0.0
    %2348 = vmatpush2.xpose.msra.mxu0 0.0
    %2349 = vmatprep.subr.mxu0 0.0
    %2350 = vmatpush2.xpose.msra.mxu0 0.0
    %2351 = vmatprep.subr.mxu0 0.0
    %2352 = vmatpush2.xpose.msra.mxu0 0.0
    %2353 = vmatprep.subr.mxu0 0.0
    %2354 = vmatpush2.xpose.msra.mxu0 0.0
    %2355 = vmatprep.subr.mxu0 0.0
    %2356 = vmatpush2.xpose.msra.mxu0 0.0
    %2357 = vmatprep.mubr.f32.mxu0 0.0
    %v2358 = vand.u32 %v1986, 4294901760
    %2359 = vmatmul.mubr.f32.gmra.mxu0 %v2358
    %v2360 = vpop.f32.mrf.mxu0
    %v2361 = vadd.f32 %v2287, %v2360
    %v2362 = vpop.f32.mrf.mxu0
    %2363 = vdwg.mxu0
    %2364 = vmatprep.subr.mxu0 0.0
    %2365 = vmatpush1.xpose.msra.mxu0 0.0
    %2366 = vmatprep.subr.mxu0 0.0
    %2367 = vmatpush1.xpose.msra.mxu0 0.0
    %2368 = vmatprep.subr.mxu0 0.0
    %2369 = vmatpush1.xpose.msra.mxu0 0.0
    %2370 = vmatprep.subr.mxu0 0.0
    %2371 = vmatpush1.xpose.msra.mxu0 0.0
    %2372 = vmatprep.subr.mxu0 0.0
    %2373 = vmatpush1.xpose.msra.mxu0 0.0
    %2374 = vmatprep.subr.mxu0 0.0
    %2375 = vmatpush1.xpose.msra.mxu0 0.0
    %2376 = vmatprep.subr.mxu0 0.0
    %2377 = vmatpush1.xpose.msra.mxu0 0.0
    %2378 = vmatprep.subr.mxu0 0.0
    %2379 = vmatpush1.xpose.msra.mxu0 0.0
    %2380 = vmatprep.subr.mxu0 0.0
    %2381 = vmatpush1.xpose.msra.mxu0 0.0
    %2382 = vmatprep.subr.mxu0 0.0
    %2383 = vmatpush1.xpose.msra.mxu0 0.0
    %2384 = vmatprep.subr.mxu0 0.0
    %2385 = vmatpush1.xpose.msra.mxu0 0.0
    %2386 = vmatprep.subr.mxu0 0.0
    %2387 = vmatpush1.xpose.msra.mxu0 0.0
    %2388 = vmatprep.subr.mxu0 0.0
    %2389 = vmatpush1.xpose.msra.mxu0 0.0
    %2390 = vmatprep.subr.mxu0 0.0
    %2391 = vmatpush1.xpose.msra.mxu0 0.0
    %2392 = vmatprep.subr.mxu0 0.0
    %2393 = vmatpush1.xpose.msra.mxu0 0.0
    %2394 = vmatprep.subr.mxu0 0.0
    %v2395 = vand.u32 %v1988, 4294901760
    %2396 = vmatpush1.xpose.msra.mxu0 %v2395
    %2397 = vmatprep.subr.mxu0 0.0
    %2398 = vmatpush2.xpose.msra.mxu0 0.0
    %2399 = vmatprep.subr.mxu0 0.0
    %2400 = vmatpush2.xpose.msra.mxu0 0.0
    %2401 = vmatprep.subr.mxu0 0.0
    %2402 = vmatpush2.xpose.msra.mxu0 0.0
    %2403 = vmatprep.subr.mxu0 0.0
    %2404 = vmatpush2.xpose.msra.mxu0 0.0
    %2405 = vmatprep.subr.mxu0 0.0
    %2406 = vmatpush2.xpose.msra.mxu0 0.0
    %2407 = vmatprep.subr.mxu0 0.0
    %2408 = vmatpush2.xpose.msra.mxu0 0.0
    %2409 = vmatprep.subr.mxu0 0.0
    %2410 = vmatpush2.xpose.msra.mxu0 0.0
    %2411 = vmatprep.subr.mxu0 0.0
    %2412 = vmatpush2.xpose.msra.mxu0 0.0
    %2413 = vmatprep.subr.mxu0 0.0
    %2414 = vmatpush2.xpose.msra.mxu0 0.0
    %2415 = vmatprep.subr.mxu0 0.0
    %2416 = vmatpush2.xpose.msra.mxu0 0.0
    %2417 = vmatprep.subr.mxu0 0.0
    %2418 = vmatpush2.xpose.msra.mxu0 0.0
    %2419 = vmatprep.subr.mxu0 0.0
    %2420 = vmatpush2.xpose.msra.mxu0 0.0
    %2421 = vmatprep.subr.mxu0 0.0
    %2422 = vmatpush2.xpose.msra.mxu0 0.0
    %2423 = vmatprep.subr.mxu0 0.0
    %2424 = vmatpush2.xpose.msra.mxu0 0.0
    %2425 = vmatprep.subr.mxu0 0.0
    %2426 = vmatpush2.xpose.msra.mxu0 0.0
    %2427 = vmatprep.subr.mxu0 0.0
    %2428 = vmatpush2.xpose.msra.mxu0 0.0
    %2429 = vmatprep.mubr.f32.mxu0 0.0
    %v2430 = vand.u32 %v1986, 4294901760
    %2431 = vmatmul.mubr.f32.gmra.mxu0 %v2430
    %v2432 = vpop.f32.mrf.mxu0
    %v2433 = vadd.f32 %v2361, %v2432
    %v2434 = vpop.f32.mrf.mxu0
    %2435 = vdwg.mxu0
    %2436 = vrot.lane.b32.xlu0 %v620, 96
    %v2437 = vpop.permute.xlu0 %2436
    %v2438 = vsel %vm629, %v620, 0
    %v2440 = vsel %vm629, %v2437, 0
    %2442 = vmatprep.subr.mxu0 0.0
    %2443 = vmatpush1.xpose.msra.mxu0 0.0
    %2444 = vmatprep.subr.mxu0 0.0
    %2445 = vmatpush1.xpose.msra.mxu0 0.0
    %2446 = vmatprep.subr.mxu0 0.0
    %2447 = vmatpush1.xpose.msra.mxu0 0.0
    %2448 = vmatprep.subr.mxu0 0.0
    %2449 = vmatpush1.xpose.msra.mxu0 0.0
    %2450 = vmatprep.subr.mxu0 0.0
    %2451 = vmatpush1.xpose.msra.mxu0 0.0
    %2452 = vmatprep.subr.mxu0 0.0
    %2453 = vmatpush1.xpose.msra.mxu0 0.0
    %2454 = vmatprep.subr.mxu0 0.0
    %2455 = vmatpush1.xpose.msra.mxu0 0.0
    %2456 = vmatprep.subr.mxu0 0.0
    %2457 = vmatpush1.xpose.msra.mxu0 0.0
    %2458 = vmatprep.subr.mxu0 0.0
    %2459 = vmatpush1.xpose.msra.mxu0 0.0
    %2460 = vmatprep.subr.mxu0 0.0
    %2461 = vmatpush1.xpose.msra.mxu0 0.0
    %2462 = vmatprep.subr.mxu0 0.0
    %2463 = vmatpush1.xpose.msra.mxu0 0.0
    %2464 = vmatprep.subr.mxu0 0.0
    %2465 = vmatpush1.xpose.msra.mxu0 0.0
    %2466 = vmatprep.subr.mxu0 0.0
    %2467 = vmatpush1.xpose.msra.mxu0 0.0
    %2468 = vmatprep.subr.mxu0 0.0
    %2469 = vmatpush1.xpose.msra.mxu0 0.0
    %2470 = vmatprep.subr.mxu0 0.0
    %2471 = vmatpush1.xpose.msra.mxu0 0.0
    %2472 = vmatprep.subr.mxu0 0.0
    %v2473 = vand.u32 %v2440, 4294901760
    %2474 = vmatpush1.xpose.msra.mxu0 %v2473
    %2475 = vmatprep.subr.mxu0 0.0
    %2476 = vmatpush2.xpose.msra.mxu0 0.0
    %2477 = vmatprep.subr.mxu0 0.0
    %2478 = vmatpush2.xpose.msra.mxu0 0.0
    %2479 = vmatprep.subr.mxu0 0.0
    %2480 = vmatpush2.xpose.msra.mxu0 0.0
    %2481 = vmatprep.subr.mxu0 0.0
    %2482 = vmatpush2.xpose.msra.mxu0 0.0
    %2483 = vmatprep.subr.mxu0 0.0
    %2484 = vmatpush2.xpose.msra.mxu0 0.0
    %2485 = vmatprep.subr.mxu0 0.0
    %2486 = vmatpush2.xpose.msra.mxu0 0.0
    %2487 = vmatprep.subr.mxu0 0.0
    %2488 = vmatpush2.xpose.msra.mxu0 0.0
    %2489 = vmatprep.subr.mxu0 0.0
    %2490 = vmatpush2.xpose.msra.mxu0 0.0
    %2491 = vmatprep.subr.mxu0 0.0
    %2492 = vmatpush2.xpose.msra.mxu0 0.0
    %2493 = vmatprep.subr.mxu0 0.0
    %2494 = vmatpush2.xpose.msra.mxu0 0.0
    %2495 = vmatprep.subr.mxu0 0.0
    %2496 = vmatpush2.xpose.msra.mxu0 0.0
    %2497 = vmatprep.subr.mxu0 0.0
    %2498 = vmatpush2.xpose.msra.mxu0 0.0
    %2499 = vmatprep.subr.mxu0 0.0
    %2500 = vmatpush2.xpose.msra.mxu0 0.0
    %2501 = vmatprep.subr.mxu0 0.0
    %2502 = vmatpush2.xpose.msra.mxu0 0.0
    %2503 = vmatprep.subr.mxu0 0.0
    %2504 = vmatpush2.xpose.msra.mxu0 0.0
    %2505 = vmatprep.subr.mxu0 0.0
    %2506 = vmatpush2.xpose.msra.mxu0 0.0
    %2507 = vmatprep.mubr.f32.mxu0 0.0
    %v2508 = vand.u32 %v2438, 4294901760
    %v2509 = vsub.f32 %v2438, %v2508
    %v2510 = vand.u32 %v2509, 4294901760
    %v2511 = vsub.f32 %v2509, %v2510
    %v2512 = vand.u32 %v2511, 4294901760
    %2513 = vmatmul.mubr.f32.gmra.mxu0 %v2512
    %v2514 = vpop.f32.mrf.mxu0
    %v2515 = vadd.f32 0.0, %v2514
    %v2516 = vpop.f32.mrf.mxu0
    %2517 = vdwg.mxu0
    %2518 = vmatprep.subr.mxu0 0.0
    %2519 = vmatpush1.xpose.msra.mxu0 0.0
    %2520 = vmatprep.subr.mxu0 0.0
    %2521 = vmatpush1.xpose.msra.mxu0 0.0
    %2522 = vmatprep.subr.mxu0 0.0
    %2523 = vmatpush1.xpose.msra.mxu0 0.0
    %2524 = vmatprep.subr.mxu0 0.0
    %2525 = vmatpush1.xpose.msra.mxu0 0.0
    %2526 = vmatprep.subr.mxu0 0.0
    %2527 = vmatpush1.xpose.msra.mxu0 0.0
    %2528 = vmatprep.subr.mxu0 0.0
    %2529 = vmatpush1.xpose.msra.mxu0 0.0
    %2530 = vmatprep.subr.mxu0 0.0
    %2531 = vmatpush1.xpose.msra.mxu0 0.0
    %2532 = vmatprep.subr.mxu0 0.0
    %2533 = vmatpush1.xpose.msra.mxu0 0.0
    %2534 = vmatprep.subr.mxu0 0.0
    %2535 = vmatpush1.xpose.msra.mxu0 0.0
    %2536 = vmatprep.subr.mxu0 0.0
    %2537 = vmatpush1.xpose.msra.mxu0 0.0
    %2538 = vmatprep.subr.mxu0 0.0
    %2539 = vmatpush1.xpose.msra.mxu0 0.0
    %2540 = vmatprep.subr.mxu0 0.0
    %2541 = vmatpush1.xpose.msra.mxu0 0.0
    %2542 = vmatprep.subr.mxu0 0.0
    %2543 = vmatpush1.xpose.msra.mxu0 0.0
    %2544 = vmatprep.subr.mxu0 0.0
    %2545 = vmatpush1.xpose.msra.mxu0 0.0
    %2546 = vmatprep.subr.mxu0 0.0
    %2547 = vmatpush1.xpose.msra.mxu0 0.0
    %2548 = vmatprep.subr.mxu0 0.0
    %v2549 = vand.u32 %v2440, 4294901760
    %v2550 = vsub.f32 %v2440, %v2549
    %v2551 = vand.u32 %v2550, 4294901760
    %v2552 = vsub.f32 %v2550, %v2551
    %v2553 = vand.u32 %v2552, 4294901760
    %2554 = vmatpush1.xpose.msra.mxu0 %v2553
    %2555 = vmatprep.subr.mxu0 0.0
    %2556 = vmatpush2.xpose.msra.mxu0 0.0
    %2557 = vmatprep.subr.mxu0 0.0
    %2558 = vmatpush2.xpose.msra.mxu0 0.0
    %2559 = vmatprep.subr.mxu0 0.0
    %2560 = vmatpush2.xpose.msra.mxu0 0.0
    %2561 = vmatprep.subr.mxu0 0.0
    %2562 = vmatpush2.xpose.msra.mxu0 0.0
    %2563 = vmatprep.subr.mxu0 0.0
    %2564 = vmatpush2.xpose.msra.mxu0 0.0
    %2565 = vmatprep.subr.mxu0 0.0
    %2566 = vmatpush2.xpose.msra.mxu0 0.0
    %2567 = vmatprep.subr.mxu0 0.0
    %2568 = vmatpush2.xpose.msra.mxu0 0.0
    %2569 = vmatprep.subr.mxu0 0.0
    %2570 = vmatpush2.xpose.msra.mxu0 0.0
    %2571 = vmatprep.subr.mxu0 0.0
    %2572 = vmatpush2.xpose.msra.mxu0 0.0
    %2573 = vmatprep.subr.mxu0 0.0
    %2574 = vmatpush2.xpose.msra.mxu0 0.0
    %2575 = vmatprep.subr.mxu0 0.0
    %2576 = vmatpush2.xpose.msra.mxu0 0.0
    %2577 = vmatprep.subr.mxu0 0.0
    %2578 = vmatpush2.xpose.msra.mxu0 0.0
    %2579 = vmatprep.subr.mxu0 0.0
    %2580 = vmatpush2.xpose.msra.mxu0 0.0
    %2581 = vmatprep.subr.mxu0 0.0
    %2582 = vmatpush2.xpose.msra.mxu0 0.0
    %2583 = vmatprep.subr.mxu0 0.0
    %2584 = vmatpush2.xpose.msra.mxu0 0.0
    %2585 = vmatprep.subr.mxu0 0.0
    %2586 = vmatpush2.xpose.msra.mxu0 0.0
    %2587 = vmatprep.mubr.f32.mxu0 0.0
    %v2588 = vand.u32 %v2438, 4294901760
    %2589 = vmatmul.mubr.f32.gmra.mxu0 %v2588
    %v2590 = vpop.f32.mrf.mxu0
    %v2591 = vadd.f32 %v2515, %v2590
    %v2592 = vpop.f32.mrf.mxu0
    %2593 = vdwg.mxu0
    %2594 = vmatprep.subr.mxu0 0.0
    %2595 = vmatpush1.xpose.msra.mxu0 0.0
    %2596 = vmatprep.subr.mxu0 0.0
    %2597 = vmatpush1.xpose.msra.mxu0 0.0
    %2598 = vmatprep.subr.mxu0 0.0
    %2599 = vmatpush1.xpose.msra.mxu0 0.0
    %2600 = vmatprep.subr.mxu0 0.0
    %2601 = vmatpush1.xpose.msra.mxu0 0.0
    %2602 = vmatprep.subr.mxu0 0.0
    %2603 = vmatpush1.xpose.msra.mxu0 0.0
    %2604 = vmatprep.subr.mxu0 0.0
    %2605 = vmatpush1.xpose.msra.mxu0 0.0
    %2606 = vmatprep.subr.mxu0 0.0
    %2607 = vmatpush1.xpose.msra.mxu0 0.0
    %2608 = vmatprep.subr.mxu0 0.0
    %2609 = vmatpush1.xpose.msra.mxu0 0.0
    %2610 = vmatprep.subr.mxu0 0.0
    %2611 = vmatpush1.xpose.msra.mxu0 0.0
    %2612 = vmatprep.subr.mxu0 0.0
    %2613 = vmatpush1.xpose.msra.mxu0 0.0
    %2614 = vmatprep.subr.mxu0 0.0
    %2615 = vmatpush1.xpose.msra.mxu0 0.0
    %2616 = vmatprep.subr.mxu0 0.0
    %2617 = vmatpush1.xpose.msra.mxu0 0.0
    %2618 = vmatprep.subr.mxu0 0.0
    %2619 = vmatpush1.xpose.msra.mxu0 0.0
    %2620 = vmatprep.subr.mxu0 0.0
    %2621 = vmatpush1.xpose.msra.mxu0 0.0
    %2622 = vmatprep.subr.mxu0 0.0
    %2623 = vmatpush1.xpose.msra.mxu0 0.0
    %2624 = vmatprep.subr.mxu0 0.0
    %v2625 = vand.u32 %v2440, 4294901760
    %v2626 = vsub.f32 %v2440, %v2625
    %2627 = vmatpush1.xpose.msra.mxu0 %v2626
    %2628 = vmatprep.subr.mxu0 0.0
    %2629 = vmatpush2.xpose.msra.mxu0 0.0
    %2630 = vmatprep.subr.mxu0 0.0
    %2631 = vmatpush2.xpose.msra.mxu0 0.0
    %2632 = vmatprep.subr.mxu0 0.0
    %2633 = vmatpush2.xpose.msra.mxu0 0.0
    %2634 = vmatprep.subr.mxu0 0.0
    %2635 = vmatpush2.xpose.msra.mxu0 0.0
    %2636 = vmatprep.subr.mxu0 0.0
    %2637 = vmatpush2.xpose.msra.mxu0 0.0
    %2638 = vmatprep.subr.mxu0 0.0
    %2639 = vmatpush2.xpose.msra.mxu0 0.0
    %2640 = vmatprep.subr.mxu0 0.0
    %2641 = vmatpush2.xpose.msra.mxu0 0.0
    %2642 = vmatprep.subr.mxu0 0.0
    %2643 = vmatpush2.xpose.msra.mxu0 0.0
    %2644 = vmatprep.subr.mxu0 0.0
    %2645 = vmatpush2.xpose.msra.mxu0 0.0
    %2646 = vmatprep.subr.mxu0 0.0
    %2647 = vmatpush2.xpose.msra.mxu0 0.0
    %2648 = vmatprep.subr.mxu0 0.0
    %2649 = vmatpush2.xpose.msra.mxu0 0.0
    %2650 = vmatprep.subr.mxu0 0.0
    %2651 = vmatpush2.xpose.msra.mxu0 0.0
    %2652 = vmatprep.subr.mxu0 0.0
    %2653 = vmatpush2.xpose.msra.mxu0 0.0
    %2654 = vmatprep.subr.mxu0 0.0
    %2655 = vmatpush2.xpose.msra.mxu0 0.0
    %2656 = vmatprep.subr.mxu0 0.0
    %2657 = vmatpush2.xpose.msra.mxu0 0.0
    %2658 = vmatprep.subr.mxu0 0.0
    %2659 = vmatpush2.xpose.msra.mxu0 0.0
    %2660 = vmatprep.mubr.f32.mxu0 0.0
    %v2661 = vand.u32 %v2438, 4294901760
    %v2662 = vsub.f32 %v2438, %v2661
    %2663 = vmatmul.mubr.f32.gmra.mxu0 %v2662
    %v2664 = vpop.f32.mrf.mxu0
    %v2665 = vadd.f32 %v2591, %v2664
    %v2666 = vpop.f32.mrf.mxu0
    %2667 = vdwg.mxu0
    %2668 = vmatprep.subr.mxu0 0.0
    %2669 = vmatpush1.xpose.msra.mxu0 0.0
    %2670 = vmatprep.subr.mxu0 0.0
    %2671 = vmatpush1.xpose.msra.mxu0 0.0
    %2672 = vmatprep.subr.mxu0 0.0
    %2673 = vmatpush1.xpose.msra.mxu0 0.0
    %2674 = vmatprep.subr.mxu0 0.0
    %2675 = vmatpush1.xpose.msra.mxu0 0.0
    %2676 = vmatprep.subr.mxu0 0.0
    %2677 = vmatpush1.xpose.msra.mxu0 0.0
    %2678 = vmatprep.subr.mxu0 0.0
    %2679 = vmatpush1.xpose.msra.mxu0 0.0
    %2680 = vmatprep.subr.mxu0 0.0
    %2681 = vmatpush1.xpose.msra.mxu0 0.0
    %2682 = vmatprep.subr.mxu0 0.0
    %2683 = vmatpush1.xpose.msra.mxu0 0.0
    %2684 = vmatprep.subr.mxu0 0.0
    %2685 = vmatpush1.xpose.msra.mxu0 0.0
    %2686 = vmatprep.subr.mxu0 0.0
    %2687 = vmatpush1.xpose.msra.mxu0 0.0
    %2688 = vmatprep.subr.mxu0 0.0
    %2689 = vmatpush1.xpose.msra.mxu0 0.0
    %2690 = vmatprep.subr.mxu0 0.0
    %2691 = vmatpush1.xpose.msra.mxu0 0.0
    %2692 = vmatprep.subr.mxu0 0.0
    %2693 = vmatpush1.xpose.msra.mxu0 0.0
    %2694 = vmatprep.subr.mxu0 0.0
    %2695 = vmatpush1.xpose.msra.mxu0 0.0
    %2696 = vmatprep.subr.mxu0 0.0
    %2697 = vmatpush1.xpose.msra.mxu0 0.0
    %2698 = vmatprep.subr.mxu0 0.0
    %v2699 = vand.u32 %v2440, 4294901760
    %2700 = vmatpush1.xpose.msra.mxu0 %v2699
    %2701 = vmatprep.subr.mxu0 0.0
    %2702 = vmatpush2.xpose.msra.mxu0 0.0
    %2703 = vmatprep.subr.mxu0 0.0
    %2704 = vmatpush2.xpose.msra.mxu0 0.0
    %2705 = vmatprep.subr.mxu0 0.0
    %2706 = vmatpush2.xpose.msra.mxu0 0.0
    %2707 = vmatprep.subr.mxu0 0.0
    %2708 = vmatpush2.xpose.msra.mxu0 0.0
    %2709 = vmatprep.subr.mxu0 0.0
    %2710 = vmatpush2.xpose.msra.mxu0 0.0
    %2711 = vmatprep.subr.mxu0 0.0
    %2712 = vmatpush2.xpose.msra.mxu0 0.0
    %2713 = vmatprep.subr.mxu0 0.0
    %2714 = vmatpush2.xpose.msra.mxu0 0.0
    %2715 = vmatprep.subr.mxu0 0.0
    %2716 = vmatpush2.xpose.msra.mxu0 0.0
    %2717 = vmatprep.subr.mxu0 0.0
    %2718 = vmatpush2.xpose.msra.mxu0 0.0
    %2719 = vmatprep.subr.mxu0 0.0
    %2720 = vmatpush2.xpose.msra.mxu0 0.0
    %2721 = vmatprep.subr.mxu0 0.0
    %2722 = vmatpush2.xpose.msra.mxu0 0.0
    %2723 = vmatprep.subr.mxu0 0.0
    %2724 = vmatpush2.xpose.msra.mxu0 0.0
    %2725 = vmatprep.subr.mxu0 0.0
    %2726 = vmatpush2.xpose.msra.mxu0 0.0
    %2727 = vmatprep.subr.mxu0 0.0
    %2728 = vmatpush2.xpose.msra.mxu0 0.0
    %2729 = vmatprep.subr.mxu0 0.0
    %2730 = vmatpush2.xpose.msra.mxu0 0.0
    %2731 = vmatprep.subr.mxu0 0.0
    %2732 = vmatpush2.xpose.msra.mxu0 0.0
    %2733 = vmatprep.mubr.f32.mxu0 0.0
    %v2734 = vand.u32 %v2438, 4294901760
    %v2735 = vsub.f32 %v2438, %v2734
    %v2736 = vand.u32 %v2735, 4294901760
    %2737 = vmatmul.mubr.f32.gmra.mxu0 %v2736
    %v2738 = vpop.f32.mrf.mxu0
    %v2739 = vadd.f32 %v2665, %v2738
    %v2740 = vpop.f32.mrf.mxu0
    %2741 = vdwg.mxu0
    %2742 = vmatprep.subr.mxu0 0.0
    %2743 = vmatpush1.xpose.msra.mxu0 0.0
    %2744 = vmatprep.subr.mxu0 0.0
    %2745 = vmatpush1.xpose.msra.mxu0 0.0
    %2746 = vmatprep.subr.mxu0 0.0
    %2747 = vmatpush1.xpose.msra.mxu0 0.0
    %2748 = vmatprep.subr.mxu0 0.0
    %2749 = vmatpush1.xpose.msra.mxu0 0.0
    %2750 = vmatprep.subr.mxu0 0.0
    %2751 = vmatpush1.xpose.msra.mxu0 0.0
    %2752 = vmatprep.subr.mxu0 0.0
    %2753 = vmatpush1.xpose.msra.mxu0 0.0
    %2754 = vmatprep.subr.mxu0 0.0
    %2755 = vmatpush1.xpose.msra.mxu0 0.0
    %2756 = vmatprep.subr.mxu0 0.0
    %2757 = vmatpush1.xpose.msra.mxu0 0.0
    %2758 = vmatprep.subr.mxu0 0.0
    %2759 = vmatpush1.xpose.msra.mxu0 0.0
    %2760 = vmatprep.subr.mxu0 0.0
    %2761 = vmatpush1.xpose.msra.mxu0 0.0
    %2762 = vmatprep.subr.mxu0 0.0
    %2763 = vmatpush1.xpose.msra.mxu0 0.0
    %2764 = vmatprep.subr.mxu0 0.0
    %2765 = vmatpush1.xpose.msra.mxu0 0.0
    %2766 = vmatprep.subr.mxu0 0.0
    %2767 = vmatpush1.xpose.msra.mxu0 0.0
    %2768 = vmatprep.subr.mxu0 0.0
    %2769 = vmatpush1.xpose.msra.mxu0 0.0
    %2770 = vmatprep.subr.mxu0 0.0
    %2771 = vmatpush1.xpose.msra.mxu0 0.0
    %2772 = vmatprep.subr.mxu0 0.0
    %v2773 = vand.u32 %v2440, 4294901760
    %v2774 = vsub.f32 %v2440, %v2773
    %v2775 = vand.u32 %v2774, 4294901760
    %2776 = vmatpush1.xpose.msra.mxu0 %v2775
    %2777 = vmatprep.subr.mxu0 0.0
    %2778 = vmatpush2.xpose.msra.mxu0 0.0
    %2779 = vmatprep.subr.mxu0 0.0
    %2780 = vmatpush2.xpose.msra.mxu0 0.0
    %2781 = vmatprep.subr.mxu0 0.0
    %2782 = vmatpush2.xpose.msra.mxu0 0.0
    %2783 = vmatprep.subr.mxu0 0.0
    %2784 = vmatpush2.xpose.msra.mxu0 0.0
    %2785 = vmatprep.subr.mxu0 0.0
    %2786 = vmatpush2.xpose.msra.mxu0 0.0
    %2787 = vmatprep.subr.mxu0 0.0
    %2788 = vmatpush2.xpose.msra.mxu0 0.0
    %2789 = vmatprep.subr.mxu0 0.0
    %2790 = vmatpush2.xpose.msra.mxu0 0.0
    %2791 = vmatprep.subr.mxu0 0.0
    %2792 = vmatpush2.xpose.msra.mxu0 0.0
    %2793 = vmatprep.subr.mxu0 0.0
    %2794 = vmatpush2.xpose.msra.mxu0 0.0
    %2795 = vmatprep.subr.mxu0 0.0
    %2796 = vmatpush2.xpose.msra.mxu0 0.0
    %2797 = vmatprep.subr.mxu0 0.0
    %2798 = vmatpush2.xpose.msra.mxu0 0.0
    %2799 = vmatprep.subr.mxu0 0.0
    %2800 = vmatpush2.xpose.msra.mxu0 0.0
    %2801 = vmatprep.subr.mxu0 0.0
    %2802 = vmatpush2.xpose.msra.mxu0 0.0
    %2803 = vmatprep.subr.mxu0 0.0
    %2804 = vmatpush2.xpose.msra.mxu0 0.0
    %2805 = vmatprep.subr.mxu0 0.0
    %2806 = vmatpush2.xpose.msra.mxu0 0.0
    %2807 = vmatprep.subr.mxu0 0.0
    %2808 = vmatpush2.xpose.msra.mxu0 0.0
    %2809 = vmatprep.mubr.f32.mxu0 0.0
    %v2810 = vand.u32 %v2438, 4294901760
    %2811 = vmatmul.mubr.f32.gmra.mxu0 %v2810
    %v2812 = vpop.f32.mrf.mxu0
    %v2813 = vadd.f32 %v2739, %v2812
    %v2814 = vpop.f32.mrf.mxu0
    %2815 = vdwg.mxu0
    %2816 = vmatprep.subr.mxu0 0.0
    %2817 = vmatpush1.xpose.msra.mxu0 0.0
    %2818 = vmatprep.subr.mxu0 0.0
    %2819 = vmatpush1.xpose.msra.mxu0 0.0
    %2820 = vmatprep.subr.mxu0 0.0
    %2821 = vmatpush1.xpose.msra.mxu0 0.0
    %2822 = vmatprep.subr.mxu0 0.0
    %2823 = vmatpush1.xpose.msra.mxu0 0.0
    %2824 = vmatprep.subr.mxu0 0.0
    %2825 = vmatpush1.xpose.msra.mxu0 0.0
    %2826 = vmatprep.subr.mxu0 0.0
    %2827 = vmatpush1.xpose.msra.mxu0 0.0
    %2828 = vmatprep.subr.mxu0 0.0
    %2829 = vmatpush1.xpose.msra.mxu0 0.0
    %2830 = vmatprep.subr.mxu0 0.0
    %2831 = vmatpush1.xpose.msra.mxu0 0.0
    %2832 = vmatprep.subr.mxu0 0.0
    %2833 = vmatpush1.xpose.msra.mxu0 0.0
    %2834 = vmatprep.subr.mxu0 0.0
    %2835 = vmatpush1.xpose.msra.mxu0 0.0
    %2836 = vmatprep.subr.mxu0 0.0
    %2837 = vmatpush1.xpose.msra.mxu0 0.0
    %2838 = vmatprep.subr.mxu0 0.0
    %2839 = vmatpush1.xpose.msra.mxu0 0.0
    %2840 = vmatprep.subr.mxu0 0.0
    %2841 = vmatpush1.xpose.msra.mxu0 0.0
    %2842 = vmatprep.subr.mxu0 0.0
    %2843 = vmatpush1.xpose.msra.mxu0 0.0
    %2844 = vmatprep.subr.mxu0 0.0
    %2845 = vmatpush1.xpose.msra.mxu0 0.0
    %2846 = vmatprep.subr.mxu0 0.0
    %v2847 = vand.u32 %v2440, 4294901760
    %2848 = vmatpush1.xpose.msra.mxu0 %v2847
    %2849 = vmatprep.subr.mxu0 0.0
    %2850 = vmatpush2.xpose.msra.mxu0 0.0
    %2851 = vmatprep.subr.mxu0 0.0
    %2852 = vmatpush2.xpose.msra.mxu0 0.0
    %2853 = vmatprep.subr.mxu0 0.0
    %2854 = vmatpush2.xpose.msra.mxu0 0.0
    %2855 = vmatprep.subr.mxu0 0.0
    %2856 = vmatpush2.xpose.msra.mxu0 0.0
    %2857 = vmatprep.subr.mxu0 0.0
    %2858 = vmatpush2.xpose.msra.mxu0 0.0
    %2859 = vmatprep.subr.mxu0 0.0
    %2860 = vmatpush2.xpose.msra.mxu0 0.0
    %2861 = vmatprep.subr.mxu0 0.0
    %2862 = vmatpush2.xpose.msra.mxu0 0.0
    %2863 = vmatprep.subr.mxu0 0.0
    %2864 = vmatpush2.xpose.msra.mxu0 0.0
    %2865 = vmatprep.subr.mxu0 0.0
    %2866 = vmatpush2.xpose.msra.mxu0 0.0
    %2867 = vmatprep.subr.mxu0 0.0
    %2868 = vmatpush2.xpose.msra.mxu0 0.0
    %2869 = vmatprep.subr.mxu0 0.0
    %2870 = vmatpush2.xpose.msra.mxu0 0.0
    %2871 = vmatprep.subr.mxu0 0.0
    %2872 = vmatpush2.xpose.msra.mxu0 0.0
    %2873 = vmatprep.subr.mxu0 0.0
    %2874 = vmatpush2.xpose.msra.mxu0 0.0
    %2875 = vmatprep.subr.mxu0 0.0
    %2876 = vmatpush2.xpose.msra.mxu0 0.0
    %2877 = vmatprep.subr.mxu0 0.0
    %2878 = vmatpush2.xpose.msra.mxu0 0.0
    %2879 = vmatprep.subr.mxu0 0.0
    %2880 = vmatpush2.xpose.msra.mxu0 0.0
    %2881 = vmatprep.mubr.f32.mxu0 0.0
    %v2882 = vand.u32 %v2438, 4294901760
    %2883 = vmatmul.mubr.f32.gmra.mxu0 %v2882
    %v2884 = vpop.f32.mrf.mxu0
    %v2885 = vadd.f32 %v2813, %v2884
    %v2886 = vpop.f32.mrf.mxu0
    %2887 = vdwg.mxu0
    %2888 = vrot.lane.b32.xlu0 %v622, 96
    %v2889 = vpop.permute.xlu0 %2888
    %v2890 = vsel %vm629, %v622, 0
    %v2892 = vsel %vm629, %v2889, 0
    %2894 = vmatprep.subr.mxu0 0.0
    %2895 = vmatpush1.xpose.msra.mxu0 0.0
    %2896 = vmatprep.subr.mxu0 0.0
    %2897 = vmatpush1.xpose.msra.mxu0 0.0
    %2898 = vmatprep.subr.mxu0 0.0
    %2899 = vmatpush1.xpose.msra.mxu0 0.0
    %2900 = vmatprep.subr.mxu0 0.0
    %2901 = vmatpush1.xpose.msra.mxu0 0.0
    %2902 = vmatprep.subr.mxu0 0.0
    %2903 = vmatpush1.xpose.msra.mxu0 0.0
    %2904 = vmatprep.subr.mxu0 0.0
    %2905 = vmatpush1.xpose.msra.mxu0 0.0
    %2906 = vmatprep.subr.mxu0 0.0
    %2907 = vmatpush1.xpose.msra.mxu0 0.0
    %2908 = vmatprep.subr.mxu0 0.0
    %2909 = vmatpush1.xpose.msra.mxu0 0.0
    %2910 = vmatprep.subr.mxu0 0.0
    %2911 = vmatpush1.xpose.msra.mxu0 0.0
    %2912 = vmatprep.subr.mxu0 0.0
    %2913 = vmatpush1.xpose.msra.mxu0 0.0
    %2914 = vmatprep.subr.mxu0 0.0
    %2915 = vmatpush1.xpose.msra.mxu0 0.0
    %2916 = vmatprep.subr.mxu0 0.0
    %2917 = vmatpush1.xpose.msra.mxu0 0.0
    %2918 = vmatprep.subr.mxu0 0.0
    %2919 = vmatpush1.xpose.msra.mxu0 0.0
    %2920 = vmatprep.subr.mxu0 0.0
    %2921 = vmatpush1.xpose.msra.mxu0 0.0
    %2922 = vmatprep.subr.mxu0 0.0
    %2923 = vmatpush1.xpose.msra.mxu0 0.0
    %2924 = vmatprep.subr.mxu0 0.0
    %v2925 = vand.u32 %v2892, 4294901760
    %2926 = vmatpush1.xpose.msra.mxu0 %v2925
    %2927 = vmatprep.subr.mxu0 0.0
    %2928 = vmatpush2.xpose.msra.mxu0 0.0
    %2929 = vmatprep.subr.mxu0 0.0
    %2930 = vmatpush2.xpose.msra.mxu0 0.0
    %2931 = vmatprep.subr.mxu0 0.0
    %2932 = vmatpush2.xpose.msra.mxu0 0.0
    %2933 = vmatprep.subr.mxu0 0.0
    %2934 = vmatpush2.xpose.msra.mxu0 0.0
    %2935 = vmatprep.subr.mxu0 0.0
    %2936 = vmatpush2.xpose.msra.mxu0 0.0
    %2937 = vmatprep.subr.mxu0 0.0
    %2938 = vmatpush2.xpose.msra.mxu0 0.0
    %2939 = vmatprep.subr.mxu0 0.0
    %2940 = vmatpush2.xpose.msra.mxu0 0.0
    %2941 = vmatprep.subr.mxu0 0.0
    %2942 = vmatpush2.xpose.msra.mxu0 0.0
    %2943 = vmatprep.subr.mxu0 0.0
    %2944 = vmatpush2.xpose.msra.mxu0 0.0
    %2945 = vmatprep.subr.mxu0 0.0
    %2946 = vmatpush2.xpose.msra.mxu0 0.0
    %2947 = vmatprep.subr.mxu0 0.0
    %2948 = vmatpush2.xpose.msra.mxu0 0.0
    %2949 = vmatprep.subr.mxu0 0.0
    %2950 = vmatpush2.xpose.msra.mxu0 0.0
    %2951 = vmatprep.subr.mxu0 0.0
    %2952 = vmatpush2.xpose.msra.mxu0 0.0
    %2953 = vmatprep.subr.mxu0 0.0
    %2954 = vmatpush2.xpose.msra.mxu0 0.0
    %2955 = vmatprep.subr.mxu0 0.0
    %2956 = vmatpush2.xpose.msra.mxu0 0.0
    %2957 = vmatprep.subr.mxu0 0.0
    %2958 = vmatpush2.xpose.msra.mxu0 0.0
    %2959 = vmatprep.mubr.f32.mxu0 0.0
    %v2960 = vand.u32 %v2890, 4294901760
    %v2961 = vsub.f32 %v2890, %v2960
    %v2962 = vand.u32 %v2961, 4294901760
    %v2963 = vsub.f32 %v2961, %v2962
    %v2964 = vand.u32 %v2963, 4294901760
    %2965 = vmatmul.mubr.f32.gmra.mxu0 %v2964
    %v2966 = vpop.f32.mrf.mxu0
    %v2967 = vadd.f32 0.0, %v2966
    %v2968 = vpop.f32.mrf.mxu0
    %2969 = vdwg.mxu0
    %2970 = vmatprep.subr.mxu0 0.0
    %2971 = vmatpush1.xpose.msra.mxu0 0.0
    %2972 = vmatprep.subr.mxu0 0.0
    %2973 = vmatpush1.xpose.msra.mxu0 0.0
    %2974 = vmatprep.subr.mxu0 0.0
    %2975 = vmatpush1.xpose.msra.mxu0 0.0
    %2976 = vmatprep.subr.mxu0 0.0
    %2977 = vmatpush1.xpose.msra.mxu0 0.0
    %2978 = vmatprep.subr.mxu0 0.0
    %2979 = vmatpush1.xpose.msra.mxu0 0.0
    %2980 = vmatprep.subr.mxu0 0.0
    %2981 = vmatpush1.xpose.msra.mxu0 0.0
    %2982 = vmatprep.subr.mxu0 0.0
    %2983 = vmatpush1.xpose.msra.mxu0 0.0
    %2984 = vmatprep.subr.mxu0 0.0
    %2985 = vmatpush1.xpose.msra.mxu0 0.0
    %2986 = vmatprep.subr.mxu0 0.0
    %2987 = vmatpush1.xpose.msra.mxu0 0.0
    %2988 = vmatprep.subr.mxu0 0.0
    %2989 = vmatpush1.xpose.msra.mxu0 0.0
    %2990 = vmatprep.subr.mxu0 0.0
    %2991 = vmatpush1.xpose.msra.mxu0 0.0
    %2992 = vmatprep.subr.mxu0 0.0
    %2993 = vmatpush1.xpose.msra.mxu0 0.0
    %2994 = vmatprep.subr.mxu0 0.0
    %2995 = vmatpush1.xpose.msra.mxu0 0.0
    %2996 = vmatprep.subr.mxu0 0.0
    %2997 = vmatpush1.xpose.msra.mxu0 0.0
    %2998 = vmatprep.subr.mxu0 0.0
    %2999 = vmatpush1.xpose.msra.mxu0 0.0
    %3000 = vmatprep.subr.mxu0 0.0
    %v3001 = vand.u32 %v2892, 4294901760
    %v3002 = vsub.f32 %v2892, %v3001
    %v3003 = vand.u32 %v3002, 4294901760
    %v3004 = vsub.f32 %v3002, %v3003
    %v3005 = vand.u32 %v3004, 4294901760
    %3006 = vmatpush1.xpose.msra.mxu0 %v3005
    %3007 = vmatprep.subr.mxu0 0.0
    %3008 = vmatpush2.xpose.msra.mxu0 0.0
    %3009 = vmatprep.subr.mxu0 0.0
    %3010 = vmatpush2.xpose.msra.mxu0 0.0
    %3011 = vmatprep.subr.mxu0 0.0
    %3012 = vmatpush2.xpose.msra.mxu0 0.0
    %3013 = vmatprep.subr.mxu0 0.0
    %3014 = vmatpush2.xpose.msra.mxu0 0.0
    %3015 = vmatprep.subr.mxu0 0.0
    %3016 = vmatpush2.xpose.msra.mxu0 0.0
    %3017 = vmatprep.subr.mxu0 0.0
    %3018 = vmatpush2.xpose.msra.mxu0 0.0
    %3019 = vmatprep.subr.mxu0 0.0
    %3020 = vmatpush2.xpose.msra.mxu0 0.0
    %3021 = vmatprep.subr.mxu0 0.0
    %3022 = vmatpush2.xpose.msra.mxu0 0.0
    %3023 = vmatprep.subr.mxu0 0.0
    %3024 = vmatpush2.xpose.msra.mxu0 0.0
    %3025 = vmatprep.subr.mxu0 0.0
    %3026 = vmatpush2.xpose.msra.mxu0 0.0
    %3027 = vmatprep.subr.mxu0 0.0
    %3028 = vmatpush2.xpose.msra.mxu0 0.0
    %3029 = vmatprep.subr.mxu0 0.0
    %3030 = vmatpush2.xpose.msra.mxu0 0.0
    %3031 = vmatprep.subr.mxu0 0.0
    %3032 = vmatpush2.xpose.msra.mxu0 0.0
    %3033 = vmatprep.subr.mxu0 0.0
    %3034 = vmatpush2.xpose.msra.mxu0 0.0
    %3035 = vmatprep.subr.mxu0 0.0
    %3036 = vmatpush2.xpose.msra.mxu0 0.0
    %3037 = vmatprep.subr.mxu0 0.0
    %3038 = vmatpush2.xpose.msra.mxu0 0.0
    %3039 = vmatprep.mubr.f32.mxu0 0.0
    %v3040 = vand.u32 %v2890, 4294901760
    %3041 = vmatmul.mubr.f32.gmra.mxu0 %v3040
    %v3042 = vpop.f32.mrf.mxu0
    %v3043 = vadd.f32 %v2967, %v3042
    %v3044 = vpop.f32.mrf.mxu0
    %3045 = vdwg.mxu0
    %3046 = vmatprep.subr.mxu0 0.0
    %3047 = vmatpush1.xpose.msra.mxu0 0.0
    %3048 = vmatprep.subr.mxu0 0.0
    %3049 = vmatpush1.xpose.msra.mxu0 0.0
    %3050 = vmatprep.subr.mxu0 0.0
    %3051 = vmatpush1.xpose.msra.mxu0 0.0
    %3052 = vmatprep.subr.mxu0 0.0
    %3053 = vmatpush1.xpose.msra.mxu0 0.0
    %3054 = vmatprep.subr.mxu0 0.0
    %3055 = vmatpush1.xpose.msra.mxu0 0.0
    %3056 = vmatprep.subr.mxu0 0.0
    %3057 = vmatpush1.xpose.msra.mxu0 0.0
    %3058 = vmatprep.subr.mxu0 0.0
    %3059 = vmatpush1.xpose.msra.mxu0 0.0
    %3060 = vmatprep.subr.mxu0 0.0
    %3061 = vmatpush1.xpose.msra.mxu0 0.0
    %3062 = vmatprep.subr.mxu0 0.0
    %3063 = vmatpush1.xpose.msra.mxu0 0.0
    %3064 = vmatprep.subr.mxu0 0.0
    %3065 = vmatpush1.xpose.msra.mxu0 0.0
    %3066 = vmatprep.subr.mxu0 0.0
    %3067 = vmatpush1.xpose.msra.mxu0 0.0
    %3068 = vmatprep.subr.mxu0 0.0
    %3069 = vmatpush1.xpose.msra.mxu0 0.0
    %3070 = vmatprep.subr.mxu0 0.0
    %3071 = vmatpush1.xpose.msra.mxu0 0.0
    %3072 = vmatprep.subr.mxu0 0.0
    %3073 = vmatpush1.xpose.msra.mxu0 0.0
    %3074 = vmatprep.subr.mxu0 0.0
    %3075 = vmatpush1.xpose.msra.mxu0 0.0
    %3076 = vmatprep.subr.mxu0 0.0
    %v3077 = vand.u32 %v2892, 4294901760
    %v3078 = vsub.f32 %v2892, %v3077
    %3079 = vmatpush1.xpose.msra.mxu0 %v3078
    %3080 = vmatprep.subr.mxu0 0.0
    %3081 = vmatpush2.xpose.msra.mxu0 0.0
    %3082 = vmatprep.subr.mxu0 0.0
    %3083 = vmatpush2.xpose.msra.mxu0 0.0
    %3084 = vmatprep.subr.mxu0 0.0
    %3085 = vmatpush2.xpose.msra.mxu0 0.0
    %3086 = vmatprep.subr.mxu0 0.0
    %3087 = vmatpush2.xpose.msra.mxu0 0.0
    %3088 = vmatprep.subr.mxu0 0.0
    %3089 = vmatpush2.xpose.msra.mxu0 0.0
    %3090 = vmatprep.subr.mxu0 0.0
    %3091 = vmatpush2.xpose.msra.mxu0 0.0
    %3092 = vmatprep.subr.mxu0 0.0
    %3093 = vmatpush2.xpose.msra.mxu0 0.0
    %3094 = vmatprep.subr.mxu0 0.0
    %3095 = vmatpush2.xpose.msra.mxu0 0.0
    %3096 = vmatprep.subr.mxu0 0.0
    %3097 = vmatpush2.xpose.msra.mxu0 0.0
    %3098 = vmatprep.subr.mxu0 0.0
    %3099 = vmatpush2.xpose.msra.mxu0 0.0
    %3100 = vmatprep.subr.mxu0 0.0
    %3101 = vmatpush2.xpose.msra.mxu0 0.0
    %3102 = vmatprep.subr.mxu0 0.0
    %3103 = vmatpush2.xpose.msra.mxu0 0.0
    %3104 = vmatprep.subr.mxu0 0.0
    %3105 = vmatpush2.xpose.msra.mxu0 0.0
    %3106 = vmatprep.subr.mxu0 0.0
    %3107 = vmatpush2.xpose.msra.mxu0 0.0
    %3108 = vmatprep.subr.mxu0 0.0
    %3109 = vmatpush2.xpose.msra.mxu0 0.0
    %3110 = vmatprep.subr.mxu0 0.0
    %3111 = vmatpush2.xpose.msra.mxu0 0.0
    %3112 = vmatprep.mubr.f32.mxu0 0.0
    %v3113 = vand.u32 %v2890, 4294901760
    %v3114 = vsub.f32 %v2890, %v3113
    %3115 = vmatmul.mubr.f32.gmra.mxu0 %v3114
    %v3116 = vpop.f32.mrf.mxu0
    %v3117 = vadd.f32 %v3043, %v3116
    %v3118 = vpop.f32.mrf.mxu0
    %3119 = vdwg.mxu0
    %3120 = vmatprep.subr.mxu0 0.0
    %3121 = vmatpush1.xpose.msra.mxu0 0.0
    %3122 = vmatprep.subr.mxu0 0.0
    %3123 = vmatpush1.xpose.msra.mxu0 0.0
    %3124 = vmatprep.subr.mxu0 0.0
    %3125 = vmatpush1.xpose.msra.mxu0 0.0
    %3126 = vmatprep.subr.mxu0 0.0
    %3127 = vmatpush1.xpose.msra.mxu0 0.0
    %3128 = vmatprep.subr.mxu0 0.0
    %3129 = vmatpush1.xpose.msra.mxu0 0.0
    %3130 = vmatprep.subr.mxu0 0.0
    %3131 = vmatpush1.xpose.msra.mxu0 0.0
    %3132 = vmatprep.subr.mxu0 0.0
    %3133 = vmatpush1.xpose.msra.mxu0 0.0
    %3134 = vmatprep.subr.mxu0 0.0
    %3135 = vmatpush1.xpose.msra.mxu0 0.0
    %3136 = vmatprep.subr.mxu0 0.0
    %3137 = vmatpush1.xpose.msra.mxu0 0.0
    %3138 = vmatprep.subr.mxu0 0.0
    %3139 = vmatpush1.xpose.msra.mxu0 0.0
    %3140 = vmatprep.subr.mxu0 0.0
    %3141 = vmatpush1.xpose.msra.mxu0 0.0
    %3142 = vmatprep.subr.mxu0 0.0
    %3143 = vmatpush1.xpose.msra.mxu0 0.0
    %3144 = vmatprep.subr.mxu0 0.0
    %3145 = vmatpush1.xpose.msra.mxu0 0.0
    %3146 = vmatprep.subr.mxu0 0.0
    %3147 = vmatpush1.xpose.msra.mxu0 0.0
    %3148 = vmatprep.subr.mxu0 0.0
    %3149 = vmatpush1.xpose.msra.mxu0 0.0
    %3150 = vmatprep.subr.mxu0 0.0
    %v3151 = vand.u32 %v2892, 4294901760
    %3152 = vmatpush1.xpose.msra.mxu0 %v3151
    %3153 = vmatprep.subr.mxu0 0.0
    %3154 = vmatpush2.xpose.msra.mxu0 0.0
    %3155 = vmatprep.subr.mxu0 0.0
    %3156 = vmatpush2.xpose.msra.mxu0 0.0
    %3157 = vmatprep.subr.mxu0 0.0
    %3158 = vmatpush2.xpose.msra.mxu0 0.0
    %3159 = vmatprep.subr.mxu0 0.0
    %3160 = vmatpush2.xpose.msra.mxu0 0.0
    %3161 = vmatprep.subr.mxu0 0.0
    %3162 = vmatpush2.xpose.msra.mxu0 0.0
    %3163 = vmatprep.subr.mxu0 0.0
    %3164 = vmatpush2.xpose.msra.mxu0 0.0
    %3165 = vmatprep.subr.mxu0 0.0
    %3166 = vmatpush2.xpose.msra.mxu0 0.0
    %3167 = vmatprep.subr.mxu0 0.0
    %3168 = vmatpush2.xpose.msra.mxu0 0.0
    %3169 = vmatprep.subr.mxu0 0.0
    %3170 = vmatpush2.xpose.msra.mxu0 0.0
    %3171 = vmatprep.subr.mxu0 0.0
    %3172 = vmatpush2.xpose.msra.mxu0 0.0
    %3173 = vmatprep.subr.mxu0 0.0
    %3174 = vmatpush2.xpose.msra.mxu0 0.0
    %3175 = vmatprep.subr.mxu0 0.0
    %3176 = vmatpush2.xpose.msra.mxu0 0.0
    %3177 = vmatprep.subr.mxu0 0.0
    %3178 = vmatpush2.xpose.msra.mxu0 0.0
    %3179 = vmatprep.subr.mxu0 0.0
    %3180 = vmatpush2.xpose.msra.mxu0 0.0
    %3181 = vmatprep.subr.mxu0 0.0
    %3182 = vmatpush2.xpose.msra.mxu0 0.0
    %3183 = vmatprep.subr.mxu0 0.0
    %3184 = vmatpush2.xpose.msra.mxu0 0.0
    %3185 = vmatprep.mubr.f32.mxu0 0.0
    %v3186 = vand.u32 %v2890, 4294901760
    %v3187 = vsub.f32 %v2890, %v3186
    %v3188 = vand.u32 %v3187, 4294901760
    %3189 = vmatmul.mubr.f32.gmra.mxu0 %v3188
    %v3190 = vpop.f32.mrf.mxu0
    %v3191 = vadd.f32 %v3117, %v3190
    %v3192 = vpop.f32.mrf.mxu0
    %3193 = vdwg.mxu0
    %3194 = vmatprep.subr.mxu0 0.0
    %3195 = vmatpush1.xpose.msra.mxu0 0.0
    %3196 = vmatprep.subr.mxu0 0.0
    %3197 = vmatpush1.xpose.msra.mxu0 0.0
    %3198 = vmatprep.subr.mxu0 0.0
    %3199 = vmatpush1.xpose.msra.mxu0 0.0
    %3200 = vmatprep.subr.mxu0 0.0
    %3201 = vmatpush1.xpose.msra.mxu0 0.0
    %3202 = vmatprep.subr.mxu0 0.0
    %3203 = vmatpush1.xpose.msra.mxu0 0.0
    %3204 = vmatprep.subr.mxu0 0.0
    %3205 = vmatpush1.xpose.msra.mxu0 0.0
    %3206 = vmatprep.subr.mxu0 0.0
    %3207 = vmatpush1.xpose.msra.mxu0 0.0
    %3208 = vmatprep.subr.mxu0 0.0
    %3209 = vmatpush1.xpose.msra.mxu0 0.0
    %3210 = vmatprep.subr.mxu0 0.0
    %3211 = vmatpush1.xpose.msra.mxu0 0.0
    %3212 = vmatprep.subr.mxu0 0.0
    %3213 = vmatpush1.xpose.msra.mxu0 0.0
    %3214 = vmatprep.subr.mxu0 0.0
    %3215 = vmatpush1.xpose.msra.mxu0 0.0
    %3216 = vmatprep.subr.mxu0 0.0
    %3217 = vmatpush1.xpose.msra.mxu0 0.0
    %3218 = vmatprep.subr.mxu0 0.0
    %3219 = vmatpush1.xpose.msra.mxu0 0.0
    %3220 = vmatprep.subr.mxu0 0.0
    %3221 = vmatpush1.xpose.msra.mxu0 0.0
    %3222 = vmatprep.subr.mxu0 0.0
    %3223 = vmatpush1.xpose.msra.mxu0 0.0
    %3224 = vmatprep.subr.mxu0 0.0
    %v3225 = vand.u32 %v2892, 4294901760
    %v3226 = vsub.f32 %v2892, %v3225
    %v3227 = vand.u32 %v3226, 4294901760
    %3228 = vmatpush1.xpose.msra.mxu0 %v3227
    %3229 = vmatprep.subr.mxu0 0.0
    %3230 = vmatpush2.xpose.msra.mxu0 0.0
    %3231 = vmatprep.subr.mxu0 0.0
    %3232 = vmatpush2.xpose.msra.mxu0 0.0
    %3233 = vmatprep.subr.mxu0 0.0
    %3234 = vmatpush2.xpose.msra.mxu0 0.0
    %3235 = vmatprep.subr.mxu0 0.0
    %3236 = vmatpush2.xpose.msra.mxu0 0.0
    %3237 = vmatprep.subr.mxu0 0.0
    %3238 = vmatpush2.xpose.msra.mxu0 0.0
    %3239 = vmatprep.subr.mxu0 0.0
    %3240 = vmatpush2.xpose.msra.mxu0 0.0
    %3241 = vmatprep.subr.mxu0 0.0
    %3242 = vmatpush2.xpose.msra.mxu0 0.0
    %3243 = vmatprep.subr.mxu0 0.0
    %3244 = vmatpush2.xpose.msra.mxu0 0.0
    %3245 = vmatprep.subr.mxu0 0.0
    %3246 = vmatpush2.xpose.msra.mxu0 0.0
    %3247 = vmatprep.subr.mxu0 0.0
    %3248 = vmatpush2.xpose.msra.mxu0 0.0
    %3249 = vmatprep.subr.mxu0 0.0
    %3250 = vmatpush2.xpose.msra.mxu0 0.0
    %3251 = vmatprep.subr.mxu0 0.0
    %3252 = vmatpush2.xpose.msra.mxu0 0.0
    %3253 = vmatprep.subr.mxu0 0.0
    %3254 = vmatpush2.xpose.msra.mxu0 0.0
    %3255 = vmatprep.subr.mxu0 0.0
    %3256 = vmatpush2.xpose.msra.mxu0 0.0
    %3257 = vmatprep.subr.mxu0 0.0
    %3258 = vmatpush2.xpose.msra.mxu0 0.0
    %3259 = vmatprep.subr.mxu0 0.0
    %3260 = vmatpush2.xpose.msra.mxu0 0.0
    %3261 = vmatprep.mubr.f32.mxu0 0.0
    %v3262 = vand.u32 %v2890, 4294901760
    %3263 = vmatmul.mubr.f32.gmra.mxu0 %v3262
    %v3264 = vpop.f32.mrf.mxu0
    %v3265 = vadd.f32 %v3191, %v3264
    %v3266 = vpop.f32.mrf.mxu0
    %3267 = vdwg.mxu0
    %3268 = vmatprep.subr.mxu0 0.0
    %3269 = vmatpush1.xpose.msra.mxu0 0.0
    %3270 = vmatprep.subr.mxu0 0.0
    %3271 = vmatpush1.xpose.msra.mxu0 0.0
    %3272 = vmatprep.subr.mxu0 0.0
    %3273 = vmatpush1.xpose.msra.mxu0 0.0
    %3274 = vmatprep.subr.mxu0 0.0
    %3275 = vmatpush1.xpose.msra.mxu0 0.0
    %3276 = vmatprep.subr.mxu0 0.0
    %3277 = vmatpush1.xpose.msra.mxu0 0.0
    %3278 = vmatprep.subr.mxu0 0.0
    %3279 = vmatpush1.xpose.msra.mxu0 0.0
    %3280 = vmatprep.subr.mxu0 0.0
    %3281 = vmatpush1.xpose.msra.mxu0 0.0
    %3282 = vmatprep.subr.mxu0 0.0
    %3283 = vmatpush1.xpose.msra.mxu0 0.0
    %3284 = vmatprep.subr.mxu0 0.0
    %3285 = vmatpush1.xpose.msra.mxu0 0.0
    %3286 = vmatprep.subr.mxu0 0.0
    %3287 = vmatpush1.xpose.msra.mxu0 0.0
    %3288 = vmatprep.subr.mxu0 0.0
    %3289 = vmatpush1.xpose.msra.mxu0 0.0
    %3290 = vmatprep.subr.mxu0 0.0
    %3291 = vmatpush1.xpose.msra.mxu0 0.0
    %3292 = vmatprep.subr.mxu0 0.0
    %3293 = vmatpush1.xpose.msra.mxu0 0.0
    %3294 = vmatprep.subr.mxu0 0.0
    %3295 = vmatpush1.xpose.msra.mxu0 0.0
    %3296 = vmatprep.subr.mxu0 0.0
    %3297 = vmatpush1.xpose.msra.mxu0 0.0
    %3298 = vmatprep.subr.mxu0 0.0
    %v3299 = vand.u32 %v2892, 4294901760
    %3300 = vmatpush1.xpose.msra.mxu0 %v3299
    %3301 = vmatprep.subr.mxu0 0.0
    %3302 = vmatpush2.xpose.msra.mxu0 0.0
    %3303 = vmatprep.subr.mxu0 0.0
    %3304 = vmatpush2.xpose.msra.mxu0 0.0
    %3305 = vmatprep.subr.mxu0 0.0
    %3306 = vmatpush2.xpose.msra.mxu0 0.0
    %3307 = vmatprep.subr.mxu0 0.0
    %3308 = vmatpush2.xpose.msra.mxu0 0.0
    %3309 = vmatprep.subr.mxu0 0.0
    %3310 = vmatpush2.xpose.msra.mxu0 0.0
    %3311 = vmatprep.subr.mxu0 0.0
    %3312 = vmatpush2.xpose.msra.mxu0 0.0
    %3313 = vmatprep.subr.mxu0 0.0
    %3314 = vmatpush2.xpose.msra.mxu0 0.0
    %3315 = vmatprep.subr.mxu0 0.0
    %3316 = vmatpush2.xpose.msra.mxu0 0.0
    %3317 = vmatprep.subr.mxu0 0.0
    %3318 = vmatpush2.xpose.msra.mxu0 0.0
    %3319 = vmatprep.subr.mxu0 0.0
    %3320 = vmatpush2.xpose.msra.mxu0 0.0
    %3321 = vmatprep.subr.mxu0 0.0
    %3322 = vmatpush2.xpose.msra.mxu0 0.0
    %3323 = vmatprep.subr.mxu0 0.0
    %3324 = vmatpush2.xpose.msra.mxu0 0.0
    %3325 = vmatprep.subr.mxu0 0.0
    %3326 = vmatpush2.xpose.msra.mxu0 0.0
    %3327 = vmatprep.subr.mxu0 0.0
    %3328 = vmatpush2.xpose.msra.mxu0 0.0
    %3329 = vmatprep.subr.mxu0 0.0
    %3330 = vmatpush2.xpose.msra.mxu0 0.0
    %3331 = vmatprep.subr.mxu0 0.0
    %3332 = vmatpush2.xpose.msra.mxu0 0.0
    %3333 = vmatprep.mubr.f32.mxu0 0.0
    %v3334 = vand.u32 %v2890, 4294901760
    %3335 = vmatmul.mubr.f32.gmra.mxu0 %v3334
    %v3336 = vpop.f32.mrf.mxu0
    %v3337 = vadd.f32 %v3265, %v3336
    %v3338 = vpop.f32.mrf.mxu0
    %3339 = vdwg.mxu0
    %3340 = vrot.lane.b32.xlu0 %v624, 96
    %v3341 = vpop.permute.xlu0 %3340
    %v3342 = vsel %vm629, %v624, 0
    %v3344 = vsel %vm629, %v3341, 0
    %3346 = vmatprep.subr.mxu0 0.0
    %3347 = vmatpush1.xpose.msra.mxu0 0.0
    %3348 = vmatprep.subr.mxu0 0.0
    %3349 = vmatpush1.xpose.msra.mxu0 0.0
    %3350 = vmatprep.subr.mxu0 0.0
    %3351 = vmatpush1.xpose.msra.mxu0 0.0
    %3352 = vmatprep.subr.mxu0 0.0
    %3353 = vmatpush1.xpose.msra.mxu0 0.0
    %3354 = vmatprep.subr.mxu0 0.0
    %3355 = vmatpush1.xpose.msra.mxu0 0.0
    %3356 = vmatprep.subr.mxu0 0.0
    %3357 = vmatpush1.xpose.msra.mxu0 0.0
    %3358 = vmatprep.subr.mxu0 0.0
    %3359 = vmatpush1.xpose.msra.mxu0 0.0
    %3360 = vmatprep.subr.mxu0 0.0
    %3361 = vmatpush1.xpose.msra.mxu0 0.0
    %3362 = vmatprep.subr.mxu0 0.0
    %3363 = vmatpush1.xpose.msra.mxu0 0.0
    %3364 = vmatprep.subr.mxu0 0.0
    %3365 = vmatpush1.xpose.msra.mxu0 0.0
    %3366 = vmatprep.subr.mxu0 0.0
    %3367 = vmatpush1.xpose.msra.mxu0 0.0
    %3368 = vmatprep.subr.mxu0 0.0
    %3369 = vmatpush1.xpose.msra.mxu0 0.0
    %3370 = vmatprep.subr.mxu0 0.0
    %3371 = vmatpush1.xpose.msra.mxu0 0.0
    %3372 = vmatprep.subr.mxu0 0.0
    %3373 = vmatpush1.xpose.msra.mxu0 0.0
    %3374 = vmatprep.subr.mxu0 0.0
    %3375 = vmatpush1.xpose.msra.mxu0 0.0
    %3376 = vmatprep.subr.mxu0 0.0
    %v3377 = vand.u32 %v3344, 4294901760
    %3378 = vmatpush1.xpose.msra.mxu0 %v3377
    %3379 = vmatprep.subr.mxu0 0.0
    %3380 = vmatpush2.xpose.msra.mxu0 0.0
    %3381 = vmatprep.subr.mxu0 0.0
    %3382 = vmatpush2.xpose.msra.mxu0 0.0
    %3383 = vmatprep.subr.mxu0 0.0
    %3384 = vmatpush2.xpose.msra.mxu0 0.0
    %3385 = vmatprep.subr.mxu0 0.0
    %3386 = vmatpush2.xpose.msra.mxu0 0.0
    %3387 = vmatprep.subr.mxu0 0.0
    %3388 = vmatpush2.xpose.msra.mxu0 0.0
    %3389 = vmatprep.subr.mxu0 0.0
    %3390 = vmatpush2.xpose.msra.mxu0 0.0
    %3391 = vmatprep.subr.mxu0 0.0
    %3392 = vmatpush2.xpose.msra.mxu0 0.0
    %3393 = vmatprep.subr.mxu0 0.0
    %3394 = vmatpush2.xpose.msra.mxu0 0.0
    %3395 = vmatprep.subr.mxu0 0.0
    %3396 = vmatpush2.xpose.msra.mxu0 0.0
    %3397 = vmatprep.subr.mxu0 0.0
    %3398 = vmatpush2.xpose.msra.mxu0 0.0
    %3399 = vmatprep.subr.mxu0 0.0
    %3400 = vmatpush2.xpose.msra.mxu0 0.0
    %3401 = vmatprep.subr.mxu0 0.0
    %3402 = vmatpush2.xpose.msra.mxu0 0.0
    %3403 = vmatprep.subr.mxu0 0.0
    %3404 = vmatpush2.xpose.msra.mxu0 0.0
    %3405 = vmatprep.subr.mxu0 0.0
    %3406 = vmatpush2.xpose.msra.mxu0 0.0
    %3407 = vmatprep.subr.mxu0 0.0
    %3408 = vmatpush2.xpose.msra.mxu0 0.0
    %3409 = vmatprep.subr.mxu0 0.0
    %3410 = vmatpush2.xpose.msra.mxu0 0.0
    %3411 = vmatprep.mubr.f32.mxu0 0.0
    %v3412 = vand.u32 %v3342, 4294901760
    %v3413 = vsub.f32 %v3342, %v3412
    %v3414 = vand.u32 %v3413, 4294901760
    %v3415 = vsub.f32 %v3413, %v3414
    %v3416 = vand.u32 %v3415, 4294901760
    %3417 = vmatmul.mubr.f32.gmra.mxu0 %v3416
    %v3418 = vpop.f32.mrf.mxu0
    %v3419 = vadd.f32 0.0, %v3418
    %v3420 = vpop.f32.mrf.mxu0
    %3421 = vdwg.mxu0
    %3422 = vmatprep.subr.mxu0 0.0
    %3423 = vmatpush1.xpose.msra.mxu0 0.0
    %3424 = vmatprep.subr.mxu0 0.0
    %3425 = vmatpush1.xpose.msra.mxu0 0.0
    %3426 = vmatprep.subr.mxu0 0.0
    %3427 = vmatpush1.xpose.msra.mxu0 0.0
    %3428 = vmatprep.subr.mxu0 0.0
    %3429 = vmatpush1.xpose.msra.mxu0 0.0
    %3430 = vmatprep.subr.mxu0 0.0
    %3431 = vmatpush1.xpose.msra.mxu0 0.0
    %3432 = vmatprep.subr.mxu0 0.0
    %3433 = vmatpush1.xpose.msra.mxu0 0.0
    %3434 = vmatprep.subr.mxu0 0.0
    %3435 = vmatpush1.xpose.msra.mxu0 0.0
    %3436 = vmatprep.subr.mxu0 0.0
    %3437 = vmatpush1.xpose.msra.mxu0 0.0
    %3438 = vmatprep.subr.mxu0 0.0
    %3439 = vmatpush1.xpose.msra.mxu0 0.0
    %3440 = vmatprep.subr.mxu0 0.0
    %3441 = vmatpush1.xpose.msra.mxu0 0.0
    %3442 = vmatprep.subr.mxu0 0.0
    %3443 = vmatpush1.xpose.msra.mxu0 0.0
    %3444 = vmatprep.subr.mxu0 0.0
    %3445 = vmatpush1.xpose.msra.mxu0 0.0
    %3446 = vmatprep.subr.mxu0 0.0
    %3447 = vmatpush1.xpose.msra.mxu0 0.0
    %3448 = vmatprep.subr.mxu0 0.0
    %3449 = vmatpush1.xpose.msra.mxu0 0.0
    %3450 = vmatprep.subr.mxu0 0.0
    %3451 = vmatpush1.xpose.msra.mxu0 0.0
    %3452 = vmatprep.subr.mxu0 0.0
    %v3453 = vand.u32 %v3344, 4294901760
    %v3454 = vsub.f32 %v3344, %v3453
    %v3455 = vand.u32 %v3454, 4294901760
    %v3456 = vsub.f32 %v3454, %v3455
    %v3457 = vand.u32 %v3456, 4294901760
    %3458 = vmatpush1.xpose.msra.mxu0 %v3457
    %3459 = vmatprep.subr.mxu0 0.0
    %3460 = vmatpush2.xpose.msra.mxu0 0.0
    %3461 = vmatprep.subr.mxu0 0.0
    %3462 = vmatpush2.xpose.msra.mxu0 0.0
    %3463 = vmatprep.subr.mxu0 0.0
    %3464 = vmatpush2.xpose.msra.mxu0 0.0
    %3465 = vmatprep.subr.mxu0 0.0
    %3466 = vmatpush2.xpose.msra.mxu0 0.0
    %3467 = vmatprep.subr.mxu0 0.0
    %3468 = vmatpush2.xpose.msra.mxu0 0.0
    %3469 = vmatprep.subr.mxu0 0.0
    %3470 = vmatpush2.xpose.msra.mxu0 0.0
    %3471 = vmatprep.subr.mxu0 0.0
    %3472 = vmatpush2.xpose.msra.mxu0 0.0
    %3473 = vmatprep.subr.mxu0 0.0
    %3474 = vmatpush2.xpose.msra.mxu0 0.0
    %3475 = vmatprep.subr.mxu0 0.0
    %3476 = vmatpush2.xpose.msra.mxu0 0.0
    %3477 = vmatprep.subr.mxu0 0.0
    %3478 = vmatpush2.xpose.msra.mxu0 0.0
    %3479 = vmatprep.subr.mxu0 0.0
    %3480 = vmatpush2.xpose.msra.mxu0 0.0
    %3481 = vmatprep.subr.mxu0 0.0
    %3482 = vmatpush2.xpose.msra.mxu0 0.0
    %3483 = vmatprep.subr.mxu0 0.0
    %3484 = vmatpush2.xpose.msra.mxu0 0.0
    %3485 = vmatprep.subr.mxu0 0.0
    %3486 = vmatpush2.xpose.msra.mxu0 0.0
    %3487 = vmatprep.subr.mxu0 0.0
    %3488 = vmatpush2.xpose.msra.mxu0 0.0
    %3489 = vmatprep.subr.mxu0 0.0
    %3490 = vmatpush2.xpose.msra.mxu0 0.0
    %3491 = vmatprep.mubr.f32.mxu0 0.0
    %v3492 = vand.u32 %v3342, 4294901760
    %3493 = vmatmul.mubr.f32.gmra.mxu0 %v3492
    %v3494 = vpop.f32.mrf.mxu0
    %v3495 = vadd.f32 %v3419, %v3494
    %v3496 = vpop.f32.mrf.mxu0
    %3497 = vdwg.mxu0
    %3498 = vmatprep.subr.mxu0 0.0
    %3499 = vmatpush1.xpose.msra.mxu0 0.0
    %3500 = vmatprep.subr.mxu0 0.0
    %3501 = vmatpush1.xpose.msra.mxu0 0.0
    %3502 = vmatprep.subr.mxu0 0.0
    %3503 = vmatpush1.xpose.msra.mxu0 0.0
    %3504 = vmatprep.subr.mxu0 0.0
    %3505 = vmatpush1.xpose.msra.mxu0 0.0
    %3506 = vmatprep.subr.mxu0 0.0
    %3507 = vmatpush1.xpose.msra.mxu0 0.0
    %3508 = vmatprep.subr.mxu0 0.0
    %3509 = vmatpush1.xpose.msra.mxu0 0.0
    %3510 = vmatprep.subr.mxu0 0.0
    %3511 = vmatpush1.xpose.msra.mxu0 0.0
    %3512 = vmatprep.subr.mxu0 0.0
    %3513 = vmatpush1.xpose.msra.mxu0 0.0
    %3514 = vmatprep.subr.mxu0 0.0
    %3515 = vmatpush1.xpose.msra.mxu0 0.0
    %3516 = vmatprep.subr.mxu0 0.0
    %3517 = vmatpush1.xpose.msra.mxu0 0.0
    %3518 = vmatprep.subr.mxu0 0.0
    %3519 = vmatpush1.xpose.msra.mxu0 0.0
    %3520 = vmatprep.subr.mxu0 0.0
    %3521 = vmatpush1.xpose.msra.mxu0 0.0
    %3522 = vmatprep.subr.mxu0 0.0
    %3523 = vmatpush1.xpose.msra.mxu0 0.0
    %3524 = vmatprep.subr.mxu0 0.0
    %3525 = vmatpush1.xpose.msra.mxu0 0.0
    %3526 = vmatprep.subr.mxu0 0.0
    %3527 = vmatpush1.xpose.msra.mxu0 0.0
    %3528 = vmatprep.subr.mxu0 0.0
    %v3529 = vand.u32 %v3344, 4294901760
    %v3530 = vsub.f32 %v3344, %v3529
    %3531 = vmatpush1.xpose.msra.mxu0 %v3530
    %3532 = vmatprep.subr.mxu0 0.0
    %3533 = vmatpush2.xpose.msra.mxu0 0.0
    %3534 = vmatprep.subr.mxu0 0.0
    %3535 = vmatpush2.xpose.msra.mxu0 0.0
    %3536 = vmatprep.subr.mxu0 0.0
    %3537 = vmatpush2.xpose.msra.mxu0 0.0
    %3538 = vmatprep.subr.mxu0 0.0
    %3539 = vmatpush2.xpose.msra.mxu0 0.0
    %3540 = vmatprep.subr.mxu0 0.0
    %3541 = vmatpush2.xpose.msra.mxu0 0.0
    %3542 = vmatprep.subr.mxu0 0.0
    %3543 = vmatpush2.xpose.msra.mxu0 0.0
    %3544 = vmatprep.subr.mxu0 0.0
    %3545 = vmatpush2.xpose.msra.mxu0 0.0
    %3546 = vmatprep.subr.mxu0 0.0
    %3547 = vmatpush2.xpose.msra.mxu0 0.0
    %3548 = vmatprep.subr.mxu0 0.0
    %3549 = vmatpush2.xpose.msra.mxu0 0.0
    %3550 = vmatprep.subr.mxu0 0.0
    %3551 = vmatpush2.xpose.msra.mxu0 0.0
    %3552 = vmatprep.subr.mxu0 0.0
    %3553 = vmatpush2.xpose.msra.mxu0 0.0
    %3554 = vmatprep.subr.mxu0 0.0
    %3555 = vmatpush2.xpose.msra.mxu0 0.0
    %3556 = vmatprep.subr.mxu0 0.0
    %3557 = vmatpush2.xpose.msra.mxu0 0.0
    %3558 = vmatprep.subr.mxu0 0.0
    %3559 = vmatpush2.xpose.msra.mxu0 0.0
    %3560 = vmatprep.subr.mxu0 0.0
    %3561 = vmatpush2.xpose.msra.mxu0 0.0
    %3562 = vmatprep.subr.mxu0 0.0
    %3563 = vmatpush2.xpose.msra.mxu0 0.0
    %3564 = vmatprep.mubr.f32.mxu0 0.0
    %v3565 = vand.u32 %v3342, 4294901760
    %v3566 = vsub.f32 %v3342, %v3565
    %3567 = vmatmul.mubr.f32.gmra.mxu0 %v3566
    %v3568 = vpop.f32.mrf.mxu0
    %v3569 = vadd.f32 %v3495, %v3568
    %v3570 = vpop.f32.mrf.mxu0
    %3571 = vdwg.mxu0
    %3572 = vmatprep.subr.mxu0 0.0
    %3573 = vmatpush1.xpose.msra.mxu0 0.0
    %3574 = vmatprep.subr.mxu0 0.0
    %3575 = vmatpush1.xpose.msra.mxu0 0.0
    %3576 = vmatprep.subr.mxu0 0.0
    %3577 = vmatpush1.xpose.msra.mxu0 0.0
    %3578 = vmatprep.subr.mxu0 0.0
    %3579 = vmatpush1.xpose.msra.mxu0 0.0
    %3580 = vmatprep.subr.mxu0 0.0
    %3581 = vmatpush1.xpose.msra.mxu0 0.0
    %3582 = vmatprep.subr.mxu0 0.0
    %3583 = vmatpush1.xpose.msra.mxu0 0.0
    %3584 = vmatprep.subr.mxu0 0.0
    %3585 = vmatpush1.xpose.msra.mxu0 0.0
    %3586 = vmatprep.subr.mxu0 0.0
    %3587 = vmatpush1.xpose.msra.mxu0 0.0
    %3588 = vmatprep.subr.mxu0 0.0
    %3589 = vmatpush1.xpose.msra.mxu0 0.0
    %3590 = vmatprep.subr.mxu0 0.0
    %3591 = vmatpush1.xpose.msra.mxu0 0.0
    %3592 = vmatprep.subr.mxu0 0.0
    %3593 = vmatpush1.xpose.msra.mxu0 0.0
    %3594 = vmatprep.subr.mxu0 0.0
    %3595 = vmatpush1.xpose.msra.mxu0 0.0
    %3596 = vmatprep.subr.mxu0 0.0
    %3597 = vmatpush1.xpose.msra.mxu0 0.0
    %3598 = vmatprep.subr.mxu0 0.0
    %3599 = vmatpush1.xpose.msra.mxu0 0.0
    %3600 = vmatprep.subr.mxu0 0.0
    %3601 = vmatpush1.xpose.msra.mxu0 0.0
    %3602 = vmatprep.subr.mxu0 0.0
    %v3603 = vand.u32 %v3344, 4294901760
    %3604 = vmatpush1.xpose.msra.mxu0 %v3603
    %3605 = vmatprep.subr.mxu0 0.0
    %3606 = vmatpush2.xpose.msra.mxu0 0.0
    %3607 = vmatprep.subr.mxu0 0.0
    %3608 = vmatpush2.xpose.msra.mxu0 0.0
    %3609 = vmatprep.subr.mxu0 0.0
    %3610 = vmatpush2.xpose.msra.mxu0 0.0
    %3611 = vmatprep.subr.mxu0 0.0
    %3612 = vmatpush2.xpose.msra.mxu0 0.0
    %3613 = vmatprep.subr.mxu0 0.0
    %3614 = vmatpush2.xpose.msra.mxu0 0.0
    %3615 = vmatprep.subr.mxu0 0.0
    %3616 = vmatpush2.xpose.msra.mxu0 0.0
    %3617 = vmatprep.subr.mxu0 0.0
    %3618 = vmatpush2.xpose.msra.mxu0 0.0
    %3619 = vmatprep.subr.mxu0 0.0
    %3620 = vmatpush2.xpose.msra.mxu0 0.0
    %3621 = vmatprep.subr.mxu0 0.0
    %3622 = vmatpush2.xpose.msra.mxu0 0.0
    %3623 = vmatprep.subr.mxu0 0.0
    %3624 = vmatpush2.xpose.msra.mxu0 0.0
    %3625 = vmatprep.subr.mxu0 0.0
    %3626 = vmatpush2.xpose.msra.mxu0 0.0
    %3627 = vmatprep.subr.mxu0 0.0
    %3628 = vmatpush2.xpose.msra.mxu0 0.0
    %3629 = vmatprep.subr.mxu0 0.0
    %3630 = vmatpush2.xpose.msra.mxu0 0.0
    %3631 = vmatprep.subr.mxu0 0.0
    %3632 = vmatpush2.xpose.msra.mxu0 0.0
    %3633 = vmatprep.subr.mxu0 0.0
    %3634 = vmatpush2.xpose.msra.mxu0 0.0
    %3635 = vmatprep.subr.mxu0 0.0
    %3636 = vmatpush2.xpose.msra.mxu0 0.0
    %3637 = vmatprep.mubr.f32.mxu0 0.0
    %v3638 = vand.u32 %v3342, 4294901760
    %v3639 = vsub.f32 %v3342, %v3638
    %v3640 = vand.u32 %v3639, 4294901760
    %3641 = vmatmul.mubr.f32.gmra.mxu0 %v3640
    %v3642 = vpop.f32.mrf.mxu0
    %v3643 = vadd.f32 %v3569, %v3642
    %v3644 = vpop.f32.mrf.mxu0
    %3645 = vdwg.mxu0
    %3646 = vmatprep.subr.mxu0 0.0
    %3647 = vmatpush1.xpose.msra.mxu0 0.0
    %3648 = vmatprep.subr.mxu0 0.0
    %3649 = vmatpush1.xpose.msra.mxu0 0.0
    %3650 = vmatprep.subr.mxu0 0.0
    %3651 = vmatpush1.xpose.msra.mxu0 0.0
    %3652 = vmatprep.subr.mxu0 0.0
    %3653 = vmatpush1.xpose.msra.mxu0 0.0
    %3654 = vmatprep.subr.mxu0 0.0
    %3655 = vmatpush1.xpose.msra.mxu0 0.0
    %3656 = vmatprep.subr.mxu0 0.0
    %3657 = vmatpush1.xpose.msra.mxu0 0.0
    %3658 = vmatprep.subr.mxu0 0.0
    %3659 = vmatpush1.xpose.msra.mxu0 0.0
    %3660 = vmatprep.subr.mxu0 0.0
    %3661 = vmatpush1.xpose.msra.mxu0 0.0
    %3662 = vmatprep.subr.mxu0 0.0
    %3663 = vmatpush1.xpose.msra.mxu0 0.0
    %3664 = vmatprep.subr.mxu0 0.0
    %3665 = vmatpush1.xpose.msra.mxu0 0.0
    %3666 = vmatprep.subr.mxu0 0.0
    %3667 = vmatpush1.xpose.msra.mxu0 0.0
    %3668 = vmatprep.subr.mxu0 0.0
    %3669 = vmatpush1.xpose.msra.mxu0 0.0
    %3670 = vmatprep.subr.mxu0 0.0
    %3671 = vmatpush1.xpose.msra.mxu0 0.0
    %3672 = vmatprep.subr.mxu0 0.0
    %3673 = vmatpush1.xpose.msra.mxu0 0.0
    %3674 = vmatprep.subr.mxu0 0.0
    %3675 = vmatpush1.xpose.msra.mxu0 0.0
    %3676 = vmatprep.subr.mxu0 0.0
    %v3677 = vand.u32 %v3344, 4294901760
    %v3678 = vsub.f32 %v3344, %v3677
    %v3679 = vand.u32 %v3678, 4294901760
    %3680 = vmatpush1.xpose.msra.mxu0 %v3679
    %3681 = vmatprep.subr.mxu0 0.0
    %3682 = vmatpush2.xpose.msra.mxu0 0.0
    %3683 = vmatprep.subr.mxu0 0.0
    %3684 = vmatpush2.xpose.msra.mxu0 0.0
    %3685 = vmatprep.subr.mxu0 0.0
    %3686 = vmatpush2.xpose.msra.mxu0 0.0
    %3687 = vmatprep.subr.mxu0 0.0
    %3688 = vmatpush2.xpose.msra.mxu0 0.0
    %3689 = vmatprep.subr.mxu0 0.0
    %3690 = vmatpush2.xpose.msra.mxu0 0.0
    %3691 = vmatprep.subr.mxu0 0.0
    %3692 = vmatpush2.xpose.msra.mxu0 0.0
    %3693 = vmatprep.subr.mxu0 0.0
    %3694 = vmatpush2.xpose.msra.mxu0 0.0
    %3695 = vmatprep.subr.mxu0 0.0
    %3696 = vmatpush2.xpose.msra.mxu0 0.0
    %3697 = vmatprep.subr.mxu0 0.0
    %3698 = vmatpush2.xpose.msra.mxu0 0.0
    %3699 = vmatprep.subr.mxu0 0.0
    %3700 = vmatpush2.xpose.msra.mxu0 0.0
    %3701 = vmatprep.subr.mxu0 0.0
    %3702 = vmatpush2.xpose.msra.mxu0 0.0
    %3703 = vmatprep.subr.mxu0 0.0
    %3704 = vmatpush2.xpose.msra.mxu0 0.0
    %3705 = vmatprep.subr.mxu0 0.0
    %3706 = vmatpush2.xpose.msra.mxu0 0.0
    %3707 = vmatprep.subr.mxu0 0.0
    %3708 = vmatpush2.xpose.msra.mxu0 0.0
    %3709 = vmatprep.subr.mxu0 0.0
    %3710 = vmatpush2.xpose.msra.mxu0 0.0
    %3711 = vmatprep.subr.mxu0 0.0
    %3712 = vmatpush2.xpose.msra.mxu0 0.0
    %3713 = vmatprep.mubr.f32.mxu0 0.0
    %v3714 = vand.u32 %v3342, 4294901760
    %3715 = vmatmul.mubr.f32.gmra.mxu0 %v3714
    %v3716 = vpop.f32.mrf.mxu0
    %v3717 = vadd.f32 %v3643, %v3716
    %v3718 = vpop.f32.mrf.mxu0
    %3719 = vdwg.mxu0
    %3720 = vmatprep.subr.mxu0 0.0
    %3721 = vmatpush1.xpose.msra.mxu0 0.0
    %3722 = vmatprep.subr.mxu0 0.0
    %3723 = vmatpush1.xpose.msra.mxu0 0.0
    %3724 = vmatprep.subr.mxu0 0.0
    %3725 = vmatpush1.xpose.msra.mxu0 0.0
    %3726 = vmatprep.subr.mxu0 0.0
    %3727 = vmatpush1.xpose.msra.mxu0 0.0
    %3728 = vmatprep.subr.mxu0 0.0
    %3729 = vmatpush1.xpose.msra.mxu0 0.0
    %3730 = vmatprep.subr.mxu0 0.0
    %3731 = vmatpush1.xpose.msra.mxu0 0.0
    %3732 = vmatprep.subr.mxu0 0.0
    %3733 = vmatpush1.xpose.msra.mxu0 0.0
    %3734 = vmatprep.subr.mxu0 0.0
    %3735 = vmatpush1.xpose.msra.mxu0 0.0
    %3736 = vmatprep.subr.mxu0 0.0
    %3737 = vmatpush1.xpose.msra.mxu0 0.0
    %3738 = vmatprep.subr.mxu0 0.0
    %3739 = vmatpush1.xpose.msra.mxu0 0.0
    %3740 = vmatprep.subr.mxu0 0.0
    %3741 = vmatpush1.xpose.msra.mxu0 0.0
    %3742 = vmatprep.subr.mxu0 0.0
    %3743 = vmatpush1.xpose.msra.mxu0 0.0
    %3744 = vmatprep.subr.mxu0 0.0
    %3745 = vmatpush1.xpose.msra.mxu0 0.0
    %3746 = vmatprep.subr.mxu0 0.0
    %3747 = vmatpush1.xpose.msra.mxu0 0.0
    %3748 = vmatprep.subr.mxu0 0.0
    %3749 = vmatpush1.xpose.msra.mxu0 0.0
    %3750 = vmatprep.subr.mxu0 0.0
    %v3751 = vand.u32 %v3344, 4294901760
    %3752 = vmatpush1.xpose.msra.mxu0 %v3751
    %3753 = vmatprep.subr.mxu0 0.0
    %3754 = vmatpush2.xpose.msra.mxu0 0.0
    %3755 = vmatprep.subr.mxu0 0.0
    %3756 = vmatpush2.xpose.msra.mxu0 0.0
    %3757 = vmatprep.subr.mxu0 0.0
    %3758 = vmatpush2.xpose.msra.mxu0 0.0
    %3759 = vmatprep.subr.mxu0 0.0
    %3760 = vmatpush2.xpose.msra.mxu0 0.0
    %3761 = vmatprep.subr.mxu0 0.0
    %3762 = vmatpush2.xpose.msra.mxu0 0.0
    %3763 = vmatprep.subr.mxu0 0.0
    %3764 = vmatpush2.xpose.msra.mxu0 0.0
    %3765 = vmatprep.subr.mxu0 0.0
    %3766 = vmatpush2.xpose.msra.mxu0 0.0
    %3767 = vmatprep.subr.mxu0 0.0
    %3768 = vmatpush2.xpose.msra.mxu0 0.0
    %3769 = vmatprep.subr.mxu0 0.0
    %3770 = vmatpush2.xpose.msra.mxu0 0.0
    %3771 = vmatprep.subr.mxu0 0.0
    %3772 = vmatpush2.xpose.msra.mxu0 0.0
    %3773 = vmatprep.subr.mxu0 0.0
    %3774 = vmatpush2.xpose.msra.mxu0 0.0
    %3775 = vmatprep.subr.mxu0 0.0
    %3776 = vmatpush2.xpose.msra.mxu0 0.0
    %3777 = vmatprep.subr.mxu0 0.0
    %3778 = vmatpush2.xpose.msra.mxu0 0.0
    %3779 = vmatprep.subr.mxu0 0.0
    %3780 = vmatpush2.xpose.msra.mxu0 0.0
    %3781 = vmatprep.subr.mxu0 0.0
    %3782 = vmatpush2.xpose.msra.mxu0 0.0
    %3783 = vmatprep.subr.mxu0 0.0
    %3784 = vmatpush2.xpose.msra.mxu0 0.0
    %3785 = vmatprep.mubr.f32.mxu0 0.0
    %v3786 = vand.u32 %v3342, 4294901760
    %3787 = vmatmul.mubr.f32.gmra.mxu0 %v3786
    %v3788 = vpop.f32.mrf.mxu0
    %v3789 = vadd.f32 %v3717, %v3788
    %v3790 = vpop.f32.mrf.mxu0
    %3791 = vdwg.mxu0
    %3792 = vrot.lane.b32.xlu0 %v626, 96
    %v3793 = vpop.permute.xlu0 %3792
    %v3794 = vsel %vm629, %v626, 0
    %v3796 = vsel %vm629, %v3793, 0
    %3798 = vmatprep.subr.mxu0 0.0
    %3799 = vmatpush1.xpose.msra.mxu0 0.0
    %3800 = vmatprep.subr.mxu0 0.0
    %3801 = vmatpush1.xpose.msra.mxu0 0.0
    %3802 = vmatprep.subr.mxu0 0.0
    %3803 = vmatpush1.xpose.msra.mxu0 0.0
    %3804 = vmatprep.subr.mxu0 0.0
    %3805 = vmatpush1.xpose.msra.mxu0 0.0
    %3806 = vmatprep.subr.mxu0 0.0
    %3807 = vmatpush1.xpose.msra.mxu0 0.0
    %3808 = vmatprep.subr.mxu0 0.0
    %3809 = vmatpush1.xpose.msra.mxu0 0.0
    %3810 = vmatprep.subr.mxu0 0.0
    %3811 = vmatpush1.xpose.msra.mxu0 0.0
    %3812 = vmatprep.subr.mxu0 0.0
    %3813 = vmatpush1.xpose.msra.mxu0 0.0
    %3814 = vmatprep.subr.mxu0 0.0
    %3815 = vmatpush1.xpose.msra.mxu0 0.0
    %3816 = vmatprep.subr.mxu0 0.0
    %3817 = vmatpush1.xpose.msra.mxu0 0.0
    %3818 = vmatprep.subr.mxu0 0.0
    %3819 = vmatpush1.xpose.msra.mxu0 0.0
    %3820 = vmatprep.subr.mxu0 0.0
    %3821 = vmatpush1.xpose.msra.mxu0 0.0
    %3822 = vmatprep.subr.mxu0 0.0
    %3823 = vmatpush1.xpose.msra.mxu0 0.0
    %3824 = vmatprep.subr.mxu0 0.0
    %3825 = vmatpush1.xpose.msra.mxu0 0.0
    %3826 = vmatprep.subr.mxu0 0.0
    %3827 = vmatpush1.xpose.msra.mxu0 0.0
    %3828 = vmatprep.subr.mxu0 0.0
    %v3829 = vand.u32 %v3796, 4294901760
    %3830 = vmatpush1.xpose.msra.mxu0 %v3829
    %3831 = vmatprep.subr.mxu0 0.0
    %3832 = vmatpush2.xpose.msra.mxu0 0.0
    %3833 = vmatprep.subr.mxu0 0.0
    %3834 = vmatpush2.xpose.msra.mxu0 0.0
    %3835 = vmatprep.subr.mxu0 0.0
    %3836 = vmatpush2.xpose.msra.mxu0 0.0
    %3837 = vmatprep.subr.mxu0 0.0
    %3838 = vmatpush2.xpose.msra.mxu0 0.0
    %3839 = vmatprep.subr.mxu0 0.0
    %3840 = vmatpush2.xpose.msra.mxu0 0.0
    %3841 = vmatprep.subr.mxu0 0.0
    %3842 = vmatpush2.xpose.msra.mxu0 0.0
    %3843 = vmatprep.subr.mxu0 0.0
    %3844 = vmatpush2.xpose.msra.mxu0 0.0
    %3845 = vmatprep.subr.mxu0 0.0
    %3846 = vmatpush2.xpose.msra.mxu0 0.0
    %3847 = vmatprep.subr.mxu0 0.0
    %3848 = vmatpush2.xpose.msra.mxu0 0.0
    %3849 = vmatprep.subr.mxu0 0.0
    %3850 = vmatpush2.xpose.msra.mxu0 0.0
    %3851 = vmatprep.subr.mxu0 0.0
    %3852 = vmatpush2.xpose.msra.mxu0 0.0
    %3853 = vmatprep.subr.mxu0 0.0
    %3854 = vmatpush2.xpose.msra.mxu0 0.0
    %3855 = vmatprep.subr.mxu0 0.0
    %3856 = vmatpush2.xpose.msra.mxu0 0.0
    %3857 = vmatprep.subr.mxu0 0.0
    %3858 = vmatpush2.xpose.msra.mxu0 0.0
    %3859 = vmatprep.subr.mxu0 0.0
    %3860 = vmatpush2.xpose.msra.mxu0 0.0
    %3861 = vmatprep.subr.mxu0 0.0
    %3862 = vmatpush2.xpose.msra.mxu0 0.0
    %3863 = vmatprep.mubr.f32.mxu0 0.0
    %v3864 = vand.u32 %v3794, 4294901760
    %v3865 = vsub.f32 %v3794, %v3864
    %v3866 = vand.u32 %v3865, 4294901760
    %v3867 = vsub.f32 %v3865, %v3866
    %v3868 = vand.u32 %v3867, 4294901760
    %3869 = vmatmul.mubr.f32.gmra.mxu0 %v3868
    %v3870 = vpop.f32.mrf.mxu0
    %v3871 = vadd.f32 0.0, %v3870
    %v3872 = vpop.f32.mrf.mxu0
    %3873 = vdwg.mxu0
    %3874 = vmatprep.subr.mxu0 0.0
    %3875 = vmatpush1.xpose.msra.mxu0 0.0
    %3876 = vmatprep.subr.mxu0 0.0
    %3877 = vmatpush1.xpose.msra.mxu0 0.0
    %3878 = vmatprep.subr.mxu0 0.0
    %3879 = vmatpush1.xpose.msra.mxu0 0.0
    %3880 = vmatprep.subr.mxu0 0.0
    %3881 = vmatpush1.xpose.msra.mxu0 0.0
    %3882 = vmatprep.subr.mxu0 0.0
    %3883 = vmatpush1.xpose.msra.mxu0 0.0
    %3884 = vmatprep.subr.mxu0 0.0
    %3885 = vmatpush1.xpose.msra.mxu0 0.0
    %3886 = vmatprep.subr.mxu0 0.0
    %3887 = vmatpush1.xpose.msra.mxu0 0.0
    %3888 = vmatprep.subr.mxu0 0.0
    %3889 = vmatpush1.xpose.msra.mxu0 0.0
    %3890 = vmatprep.subr.mxu0 0.0
    %3891 = vmatpush1.xpose.msra.mxu0 0.0
    %3892 = vmatprep.subr.mxu0 0.0
    %3893 = vmatpush1.xpose.msra.mxu0 0.0
    %3894 = vmatprep.subr.mxu0 0.0
    %3895 = vmatpush1.xpose.msra.mxu0 0.0
    %3896 = vmatprep.subr.mxu0 0.0
    %3897 = vmatpush1.xpose.msra.mxu0 0.0
    %3898 = vmatprep.subr.mxu0 0.0
    %3899 = vmatpush1.xpose.msra.mxu0 0.0
    %3900 = vmatprep.subr.mxu0 0.0
    %3901 = vmatpush1.xpose.msra.mxu0 0.0
    %3902 = vmatprep.subr.mxu0 0.0
    %3903 = vmatpush1.xpose.msra.mxu0 0.0
    %3904 = vmatprep.subr.mxu0 0.0
    %v3905 = vand.u32 %v3796, 4294901760
    %v3906 = vsub.f32 %v3796, %v3905
    %v3907 = vand.u32 %v3906, 4294901760
    %v3908 = vsub.f32 %v3906, %v3907
    %v3909 = vand.u32 %v3908, 4294901760
    %3910 = vmatpush1.xpose.msra.mxu0 %v3909
    %3911 = vmatprep.subr.mxu0 0.0
    %3912 = vmatpush2.xpose.msra.mxu0 0.0
    %3913 = vmatprep.subr.mxu0 0.0
    %3914 = vmatpush2.xpose.msra.mxu0 0.0
    %3915 = vmatprep.subr.mxu0 0.0
    %3916 = vmatpush2.xpose.msra.mxu0 0.0
    %3917 = vmatprep.subr.mxu0 0.0
    %3918 = vmatpush2.xpose.msra.mxu0 0.0
    %3919 = vmatprep.subr.mxu0 0.0
    %3920 = vmatpush2.xpose.msra.mxu0 0.0
    %3921 = vmatprep.subr.mxu0 0.0
    %3922 = vmatpush2.xpose.msra.mxu0 0.0
    %3923 = vmatprep.subr.mxu0 0.0
    %3924 = vmatpush2.xpose.msra.mxu0 0.0
    %3925 = vmatprep.subr.mxu0 0.0
    %3926 = vmatpush2.xpose.msra.mxu0 0.0
    %3927 = vmatprep.subr.mxu0 0.0
    %3928 = vmatpush2.xpose.msra.mxu0 0.0
    %3929 = vmatprep.subr.mxu0 0.0
    %3930 = vmatpush2.xpose.msra.mxu0 0.0
    %3931 = vmatprep.subr.mxu0 0.0
    %3932 = vmatpush2.xpose.msra.mxu0 0.0
    %3933 = vmatprep.subr.mxu0 0.0
    %3934 = vmatpush2.xpose.msra.mxu0 0.0
    %3935 = vmatprep.subr.mxu0 0.0
    %3936 = vmatpush2.xpose.msra.mxu0 0.0
    %3937 = vmatprep.subr.mxu0 0.0
    %3938 = vmatpush2.xpose.msra.mxu0 0.0
    %3939 = vmatprep.subr.mxu0 0.0
    %3940 = vmatpush2.xpose.msra.mxu0 0.0
    %3941 = vmatprep.subr.mxu0 0.0
    %3942 = vmatpush2.xpose.msra.mxu0 0.0
    %3943 = vmatprep.mubr.f32.mxu0 0.0
    %v3944 = vand.u32 %v3794, 4294901760
    %3945 = vmatmul.mubr.f32.gmra.mxu0 %v3944
    %v3946 = vpop.f32.mrf.mxu0
    %v3947 = vadd.f32 %v3871, %v3946
    %v3948 = vpop.f32.mrf.mxu0
    %3949 = vdwg.mxu0
    %3950 = vmatprep.subr.mxu0 0.0
    %3951 = vmatpush1.xpose.msra.mxu0 0.0
    %3952 = vmatprep.subr.mxu0 0.0
    %3953 = vmatpush1.xpose.msra.mxu0 0.0
    %3954 = vmatprep.subr.mxu0 0.0
    %3955 = vmatpush1.xpose.msra.mxu0 0.0
    %3956 = vmatprep.subr.mxu0 0.0
    %3957 = vmatpush1.xpose.msra.mxu0 0.0
    %3958 = vmatprep.subr.mxu0 0.0
    %3959 = vmatpush1.xpose.msra.mxu0 0.0
    %3960 = vmatprep.subr.mxu0 0.0
    %3961 = vmatpush1.xpose.msra.mxu0 0.0
    %3962 = vmatprep.subr.mxu0 0.0
    %3963 = vmatpush1.xpose.msra.mxu0 0.0
    %3964 = vmatprep.subr.mxu0 0.0
    %3965 = vmatpush1.xpose.msra.mxu0 0.0
    %3966 = vmatprep.subr.mxu0 0.0
    %3967 = vmatpush1.xpose.msra.mxu0 0.0
    %3968 = vmatprep.subr.mxu0 0.0
    %3969 = vmatpush1.xpose.msra.mxu0 0.0
    %3970 = vmatprep.subr.mxu0 0.0
    %3971 = vmatpush1.xpose.msra.mxu0 0.0
    %3972 = vmatprep.subr.mxu0 0.0
    %3973 = vmatpush1.xpose.msra.mxu0 0.0
    %3974 = vmatprep.subr.mxu0 0.0
    %3975 = vmatpush1.xpose.msra.mxu0 0.0
    %3976 = vmatprep.subr.mxu0 0.0
    %3977 = vmatpush1.xpose.msra.mxu0 0.0
    %3978 = vmatprep.subr.mxu0 0.0
    %3979 = vmatpush1.xpose.msra.mxu0 0.0
    %3980 = vmatprep.subr.mxu0 0.0
    %v3981 = vand.u32 %v3796, 4294901760
    %v3982 = vsub.f32 %v3796, %v3981
    %3983 = vmatpush1.xpose.msra.mxu0 %v3982
    %3984 = vmatprep.subr.mxu0 0.0
    %3985 = vmatpush2.xpose.msra.mxu0 0.0
    %3986 = vmatprep.subr.mxu0 0.0
    %3987 = vmatpush2.xpose.msra.mxu0 0.0
    %3988 = vmatprep.subr.mxu0 0.0
    %3989 = vmatpush2.xpose.msra.mxu0 0.0
    %3990 = vmatprep.subr.mxu0 0.0
    %3991 = vmatpush2.xpose.msra.mxu0 0.0
    %3992 = vmatprep.subr.mxu0 0.0
    %3993 = vmatpush2.xpose.msra.mxu0 0.0
    %3994 = vmatprep.subr.mxu0 0.0
    %3995 = vmatpush2.xpose.msra.mxu0 0.0
    %3996 = vmatprep.subr.mxu0 0.0
    %3997 = vmatpush2.xpose.msra.mxu0 0.0
    %3998 = vmatprep.subr.mxu0 0.0
    %3999 = vmatpush2.xpose.msra.mxu0 0.0
    %4000 = vmatprep.subr.mxu0 0.0
    %4001 = vmatpush2.xpose.msra.mxu0 0.0
    %4002 = vmatprep.subr.mxu0 0.0
    %4003 = vmatpush2.xpose.msra.mxu0 0.0
    %4004 = vmatprep.subr.mxu0 0.0
    %4005 = vmatpush2.xpose.msra.mxu0 0.0
    %4006 = vmatprep.subr.mxu0 0.0
    %4007 = vmatpush2.xpose.msra.mxu0 0.0
    %4008 = vmatprep.subr.mxu0 0.0
    %4009 = vmatpush2.xpose.msra.mxu0 0.0
    %4010 = vmatprep.subr.mxu0 0.0
    %4011 = vmatpush2.xpose.msra.mxu0 0.0
    %4012 = vmatprep.subr.mxu0 0.0
    %4013 = vmatpush2.xpose.msra.mxu0 0.0
    %4014 = vmatprep.subr.mxu0 0.0
    %4015 = vmatpush2.xpose.msra.mxu0 0.0
    %4016 = vmatprep.mubr.f32.mxu0 0.0
    %v4017 = vand.u32 %v3794, 4294901760
    %v4018 = vsub.f32 %v3794, %v4017
    %4019 = vmatmul.mubr.f32.gmra.mxu0 %v4018
    %v4020 = vpop.f32.mrf.mxu0
    %v4021 = vadd.f32 %v3947, %v4020
    %v4022 = vpop.f32.mrf.mxu0
    %4023 = vdwg.mxu0
    %4024 = vmatprep.subr.mxu0 0.0
    %4025 = vmatpush1.xpose.msra.mxu0 0.0
    %4026 = vmatprep.subr.mxu0 0.0
    %4027 = vmatpush1.xpose.msra.mxu0 0.0
    %4028 = vmatprep.subr.mxu0 0.0
    %4029 = vmatpush1.xpose.msra.mxu0 0.0
    %4030 = vmatprep.subr.mxu0 0.0
    %4031 = vmatpush1.xpose.msra.mxu0 0.0
    %4032 = vmatprep.subr.mxu0 0.0
    %4033 = vmatpush1.xpose.msra.mxu0 0.0
    %4034 = vmatprep.subr.mxu0 0.0
    %4035 = vmatpush1.xpose.msra.mxu0 0.0
    %4036 = vmatprep.subr.mxu0 0.0
    %4037 = vmatpush1.xpose.msra.mxu0 0.0
    %4038 = vmatprep.subr.mxu0 0.0
    %4039 = vmatpush1.xpose.msra.mxu0 0.0
    %4040 = vmatprep.subr.mxu0 0.0
    %4041 = vmatpush1.xpose.msra.mxu0 0.0
    %4042 = vmatprep.subr.mxu0 0.0
    %4043 = vmatpush1.xpose.msra.mxu0 0.0
    %4044 = vmatprep.subr.mxu0 0.0
    %4045 = vmatpush1.xpose.msra.mxu0 0.0
    %4046 = vmatprep.subr.mxu0 0.0
    %4047 = vmatpush1.xpose.msra.mxu0 0.0
    %4048 = vmatprep.subr.mxu0 0.0
    %4049 = vmatpush1.xpose.msra.mxu0 0.0
    %4050 = vmatprep.subr.mxu0 0.0
    %4051 = vmatpush1.xpose.msra.mxu0 0.0
    %4052 = vmatprep.subr.mxu0 0.0
    %4053 = vmatpush1.xpose.msra.mxu0 0.0
    %4054 = vmatprep.subr.mxu0 0.0
    %v4055 = vand.u32 %v3796, 4294901760
    %4056 = vmatpush1.xpose.msra.mxu0 %v4055
    %4057 = vmatprep.subr.mxu0 0.0
    %4058 = vmatpush2.xpose.msra.mxu0 0.0
    %4059 = vmatprep.subr.mxu0 0.0
    %4060 = vmatpush2.xpose.msra.mxu0 0.0
    %4061 = vmatprep.subr.mxu0 0.0
    %4062 = vmatpush2.xpose.msra.mxu0 0.0
    %4063 = vmatprep.subr.mxu0 0.0
    %4064 = vmatpush2.xpose.msra.mxu0 0.0
    %4065 = vmatprep.subr.mxu0 0.0
    %4066 = vmatpush2.xpose.msra.mxu0 0.0
    %4067 = vmatprep.subr.mxu0 0.0
    %4068 = vmatpush2.xpose.msra.mxu0 0.0
    %4069 = vmatprep.subr.mxu0 0.0
    %4070 = vmatpush2.xpose.msra.mxu0 0.0
    %4071 = vmatprep.subr.mxu0 0.0
    %4072 = vmatpush2.xpose.msra.mxu0 0.0
    %4073 = vmatprep.subr.mxu0 0.0
    %4074 = vmatpush2.xpose.msra.mxu0 0.0
    %4075 = vmatprep.subr.mxu0 0.0
    %4076 = vmatpush2.xpose.msra.mxu0 0.0
    %4077 = vmatprep.subr.mxu0 0.0
    %4078 = vmatpush2.xpose.msra.mxu0 0.0
    %4079 = vmatprep.subr.mxu0 0.0
    %4080 = vmatpush2.xpose.msra.mxu0 0.0
    %4081 = vmatprep.subr.mxu0 0.0
    %4082 = vmatpush2.xpose.msra.mxu0 0.0
    %4083 = vmatprep.subr.mxu0 0.0
    %4084 = vmatpush2.xpose.msra.mxu0 0.0
    %4085 = vmatprep.subr.mxu0 0.0
    %4086 = vmatpush2.xpose.msra.mxu0 0.0
    %4087 = vmatprep.subr.mxu0 0.0
    %4088 = vmatpush2.xpose.msra.mxu0 0.0
    %4089 = vmatprep.mubr.f32.mxu0 0.0
    %v4090 = vand.u32 %v3794, 4294901760
    %v4091 = vsub.f32 %v3794, %v4090
    %v4092 = vand.u32 %v4091, 4294901760
    %4093 = vmatmul.mubr.f32.gmra.mxu0 %v4092
    %v4094 = vpop.f32.mrf.mxu0
    %v4095 = vadd.f32 %v4021, %v4094
    %v4096 = vpop.f32.mrf.mxu0
    %4097 = vdwg.mxu0
    %4098 = vmatprep.subr.mxu0 0.0
    %4099 = vmatpush1.xpose.msra.mxu0 0.0
    %4100 = vmatprep.subr.mxu0 0.0
    %4101 = vmatpush1.xpose.msra.mxu0 0.0
    %4102 = vmatprep.subr.mxu0 0.0
    %4103 = vmatpush1.xpose.msra.mxu0 0.0
    %4104 = vmatprep.subr.mxu0 0.0
    %4105 = vmatpush1.xpose.msra.mxu0 0.0
    %4106 = vmatprep.subr.mxu0 0.0
    %4107 = vmatpush1.xpose.msra.mxu0 0.0
    %4108 = vmatprep.subr.mxu0 0.0
    %4109 = vmatpush1.xpose.msra.mxu0 0.0
    %4110 = vmatprep.subr.mxu0 0.0
    %4111 = vmatpush1.xpose.msra.mxu0 0.0
    %4112 = vmatprep.subr.mxu0 0.0
    %4113 = vmatpush1.xpose.msra.mxu0 0.0
    %4114 = vmatprep.subr.mxu0 0.0
    %4115 = vmatpush1.xpose.msra.mxu0 0.0
    %4116 = vmatprep.subr.mxu0 0.0
    %4117 = vmatpush1.xpose.msra.mxu0 0.0
    %4118 = vmatprep.subr.mxu0 0.0
    %4119 = vmatpush1.xpose.msra.mxu0 0.0
    %4120 = vmatprep.subr.mxu0 0.0
    %4121 = vmatpush1.xpose.msra.mxu0 0.0
    %4122 = vmatprep.subr.mxu0 0.0
    %4123 = vmatpush1.xpose.msra.mxu0 0.0
    %4124 = vmatprep.subr.mxu0 0.0
    %4125 = vmatpush1.xpose.msra.mxu0 0.0
    %4126 = vmatprep.subr.mxu0 0.0
    %4127 = vmatpush1.xpose.msra.mxu0 0.0
    %4128 = vmatprep.subr.mxu0 0.0
    %v4129 = vand.u32 %v3796, 4294901760
    %v4130 = vsub.f32 %v3796, %v4129
    %v4131 = vand.u32 %v4130, 4294901760
    %4132 = vmatpush1.xpose.msra.mxu0 %v4131
    %4133 = vmatprep.subr.mxu0 0.0
    %4134 = vmatpush2.xpose.msra.mxu0 0.0
    %4135 = vmatprep.subr.mxu0 0.0
    %4136 = vmatpush2.xpose.msra.mxu0 0.0
    %4137 = vmatprep.subr.mxu0 0.0
    %4138 = vmatpush2.xpose.msra.mxu0 0.0
    %4139 = vmatprep.subr.mxu0 0.0
    %4140 = vmatpush2.xpose.msra.mxu0 0.0
    %4141 = vmatprep.subr.mxu0 0.0
    %4142 = vmatpush2.xpose.msra.mxu0 0.0
    %4143 = vmatprep.subr.mxu0 0.0
    %4144 = vmatpush2.xpose.msra.mxu0 0.0
    %4145 = vmatprep.subr.mxu0 0.0
    %4146 = vmatpush2.xpose.msra.mxu0 0.0
    %4147 = vmatprep.subr.mxu0 0.0
    %4148 = vmatpush2.xpose.msra.mxu0 0.0
    %4149 = vmatprep.subr.mxu0 0.0
    %4150 = vmatpush2.xpose.msra.mxu0 0.0
    %4151 = vmatprep.subr.mxu0 0.0
    %4152 = vmatpush2.xpose.msra.mxu0 0.0
    %4153 = vmatprep.subr.mxu0 0.0
    %4154 = vmatpush2.xpose.msra.mxu0 0.0
    %4155 = vmatprep.subr.mxu0 0.0
    %4156 = vmatpush2.xpose.msra.mxu0 0.0
    %4157 = vmatprep.subr.mxu0 0.0
    %4158 = vmatpush2.xpose.msra.mxu0 0.0
    %4159 = vmatprep.subr.mxu0 0.0
    %4160 = vmatpush2.xpose.msra.mxu0 0.0
    %4161 = vmatprep.subr.mxu0 0.0
    %4162 = vmatpush2.xpose.msra.mxu0 0.0
    %4163 = vmatprep.subr.mxu0 0.0
    %4164 = vmatpush2.xpose.msra.mxu0 0.0
    %4165 = vmatprep.mubr.f32.mxu0 0.0
    %v4166 = vand.u32 %v3794, 4294901760
    %4167 = vmatmul.mubr.f32.gmra.mxu0 %v4166
    %v4168 = vpop.f32.mrf.mxu0
    %v4169 = vadd.f32 %v4095, %v4168
    %v4170 = vpop.f32.mrf.mxu0
    %4171 = vdwg.mxu0
    %4172 = vmatprep.subr.mxu0 0.0
    %4173 = vmatpush1.xpose.msra.mxu0 0.0
    %4174 = vmatprep.subr.mxu0 0.0
    %4175 = vmatpush1.xpose.msra.mxu0 0.0
    %4176 = vmatprep.subr.mxu0 0.0
    %4177 = vmatpush1.xpose.msra.mxu0 0.0
    %4178 = vmatprep.subr.mxu0 0.0
    %4179 = vmatpush1.xpose.msra.mxu0 0.0
    %4180 = vmatprep.subr.mxu0 0.0
    %4181 = vmatpush1.xpose.msra.mxu0 0.0
    %4182 = vmatprep.subr.mxu0 0.0
    %4183 = vmatpush1.xpose.msra.mxu0 0.0
    %4184 = vmatprep.subr.mxu0 0.0
    %4185 = vmatpush1.xpose.msra.mxu0 0.0
    %4186 = vmatprep.subr.mxu0 0.0
    %4187 = vmatpush1.xpose.msra.mxu0 0.0
    %4188 = vmatprep.subr.mxu0 0.0
    %4189 = vmatpush1.xpose.msra.mxu0 0.0
    %4190 = vmatprep.subr.mxu0 0.0
    %4191 = vmatpush1.xpose.msra.mxu0 0.0
    %4192 = vmatprep.subr.mxu0 0.0
    %4193 = vmatpush1.xpose.msra.mxu0 0.0
    %4194 = vmatprep.subr.mxu0 0.0
    %4195 = vmatpush1.xpose.msra.mxu0 0.0
    %4196 = vmatprep.subr.mxu0 0.0
    %4197 = vmatpush1.xpose.msra.mxu0 0.0
    %4198 = vmatprep.subr.mxu0 0.0
    %4199 = vmatpush1.xpose.msra.mxu0 0.0
    %4200 = vmatprep.subr.mxu0 0.0
    %4201 = vmatpush1.xpose.msra.mxu0 0.0
    %4202 = vmatprep.subr.mxu0 0.0
    %v4203 = vand.u32 %v3796, 4294901760
    %4204 = vmatpush1.xpose.msra.mxu0 %v4203
    %4205 = vmatprep.subr.mxu0 0.0
    %4206 = vmatpush2.xpose.msra.mxu0 0.0
    %4207 = vmatprep.subr.mxu0 0.0
    %4208 = vmatpush2.xpose.msra.mxu0 0.0
    %4209 = vmatprep.subr.mxu0 0.0
    %4210 = vmatpush2.xpose.msra.mxu0 0.0
    %4211 = vmatprep.subr.mxu0 0.0
    %4212 = vmatpush2.xpose.msra.mxu0 0.0
    %4213 = vmatprep.subr.mxu0 0.0
    %4214 = vmatpush2.xpose.msra.mxu0 0.0
    %4215 = vmatprep.subr.mxu0 0.0
    %4216 = vmatpush2.xpose.msra.mxu0 0.0
    %4217 = vmatprep.subr.mxu0 0.0
    %4218 = vmatpush2.xpose.msra.mxu0 0.0
    %4219 = vmatprep.subr.mxu0 0.0
    %4220 = vmatpush2.xpose.msra.mxu0 0.0
    %4221 = vmatprep.subr.mxu0 0.0
    %4222 = vmatpush2.xpose.msra.mxu0 0.0
    %4223 = vmatprep.subr.mxu0 0.0
    %4224 = vmatpush2.xpose.msra.mxu0 0.0
    %4225 = vmatprep.subr.mxu0 0.0
    %4226 = vmatpush2.xpose.msra.mxu0 0.0
    %4227 = vmatprep.subr.mxu0 0.0
    %4228 = vmatpush2.xpose.msra.mxu0 0.0
    %4229 = vmatprep.subr.mxu0 0.0
    %4230 = vmatpush2.xpose.msra.mxu0 0.0
    %4231 = vmatprep.subr.mxu0 0.0
    %4232 = vmatpush2.xpose.msra.mxu0 0.0
    %4233 = vmatprep.subr.mxu0 0.0
    %4234 = vmatpush2.xpose.msra.mxu0 0.0
    %4235 = vmatprep.subr.mxu0 0.0
    %4236 = vmatpush2.xpose.msra.mxu0 0.0
    %4237 = vmatprep.mubr.f32.mxu0 0.0
    %v4238 = vand.u32 %v3794, 4294901760
    %4239 = vmatmul.mubr.f32.gmra.mxu0 %v4238
    %v4240 = vpop.f32.mrf.mxu0
    %v4241 = vadd.f32 %v4169, %v4240
    %v4242 = vpop.f32.mrf.mxu0
    %4243 = vdwg.mxu0
    %v4244 = vsel %vm629, %v1077, -inf
    %4245 = vmax.xlane.f32.xlu0 %v4244
    %v4246 = vpop.xlane.xlu0 %4245
    %v4247 = vsel %vm629, %v1529, -inf
    %4248 = vmax.xlane.f32.xlu0 %v4247
    %v4249 = vpop.xlane.xlu0 %4248
    %v4250 = vsel %vm629, %v1981, -inf
    %4251 = vmax.xlane.f32.xlu0 %v4250
    %v4252 = vpop.xlane.xlu0 %4251
    %v4253 = vsel %vm629, %v2433, -inf
    %4254 = vmax.xlane.f32.xlu0 %v4253
    %v4255 = vpop.xlane.xlu0 %4254
    %v4256 = vsel %vm629, %v2885, -inf
    %4257 = vmax.xlane.f32.xlu0 %v4256
    %v4258 = vpop.xlane.xlu0 %4257
    %v4259 = vsel %vm629, %v3337, -inf
    %4260 = vmax.xlane.f32.xlu0 %v4259
    %v4261 = vpop.xlane.xlu0 %4260
    %v4262 = vsel %vm629, %v3789, -inf
    %4263 = vmax.xlane.f32.xlu0 %v4262
    %v4264 = vpop.xlane.xlu0 %4263
    %v4265 = vsel %vm629, %v4241, -inf
    %4266 = vmax.xlane.f32.xlu0 %v4265
    %v4267 = vpop.xlane.xlu0 %4266
    %v4268 = vsub.f32 %v1077, %v4246
    %v4269 = vsub.f32 %v1529, %v4249
    %v4270 = vsub.f32 %v1981, %v4252
    %v4271 = vsub.f32 %v2433, %v4255
    %v4272 = vsub.f32 %v2885, %v4258
    %v4273 = vsub.f32 %v3337, %v4261
    %v4274 = vsub.f32 %v3789, %v4264
    %v4275 = vsub.f32 %v4241, %v4267
    %v4276 = vmul.f32 %v4268, 1.442695
    %v4277 = vpow.pop %v4276
    %v4278 = vmul.f32 %v4269, 1.442695
    %v4279 = vpow.pop %v4278
    %v4280 = vmul.f32 %v4270, 1.442695
    %v4281 = vpow.pop %v4280
    %v4282 = vmul.f32 %v4271, 1.442695
    %v4283 = vpow.pop %v4282
    %v4284 = vmul.f32 %v4272, 1.442695
    %v4285 = vpow.pop %v4284
    %v4286 = vmul.f32 %v4273, 1.442695
    %v4287 = vpow.pop %v4286
    %v4288 = vmul.f32 %v4274, 1.442695
    %v4289 = vpow.pop %v4288
    %v4290 = vmul.f32 %v4275, 1.442695
    %v4291 = vpow.pop %v4290
    %v4292 = vsel %vm629, %v4277, 0.0
    %4293 = vadd.xlane.f32.xlu0 %v4292
    %v4294 = vpop.xlane.xlu0 %4293
    %v4295 = vsel %vm629, %v4279, 0.0
    %4296 = vadd.xlane.f32.xlu0 %v4295
    %v4297 = vpop.xlane.xlu0 %4296
    %v4298 = vsel %vm629, %v4281, 0.0
    %4299 = vadd.xlane.f32.xlu0 %v4298
    %v4300 = vpop.xlane.xlu0 %4299
    %v4301 = vsel %vm629, %v4283, 0.0
    %4302 = vadd.xlane.f32.xlu0 %v4301
    %v4303 = vpop.xlane.xlu0 %4302
    %v4304 = vsel %vm629, %v4285, 0.0
    %4305 = vadd.xlane.f32.xlu0 %v4304
    %v4306 = vpop.xlane.xlu0 %4305
    %v4307 = vsel %vm629, %v4287, 0.0
    %4308 = vadd.xlane.f32.xlu0 %v4307
    %v4309 = vpop.xlane.xlu0 %4308
    %v4310 = vsel %vm629, %v4289, 0.0
    %4311 = vadd.xlane.f32.xlu0 %v4310
    %v4312 = vpop.xlane.xlu0 %4311
    %v4313 = vsel %vm629, %v4291, 0.0
    %4314 = vadd.xlane.f32.xlu0 %v4313
    %v4315 = vpop.xlane.xlu0 %4314
    %v4316 = vrcp.pop %v4294
    %v4317 = vrcp.pop %v4297
    %v4318 = vrcp.pop %v4300
    %v4319 = vrcp.pop %v4303
    %v4320 = vrcp.pop %v4306
    %v4321 = vrcp.pop %v4309
    %v4322 = vrcp.pop %v4312
    %v4323 = vrcp.pop %v4315
    %v4324 = vmul.f32 %v4277, %v4316
    %v4325 = vmul.f32 %v4279, %v4317
    %v4326 = vmul.f32 %v4281, %v4318
    %v4327 = vmul.f32 %v4283, %v4319
    %v4328 = vmul.f32 %v4285, %v4320
    %v4329 = vmul.f32 %v4287, %v4321
    %v4330 = vmul.f32 %v4289, %v4322
    %v4331 = vmul.f32 %v4291, %v4323
    %4332 = vrot.lane.b32.xlu0 %v604, 64
    %v4333 = vpop.permute.xlu0 %4332
    %v4336 = vsel %vm629, %v4324, 0
    %4338 = vmatprep.subr.mxu0 0.0
    %4339 = vmatpush1.msra.mxu0 0.0
    %4340 = vmatprep.subr.mxu0 0.0
    %4341 = vmatpush1.msra.mxu0 0.0
    %4342 = vmatprep.subr.mxu0 0.0
    %4343 = vmatpush1.msra.mxu0 0.0
    %4344 = vmatprep.subr.mxu0 0.0
    %4345 = vmatpush1.msra.mxu0 0.0
    %4346 = vmatprep.subr.mxu0 0.0
    %4347 = vmatpush1.msra.mxu0 0.0
    %4348 = vmatprep.subr.mxu0 0.0
    %4349 = vmatpush1.msra.mxu0 0.0
    %4350 = vmatprep.subr.mxu0 0.0
    %4351 = vmatpush1.msra.mxu0 0.0
    %4352 = vmatprep.subr.mxu0 0.0
    %4353 = vmatpush1.msra.mxu0 0.0
    %4354 = vmatprep.subr.mxu0 0.0
    %4355 = vmatpush1.msra.mxu0 0.0
    %4356 = vmatprep.subr.mxu0 0.0
    %4357 = vmatpush1.msra.mxu0 0.0
    %4358 = vmatprep.subr.mxu0 0.0
    %4359 = vmatpush1.msra.mxu0 0.0
    %4360 = vmatprep.subr.mxu0 0.0
    %4361 = vmatpush1.msra.mxu0 0.0
    %4362 = vmatprep.subr.mxu0 0.0
    %4363 = vmatpush1.msra.mxu0 0.0
    %4364 = vmatprep.subr.mxu0 0.0
    %4365 = vmatpush1.msra.mxu0 0.0
    %4366 = vmatprep.subr.mxu0 0.0
    %4367 = vmatpush1.msra.mxu0 0.0
    %4368 = vmatprep.subr.mxu0 0.0
    %v4369 = vand.u32 %v4333, 4294901760
    %4370 = vmatpush1.msra.mxu0 %v4369
    %4371 = vmatprep.subr.mxu0 0.0
    %4372 = vmatpush2.msra.mxu0 0.0
    %4373 = vmatprep.subr.mxu0 0.0
    %4374 = vmatpush2.msra.mxu0 0.0
    %4375 = vmatprep.subr.mxu0 0.0
    %4376 = vmatpush2.msra.mxu0 0.0
    %4377 = vmatprep.subr.mxu0 0.0
    %4378 = vmatpush2.msra.mxu0 0.0
    %4379 = vmatprep.subr.mxu0 0.0
    %4380 = vmatpush2.msra.mxu0 0.0
    %4381 = vmatprep.subr.mxu0 0.0
    %4382 = vmatpush2.msra.mxu0 0.0
    %4383 = vmatprep.subr.mxu0 0.0
    %4384 = vmatpush2.msra.mxu0 0.0
    %4385 = vmatprep.subr.mxu0 0.0
    %4386 = vmatpush2.msra.mxu0 0.0
    %4387 = vmatprep.subr.mxu0 0.0
    %4388 = vmatpush2.msra.mxu0 0.0
    %4389 = vmatprep.subr.mxu0 0.0
    %4390 = vmatpush2.msra.mxu0 0.0
    %4391 = vmatprep.subr.mxu0 0.0
    %4392 = vmatpush2.msra.mxu0 0.0
    %4393 = vmatprep.subr.mxu0 0.0
    %4394 = vmatpush2.msra.mxu0 0.0
    %4395 = vmatprep.subr.mxu0 0.0
    %4396 = vmatpush2.msra.mxu0 0.0
    %4397 = vmatprep.subr.mxu0 0.0
    %4398 = vmatpush2.msra.mxu0 0.0
    %4399 = vmatprep.subr.mxu0 0.0
    %4400 = vmatpush2.msra.mxu0 0.0
    %4401 = vmatprep.subr.mxu0 0.0
    %4402 = vmatpush2.msra.mxu0 0.0
    %4403 = vmatprep.mubr.f32.mxu0 0.0
    %v4404 = vand.u32 %v4336, 4294901760
    %v4405 = vsub.f32 %v4336, %v4404
    %v4406 = vand.u32 %v4405, 4294901760
    %v4407 = vsub.f32 %v4405, %v4406
    %v4408 = vand.u32 %v4407, 4294901760
    %4409 = vmatmul.mubr.f32.gmra.mxu0 %v4408
    %v4410 = vpop.f32.mrf.mxu0
    %v4411 = vadd.f32 0.0, %v4410
    %v4412 = vpop.f32.mrf.mxu0
    %4413 = vdwg.mxu0
    %4414 = vmatprep.subr.mxu0 0.0
    %4415 = vmatpush1.msra.mxu0 0.0
    %4416 = vmatprep.subr.mxu0 0.0
    %4417 = vmatpush1.msra.mxu0 0.0
    %4418 = vmatprep.subr.mxu0 0.0
    %4419 = vmatpush1.msra.mxu0 0.0
    %4420 = vmatprep.subr.mxu0 0.0
    %4421 = vmatpush1.msra.mxu0 0.0
    %4422 = vmatprep.subr.mxu0 0.0
    %4423 = vmatpush1.msra.mxu0 0.0
    %4424 = vmatprep.subr.mxu0 0.0
    %4425 = vmatpush1.msra.mxu0 0.0
    %4426 = vmatprep.subr.mxu0 0.0
    %4427 = vmatpush1.msra.mxu0 0.0
    %4428 = vmatprep.subr.mxu0 0.0
    %4429 = vmatpush1.msra.mxu0 0.0
    %4430 = vmatprep.subr.mxu0 0.0
    %4431 = vmatpush1.msra.mxu0 0.0
    %4432 = vmatprep.subr.mxu0 0.0
    %4433 = vmatpush1.msra.mxu0 0.0
    %4434 = vmatprep.subr.mxu0 0.0
    %4435 = vmatpush1.msra.mxu0 0.0
    %4436 = vmatprep.subr.mxu0 0.0
    %4437 = vmatpush1.msra.mxu0 0.0
    %4438 = vmatprep.subr.mxu0 0.0
    %4439 = vmatpush1.msra.mxu0 0.0
    %4440 = vmatprep.subr.mxu0 0.0
    %4441 = vmatpush1.msra.mxu0 0.0
    %4442 = vmatprep.subr.mxu0 0.0
    %4443 = vmatpush1.msra.mxu0 0.0
    %4444 = vmatprep.subr.mxu0 0.0
    %v4445 = vand.u32 %v4333, 4294901760
    %v4446 = vsub.f32 %v4333, %v4445
    %v4447 = vand.u32 %v4446, 4294901760
    %v4448 = vsub.f32 %v4446, %v4447
    %v4449 = vand.u32 %v4448, 4294901760
    %4450 = vmatpush1.msra.mxu0 %v4449
    %4451 = vmatprep.subr.mxu0 0.0
    %4452 = vmatpush2.msra.mxu0 0.0
    %4453 = vmatprep.subr.mxu0 0.0
    %4454 = vmatpush2.msra.mxu0 0.0
    %4455 = vmatprep.subr.mxu0 0.0
    %4456 = vmatpush2.msra.mxu0 0.0
    %4457 = vmatprep.subr.mxu0 0.0
    %4458 = vmatpush2.msra.mxu0 0.0
    %4459 = vmatprep.subr.mxu0 0.0
    %4460 = vmatpush2.msra.mxu0 0.0
    %4461 = vmatprep.subr.mxu0 0.0
    %4462 = vmatpush2.msra.mxu0 0.0
    %4463 = vmatprep.subr.mxu0 0.0
    %4464 = vmatpush2.msra.mxu0 0.0
    %4465 = vmatprep.subr.mxu0 0.0
    %4466 = vmatpush2.msra.mxu0 0.0
    %4467 = vmatprep.subr.mxu0 0.0
    %4468 = vmatpush2.msra.mxu0 0.0
    %4469 = vmatprep.subr.mxu0 0.0
    %4470 = vmatpush2.msra.mxu0 0.0
    %4471 = vmatprep.subr.mxu0 0.0
    %4472 = vmatpush2.msra.mxu0 0.0
    %4473 = vmatprep.subr.mxu0 0.0
    %4474 = vmatpush2.msra.mxu0 0.0
    %4475 = vmatprep.subr.mxu0 0.0
    %4476 = vmatpush2.msra.mxu0 0.0
    %4477 = vmatprep.subr.mxu0 0.0
    %4478 = vmatpush2.msra.mxu0 0.0
    %4479 = vmatprep.subr.mxu0 0.0
    %4480 = vmatpush2.msra.mxu0 0.0
    %4481 = vmatprep.subr.mxu0 0.0
    %4482 = vmatpush2.msra.mxu0 0.0
    %4483 = vmatprep.mubr.f32.mxu0 0.0
    %v4484 = vand.u32 %v4336, 4294901760
    %4485 = vmatmul.mubr.f32.gmra.mxu0 %v4484
    %v4486 = vpop.f32.mrf.mxu0
    %v4487 = vadd.f32 %v4411, %v4486
    %v4488 = vpop.f32.mrf.mxu0
    %4489 = vdwg.mxu0
    %4490 = vmatprep.subr.mxu0 0.0
    %4491 = vmatpush1.msra.mxu0 0.0
    %4492 = vmatprep.subr.mxu0 0.0
    %4493 = vmatpush1.msra.mxu0 0.0
    %4494 = vmatprep.subr.mxu0 0.0
    %4495 = vmatpush1.msra.mxu0 0.0
    %4496 = vmatprep.subr.mxu0 0.0
    %4497 = vmatpush1.msra.mxu0 0.0
    %4498 = vmatprep.subr.mxu0 0.0
    %4499 = vmatpush1.msra.mxu0 0.0
    %4500 = vmatprep.subr.mxu0 0.0
    %4501 = vmatpush1.msra.mxu0 0.0
    %4502 = vmatprep.subr.mxu0 0.0
    %4503 = vmatpush1.msra.mxu0 0.0
    %4504 = vmatprep.subr.mxu0 0.0
    %4505 = vmatpush1.msra.mxu0 0.0
    %4506 = vmatprep.subr.mxu0 0.0
    %4507 = vmatpush1.msra.mxu0 0.0
    %4508 = vmatprep.subr.mxu0 0.0
    %4509 = vmatpush1.msra.mxu0 0.0
    %4510 = vmatprep.subr.mxu0 0.0
    %4511 = vmatpush1.msra.mxu0 0.0
    %4512 = vmatprep.subr.mxu0 0.0
    %4513 = vmatpush1.msra.mxu0 0.0
    %4514 = vmatprep.subr.mxu0 0.0
    %4515 = vmatpush1.msra.mxu0 0.0
    %4516 = vmatprep.subr.mxu0 0.0
    %4517 = vmatpush1.msra.mxu0 0.0
    %4518 = vmatprep.subr.mxu0 0.0
    %4519 = vmatpush1.msra.mxu0 0.0
    %4520 = vmatprep.subr.mxu0 0.0
    %v4521 = vand.u32 %v4333, 4294901760
    %v4522 = vsub.f32 %v4333, %v4521
    %4523 = vmatpush1.msra.mxu0 %v4522
    %4524 = vmatprep.subr.mxu0 0.0
    %4525 = vmatpush2.msra.mxu0 0.0
    %4526 = vmatprep.subr.mxu0 0.0
    %4527 = vmatpush2.msra.mxu0 0.0
    %4528 = vmatprep.subr.mxu0 0.0
    %4529 = vmatpush2.msra.mxu0 0.0
    %4530 = vmatprep.subr.mxu0 0.0
    %4531 = vmatpush2.msra.mxu0 0.0
    %4532 = vmatprep.subr.mxu0 0.0
    %4533 = vmatpush2.msra.mxu0 0.0
    %4534 = vmatprep.subr.mxu0 0.0
    %4535 = vmatpush2.msra.mxu0 0.0
    %4536 = vmatprep.subr.mxu0 0.0
    %4537 = vmatpush2.msra.mxu0 0.0
    %4538 = vmatprep.subr.mxu0 0.0
    %4539 = vmatpush2.msra.mxu0 0.0
    %4540 = vmatprep.subr.mxu0 0.0
    %4541 = vmatpush2.msra.mxu0 0.0
    %4542 = vmatprep.subr.mxu0 0.0
    %4543 = vmatpush2.msra.mxu0 0.0
    %4544 = vmatprep.subr.mxu0 0.0
    %4545 = vmatpush2.msra.mxu0 0.0
    %4546 = vmatprep.subr.mxu0 0.0
    %4547 = vmatpush2.msra.mxu0 0.0
    %4548 = vmatprep.subr.mxu0 0.0
    %4549 = vmatpush2.msra.mxu0 0.0
    %4550 = vmatprep.subr.mxu0 0.0
    %4551 = vmatpush2.msra.mxu0 0.0
    %4552 = vmatprep.subr.mxu0 0.0
    %4553 = vmatpush2.msra.mxu0 0.0
    %4554 = vmatprep.subr.mxu0 0.0
    %4555 = vmatpush2.msra.mxu0 0.0
    %4556 = vmatprep.mubr.f32.mxu0 0.0
    %v4557 = vand.u32 %v4336, 4294901760
    %v4558 = vsub.f32 %v4336, %v4557
    %4559 = vmatmul.mubr.f32.gmra.mxu0 %v4558
    %v4560 = vpop.f32.mrf.mxu0
    %v4561 = vadd.f32 %v4487, %v4560
    %v4562 = vpop.f32.mrf.mxu0
    %4563 = vdwg.mxu0
    %4564 = vmatprep.subr.mxu0 0.0
    %4565 = vmatpush1.msra.mxu0 0.0
    %4566 = vmatprep.subr.mxu0 0.0
    %4567 = vmatpush1.msra.mxu0 0.0
    %4568 = vmatprep.subr.mxu0 0.0
    %4569 = vmatpush1.msra.mxu0 0.0
    %4570 = vmatprep.subr.mxu0 0.0
    %4571 = vmatpush1.msra.mxu0 0.0
    %4572 = vmatprep.subr.mxu0 0.0
    %4573 = vmatpush1.msra.mxu0 0.0
    %4574 = vmatprep.subr.mxu0 0.0
    %4575 = vmatpush1.msra.mxu0 0.0
    %4576 = vmatprep.subr.mxu0 0.0
    %4577 = vmatpush1.msra.mxu0 0.0
    %4578 = vmatprep.subr.mxu0 0.0
    %4579 = vmatpush1.msra.mxu0 0.0
    %4580 = vmatprep.subr.mxu0 0.0
    %4581 = vmatpush1.msra.mxu0 0.0
    %4582 = vmatprep.subr.mxu0 0.0
    %4583 = vmatpush1.msra.mxu0 0.0
    %4584 = vmatprep.subr.mxu0 0.0
    %4585 = vmatpush1.msra.mxu0 0.0
    %4586 = vmatprep.subr.mxu0 0.0
    %4587 = vmatpush1.msra.mxu0 0.0
    %4588 = vmatprep.subr.mxu0 0.0
    %4589 = vmatpush1.msra.mxu0 0.0
    %4590 = vmatprep.subr.mxu0 0.0
    %4591 = vmatpush1.msra.mxu0 0.0
    %4592 = vmatprep.subr.mxu0 0.0
    %4593 = vmatpush1.msra.mxu0 0.0
    %4594 = vmatprep.subr.mxu0 0.0
    %v4595 = vand.u32 %v4333, 4294901760
    %4596 = vmatpush1.msra.mxu0 %v4595
    %4597 = vmatprep.subr.mxu0 0.0
    %4598 = vmatpush2.msra.mxu0 0.0
    %4599 = vmatprep.subr.mxu0 0.0
    %4600 = vmatpush2.msra.mxu0 0.0
    %4601 = vmatprep.subr.mxu0 0.0
    %4602 = vmatpush2.msra.mxu0 0.0
    %4603 = vmatprep.subr.mxu0 0.0
    %4604 = vmatpush2.msra.mxu0 0.0
    %4605 = vmatprep.subr.mxu0 0.0
    %4606 = vmatpush2.msra.mxu0 0.0
    %4607 = vmatprep.subr.mxu0 0.0
    %4608 = vmatpush2.msra.mxu0 0.0
    %4609 = vmatprep.subr.mxu0 0.0
    %4610 = vmatpush2.msra.mxu0 0.0
    %4611 = vmatprep.subr.mxu0 0.0
    %4612 = vmatpush2.msra.mxu0 0.0
    %4613 = vmatprep.subr.mxu0 0.0
    %4614 = vmatpush2.msra.mxu0 0.0
    %4615 = vmatprep.subr.mxu0 0.0
    %4616 = vmatpush2.msra.mxu0 0.0
    %4617 = vmatprep.subr.mxu0 0.0
    %4618 = vmatpush2.msra.mxu0 0.0
    %4619 = vmatprep.subr.mxu0 0.0
    %4620 = vmatpush2.msra.mxu0 0.0
    %4621 = vmatprep.subr.mxu0 0.0
    %4622 = vmatpush2.msra.mxu0 0.0
    %4623 = vmatprep.subr.mxu0 0.0
    %4624 = vmatpush2.msra.mxu0 0.0
    %4625 = vmatprep.subr.mxu0 0.0
    %4626 = vmatpush2.msra.mxu0 0.0
    %4627 = vmatprep.subr.mxu0 0.0
    %4628 = vmatpush2.msra.mxu0 0.0
    %4629 = vmatprep.mubr.f32.mxu0 0.0
    %v4630 = vand.u32 %v4336, 4294901760
    %v4631 = vsub.f32 %v4336, %v4630
    %v4632 = vand.u32 %v4631, 4294901760
    %4633 = vmatmul.mubr.f32.gmra.mxu0 %v4632
    %v4634 = vpop.f32.mrf.mxu0
    %v4635 = vadd.f32 %v4561, %v4634
    %v4636 = vpop.f32.mrf.mxu0
    %4637 = vdwg.mxu0
    %4638 = vmatprep.subr.mxu0 0.0
    %4639 = vmatpush1.msra.mxu0 0.0
    %4640 = vmatprep.subr.mxu0 0.0
    %4641 = vmatpush1.msra.mxu0 0.0
    %4642 = vmatprep.subr.mxu0 0.0
    %4643 = vmatpush1.msra.mxu0 0.0
    %4644 = vmatprep.subr.mxu0 0.0
    %4645 = vmatpush1.msra.mxu0 0.0
    %4646 = vmatprep.subr.mxu0 0.0
    %4647 = vmatpush1.msra.mxu0 0.0
    %4648 = vmatprep.subr.mxu0 0.0
    %4649 = vmatpush1.msra.mxu0 0.0
    %4650 = vmatprep.subr.mxu0 0.0
    %4651 = vmatpush1.msra.mxu0 0.0
    %4652 = vmatprep.subr.mxu0 0.0
    %4653 = vmatpush1.msra.mxu0 0.0
    %4654 = vmatprep.subr.mxu0 0.0
    %4655 = vmatpush1.msra.mxu0 0.0
    %4656 = vmatprep.subr.mxu0 0.0
    %4657 = vmatpush1.msra.mxu0 0.0
    %4658 = vmatprep.subr.mxu0 0.0
    %4659 = vmatpush1.msra.mxu0 0.0
    %4660 = vmatprep.subr.mxu0 0.0
    %4661 = vmatpush1.msra.mxu0 0.0
    %4662 = vmatprep.subr.mxu0 0.0
    %4663 = vmatpush1.msra.mxu0 0.0
    %4664 = vmatprep.subr.mxu0 0.0
    %4665 = vmatpush1.msra.mxu0 0.0
    %4666 = vmatprep.subr.mxu0 0.0
    %4667 = vmatpush1.msra.mxu0 0.0
    %4668 = vmatprep.subr.mxu0 0.0
    %v4669 = vand.u32 %v4333, 4294901760
    %v4670 = vsub.f32 %v4333, %v4669
    %v4671 = vand.u32 %v4670, 4294901760
    %4672 = vmatpush1.msra.mxu0 %v4671
    %4673 = vmatprep.subr.mxu0 0.0
    %4674 = vmatpush2.msra.mxu0 0.0
    %4675 = vmatprep.subr.mxu0 0.0
    %4676 = vmatpush2.msra.mxu0 0.0
    %4677 = vmatprep.subr.mxu0 0.0
    %4678 = vmatpush2.msra.mxu0 0.0
    %4679 = vmatprep.subr.mxu0 0.0
    %4680 = vmatpush2.msra.mxu0 0.0
    %4681 = vmatprep.subr.mxu0 0.0
    %4682 = vmatpush2.msra.mxu0 0.0
    %4683 = vmatprep.subr.mxu0 0.0
    %4684 = vmatpush2.msra.mxu0 0.0
    %4685 = vmatprep.subr.mxu0 0.0
    %4686 = vmatpush2.msra.mxu0 0.0
    %4687 = vmatprep.subr.mxu0 0.0
    %4688 = vmatpush2.msra.mxu0 0.0
    %4689 = vmatprep.subr.mxu0 0.0
    %4690 = vmatpush2.msra.mxu0 0.0
    %4691 = vmatprep.subr.mxu0 0.0
    %4692 = vmatpush2.msra.mxu0 0.0
    %4693 = vmatprep.subr.mxu0 0.0
    %4694 = vmatpush2.msra.mxu0 0.0
    %4695 = vmatprep.subr.mxu0 0.0
    %4696 = vmatpush2.msra.mxu0 0.0
    %4697 = vmatprep.subr.mxu0 0.0
    %4698 = vmatpush2.msra.mxu0 0.0
    %4699 = vmatprep.subr.mxu0 0.0
    %4700 = vmatpush2.msra.mxu0 0.0
    %4701 = vmatprep.subr.mxu0 0.0
    %4702 = vmatpush2.msra.mxu0 0.0
    %4703 = vmatprep.subr.mxu0 0.0
    %4704 = vmatpush2.msra.mxu0 0.0
    %4705 = vmatprep.mubr.f32.mxu0 0.0
    %v4706 = vand.u32 %v4336, 4294901760
    %4707 = vmatmul.mubr.f32.gmra.mxu0 %v4706
    %v4708 = vpop.f32.mrf.mxu0
    %v4709 = vadd.f32 %v4635, %v4708
    %v4710 = vpop.f32.mrf.mxu0
    %4711 = vdwg.mxu0
    %4712 = vmatprep.subr.mxu0 0.0
    %4713 = vmatpush1.msra.mxu0 0.0
    %4714 = vmatprep.subr.mxu0 0.0
    %4715 = vmatpush1.msra.mxu0 0.0
    %4716 = vmatprep.subr.mxu0 0.0
    %4717 = vmatpush1.msra.mxu0 0.0
    %4718 = vmatprep.subr.mxu0 0.0
    %4719 = vmatpush1.msra.mxu0 0.0
    %4720 = vmatprep.subr.mxu0 0.0
    %4721 = vmatpush1.msra.mxu0 0.0
    %4722 = vmatprep.subr.mxu0 0.0
    %4723 = vmatpush1.msra.mxu0 0.0
    %4724 = vmatprep.subr.mxu0 0.0
    %4725 = vmatpush1.msra.mxu0 0.0
    %4726 = vmatprep.subr.mxu0 0.0
    %4727 = vmatpush1.msra.mxu0 0.0
    %4728 = vmatprep.subr.mxu0 0.0
    %4729 = vmatpush1.msra.mxu0 0.0
    %4730 = vmatprep.subr.mxu0 0.0
    %4731 = vmatpush1.msra.mxu0 0.0
    %4732 = vmatprep.subr.mxu0 0.0
    %4733 = vmatpush1.msra.mxu0 0.0
    %4734 = vmatprep.subr.mxu0 0.0
    %4735 = vmatpush1.msra.mxu0 0.0
    %4736 = vmatprep.subr.mxu0 0.0
    %4737 = vmatpush1.msra.mxu0 0.0
    %4738 = vmatprep.subr.mxu0 0.0
    %4739 = vmatpush1.msra.mxu0 0.0
    %4740 = vmatprep.subr.mxu0 0.0
    %4741 = vmatpush1.msra.mxu0 0.0
    %4742 = vmatprep.subr.mxu0 0.0
    %v4743 = vand.u32 %v4333, 4294901760
    %4744 = vmatpush1.msra.mxu0 %v4743
    %4745 = vmatprep.subr.mxu0 0.0
    %4746 = vmatpush2.msra.mxu0 0.0
    %4747 = vmatprep.subr.mxu0 0.0
    %4748 = vmatpush2.msra.mxu0 0.0
    %4749 = vmatprep.subr.mxu0 0.0
    %4750 = vmatpush2.msra.mxu0 0.0
    %4751 = vmatprep.subr.mxu0 0.0
    %4752 = vmatpush2.msra.mxu0 0.0
    %4753 = vmatprep.subr.mxu0 0.0
    %4754 = vmatpush2.msra.mxu0 0.0
    %4755 = vmatprep.subr.mxu0 0.0
    %4756 = vmatpush2.msra.mxu0 0.0
    %4757 = vmatprep.subr.mxu0 0.0
    %4758 = vmatpush2.msra.mxu0 0.0
    %4759 = vmatprep.subr.mxu0 0.0
    %4760 = vmatpush2.msra.mxu0 0.0
    %4761 = vmatprep.subr.mxu0 0.0
    %4762 = vmatpush2.msra.mxu0 0.0
    %4763 = vmatprep.subr.mxu0 0.0
    %4764 = vmatpush2.msra.mxu0 0.0
    %4765 = vmatprep.subr.mxu0 0.0
    %4766 = vmatpush2.msra.mxu0 0.0
    %4767 = vmatprep.subr.mxu0 0.0
    %4768 = vmatpush2.msra.mxu0 0.0
    %4769 = vmatprep.subr.mxu0 0.0
    %4770 = vmatpush2.msra.mxu0 0.0
    %4771 = vmatprep.subr.mxu0 0.0
    %4772 = vmatpush2.msra.mxu0 0.0
    %4773 = vmatprep.subr.mxu0 0.0
    %4774 = vmatpush2.msra.mxu0 0.0
    %4775 = vmatprep.subr.mxu0 0.0
    %4776 = vmatpush2.msra.mxu0 0.0
    %4777 = vmatprep.mubr.f32.mxu0 0.0
    %v4778 = vand.u32 %v4336, 4294901760
    %4779 = vmatmul.mubr.f32.gmra.mxu0 %v4778
    %v4780 = vpop.f32.mrf.mxu0
    %v4781 = vadd.f32 %v4709, %v4780
    %v4782 = vpop.f32.mrf.mxu0
    %4783 = vdwg.mxu0
    %4784 = vrot.lane.b32.xlu0 %v610, 64
    %v4785 = vpop.permute.xlu0 %4784
    %v4788 = vsel %vm629, %v4325, 0
    %4790 = vmatprep.subr.mxu0 0.0
    %4791 = vmatpush1.msra.mxu0 0.0
    %4792 = vmatprep.subr.mxu0 0.0
    %4793 = vmatpush1.msra.mxu0 0.0
    %4794 = vmatprep.subr.mxu0 0.0
    %4795 = vmatpush1.msra.mxu0 0.0
    %4796 = vmatprep.subr.mxu0 0.0
    %4797 = vmatpush1.msra.mxu0 0.0
    %4798 = vmatprep.subr.mxu0 0.0
    %4799 = vmatpush1.msra.mxu0 0.0
    %4800 = vmatprep.subr.mxu0 0.0
    %4801 = vmatpush1.msra.mxu0 0.0
    %4802 = vmatprep.subr.mxu0 0.0
    %4803 = vmatpush1.msra.mxu0 0.0
    %4804 = vmatprep.subr.mxu0 0.0
    %4805 = vmatpush1.msra.mxu0 0.0
    %4806 = vmatprep.subr.mxu0 0.0
    %4807 = vmatpush1.msra.mxu0 0.0
    %4808 = vmatprep.subr.mxu0 0.0
    %4809 = vmatpush1.msra.mxu0 0.0
    %4810 = vmatprep.subr.mxu0 0.0
    %4811 = vmatpush1.msra.mxu0 0.0
    %4812 = vmatprep.subr.mxu0 0.0
    %4813 = vmatpush1.msra.mxu0 0.0
    %4814 = vmatprep.subr.mxu0 0.0
    %4815 = vmatpush1.msra.mxu0 0.0
    %4816 = vmatprep.subr.mxu0 0.0
    %4817 = vmatpush1.msra.mxu0 0.0
    %4818 = vmatprep.subr.mxu0 0.0
    %4819 = vmatpush1.msra.mxu0 0.0
    %4820 = vmatprep.subr.mxu0 0.0
    %v4821 = vand.u32 %v4785, 4294901760
    %4822 = vmatpush1.msra.mxu0 %v4821
    %4823 = vmatprep.subr.mxu0 0.0
    %4824 = vmatpush2.msra.mxu0 0.0
    %4825 = vmatprep.subr.mxu0 0.0
    %4826 = vmatpush2.msra.mxu0 0.0
    %4827 = vmatprep.subr.mxu0 0.0
    %4828 = vmatpush2.msra.mxu0 0.0
    %4829 = vmatprep.subr.mxu0 0.0
    %4830 = vmatpush2.msra.mxu0 0.0
    %4831 = vmatprep.subr.mxu0 0.0
    %4832 = vmatpush2.msra.mxu0 0.0
    %4833 = vmatprep.subr.mxu0 0.0
    %4834 = vmatpush2.msra.mxu0 0.0
    %4835 = vmatprep.subr.mxu0 0.0
    %4836 = vmatpush2.msra.mxu0 0.0
    %4837 = vmatprep.subr.mxu0 0.0
    %4838 = vmatpush2.msra.mxu0 0.0
    %4839 = vmatprep.subr.mxu0 0.0
    %4840 = vmatpush2.msra.mxu0 0.0
    %4841 = vmatprep.subr.mxu0 0.0
    %4842 = vmatpush2.msra.mxu0 0.0
    %4843 = vmatprep.subr.mxu0 0.0
    %4844 = vmatpush2.msra.mxu0 0.0
    %4845 = vmatprep.subr.mxu0 0.0
    %4846 = vmatpush2.msra.mxu0 0.0
    %4847 = vmatprep.subr.mxu0 0.0
    %4848 = vmatpush2.msra.mxu0 0.0
    %4849 = vmatprep.subr.mxu0 0.0
    %4850 = vmatpush2.msra.mxu0 0.0
    %4851 = vmatprep.subr.mxu0 0.0
    %4852 = vmatpush2.msra.mxu0 0.0
    %4853 = vmatprep.subr.mxu0 0.0
    %4854 = vmatpush2.msra.mxu0 0.0
    %4855 = vmatprep.mubr.f32.mxu0 0.0
    %v4856 = vand.u32 %v4788, 4294901760
    %v4857 = vsub.f32 %v4788, %v4856
    %v4858 = vand.u32 %v4857, 4294901760
    %v4859 = vsub.f32 %v4857, %v4858
    %v4860 = vand.u32 %v4859, 4294901760
    %4861 = vmatmul.mubr.f32.gmra.mxu0 %v4860
    %v4862 = vpop.f32.mrf.mxu0
    %v4863 = vadd.f32 0.0, %v4862
    %v4864 = vpop.f32.mrf.mxu0
    %4865 = vdwg.mxu0
    %4866 = vmatprep.subr.mxu0 0.0
    %4867 = vmatpush1.msra.mxu0 0.0
    %4868 = vmatprep.subr.mxu0 0.0
    %4869 = vmatpush1.msra.mxu0 0.0
    %4870 = vmatprep.subr.mxu0 0.0
    %4871 = vmatpush1.msra.mxu0 0.0
    %4872 = vmatprep.subr.mxu0 0.0
    %4873 = vmatpush1.msra.mxu0 0.0
    %4874 = vmatprep.subr.mxu0 0.0
    %4875 = vmatpush1.msra.mxu0 0.0
    %4876 = vmatprep.subr.mxu0 0.0
    %4877 = vmatpush1.msra.mxu0 0.0
    %4878 = vmatprep.subr.mxu0 0.0
    %4879 = vmatpush1.msra.mxu0 0.0
    %4880 = vmatprep.subr.mxu0 0.0
    %4881 = vmatpush1.msra.mxu0 0.0
    %4882 = vmatprep.subr.mxu0 0.0
    %4883 = vmatpush1.msra.mxu0 0.0
    %4884 = vmatprep.subr.mxu0 0.0
    %4885 = vmatpush1.msra.mxu0 0.0
    %4886 = vmatprep.subr.mxu0 0.0
    %4887 = vmatpush1.msra.mxu0 0.0
    %4888 = vmatprep.subr.mxu0 0.0
    %4889 = vmatpush1.msra.mxu0 0.0
    %4890 = vmatprep.subr.mxu0 0.0
    %4891 = vmatpush1.msra.mxu0 0.0
    %4892 = vmatprep.subr.mxu0 0.0
    %4893 = vmatpush1.msra.mxu0 0.0
    %4894 = vmatprep.subr.mxu0 0.0
    %4895 = vmatpush1.msra.mxu0 0.0
    %4896 = vmatprep.subr.mxu0 0.0
    %v4897 = vand.u32 %v4785, 4294901760
    %v4898 = vsub.f32 %v4785, %v4897
    %v4899 = vand.u32 %v4898, 4294901760
    %v4900 = vsub.f32 %v4898, %v4899
    %v4901 = vand.u32 %v4900, 4294901760
    %4902 = vmatpush1.msra.mxu0 %v4901
    %4903 = vmatprep.subr.mxu0 0.0
    %4904 = vmatpush2.msra.mxu0 0.0
    %4905 = vmatprep.subr.mxu0 0.0
    %4906 = vmatpush2.msra.mxu0 0.0
    %4907 = vmatprep.subr.mxu0 0.0
    %4908 = vmatpush2.msra.mxu0 0.0
    %4909 = vmatprep.subr.mxu0 0.0
    %4910 = vmatpush2.msra.mxu0 0.0
    %4911 = vmatprep.subr.mxu0 0.0
    %4912 = vmatpush2.msra.mxu0 0.0
    %4913 = vmatprep.subr.mxu0 0.0
    %4914 = vmatpush2.msra.mxu0 0.0
    %4915 = vmatprep.subr.mxu0 0.0
    %4916 = vmatpush2.msra.mxu0 0.0
    %4917 = vmatprep.subr.mxu0 0.0
    %4918 = vmatpush2.msra.mxu0 0.0
    %4919 = vmatprep.subr.mxu0 0.0
    %4920 = vmatpush2.msra.mxu0 0.0
    %4921 = vmatprep.subr.mxu0 0.0
    %4922 = vmatpush2.msra.mxu0 0.0
    %4923 = vmatprep.subr.mxu0 0.0
    %4924 = vmatpush2.msra.mxu0 0.0
    %4925 = vmatprep.subr.mxu0 0.0
    %4926 = vmatpush2.msra.mxu0 0.0
    %4927 = vmatprep.subr.mxu0 0.0
    %4928 = vmatpush2.msra.mxu0 0.0
    %4929 = vmatprep.subr.mxu0 0.0
    %4930 = vmatpush2.msra.mxu0 0.0
    %4931 = vmatprep.subr.mxu0 0.0
    %4932 = vmatpush2.msra.mxu0 0.0
    %4933 = vmatprep.subr.mxu0 0.0
    %4934 = vmatpush2.msra.mxu0 0.0
    %4935 = vmatprep.mubr.f32.mxu0 0.0
    %v4936 = vand.u32 %v4788, 4294901760
    %4937 = vmatmul.mubr.f32.gmra.mxu0 %v4936
    %v4938 = vpop.f32.mrf.mxu0
    %v4939 = vadd.f32 %v4863, %v4938
    %v4940 = vpop.f32.mrf.mxu0
    %4941 = vdwg.mxu0
    %4942 = vmatprep.subr.mxu0 0.0
    %4943 = vmatpush1.msra.mxu0 0.0
    %4944 = vmatprep.subr.mxu0 0.0
    %4945 = vmatpush1.msra.mxu0 0.0
    %4946 = vmatprep.subr.mxu0 0.0
    %4947 = vmatpush1.msra.mxu0 0.0
    %4948 = vmatprep.subr.mxu0 0.0
    %4949 = vmatpush1.msra.mxu0 0.0
    %4950 = vmatprep.subr.mxu0 0.0
    %4951 = vmatpush1.msra.mxu0 0.0
    %4952 = vmatprep.subr.mxu0 0.0
    %4953 = vmatpush1.msra.mxu0 0.0
    %4954 = vmatprep.subr.mxu0 0.0
    %4955 = vmatpush1.msra.mxu0 0.0
    %4956 = vmatprep.subr.mxu0 0.0
    %4957 = vmatpush1.msra.mxu0 0.0
    %4958 = vmatprep.subr.mxu0 0.0
    %4959 = vmatpush1.msra.mxu0 0.0
    %4960 = vmatprep.subr.mxu0 0.0
    %4961 = vmatpush1.msra.mxu0 0.0
    %4962 = vmatprep.subr.mxu0 0.0
    %4963 = vmatpush1.msra.mxu0 0.0
    %4964 = vmatprep.subr.mxu0 0.0
    %4965 = vmatpush1.msra.mxu0 0.0
    %4966 = vmatprep.subr.mxu0 0.0
    %4967 = vmatpush1.msra.mxu0 0.0
    %4968 = vmatprep.subr.mxu0 0.0
    %4969 = vmatpush1.msra.mxu0 0.0
    %4970 = vmatprep.subr.mxu0 0.0
    %4971 = vmatpush1.msra.mxu0 0.0
    %4972 = vmatprep.subr.mxu0 0.0
    %v4973 = vand.u32 %v4785, 4294901760
    %v4974 = vsub.f32 %v4785, %v4973
    %4975 = vmatpush1.msra.mxu0 %v4974
    %4976 = vmatprep.subr.mxu0 0.0
    %4977 = vmatpush2.msra.mxu0 0.0
    %4978 = vmatprep.subr.mxu0 0.0
    %4979 = vmatpush2.msra.mxu0 0.0
    %4980 = vmatprep.subr.mxu0 0.0
    %4981 = vmatpush2.msra.mxu0 0.0
    %4982 = vmatprep.subr.mxu0 0.0
    %4983 = vmatpush2.msra.mxu0 0.0
    %4984 = vmatprep.subr.mxu0 0.0
    %4985 = vmatpush2.msra.mxu0 0.0
    %4986 = vmatprep.subr.mxu0 0.0
    %4987 = vmatpush2.msra.mxu0 0.0
    %4988 = vmatprep.subr.mxu0 0.0
    %4989 = vmatpush2.msra.mxu0 0.0
    %4990 = vmatprep.subr.mxu0 0.0
    %4991 = vmatpush2.msra.mxu0 0.0
    %4992 = vmatprep.subr.mxu0 0.0
    %4993 = vmatpush2.msra.mxu0 0.0
    %4994 = vmatprep.subr.mxu0 0.0
    %4995 = vmatpush2.msra.mxu0 0.0
    %4996 = vmatprep.subr.mxu0 0.0
    %4997 = vmatpush2.msra.mxu0 0.0
    %4998 = vmatprep.subr.mxu0 0.0
    %4999 = vmatpush2.msra.mxu0 0.0
    %5000 = vmatprep.subr.mxu0 0.0
    %5001 = vmatpush2.msra.mxu0 0.0
    %5002 = vmatprep.subr.mxu0 0.0
    %5003 = vmatpush2.msra.mxu0 0.0
    %5004 = vmatprep.subr.mxu0 0.0
    %5005 = vmatpush2.msra.mxu0 0.0
    %5006 = vmatprep.subr.mxu0 0.0
    %5007 = vmatpush2.msra.mxu0 0.0
    %5008 = vmatprep.mubr.f32.mxu0 0.0
    %v5009 = vand.u32 %v4788, 4294901760
    %v5010 = vsub.f32 %v4788, %v5009
    %5011 = vmatmul.mubr.f32.gmra.mxu0 %v5010
    %v5012 = vpop.f32.mrf.mxu0
    %v5013 = vadd.f32 %v4939, %v5012
    %v5014 = vpop.f32.mrf.mxu0
    %5015 = vdwg.mxu0
    %5016 = vmatprep.subr.mxu0 0.0
    %5017 = vmatpush1.msra.mxu0 0.0
    %5018 = vmatprep.subr.mxu0 0.0
    %5019 = vmatpush1.msra.mxu0 0.0
    %5020 = vmatprep.subr.mxu0 0.0
    %5021 = vmatpush1.msra.mxu0 0.0
    %5022 = vmatprep.subr.mxu0 0.0
    %5023 = vmatpush1.msra.mxu0 0.0
    %5024 = vmatprep.subr.mxu0 0.0
    %5025 = vmatpush1.msra.mxu0 0.0
    %5026 = vmatprep.subr.mxu0 0.0
    %5027 = vmatpush1.msra.mxu0 0.0
    %5028 = vmatprep.subr.mxu0 0.0
    %5029 = vmatpush1.msra.mxu0 0.0
    %5030 = vmatprep.subr.mxu0 0.0
    %5031 = vmatpush1.msra.mxu0 0.0
    %5032 = vmatprep.subr.mxu0 0.0
    %5033 = vmatpush1.msra.mxu0 0.0
    %5034 = vmatprep.subr.mxu0 0.0
    %5035 = vmatpush1.msra.mxu0 0.0
    %5036 = vmatprep.subr.mxu0 0.0
    %5037 = vmatpush1.msra.mxu0 0.0
    %5038 = vmatprep.subr.mxu0 0.0
    %5039 = vmatpush1.msra.mxu0 0.0
    %5040 = vmatprep.subr.mxu0 0.0
    %5041 = vmatpush1.msra.mxu0 0.0
    %5042 = vmatprep.subr.mxu0 0.0
    %5043 = vmatpush1.msra.mxu0 0.0
    %5044 = vmatprep.subr.mxu0 0.0
    %5045 = vmatpush1.msra.mxu0 0.0
    %5046 = vmatprep.subr.mxu0 0.0
    %v5047 = vand.u32 %v4785, 4294901760
    %5048 = vmatpush1.msra.mxu0 %v5047
    %5049 = vmatprep.subr.mxu0 0.0
    %5050 = vmatpush2.msra.mxu0 0.0
    %5051 = vmatprep.subr.mxu0 0.0
    %5052 = vmatpush2.msra.mxu0 0.0
    %5053 = vmatprep.subr.mxu0 0.0
    %5054 = vmatpush2.msra.mxu0 0.0
    %5055 = vmatprep.subr.mxu0 0.0
    %5056 = vmatpush2.msra.mxu0 0.0
    %5057 = vmatprep.subr.mxu0 0.0
    %5058 = vmatpush2.msra.mxu0 0.0
    %5059 = vmatprep.subr.mxu0 0.0
    %5060 = vmatpush2.msra.mxu0 0.0
    %5061 = vmatprep.subr.mxu0 0.0
    %5062 = vmatpush2.msra.mxu0 0.0
    %5063 = vmatprep.subr.mxu0 0.0
    %5064 = vmatpush2.msra.mxu0 0.0
    %5065 = vmatprep.subr.mxu0 0.0
    %5066 = vmatpush2.msra.mxu0 0.0
    %5067 = vmatprep.subr.mxu0 0.0
    %5068 = vmatpush2.msra.mxu0 0.0
    %5069 = vmatprep.subr.mxu0 0.0
    %5070 = vmatpush2.msra.mxu0 0.0
    %5071 = vmatprep.subr.mxu0 0.0
    %5072 = vmatpush2.msra.mxu0 0.0
    %5073 = vmatprep.subr.mxu0 0.0
    %5074 = vmatpush2.msra.mxu0 0.0
    %5075 = vmatprep.subr.mxu0 0.0
    %5076 = vmatpush2.msra.mxu0 0.0
    %5077 = vmatprep.subr.mxu0 0.0
    %5078 = vmatpush2.msra.mxu0 0.0
    %5079 = vmatprep.subr.mxu0 0.0
    %5080 = vmatpush2.msra.mxu0 0.0
    %5081 = vmatprep.mubr.f32.mxu0 0.0
    %v5082 = vand.u32 %v4788, 4294901760
    %v5083 = vsub.f32 %v4788, %v5082
    %v5084 = vand.u32 %v5083, 4294901760
    %5085 = vmatmul.mubr.f32.gmra.mxu0 %v5084
    %v5086 = vpop.f32.mrf.mxu0
    %v5087 = vadd.f32 %v5013, %v5086
    %v5088 = vpop.f32.mrf.mxu0
    %5089 = vdwg.mxu0
    %5090 = vmatprep.subr.mxu0 0.0
    %5091 = vmatpush1.msra.mxu0 0.0
    %5092 = vmatprep.subr.mxu0 0.0
    %5093 = vmatpush1.msra.mxu0 0.0
    %5094 = vmatprep.subr.mxu0 0.0
    %5095 = vmatpush1.msra.mxu0 0.0
    %5096 = vmatprep.subr.mxu0 0.0
    %5097 = vmatpush1.msra.mxu0 0.0
    %5098 = vmatprep.subr.mxu0 0.0
    %5099 = vmatpush1.msra.mxu0 0.0
    %5100 = vmatprep.subr.mxu0 0.0
    %5101 = vmatpush1.msra.mxu0 0.0
    %5102 = vmatprep.subr.mxu0 0.0
    %5103 = vmatpush1.msra.mxu0 0.0
    %5104 = vmatprep.subr.mxu0 0.0
    %5105 = vmatpush1.msra.mxu0 0.0
    %5106 = vmatprep.subr.mxu0 0.0
    %5107 = vmatpush1.msra.mxu0 0.0
    %5108 = vmatprep.subr.mxu0 0.0
    %5109 = vmatpush1.msra.mxu0 0.0
    %5110 = vmatprep.subr.mxu0 0.0
    %5111 = vmatpush1.msra.mxu0 0.0
    %5112 = vmatprep.subr.mxu0 0.0
    %5113 = vmatpush1.msra.mxu0 0.0
    %5114 = vmatprep.subr.mxu0 0.0
    %5115 = vmatpush1.msra.mxu0 0.0
    %5116 = vmatprep.subr.mxu0 0.0
    %5117 = vmatpush1.msra.mxu0 0.0
    %5118 = vmatprep.subr.mxu0 0.0
    %5119 = vmatpush1.msra.mxu0 0.0
    %5120 = vmatprep.subr.mxu0 0.0
    %v5121 = vand.u32 %v4785, 4294901760
    %v5122 = vsub.f32 %v4785, %v5121
    %v5123 = vand.u32 %v5122, 4294901760
    %5124 = vmatpush1.msra.mxu0 %v5123
    %5125 = vmatprep.subr.mxu0 0.0
    %5126 = vmatpush2.msra.mxu0 0.0
    %5127 = vmatprep.subr.mxu0 0.0
    %5128 = vmatpush2.msra.mxu0 0.0
    %5129 = vmatprep.subr.mxu0 0.0
    %5130 = vmatpush2.msra.mxu0 0.0
    %5131 = vmatprep.subr.mxu0 0.0
    %5132 = vmatpush2.msra.mxu0 0.0
    %5133 = vmatprep.subr.mxu0 0.0
    %5134 = vmatpush2.msra.mxu0 0.0
    %5135 = vmatprep.subr.mxu0 0.0
    %5136 = vmatpush2.msra.mxu0 0.0
    %5137 = vmatprep.subr.mxu0 0.0
    %5138 = vmatpush2.msra.mxu0 0.0
    %5139 = vmatprep.subr.mxu0 0.0
    %5140 = vmatpush2.msra.mxu0 0.0
    %5141 = vmatprep.subr.mxu0 0.0
    %5142 = vmatpush2.msra.mxu0 0.0
    %5143 = vmatprep.subr.mxu0 0.0
    %5144 = vmatpush2.msra.mxu0 0.0
    %5145 = vmatprep.subr.mxu0 0.0
    %5146 = vmatpush2.msra.mxu0 0.0
    %5147 = vmatprep.subr.mxu0 0.0
    %5148 = vmatpush2.msra.mxu0 0.0
    %5149 = vmatprep.subr.mxu0 0.0
    %5150 = vmatpush2.msra.mxu0 0.0
    %5151 = vmatprep.subr.mxu0 0.0
    %5152 = vmatpush2.msra.mxu0 0.0
    %5153 = vmatprep.subr.mxu0 0.0
    %5154 = vmatpush2.msra.mxu0 0.0
    %5155 = vmatprep.subr.mxu0 0.0
    %5156 = vmatpush2.msra.mxu0 0.0
    %5157 = vmatprep.mubr.f32.mxu0 0.0
    %v5158 = vand.u32 %v4788, 4294901760
    %5159 = vmatmul.mubr.f32.gmra.mxu0 %v5158
    %v5160 = vpop.f32.mrf.mxu0
    %v5161 = vadd.f32 %v5087, %v5160
    %v5162 = vpop.f32.mrf.mxu0
    %5163 = vdwg.mxu0
    %5164 = vmatprep.subr.mxu0 0.0
    %5165 = vmatpush1.msra.mxu0 0.0
    %5166 = vmatprep.subr.mxu0 0.0
    %5167 = vmatpush1.msra.mxu0 0.0
    %5168 = vmatprep.subr.mxu0 0.0
    %5169 = vmatpush1.msra.mxu0 0.0
    %5170 = vmatprep.subr.mxu0 0.0
    %5171 = vmatpush1.msra.mxu0 0.0
    %5172 = vmatprep.subr.mxu0 0.0
    %5173 = vmatpush1.msra.mxu0 0.0
    %5174 = vmatprep.subr.mxu0 0.0
    %5175 = vmatpush1.msra.mxu0 0.0
    %5176 = vmatprep.subr.mxu0 0.0
    %5177 = vmatpush1.msra.mxu0 0.0
    %5178 = vmatprep.subr.mxu0 0.0
    %5179 = vmatpush1.msra.mxu0 0.0
    %5180 = vmatprep.subr.mxu0 0.0
    %5181 = vmatpush1.msra.mxu0 0.0
    %5182 = vmatprep.subr.mxu0 0.0
    %5183 = vmatpush1.msra.mxu0 0.0
    %5184 = vmatprep.subr.mxu0 0.0
    %5185 = vmatpush1.msra.mxu0 0.0
    %5186 = vmatprep.subr.mxu0 0.0
    %5187 = vmatpush1.msra.mxu0 0.0
    %5188 = vmatprep.subr.mxu0 0.0
    %5189 = vmatpush1.msra.mxu0 0.0
    %5190 = vmatprep.subr.mxu0 0.0
    %5191 = vmatpush1.msra.mxu0 0.0
    %5192 = vmatprep.subr.mxu0 0.0
    %5193 = vmatpush1.msra.mxu0 0.0
    %5194 = vmatprep.subr.mxu0 0.0
    %v5195 = vand.u32 %v4785, 4294901760
    %5196 = vmatpush1.msra.mxu0 %v5195
    %5197 = vmatprep.subr.mxu0 0.0
    %5198 = vmatpush2.msra.mxu0 0.0
    %5199 = vmatprep.subr.mxu0 0.0
    %5200 = vmatpush2.msra.mxu0 0.0
    %5201 = vmatprep.subr.mxu0 0.0
    %5202 = vmatpush2.msra.mxu0 0.0
    %5203 = vmatprep.subr.mxu0 0.0
    %5204 = vmatpush2.msra.mxu0 0.0
    %5205 = vmatprep.subr.mxu0 0.0
    %5206 = vmatpush2.msra.mxu0 0.0
    %5207 = vmatprep.subr.mxu0 0.0
    %5208 = vmatpush2.msra.mxu0 0.0
    %5209 = vmatprep.subr.mxu0 0.0
    %5210 = vmatpush2.msra.mxu0 0.0
    %5211 = vmatprep.subr.mxu0 0.0
    %5212 = vmatpush2.msra.mxu0 0.0
    %5213 = vmatprep.subr.mxu0 0.0
    %5214 = vmatpush2.msra.mxu0 0.0
    %5215 = vmatprep.subr.mxu0 0.0
    %5216 = vmatpush2.msra.mxu0 0.0
    %5217 = vmatprep.subr.mxu0 0.0
    %5218 = vmatpush2.msra.mxu0 0.0
    %5219 = vmatprep.subr.mxu0 0.0
    %5220 = vmatpush2.msra.mxu0 0.0
    %5221 = vmatprep.subr.mxu0 0.0
    %5222 = vmatpush2.msra.mxu0 0.0
    %5223 = vmatprep.subr.mxu0 0.0
    %5224 = vmatpush2.msra.mxu0 0.0
    %5225 = vmatprep.subr.mxu0 0.0
    %5226 = vmatpush2.msra.mxu0 0.0
    %5227 = vmatprep.subr.mxu0 0.0
    %5228 = vmatpush2.msra.mxu0 0.0
    %5229 = vmatprep.mubr.f32.mxu0 0.0
    %v5230 = vand.u32 %v4788, 4294901760
    %5231 = vmatmul.mubr.f32.gmra.mxu0 %v5230
    %v5232 = vpop.f32.mrf.mxu0
    %v5233 = vadd.f32 %v5161, %v5232
    %v5234 = vpop.f32.mrf.mxu0
    %5235 = vdwg.mxu0
    %5236 = vrot.lane.b32.xlu0 %v616, 64
    %v5237 = vpop.permute.xlu0 %5236
    %v5240 = vsel %vm629, %v4326, 0
    %5242 = vmatprep.subr.mxu0 0.0
    %5243 = vmatpush1.msra.mxu0 0.0
    %5244 = vmatprep.subr.mxu0 0.0
    %5245 = vmatpush1.msra.mxu0 0.0
    %5246 = vmatprep.subr.mxu0 0.0
    %5247 = vmatpush1.msra.mxu0 0.0
    %5248 = vmatprep.subr.mxu0 0.0
    %5249 = vmatpush1.msra.mxu0 0.0
    %5250 = vmatprep.subr.mxu0 0.0
    %5251 = vmatpush1.msra.mxu0 0.0
    %5252 = vmatprep.subr.mxu0 0.0
    %5253 = vmatpush1.msra.mxu0 0.0
    %5254 = vmatprep.subr.mxu0 0.0
    %5255 = vmatpush1.msra.mxu0 0.0
    %5256 = vmatprep.subr.mxu0 0.0
    %5257 = vmatpush1.msra.mxu0 0.0
    %5258 = vmatprep.subr.mxu0 0.0
    %5259 = vmatpush1.msra.mxu0 0.0
    %5260 = vmatprep.subr.mxu0 0.0
    %5261 = vmatpush1.msra.mxu0 0.0
    %5262 = vmatprep.subr.mxu0 0.0
    %5263 = vmatpush1.msra.mxu0 0.0
    %5264 = vmatprep.subr.mxu0 0.0
    %5265 = vmatpush1.msra.mxu0 0.0
    %5266 = vmatprep.subr.mxu0 0.0
    %5267 = vmatpush1.msra.mxu0 0.0
    %5268 = vmatprep.subr.mxu0 0.0
    %5269 = vmatpush1.msra.mxu0 0.0
    %5270 = vmatprep.subr.mxu0 0.0
    %5271 = vmatpush1.msra.mxu0 0.0
    %5272 = vmatprep.subr.mxu0 0.0
    %v5273 = vand.u32 %v5237, 4294901760
    %5274 = vmatpush1.msra.mxu0 %v5273
    %5275 = vmatprep.subr.mxu0 0.0
    %5276 = vmatpush2.msra.mxu0 0.0
    %5277 = vmatprep.subr.mxu0 0.0
    %5278 = vmatpush2.msra.mxu0 0.0
    %5279 = vmatprep.subr.mxu0 0.0
    %5280 = vmatpush2.msra.mxu0 0.0
    %5281 = vmatprep.subr.mxu0 0.0
    %5282 = vmatpush2.msra.mxu0 0.0
    %5283 = vmatprep.subr.mxu0 0.0
    %5284 = vmatpush2.msra.mxu0 0.0
    %5285 = vmatprep.subr.mxu0 0.0
    %5286 = vmatpush2.msra.mxu0 0.0
    %5287 = vmatprep.subr.mxu0 0.0
    %5288 = vmatpush2.msra.mxu0 0.0
    %5289 = vmatprep.subr.mxu0 0.0
    %5290 = vmatpush2.msra.mxu0 0.0
    %5291 = vmatprep.subr.mxu0 0.0
    %5292 = vmatpush2.msra.mxu0 0.0
    %5293 = vmatprep.subr.mxu0 0.0
    %5294 = vmatpush2.msra.mxu0 0.0
    %5295 = vmatprep.subr.mxu0 0.0
    %5296 = vmatpush2.msra.mxu0 0.0
    %5297 = vmatprep.subr.mxu0 0.0
    %5298 = vmatpush2.msra.mxu0 0.0
    %5299 = vmatprep.subr.mxu0 0.0
    %5300 = vmatpush2.msra.mxu0 0.0
    %5301 = vmatprep.subr.mxu0 0.0
    %5302 = vmatpush2.msra.mxu0 0.0
    %5303 = vmatprep.subr.mxu0 0.0
    %5304 = vmatpush2.msra.mxu0 0.0
    %5305 = vmatprep.subr.mxu0 0.0
    %5306 = vmatpush2.msra.mxu0 0.0
    %5307 = vmatprep.mubr.f32.mxu0 0.0
    %v5308 = vand.u32 %v5240, 4294901760
    %v5309 = vsub.f32 %v5240, %v5308
    %v5310 = vand.u32 %v5309, 4294901760
    %v5311 = vsub.f32 %v5309, %v5310
    %v5312 = vand.u32 %v5311, 4294901760
    %5313 = vmatmul.mubr.f32.gmra.mxu0 %v5312
    %v5314 = vpop.f32.mrf.mxu0
    %v5315 = vadd.f32 0.0, %v5314
    %v5316 = vpop.f32.mrf.mxu0
    %5317 = vdwg.mxu0
    %5318 = vmatprep.subr.mxu0 0.0
    %5319 = vmatpush1.msra.mxu0 0.0
    %5320 = vmatprep.subr.mxu0 0.0
    %5321 = vmatpush1.msra.mxu0 0.0
    %5322 = vmatprep.subr.mxu0 0.0
    %5323 = vmatpush1.msra.mxu0 0.0
    %5324 = vmatprep.subr.mxu0 0.0
    %5325 = vmatpush1.msra.mxu0 0.0
    %5326 = vmatprep.subr.mxu0 0.0
    %5327 = vmatpush1.msra.mxu0 0.0
    %5328 = vmatprep.subr.mxu0 0.0
    %5329 = vmatpush1.msra.mxu0 0.0
    %5330 = vmatprep.subr.mxu0 0.0
    %5331 = vmatpush1.msra.mxu0 0.0
    %5332 = vmatprep.subr.mxu0 0.0
    %5333 = vmatpush1.msra.mxu0 0.0
    %5334 = vmatprep.subr.mxu0 0.0
    %5335 = vmatpush1.msra.mxu0 0.0
    %5336 = vmatprep.subr.mxu0 0.0
    %5337 = vmatpush1.msra.mxu0 0.0
    %5338 = vmatprep.subr.mxu0 0.0
    %5339 = vmatpush1.msra.mxu0 0.0
    %5340 = vmatprep.subr.mxu0 0.0
    %5341 = vmatpush1.msra.mxu0 0.0
    %5342 = vmatprep.subr.mxu0 0.0
    %5343 = vmatpush1.msra.mxu0 0.0
    %5344 = vmatprep.subr.mxu0 0.0
    %5345 = vmatpush1.msra.mxu0 0.0
    %5346 = vmatprep.subr.mxu0 0.0
    %5347 = vmatpush1.msra.mxu0 0.0
    %5348 = vmatprep.subr.mxu0 0.0
    %v5349 = vand.u32 %v5237, 4294901760
    %v5350 = vsub.f32 %v5237, %v5349
    %v5351 = vand.u32 %v5350, 4294901760
    %v5352 = vsub.f32 %v5350, %v5351
    %v5353 = vand.u32 %v5352, 4294901760
    %5354 = vmatpush1.msra.mxu0 %v5353
    %5355 = vmatprep.subr.mxu0 0.0
    %5356 = vmatpush2.msra.mxu0 0.0
    %5357 = vmatprep.subr.mxu0 0.0
    %5358 = vmatpush2.msra.mxu0 0.0
    %5359 = vmatprep.subr.mxu0 0.0
    %5360 = vmatpush2.msra.mxu0 0.0
    %5361 = vmatprep.subr.mxu0 0.0
    %5362 = vmatpush2.msra.mxu0 0.0
    %5363 = vmatprep.subr.mxu0 0.0
    %5364 = vmatpush2.msra.mxu0 0.0
    %5365 = vmatprep.subr.mxu0 0.0
    %5366 = vmatpush2.msra.mxu0 0.0
    %5367 = vmatprep.subr.mxu0 0.0
    %5368 = vmatpush2.msra.mxu0 0.0
    %5369 = vmatprep.subr.mxu0 0.0
    %5370 = vmatpush2.msra.mxu0 0.0
    %5371 = vmatprep.subr.mxu0 0.0
    %5372 = vmatpush2.msra.mxu0 0.0
    %5373 = vmatprep.subr.mxu0 0.0
    %5374 = vmatpush2.msra.mxu0 0.0
    %5375 = vmatprep.subr.mxu0 0.0
    %5376 = vmatpush2.msra.mxu0 0.0
    %5377 = vmatprep.subr.mxu0 0.0
    %5378 = vmatpush2.msra.mxu0 0.0
    %5379 = vmatprep.subr.mxu0 0.0
    %5380 = vmatpush2.msra.mxu0 0.0
    %5381 = vmatprep.subr.mxu0 0.0
    %5382 = vmatpush2.msra.mxu0 0.0
    %5383 = vmatprep.subr.mxu0 0.0
    %5384 = vmatpush2.msra.mxu0 0.0
    %5385 = vmatprep.subr.mxu0 0.0
    %5386 = vmatpush2.msra.mxu0 0.0
    %5387 = vmatprep.mubr.f32.mxu0 0.0
    %v5388 = vand.u32 %v5240, 4294901760
    %5389 = vmatmul.mubr.f32.gmra.mxu0 %v5388
    %v5390 = vpop.f32.mrf.mxu0
    %v5391 = vadd.f32 %v5315, %v5390
    %v5392 = vpop.f32.mrf.mxu0
    %5393 = vdwg.mxu0
    %5394 = vmatprep.subr.mxu0 0.0
    %5395 = vmatpush1.msra.mxu0 0.0
    %5396 = vmatprep.subr.mxu0 0.0
    %5397 = vmatpush1.msra.mxu0 0.0
    %5398 = vmatprep.subr.mxu0 0.0
    %5399 = vmatpush1.msra.mxu0 0.0
    %5400 = vmatprep.subr.mxu0 0.0
    %5401 = vmatpush1.msra.mxu0 0.0
    %5402 = vmatprep.subr.mxu0 0.0
    %5403 = vmatpush1.msra.mxu0 0.0
    %5404 = vmatprep.subr.mxu0 0.0
    %5405 = vmatpush1.msra.mxu0 0.0
    %5406 = vmatprep.subr.mxu0 0.0
    %5407 = vmatpush1.msra.mxu0 0.0
    %5408 = vmatprep.subr.mxu0 0.0
    %5409 = vmatpush1.msra.mxu0 0.0
    %5410 = vmatprep.subr.mxu0 0.0
    %5411 = vmatpush1.msra.mxu0 0.0
    %5412 = vmatprep.subr.mxu0 0.0
    %5413 = vmatpush1.msra.mxu0 0.0
    %5414 = vmatprep.subr.mxu0 0.0
    %5415 = vmatpush1.msra.mxu0 0.0
    %5416 = vmatprep.subr.mxu0 0.0
    %5417 = vmatpush1.msra.mxu0 0.0
    %5418 = vmatprep.subr.mxu0 0.0
    %5419 = vmatpush1.msra.mxu0 0.0
    %5420 = vmatprep.subr.mxu0 0.0
    %5421 = vmatpush1.msra.mxu0 0.0
    %5422 = vmatprep.subr.mxu0 0.0
    %5423 = vmatpush1.msra.mxu0 0.0
    %5424 = vmatprep.subr.mxu0 0.0
    %v5425 = vand.u32 %v5237, 4294901760
    %v5426 = vsub.f32 %v5237, %v5425
    %5427 = vmatpush1.msra.mxu0 %v5426
    %5428 = vmatprep.subr.mxu0 0.0
    %5429 = vmatpush2.msra.mxu0 0.0
    %5430 = vmatprep.subr.mxu0 0.0
    %5431 = vmatpush2.msra.mxu0 0.0
    %5432 = vmatprep.subr.mxu0 0.0
    %5433 = vmatpush2.msra.mxu0 0.0
    %5434 = vmatprep.subr.mxu0 0.0
    %5435 = vmatpush2.msra.mxu0 0.0
    %5436 = vmatprep.subr.mxu0 0.0
    %5437 = vmatpush2.msra.mxu0 0.0
    %5438 = vmatprep.subr.mxu0 0.0
    %5439 = vmatpush2.msra.mxu0 0.0
    %5440 = vmatprep.subr.mxu0 0.0
    %5441 = vmatpush2.msra.mxu0 0.0
    %5442 = vmatprep.subr.mxu0 0.0
    %5443 = vmatpush2.msra.mxu0 0.0
    %5444 = vmatprep.subr.mxu0 0.0
    %5445 = vmatpush2.msra.mxu0 0.0
    %5446 = vmatprep.subr.mxu0 0.0
    %5447 = vmatpush2.msra.mxu0 0.0
    %5448 = vmatprep.subr.mxu0 0.0
    %5449 = vmatpush2.msra.mxu0 0.0
    %5450 = vmatprep.subr.mxu0 0.0
    %5451 = vmatpush2.msra.mxu0 0.0
    %5452 = vmatprep.subr.mxu0 0.0
    %5453 = vmatpush2.msra.mxu0 0.0
    %5454 = vmatprep.subr.mxu0 0.0
    %5455 = vmatpush2.msra.mxu0 0.0
    %5456 = vmatprep.subr.mxu0 0.0
    %5457 = vmatpush2.msra.mxu0 0.0
    %5458 = vmatprep.subr.mxu0 0.0
    %5459 = vmatpush2.msra.mxu0 0.0
    %5460 = vmatprep.mubr.f32.mxu0 0.0
    %v5461 = vand.u32 %v5240, 4294901760
    %v5462 = vsub.f32 %v5240, %v5461
    %5463 = vmatmul.mubr.f32.gmra.mxu0 %v5462
    %v5464 = vpop.f32.mrf.mxu0
    %v5465 = vadd.f32 %v5391, %v5464
    %v5466 = vpop.f32.mrf.mxu0
    %5467 = vdwg.mxu0
    %5468 = vmatprep.subr.mxu0 0.0
    %5469 = vmatpush1.msra.mxu0 0.0
    %5470 = vmatprep.subr.mxu0 0.0
    %5471 = vmatpush1.msra.mxu0 0.0
    %5472 = vmatprep.subr.mxu0 0.0
    %5473 = vmatpush1.msra.mxu0 0.0
    %5474 = vmatprep.subr.mxu0 0.0
    %5475 = vmatpush1.msra.mxu0 0.0
    %5476 = vmatprep.subr.mxu0 0.0
    %5477 = vmatpush1.msra.mxu0 0.0
    %5478 = vmatprep.subr.mxu0 0.0
    %5479 = vmatpush1.msra.mxu0 0.0
    %5480 = vmatprep.subr.mxu0 0.0
    %5481 = vmatpush1.msra.mxu0 0.0
    %5482 = vmatprep.subr.mxu0 0.0
    %5483 = vmatpush1.msra.mxu0 0.0
    %5484 = vmatprep.subr.mxu0 0.0
    %5485 = vmatpush1.msra.mxu0 0.0
    %5486 = vmatprep.subr.mxu0 0.0
    %5487 = vmatpush1.msra.mxu0 0.0
    %5488 = vmatprep.subr.mxu0 0.0
    %5489 = vmatpush1.msra.mxu0 0.0
    %5490 = vmatprep.subr.mxu0 0.0
    %5491 = vmatpush1.msra.mxu0 0.0
    %5492 = vmatprep.subr.mxu0 0.0
    %5493 = vmatpush1.msra.mxu0 0.0
    %5494 = vmatprep.subr.mxu0 0.0
    %5495 = vmatpush1.msra.mxu0 0.0
    %5496 = vmatprep.subr.mxu0 0.0
    %5497 = vmatpush1.msra.mxu0 0.0
    %5498 = vmatprep.subr.mxu0 0.0
    %v5499 = vand.u32 %v5237, 4294901760
    %5500 = vmatpush1.msra.mxu0 %v5499
    %5501 = vmatprep.subr.mxu0 0.0
    %5502 = vmatpush2.msra.mxu0 0.0
    %5503 = vmatprep.subr.mxu0 0.0
    %5504 = vmatpush2.msra.mxu0 0.0
    %5505 = vmatprep.subr.mxu0 0.0
    %5506 = vmatpush2.msra.mxu0 0.0
    %5507 = vmatprep.subr.mxu0 0.0
    %5508 = vmatpush2.msra.mxu0 0.0
    %5509 = vmatprep.subr.mxu0 0.0
    %5510 = vmatpush2.msra.mxu0 0.0
    %5511 = vmatprep.subr.mxu0 0.0
    %5512 = vmatpush2.msra.mxu0 0.0
    %5513 = vmatprep.subr.mxu0 0.0
    %5514 = vmatpush2.msra.mxu0 0.0
    %5515 = vmatprep.subr.mxu0 0.0
    %5516 = vmatpush2.msra.mxu0 0.0
    %5517 = vmatprep.subr.mxu0 0.0
    %5518 = vmatpush2.msra.mxu0 0.0
    %5519 = vmatprep.subr.mxu0 0.0
    %5520 = vmatpush2.msra.mxu0 0.0
    %5521 = vmatprep.subr.mxu0 0.0
    %5522 = vmatpush2.msra.mxu0 0.0
    %5523 = vmatprep.subr.mxu0 0.0
    %5524 = vmatpush2.msra.mxu0 0.0
    %5525 = vmatprep.subr.mxu0 0.0
    %5526 = vmatpush2.msra.mxu0 0.0
    %5527 = vmatprep.subr.mxu0 0.0
    %5528 = vmatpush2.msra.mxu0 0.0
    %5529 = vmatprep.subr.mxu0 0.0
    %5530 = vmatpush2.msra.mxu0 0.0
    %5531 = vmatprep.subr.mxu0 0.0
    %5532 = vmatpush2.msra.mxu0 0.0
    %5533 = vmatprep.mubr.f32.mxu0 0.0
    %v5534 = vand.u32 %v5240, 4294901760
    %v5535 = vsub.f32 %v5240, %v5534
    %v5536 = vand.u32 %v5535, 4294901760
    %5537 = vmatmul.mubr.f32.gmra.mxu0 %v5536
    %v5538 = vpop.f32.mrf.mxu0
    %v5539 = vadd.f32 %v5465, %v5538
    %v5540 = vpop.f32.mrf.mxu0
    %5541 = vdwg.mxu0
    %5542 = vmatprep.subr.mxu0 0.0
    %5543 = vmatpush1.msra.mxu0 0.0
    %5544 = vmatprep.subr.mxu0 0.0
    %5545 = vmatpush1.msra.mxu0 0.0
    %5546 = vmatprep.subr.mxu0 0.0
    %5547 = vmatpush1.msra.mxu0 0.0
    %5548 = vmatprep.subr.mxu0 0.0
    %5549 = vmatpush1.msra.mxu0 0.0
    %5550 = vmatprep.subr.mxu0 0.0
    %5551 = vmatpush1.msra.mxu0 0.0
    %5552 = vmatprep.subr.mxu0 0.0
    %5553 = vmatpush1.msra.mxu0 0.0
    %5554 = vmatprep.subr.mxu0 0.0
    %5555 = vmatpush1.msra.mxu0 0.0
    %5556 = vmatprep.subr.mxu0 0.0
    %5557 = vmatpush1.msra.mxu0 0.0
    %5558 = vmatprep.subr.mxu0 0.0
    %5559 = vmatpush1.msra.mxu0 0.0
    %5560 = vmatprep.subr.mxu0 0.0
    %5561 = vmatpush1.msra.mxu0 0.0
    %5562 = vmatprep.subr.mxu0 0.0
    %5563 = vmatpush1.msra.mxu0 0.0
    %5564 = vmatprep.subr.mxu0 0.0
    %5565 = vmatpush1.msra.mxu0 0.0
    %5566 = vmatprep.subr.mxu0 0.0
    %5567 = vmatpush1.msra.mxu0 0.0
    %5568 = vmatprep.subr.mxu0 0.0
    %5569 = vmatpush1.msra.mxu0 0.0
    %5570 = vmatprep.subr.mxu0 0.0
    %5571 = vmatpush1.msra.mxu0 0.0
    %5572 = vmatprep.subr.mxu0 0.0
    %v5573 = vand.u32 %v5237, 4294901760
    %v5574 = vsub.f32 %v5237, %v5573
    %v5575 = vand.u32 %v5574, 4294901760
    %5576 = vmatpush1.msra.mxu0 %v5575
    %5577 = vmatprep.subr.mxu0 0.0
    %5578 = vmatpush2.msra.mxu0 0.0
    %5579 = vmatprep.subr.mxu0 0.0
    %5580 = vmatpush2.msra.mxu0 0.0
    %5581 = vmatprep.subr.mxu0 0.0
    %5582 = vmatpush2.msra.mxu0 0.0
    %5583 = vmatprep.subr.mxu0 0.0
    %5584 = vmatpush2.msra.mxu0 0.0
    %5585 = vmatprep.subr.mxu0 0.0
    %5586 = vmatpush2.msra.mxu0 0.0
    %5587 = vmatprep.subr.mxu0 0.0
    %5588 = vmatpush2.msra.mxu0 0.0
    %5589 = vmatprep.subr.mxu0 0.0
    %5590 = vmatpush2.msra.mxu0 0.0
    %5591 = vmatprep.subr.mxu0 0.0
    %5592 = vmatpush2.msra.mxu0 0.0
    %5593 = vmatprep.subr.mxu0 0.0
    %5594 = vmatpush2.msra.mxu0 0.0
    %5595 = vmatprep.subr.mxu0 0.0
    %5596 = vmatpush2.msra.mxu0 0.0
    %5597 = vmatprep.subr.mxu0 0.0
    %5598 = vmatpush2.msra.mxu0 0.0
    %5599 = vmatprep.subr.mxu0 0.0
    %5600 = vmatpush2.msra.mxu0 0.0
    %5601 = vmatprep.subr.mxu0 0.0
    %5602 = vmatpush2.msra.mxu0 0.0
    %5603 = vmatprep.subr.mxu0 0.0
    %5604 = vmatpush2.msra.mxu0 0.0
    %5605 = vmatprep.subr.mxu0 0.0
    %5606 = vmatpush2.msra.mxu0 0.0
    %5607 = vmatprep.subr.mxu0 0.0
    %5608 = vmatpush2.msra.mxu0 0.0
    %5609 = vmatprep.mubr.f32.mxu0 0.0
    %v5610 = vand.u32 %v5240, 4294901760
    %5611 = vmatmul.mubr.f32.gmra.mxu0 %v5610
    %v5612 = vpop.f32.mrf.mxu0
    %v5613 = vadd.f32 %v5539, %v5612
    %v5614 = vpop.f32.mrf.mxu0
    %5615 = vdwg.mxu0
    %5616 = vmatprep.subr.mxu0 0.0
    %5617 = vmatpush1.msra.mxu0 0.0
    %5618 = vmatprep.subr.mxu0 0.0
    %5619 = vmatpush1.msra.mxu0 0.0
    %5620 = vmatprep.subr.mxu0 0.0
    %5621 = vmatpush1.msra.mxu0 0.0
    %5622 = vmatprep.subr.mxu0 0.0
    %5623 = vmatpush1.msra.mxu0 0.0
    %5624 = vmatprep.subr.mxu0 0.0
    %5625 = vmatpush1.msra.mxu0 0.0
    %5626 = vmatprep.subr.mxu0 0.0
    %5627 = vmatpush1.msra.mxu0 0.0
    %5628 = vmatprep.subr.mxu0 0.0
    %5629 = vmatpush1.msra.mxu0 0.0
    %5630 = vmatprep.subr.mxu0 0.0
    %5631 = vmatpush1.msra.mxu0 0.0
    %5632 = vmatprep.subr.mxu0 0.0
    %5633 = vmatpush1.msra.mxu0 0.0
    %5634 = vmatprep.subr.mxu0 0.0
    %5635 = vmatpush1.msra.mxu0 0.0
    %5636 = vmatprep.subr.mxu0 0.0
    %5637 = vmatpush1.msra.mxu0 0.0
    %5638 = vmatprep.subr.mxu0 0.0
    %5639 = vmatpush1.msra.mxu0 0.0
    %5640 = vmatprep.subr.mxu0 0.0
    %5641 = vmatpush1.msra.mxu0 0.0
    %5642 = vmatprep.subr.mxu0 0.0
    %5643 = vmatpush1.msra.mxu0 0.0
    %5644 = vmatprep.subr.mxu0 0.0
    %5645 = vmatpush1.msra.mxu0 0.0
    %5646 = vmatprep.subr.mxu0 0.0
    %v5647 = vand.u32 %v5237, 4294901760
    %5648 = vmatpush1.msra.mxu0 %v5647
    %5649 = vmatprep.subr.mxu0 0.0
    %5650 = vmatpush2.msra.mxu0 0.0
    %5651 = vmatprep.subr.mxu0 0.0
    %5652 = vmatpush2.msra.mxu0 0.0
    %5653 = vmatprep.subr.mxu0 0.0
    %5654 = vmatpush2.msra.mxu0 0.0
    %5655 = vmatprep.subr.mxu0 0.0
    %5656 = vmatpush2.msra.mxu0 0.0
    %5657 = vmatprep.subr.mxu0 0.0
    %5658 = vmatpush2.msra.mxu0 0.0
    %5659 = vmatprep.subr.mxu0 0.0
    %5660 = vmatpush2.msra.mxu0 0.0
    %5661 = vmatprep.subr.mxu0 0.0
    %5662 = vmatpush2.msra.mxu0 0.0
    %5663 = vmatprep.subr.mxu0 0.0
    %5664 = vmatpush2.msra.mxu0 0.0
    %5665 = vmatprep.subr.mxu0 0.0
    %5666 = vmatpush2.msra.mxu0 0.0
    %5667 = vmatprep.subr.mxu0 0.0
    %5668 = vmatpush2.msra.mxu0 0.0
    %5669 = vmatprep.subr.mxu0 0.0
    %5670 = vmatpush2.msra.mxu0 0.0
    %5671 = vmatprep.subr.mxu0 0.0
    %5672 = vmatpush2.msra.mxu0 0.0
    %5673 = vmatprep.subr.mxu0 0.0
    %5674 = vmatpush2.msra.mxu0 0.0
    %5675 = vmatprep.subr.mxu0 0.0
    %5676 = vmatpush2.msra.mxu0 0.0
    %5677 = vmatprep.subr.mxu0 0.0
    %5678 = vmatpush2.msra.mxu0 0.0
    %5679 = vmatprep.subr.mxu0 0.0
    %5680 = vmatpush2.msra.mxu0 0.0
    %5681 = vmatprep.mubr.f32.mxu0 0.0
    %v5682 = vand.u32 %v5240, 4294901760
    %5683 = vmatmul.mubr.f32.gmra.mxu0 %v5682
    %v5684 = vpop.f32.mrf.mxu0
    %v5685 = vadd.f32 %v5613, %v5684
    %v5686 = vpop.f32.mrf.mxu0
    %5687 = vdwg.mxu0
    %5688 = vrot.lane.b32.xlu0 %v618, 64
    %v5689 = vpop.permute.xlu0 %5688
    %v5692 = vsel %vm629, %v4327, 0
    %5694 = vmatprep.subr.mxu0 0.0
    %5695 = vmatpush1.msra.mxu0 0.0
    %5696 = vmatprep.subr.mxu0 0.0
    %5697 = vmatpush1.msra.mxu0 0.0
    %5698 = vmatprep.subr.mxu0 0.0
    %5699 = vmatpush1.msra.mxu0 0.0
    %5700 = vmatprep.subr.mxu0 0.0
    %5701 = vmatpush1.msra.mxu0 0.0
    %5702 = vmatprep.subr.mxu0 0.0
    %5703 = vmatpush1.msra.mxu0 0.0
    %5704 = vmatprep.subr.mxu0 0.0
    %5705 = vmatpush1.msra.mxu0 0.0
    %5706 = vmatprep.subr.mxu0 0.0
    %5707 = vmatpush1.msra.mxu0 0.0
    %5708 = vmatprep.subr.mxu0 0.0
    %5709 = vmatpush1.msra.mxu0 0.0
    %5710 = vmatprep.subr.mxu0 0.0
    %5711 = vmatpush1.msra.mxu0 0.0
    %5712 = vmatprep.subr.mxu0 0.0
    %5713 = vmatpush1.msra.mxu0 0.0
    %5714 = vmatprep.subr.mxu0 0.0
    %5715 = vmatpush1.msra.mxu0 0.0
    %5716 = vmatprep.subr.mxu0 0.0
    %5717 = vmatpush1.msra.mxu0 0.0
    %5718 = vmatprep.subr.mxu0 0.0
    %5719 = vmatpush1.msra.mxu0 0.0
    %5720 = vmatprep.subr.mxu0 0.0
    %5721 = vmatpush1.msra.mxu0 0.0
    %5722 = vmatprep.subr.mxu0 0.0
    %5723 = vmatpush1.msra.mxu0 0.0
    %5724 = vmatprep.subr.mxu0 0.0
    %v5725 = vand.u32 %v5689, 4294901760
    %5726 = vmatpush1.msra.mxu0 %v5725
    %5727 = vmatprep.subr.mxu0 0.0
    %5728 = vmatpush2.msra.mxu0 0.0
    %5729 = vmatprep.subr.mxu0 0.0
    %5730 = vmatpush2.msra.mxu0 0.0
    %5731 = vmatprep.subr.mxu0 0.0
    %5732 = vmatpush2.msra.mxu0 0.0
    %5733 = vmatprep.subr.mxu0 0.0
    %5734 = vmatpush2.msra.mxu0 0.0
    %5735 = vmatprep.subr.mxu0 0.0
    %5736 = vmatpush2.msra.mxu0 0.0
    %5737 = vmatprep.subr.mxu0 0.0
    %5738 = vmatpush2.msra.mxu0 0.0
    %5739 = vmatprep.subr.mxu0 0.0
    %5740 = vmatpush2.msra.mxu0 0.0
    %5741 = vmatprep.subr.mxu0 0.0
    %5742 = vmatpush2.msra.mxu0 0.0
    %5743 = vmatprep.subr.mxu0 0.0
    %5744 = vmatpush2.msra.mxu0 0.0
    %5745 = vmatprep.subr.mxu0 0.0
    %5746 = vmatpush2.msra.mxu0 0.0
    %5747 = vmatprep.subr.mxu0 0.0
    %5748 = vmatpush2.msra.mxu0 0.0
    %5749 = vmatprep.subr.mxu0 0.0
    %5750 = vmatpush2.msra.mxu0 0.0
    %5751 = vmatprep.subr.mxu0 0.0
    %5752 = vmatpush2.msra.mxu0 0.0
    %5753 = vmatprep.subr.mxu0 0.0
    %5754 = vmatpush2.msra.mxu0 0.0
    %5755 = vmatprep.subr.mxu0 0.0
    %5756 = vmatpush2.msra.mxu0 0.0
    %5757 = vmatprep.subr.mxu0 0.0
    %5758 = vmatpush2.msra.mxu0 0.0
    %5759 = vmatprep.mubr.f32.mxu0 0.0
    %v5760 = vand.u32 %v5692, 4294901760
    %v5761 = vsub.f32 %v5692, %v5760
    %v5762 = vand.u32 %v5761, 4294901760
    %v5763 = vsub.f32 %v5761, %v5762
    %v5764 = vand.u32 %v5763, 4294901760
    %5765 = vmatmul.mubr.f32.gmra.mxu0 %v5764
    %v5766 = vpop.f32.mrf.mxu0
    %v5767 = vadd.f32 0.0, %v5766
    %v5768 = vpop.f32.mrf.mxu0
    %5769 = vdwg.mxu0
    %5770 = vmatprep.subr.mxu0 0.0
    %5771 = vmatpush1.msra.mxu0 0.0
    %5772 = vmatprep.subr.mxu0 0.0
    %5773 = vmatpush1.msra.mxu0 0.0
    %5774 = vmatprep.subr.mxu0 0.0
    %5775 = vmatpush1.msra.mxu0 0.0
    %5776 = vmatprep.subr.mxu0 0.0
    %5777 = vmatpush1.msra.mxu0 0.0
    %5778 = vmatprep.subr.mxu0 0.0
    %5779 = vmatpush1.msra.mxu0 0.0
    %5780 = vmatprep.subr.mxu0 0.0
    %5781 = vmatpush1.msra.mxu0 0.0
    %5782 = vmatprep.subr.mxu0 0.0
    %5783 = vmatpush1.msra.mxu0 0.0
    %5784 = vmatprep.subr.mxu0 0.0
    %5785 = vmatpush1.msra.mxu0 0.0
    %5786 = vmatprep.subr.mxu0 0.0
    %5787 = vmatpush1.msra.mxu0 0.0
    %5788 = vmatprep.subr.mxu0 0.0
    %5789 = vmatpush1.msra.mxu0 0.0
    %5790 = vmatprep.subr.mxu0 0.0
    %5791 = vmatpush1.msra.mxu0 0.0
    %5792 = vmatprep.subr.mxu0 0.0
    %5793 = vmatpush1.msra.mxu0 0.0
    %5794 = vmatprep.subr.mxu0 0.0
    %5795 = vmatpush1.msra.mxu0 0.0
    %5796 = vmatprep.subr.mxu0 0.0
    %5797 = vmatpush1.msra.mxu0 0.0
    %5798 = vmatprep.subr.mxu0 0.0
    %5799 = vmatpush1.msra.mxu0 0.0
    %5800 = vmatprep.subr.mxu0 0.0
    %v5801 = vand.u32 %v5689, 4294901760
    %v5802 = vsub.f32 %v5689, %v5801
    %v5803 = vand.u32 %v5802, 4294901760
    %v5804 = vsub.f32 %v5802, %v5803
    %v5805 = vand.u32 %v5804, 4294901760
    %5806 = vmatpush1.msra.mxu0 %v5805
    %5807 = vmatprep.subr.mxu0 0.0
    %5808 = vmatpush2.msra.mxu0 0.0
    %5809 = vmatprep.subr.mxu0 0.0
    %5810 = vmatpush2.msra.mxu0 0.0
    %5811 = vmatprep.subr.mxu0 0.0
    %5812 = vmatpush2.msra.mxu0 0.0
    %5813 = vmatprep.subr.mxu0 0.0
    %5814 = vmatpush2.msra.mxu0 0.0
    %5815 = vmatprep.subr.mxu0 0.0
    %5816 = vmatpush2.msra.mxu0 0.0
    %5817 = vmatprep.subr.mxu0 0.0
    %5818 = vmatpush2.msra.mxu0 0.0
    %5819 = vmatprep.subr.mxu0 0.0
    %5820 = vmatpush2.msra.mxu0 0.0
    %5821 = vmatprep.subr.mxu0 0.0
    %5822 = vmatpush2.msra.mxu0 0.0
    %5823 = vmatprep.subr.mxu0 0.0
    %5824 = vmatpush2.msra.mxu0 0.0
    %5825 = vmatprep.subr.mxu0 0.0
    %5826 = vmatpush2.msra.mxu0 0.0
    %5827 = vmatprep.subr.mxu0 0.0
    %5828 = vmatpush2.msra.mxu0 0.0
    %5829 = vmatprep.subr.mxu0 0.0
    %5830 = vmatpush2.msra.mxu0 0.0
    %5831 = vmatprep.subr.mxu0 0.0
    %5832 = vmatpush2.msra.mxu0 0.0
    %5833 = vmatprep.subr.mxu0 0.0
    %5834 = vmatpush2.msra.mxu0 0.0
    %5835 = vmatprep.subr.mxu0 0.0
    %5836 = vmatpush2.msra.mxu0 0.0
    %5837 = vmatprep.subr.mxu0 0.0
    %5838 = vmatpush2.msra.mxu0 0.0
    %5839 = vmatprep.mubr.f32.mxu0 0.0
    %v5840 = vand.u32 %v5692, 4294901760
    %5841 = vmatmul.mubr.f32.gmra.mxu0 %v5840
    %v5842 = vpop.f32.mrf.mxu0
    %v5843 = vadd.f32 %v5767, %v5842
    %v5844 = vpop.f32.mrf.mxu0
    %5845 = vdwg.mxu0
    %5846 = vmatprep.subr.mxu0 0.0
    %5847 = vmatpush1.msra.mxu0 0.0
    %5848 = vmatprep.subr.mxu0 0.0
    %5849 = vmatpush1.msra.mxu0 0.0
    %5850 = vmatprep.subr.mxu0 0.0
    %5851 = vmatpush1.msra.mxu0 0.0
    %5852 = vmatprep.subr.mxu0 0.0
    %5853 = vmatpush1.msra.mxu0 0.0
    %5854 = vmatprep.subr.mxu0 0.0
    %5855 = vmatpush1.msra.mxu0 0.0
    %5856 = vmatprep.subr.mxu0 0.0
    %5857 = vmatpush1.msra.mxu0 0.0
    %5858 = vmatprep.subr.mxu0 0.0
    %5859 = vmatpush1.msra.mxu0 0.0
    %5860 = vmatprep.subr.mxu0 0.0
    %5861 = vmatpush1.msra.mxu0 0.0
    %5862 = vmatprep.subr.mxu0 0.0
    %5863 = vmatpush1.msra.mxu0 0.0
    %5864 = vmatprep.subr.mxu0 0.0
    %5865 = vmatpush1.msra.mxu0 0.0
    %5866 = vmatprep.subr.mxu0 0.0
    %5867 = vmatpush1.msra.mxu0 0.0
    %5868 = vmatprep.subr.mxu0 0.0
    %5869 = vmatpush1.msra.mxu0 0.0
    %5870 = vmatprep.subr.mxu0 0.0
    %5871 = vmatpush1.msra.mxu0 0.0
    %5872 = vmatprep.subr.mxu0 0.0
    %5873 = vmatpush1.msra.mxu0 0.0
    %5874 = vmatprep.subr.mxu0 0.0
    %5875 = vmatpush1.msra.mxu0 0.0
    %5876 = vmatprep.subr.mxu0 0.0
    %v5877 = vand.u32 %v5689, 4294901760
    %v5878 = vsub.f32 %v5689, %v5877
    %5879 = vmatpush1.msra.mxu0 %v5878
    %5880 = vmatprep.subr.mxu0 0.0
    %5881 = vmatpush2.msra.mxu0 0.0
    %5882 = vmatprep.subr.mxu0 0.0
    %5883 = vmatpush2.msra.mxu0 0.0
    %5884 = vmatprep.subr.mxu0 0.0
    %5885 = vmatpush2.msra.mxu0 0.0
    %5886 = vmatprep.subr.mxu0 0.0
    %5887 = vmatpush2.msra.mxu0 0.0
    %5888 = vmatprep.subr.mxu0 0.0
    %5889 = vmatpush2.msra.mxu0 0.0
    %5890 = vmatprep.subr.mxu0 0.0
    %5891 = vmatpush2.msra.mxu0 0.0
    %5892 = vmatprep.subr.mxu0 0.0
    %5893 = vmatpush2.msra.mxu0 0.0
    %5894 = vmatprep.subr.mxu0 0.0
    %5895 = vmatpush2.msra.mxu0 0.0
    %5896 = vmatprep.subr.mxu0 0.0
    %5897 = vmatpush2.msra.mxu0 0.0
    %5898 = vmatprep.subr.mxu0 0.0
    %5899 = vmatpush2.msra.mxu0 0.0
    %5900 = vmatprep.subr.mxu0 0.0
    %5901 = vmatpush2.msra.mxu0 0.0
    %5902 = vmatprep.subr.mxu0 0.0
    %5903 = vmatpush2.msra.mxu0 0.0
    %5904 = vmatprep.subr.mxu0 0.0
    %5905 = vmatpush2.msra.mxu0 0.0
    %5906 = vmatprep.subr.mxu0 0.0
    %5907 = vmatpush2.msra.mxu0 0.0
    %5908 = vmatprep.subr.mxu0 0.0
    %5909 = vmatpush2.msra.mxu0 0.0
    %5910 = vmatprep.subr.mxu0 0.0
    %5911 = vmatpush2.msra.mxu0 0.0
    %5912 = vmatprep.mubr.f32.mxu0 0.0
    %v5913 = vand.u32 %v5692, 4294901760
    %v5914 = vsub.f32 %v5692, %v5913
    %5915 = vmatmul.mubr.f32.gmra.mxu0 %v5914
    %v5916 = vpop.f32.mrf.mxu0
    %v5917 = vadd.f32 %v5843, %v5916
    %v5918 = vpop.f32.mrf.mxu0
    %5919 = vdwg.mxu0
    %5920 = vmatprep.subr.mxu0 0.0
    %5921 = vmatpush1.msra.mxu0 0.0
    %5922 = vmatprep.subr.mxu0 0.0
    %5923 = vmatpush1.msra.mxu0 0.0
    %5924 = vmatprep.subr.mxu0 0.0
    %5925 = vmatpush1.msra.mxu0 0.0
    %5926 = vmatprep.subr.mxu0 0.0
    %5927 = vmatpush1.msra.mxu0 0.0
    %5928 = vmatprep.subr.mxu0 0.0
    %5929 = vmatpush1.msra.mxu0 0.0
    %5930 = vmatprep.subr.mxu0 0.0
    %5931 = vmatpush1.msra.mxu0 0.0
    %5932 = vmatprep.subr.mxu0 0.0
    %5933 = vmatpush1.msra.mxu0 0.0
    %5934 = vmatprep.subr.mxu0 0.0
    %5935 = vmatpush1.msra.mxu0 0.0
    %5936 = vmatprep.subr.mxu0 0.0
    %5937 = vmatpush1.msra.mxu0 0.0
    %5938 = vmatprep.subr.mxu0 0.0
    %5939 = vmatpush1.msra.mxu0 0.0
    %5940 = vmatprep.subr.mxu0 0.0
    %5941 = vmatpush1.msra.mxu0 0.0
    %5942 = vmatprep.subr.mxu0 0.0
    %5943 = vmatpush1.msra.mxu0 0.0
    %5944 = vmatprep.subr.mxu0 0.0
    %5945 = vmatpush1.msra.mxu0 0.0
    %5946 = vmatprep.subr.mxu0 0.0
    %5947 = vmatpush1.msra.mxu0 0.0
    %5948 = vmatprep.subr.mxu0 0.0
    %5949 = vmatpush1.msra.mxu0 0.0
    %5950 = vmatprep.subr.mxu0 0.0
    %v5951 = vand.u32 %v5689, 4294901760
    %5952 = vmatpush1.msra.mxu0 %v5951
    %5953 = vmatprep.subr.mxu0 0.0
    %5954 = vmatpush2.msra.mxu0 0.0
    %5955 = vmatprep.subr.mxu0 0.0
    %5956 = vmatpush2.msra.mxu0 0.0
    %5957 = vmatprep.subr.mxu0 0.0
    %5958 = vmatpush2.msra.mxu0 0.0
    %5959 = vmatprep.subr.mxu0 0.0
    %5960 = vmatpush2.msra.mxu0 0.0
    %5961 = vmatprep.subr.mxu0 0.0
    %5962 = vmatpush2.msra.mxu0 0.0
    %5963 = vmatprep.subr.mxu0 0.0
    %5964 = vmatpush2.msra.mxu0 0.0
    %5965 = vmatprep.subr.mxu0 0.0
    %5966 = vmatpush2.msra.mxu0 0.0
    %5967 = vmatprep.subr.mxu0 0.0
    %5968 = vmatpush2.msra.mxu0 0.0
    %5969 = vmatprep.subr.mxu0 0.0
    %5970 = vmatpush2.msra.mxu0 0.0
    %5971 = vmatprep.subr.mxu0 0.0
    %5972 = vmatpush2.msra.mxu0 0.0
    %5973 = vmatprep.subr.mxu0 0.0
    %5974 = vmatpush2.msra.mxu0 0.0
    %5975 = vmatprep.subr.mxu0 0.0
    %5976 = vmatpush2.msra.mxu0 0.0
    %5977 = vmatprep.subr.mxu0 0.0
    %5978 = vmatpush2.msra.mxu0 0.0
    %5979 = vmatprep.subr.mxu0 0.0
    %5980 = vmatpush2.msra.mxu0 0.0
    %5981 = vmatprep.subr.mxu0 0.0
    %5982 = vmatpush2.msra.mxu0 0.0
    %5983 = vmatprep.subr.mxu0 0.0
    %5984 = vmatpush2.msra.mxu0 0.0
    %5985 = vmatprep.mubr.f32.mxu0 0.0
    %v5986 = vand.u32 %v5692, 4294901760
    %v5987 = vsub.f32 %v5692, %v5986
    %v5988 = vand.u32 %v5987, 4294901760
    %5989 = vmatmul.mubr.f32.gmra.mxu0 %v5988
    %v5990 = vpop.f32.mrf.mxu0
    %v5991 = vadd.f32 %v5917, %v5990
    %v5992 = vpop.f32.mrf.mxu0
    %5993 = vdwg.mxu0
    %5994 = vmatprep.subr.mxu0 0.0
    %5995 = vmatpush1.msra.mxu0 0.0
    %5996 = vmatprep.subr.mxu0 0.0
    %5997 = vmatpush1.msra.mxu0 0.0
    %5998 = vmatprep.subr.mxu0 0.0
    %5999 = vmatpush1.msra.mxu0 0.0
    %6000 = vmatprep.subr.mxu0 0.0
    %6001 = vmatpush1.msra.mxu0 0.0
    %6002 = vmatprep.subr.mxu0 0.0
    %6003 = vmatpush1.msra.mxu0 0.0
    %6004 = vmatprep.subr.mxu0 0.0
    %6005 = vmatpush1.msra.mxu0 0.0
    %6006 = vmatprep.subr.mxu0 0.0
    %6007 = vmatpush1.msra.mxu0 0.0
    %6008 = vmatprep.subr.mxu0 0.0
    %6009 = vmatpush1.msra.mxu0 0.0
    %6010 = vmatprep.subr.mxu0 0.0
    %6011 = vmatpush1.msra.mxu0 0.0
    %6012 = vmatprep.subr.mxu0 0.0
    %6013 = vmatpush1.msra.mxu0 0.0
    %6014 = vmatprep.subr.mxu0 0.0
    %6015 = vmatpush1.msra.mxu0 0.0
    %6016 = vmatprep.subr.mxu0 0.0
    %6017 = vmatpush1.msra.mxu0 0.0
    %6018 = vmatprep.subr.mxu0 0.0
    %6019 = vmatpush1.msra.mxu0 0.0
    %6020 = vmatprep.subr.mxu0 0.0
    %6021 = vmatpush1.msra.mxu0 0.0
    %6022 = vmatprep.subr.mxu0 0.0
    %6023 = vmatpush1.msra.mxu0 0.0
    %6024 = vmatprep.subr.mxu0 0.0
    %v6025 = vand.u32 %v5689, 4294901760
    %v6026 = vsub.f32 %v5689, %v6025
    %v6027 = vand.u32 %v6026, 4294901760
    %6028 = vmatpush1.msra.mxu0 %v6027
    %6029 = vmatprep.subr.mxu0 0.0
    %6030 = vmatpush2.msra.mxu0 0.0
    %6031 = vmatprep.subr.mxu0 0.0
    %6032 = vmatpush2.msra.mxu0 0.0
    %6033 = vmatprep.subr.mxu0 0.0
    %6034 = vmatpush2.msra.mxu0 0.0
    %6035 = vmatprep.subr.mxu0 0.0
    %6036 = vmatpush2.msra.mxu0 0.0
    %6037 = vmatprep.subr.mxu0 0.0
    %6038 = vmatpush2.msra.mxu0 0.0
    %6039 = vmatprep.subr.mxu0 0.0
    %6040 = vmatpush2.msra.mxu0 0.0
    %6041 = vmatprep.subr.mxu0 0.0
    %6042 = vmatpush2.msra.mxu0 0.0
    %6043 = vmatprep.subr.mxu0 0.0
    %6044 = vmatpush2.msra.mxu0 0.0
    %6045 = vmatprep.subr.mxu0 0.0
    %6046 = vmatpush2.msra.mxu0 0.0
    %6047 = vmatprep.subr.mxu0 0.0
    %6048 = vmatpush2.msra.mxu0 0.0
    %6049 = vmatprep.subr.mxu0 0.0
    %6050 = vmatpush2.msra.mxu0 0.0
    %6051 = vmatprep.subr.mxu0 0.0
    %6052 = vmatpush2.msra.mxu0 0.0
    %6053 = vmatprep.subr.mxu0 0.0
    %6054 = vmatpush2.msra.mxu0 0.0
    %6055 = vmatprep.subr.mxu0 0.0
    %6056 = vmatpush2.msra.mxu0 0.0
    %6057 = vmatprep.subr.mxu0 0.0
    %6058 = vmatpush2.msra.mxu0 0.0
    %6059 = vmatprep.subr.mxu0 0.0
    %6060 = vmatpush2.msra.mxu0 0.0
    %6061 = vmatprep.mubr.f32.mxu0 0.0
    %v6062 = vand.u32 %v5692, 4294901760
    %6063 = vmatmul.mubr.f32.gmra.mxu0 %v6062
    %v6064 = vpop.f32.mrf.mxu0
    %v6065 = vadd.f32 %v5991, %v6064
    %v6066 = vpop.f32.mrf.mxu0
    %6067 = vdwg.mxu0
    %6068 = vmatprep.subr.mxu0 0.0
    %6069 = vmatpush1.msra.mxu0 0.0
    %6070 = vmatprep.subr.mxu0 0.0
    %6071 = vmatpush1.msra.mxu0 0.0
    %6072 = vmatprep.subr.mxu0 0.0
    %6073 = vmatpush1.msra.mxu0 0.0
    %6074 = vmatprep.subr.mxu0 0.0
    %6075 = vmatpush1.msra.mxu0 0.0
    %6076 = vmatprep.subr.mxu0 0.0
    %6077 = vmatpush1.msra.mxu0 0.0
    %6078 = vmatprep.subr.mxu0 0.0
    %6079 = vmatpush1.msra.mxu0 0.0
    %6080 = vmatprep.subr.mxu0 0.0
    %6081 = vmatpush1.msra.mxu0 0.0
    %6082 = vmatprep.subr.mxu0 0.0
    %6083 = vmatpush1.msra.mxu0 0.0
    %6084 = vmatprep.subr.mxu0 0.0
    %6085 = vmatpush1.msra.mxu0 0.0
    %6086 = vmatprep.subr.mxu0 0.0
    %6087 = vmatpush1.msra.mxu0 0.0
    %6088 = vmatprep.subr.mxu0 0.0
    %6089 = vmatpush1.msra.mxu0 0.0
    %6090 = vmatprep.subr.mxu0 0.0
    %6091 = vmatpush1.msra.mxu0 0.0
    %6092 = vmatprep.subr.mxu0 0.0
    %6093 = vmatpush1.msra.mxu0 0.0
    %6094 = vmatprep.subr.mxu0 0.0
    %6095 = vmatpush1.msra.mxu0 0.0
    %6096 = vmatprep.subr.mxu0 0.0
    %6097 = vmatpush1.msra.mxu0 0.0
    %6098 = vmatprep.subr.mxu0 0.0
    %v6099 = vand.u32 %v5689, 4294901760
    %6100 = vmatpush1.msra.mxu0 %v6099
    %6101 = vmatprep.subr.mxu0 0.0
    %6102 = vmatpush2.msra.mxu0 0.0
    %6103 = vmatprep.subr.mxu0 0.0
    %6104 = vmatpush2.msra.mxu0 0.0
    %6105 = vmatprep.subr.mxu0 0.0
    %6106 = vmatpush2.msra.mxu0 0.0
    %6107 = vmatprep.subr.mxu0 0.0
    %6108 = vmatpush2.msra.mxu0 0.0
    %6109 = vmatprep.subr.mxu0 0.0
    %6110 = vmatpush2.msra.mxu0 0.0
    %6111 = vmatprep.subr.mxu0 0.0
    %6112 = vmatpush2.msra.mxu0 0.0
    %6113 = vmatprep.subr.mxu0 0.0
    %6114 = vmatpush2.msra.mxu0 0.0
    %6115 = vmatprep.subr.mxu0 0.0
    %6116 = vmatpush2.msra.mxu0 0.0
    %6117 = vmatprep.subr.mxu0 0.0
    %6118 = vmatpush2.msra.mxu0 0.0
    %6119 = vmatprep.subr.mxu0 0.0
    %6120 = vmatpush2.msra.mxu0 0.0
    %6121 = vmatprep.subr.mxu0 0.0
    %6122 = vmatpush2.msra.mxu0 0.0
    %6123 = vmatprep.subr.mxu0 0.0
    %6124 = vmatpush2.msra.mxu0 0.0
    %6125 = vmatprep.subr.mxu0 0.0
    %6126 = vmatpush2.msra.mxu0 0.0
    %6127 = vmatprep.subr.mxu0 0.0
    %6128 = vmatpush2.msra.mxu0 0.0
    %6129 = vmatprep.subr.mxu0 0.0
    %6130 = vmatpush2.msra.mxu0 0.0
    %6131 = vmatprep.subr.mxu0 0.0
    %6132 = vmatpush2.msra.mxu0 0.0
    %6133 = vmatprep.mubr.f32.mxu0 0.0
    %v6134 = vand.u32 %v5692, 4294901760
    %6135 = vmatmul.mubr.f32.gmra.mxu0 %v6134
    %v6136 = vpop.f32.mrf.mxu0
    %v6137 = vadd.f32 %v6065, %v6136
    %v6138 = vpop.f32.mrf.mxu0
    %6139 = vdwg.mxu0
    %6140 = vrot.lane.b32.xlu0 %v620, 64
    %v6141 = vpop.permute.xlu0 %6140
    %v6144 = vsel %vm629, %v4328, 0
    %6146 = vmatprep.subr.mxu0 0.0
    %6147 = vmatpush1.msra.mxu0 0.0
    %6148 = vmatprep.subr.mxu0 0.0
    %6149 = vmatpush1.msra.mxu0 0.0
    %6150 = vmatprep.subr.mxu0 0.0
    %6151 = vmatpush1.msra.mxu0 0.0
    %6152 = vmatprep.subr.mxu0 0.0
    %6153 = vmatpush1.msra.mxu0 0.0
    %6154 = vmatprep.subr.mxu0 0.0
    %6155 = vmatpush1.msra.mxu0 0.0
    %6156 = vmatprep.subr.mxu0 0.0
    %6157 = vmatpush1.msra.mxu0 0.0
    %6158 = vmatprep.subr.mxu0 0.0
    %6159 = vmatpush1.msra.mxu0 0.0
    %6160 = vmatprep.subr.mxu0 0.0
    %6161 = vmatpush1.msra.mxu0 0.0
    %6162 = vmatprep.subr.mxu0 0.0
    %6163 = vmatpush1.msra.mxu0 0.0
    %6164 = vmatprep.subr.mxu0 0.0
    %6165 = vmatpush1.msra.mxu0 0.0
    %6166 = vmatprep.subr.mxu0 0.0
    %6167 = vmatpush1.msra.mxu0 0.0
    %6168 = vmatprep.subr.mxu0 0.0
    %6169 = vmatpush1.msra.mxu0 0.0
    %6170 = vmatprep.subr.mxu0 0.0
    %6171 = vmatpush1.msra.mxu0 0.0
    %6172 = vmatprep.subr.mxu0 0.0
    %6173 = vmatpush1.msra.mxu0 0.0
    %6174 = vmatprep.subr.mxu0 0.0
    %6175 = vmatpush1.msra.mxu0 0.0
    %6176 = vmatprep.subr.mxu0 0.0
    %v6177 = vand.u32 %v6141, 4294901760
    %6178 = vmatpush1.msra.mxu0 %v6177
    %6179 = vmatprep.subr.mxu0 0.0
    %6180 = vmatpush2.msra.mxu0 0.0
    %6181 = vmatprep.subr.mxu0 0.0
    %6182 = vmatpush2.msra.mxu0 0.0
    %6183 = vmatprep.subr.mxu0 0.0
    %6184 = vmatpush2.msra.mxu0 0.0
    %6185 = vmatprep.subr.mxu0 0.0
    %6186 = vmatpush2.msra.mxu0 0.0
    %6187 = vmatprep.subr.mxu0 0.0
    %6188 = vmatpush2.msra.mxu0 0.0
    %6189 = vmatprep.subr.mxu0 0.0
    %6190 = vmatpush2.msra.mxu0 0.0
    %6191 = vmatprep.subr.mxu0 0.0
    %6192 = vmatpush2.msra.mxu0 0.0
    %6193 = vmatprep.subr.mxu0 0.0
    %6194 = vmatpush2.msra.mxu0 0.0
    %6195 = vmatprep.subr.mxu0 0.0
    %6196 = vmatpush2.msra.mxu0 0.0
    %6197 = vmatprep.subr.mxu0 0.0
    %6198 = vmatpush2.msra.mxu0 0.0
    %6199 = vmatprep.subr.mxu0 0.0
    %6200 = vmatpush2.msra.mxu0 0.0
    %6201 = vmatprep.subr.mxu0 0.0
    %6202 = vmatpush2.msra.mxu0 0.0
    %6203 = vmatprep.subr.mxu0 0.0
    %6204 = vmatpush2.msra.mxu0 0.0
    %6205 = vmatprep.subr.mxu0 0.0
    %6206 = vmatpush2.msra.mxu0 0.0
    %6207 = vmatprep.subr.mxu0 0.0
    %6208 = vmatpush2.msra.mxu0 0.0
    %6209 = vmatprep.subr.mxu0 0.0
    %6210 = vmatpush2.msra.mxu0 0.0
    %6211 = vmatprep.mubr.f32.mxu0 0.0
    %v6212 = vand.u32 %v6144, 4294901760
    %v6213 = vsub.f32 %v6144, %v6212
    %v6214 = vand.u32 %v6213, 4294901760
    %v6215 = vsub.f32 %v6213, %v6214
    %v6216 = vand.u32 %v6215, 4294901760
    %6217 = vmatmul.mubr.f32.gmra.mxu0 %v6216
    %v6218 = vpop.f32.mrf.mxu0
    %v6219 = vadd.f32 0.0, %v6218
    %v6220 = vpop.f32.mrf.mxu0
    %6221 = vdwg.mxu0
    %6222 = vmatprep.subr.mxu0 0.0
    %6223 = vmatpush1.msra.mxu0 0.0
    %6224 = vmatprep.subr.mxu0 0.0
    %6225 = vmatpush1.msra.mxu0 0.0
    %6226 = vmatprep.subr.mxu0 0.0
    %6227 = vmatpush1.msra.mxu0 0.0
    %6228 = vmatprep.subr.mxu0 0.0
    %6229 = vmatpush1.msra.mxu0 0.0
    %6230 = vmatprep.subr.mxu0 0.0
    %6231 = vmatpush1.msra.mxu0 0.0
    %6232 = vmatprep.subr.mxu0 0.0
    %6233 = vmatpush1.msra.mxu0 0.0
    %6234 = vmatprep.subr.mxu0 0.0
    %6235 = vmatpush1.msra.mxu0 0.0
    %6236 = vmatprep.subr.mxu0 0.0
    %6237 = vmatpush1.msra.mxu0 0.0
    %6238 = vmatprep.subr.mxu0 0.0
    %6239 = vmatpush1.msra.mxu0 0.0
    %6240 = vmatprep.subr.mxu0 0.0
    %6241 = vmatpush1.msra.mxu0 0.0
    %6242 = vmatprep.subr.mxu0 0.0
    %6243 = vmatpush1.msra.mxu0 0.0
    %6244 = vmatprep.subr.mxu0 0.0
    %6245 = vmatpush1.msra.mxu0 0.0
    %6246 = vmatprep.subr.mxu0 0.0
    %6247 = vmatpush1.msra.mxu0 0.0
    %6248 = vmatprep.subr.mxu0 0.0
    %6249 = vmatpush1.msra.mxu0 0.0
    %6250 = vmatprep.subr.mxu0 0.0
    %6251 = vmatpush1.msra.mxu0 0.0
    %6252 = vmatprep.subr.mxu0 0.0
    %v6253 = vand.u32 %v6141, 4294901760
    %v6254 = vsub.f32 %v6141, %v6253
    %v6255 = vand.u32 %v6254, 4294901760
    %v6256 = vsub.f32 %v6254, %v6255
    %v6257 = vand.u32 %v6256, 4294901760
    %6258 = vmatpush1.msra.mxu0 %v6257
    %6259 = vmatprep.subr.mxu0 0.0
    %6260 = vmatpush2.msra.mxu0 0.0
    %6261 = vmatprep.subr.mxu0 0.0
    %6262 = vmatpush2.msra.mxu0 0.0
    %6263 = vmatprep.subr.mxu0 0.0
    %6264 = vmatpush2.msra.mxu0 0.0
    %6265 = vmatprep.subr.mxu0 0.0
    %6266 = vmatpush2.msra.mxu0 0.0
    %6267 = vmatprep.subr.mxu0 0.0
    %6268 = vmatpush2.msra.mxu0 0.0
    %6269 = vmatprep.subr.mxu0 0.0
    %6270 = vmatpush2.msra.mxu0 0.0
    %6271 = vmatprep.subr.mxu0 0.0
    %6272 = vmatpush2.msra.mxu0 0.0
    %6273 = vmatprep.subr.mxu0 0.0
    %6274 = vmatpush2.msra.mxu0 0.0
    %6275 = vmatprep.subr.mxu0 0.0
    %6276 = vmatpush2.msra.mxu0 0.0
    %6277 = vmatprep.subr.mxu0 0.0
    %6278 = vmatpush2.msra.mxu0 0.0
    %6279 = vmatprep.subr.mxu0 0.0
    %6280 = vmatpush2.msra.mxu0 0.0
    %6281 = vmatprep.subr.mxu0 0.0
    %6282 = vmatpush2.msra.mxu0 0.0
    %6283 = vmatprep.subr.mxu0 0.0
    %6284 = vmatpush2.msra.mxu0 0.0
    %6285 = vmatprep.subr.mxu0 0.0
    %6286 = vmatpush2.msra.mxu0 0.0
    %6287 = vmatprep.subr.mxu0 0.0
    %6288 = vmatpush2.msra.mxu0 0.0
    %6289 = vmatprep.subr.mxu0 0.0
    %6290 = vmatpush2.msra.mxu0 0.0
    %6291 = vmatprep.mubr.f32.mxu0 0.0
    %v6292 = vand.u32 %v6144, 4294901760
    %6293 = vmatmul.mubr.f32.gmra.mxu0 %v6292
    %v6294 = vpop.f32.mrf.mxu0
    %v6295 = vadd.f32 %v6219, %v6294
    %v6296 = vpop.f32.mrf.mxu0
    %6297 = vdwg.mxu0
    %6298 = vmatprep.subr.mxu0 0.0
    %6299 = vmatpush1.msra.mxu0 0.0
    %6300 = vmatprep.subr.mxu0 0.0
    %6301 = vmatpush1.msra.mxu0 0.0
    %6302 = vmatprep.subr.mxu0 0.0
    %6303 = vmatpush1.msra.mxu0 0.0
    %6304 = vmatprep.subr.mxu0 0.0
    %6305 = vmatpush1.msra.mxu0 0.0
    %6306 = vmatprep.subr.mxu0 0.0
    %6307 = vmatpush1.msra.mxu0 0.0
    %6308 = vmatprep.subr.mxu0 0.0
    %6309 = vmatpush1.msra.mxu0 0.0
    %6310 = vmatprep.subr.mxu0 0.0
    %6311 = vmatpush1.msra.mxu0 0.0
    %6312 = vmatprep.subr.mxu0 0.0
    %6313 = vmatpush1.msra.mxu0 0.0
    %6314 = vmatprep.subr.mxu0 0.0
    %6315 = vmatpush1.msra.mxu0 0.0
    %6316 = vmatprep.subr.mxu0 0.0
    %6317 = vmatpush1.msra.mxu0 0.0
    %6318 = vmatprep.subr.mxu0 0.0
    %6319 = vmatpush1.msra.mxu0 0.0
    %6320 = vmatprep.subr.mxu0 0.0
    %6321 = vmatpush1.msra.mxu0 0.0
    %6322 = vmatprep.subr.mxu0 0.0
    %6323 = vmatpush1.msra.mxu0 0.0
    %6324 = vmatprep.subr.mxu0 0.0
    %6325 = vmatpush1.msra.mxu0 0.0
    %6326 = vmatprep.subr.mxu0 0.0
    %6327 = vmatpush1.msra.mxu0 0.0
    %6328 = vmatprep.subr.mxu0 0.0
    %v6329 = vand.u32 %v6141, 4294901760
    %v6330 = vsub.f32 %v6141, %v6329
    %6331 = vmatpush1.msra.mxu0 %v6330
    %6332 = vmatprep.subr.mxu0 0.0
    %6333 = vmatpush2.msra.mxu0 0.0
    %6334 = vmatprep.subr.mxu0 0.0
    %6335 = vmatpush2.msra.mxu0 0.0
    %6336 = vmatprep.subr.mxu0 0.0
    %6337 = vmatpush2.msra.mxu0 0.0
    %6338 = vmatprep.subr.mxu0 0.0
    %6339 = vmatpush2.msra.mxu0 0.0
    %6340 = vmatprep.subr.mxu0 0.0
    %6341 = vmatpush2.msra.mxu0 0.0
    %6342 = vmatprep.subr.mxu0 0.0
    %6343 = vmatpush2.msra.mxu0 0.0
    %6344 = vmatprep.subr.mxu0 0.0
    %6345 = vmatpush2.msra.mxu0 0.0
    %6346 = vmatprep.subr.mxu0 0.0
    %6347 = vmatpush2.msra.mxu0 0.0
    %6348 = vmatprep.subr.mxu0 0.0
    %6349 = vmatpush2.msra.mxu0 0.0
    %6350 = vmatprep.subr.mxu0 0.0
    %6351 = vmatpush2.msra.mxu0 0.0
    %6352 = vmatprep.subr.mxu0 0.0
    %6353 = vmatpush2.msra.mxu0 0.0
    %6354 = vmatprep.subr.mxu0 0.0
    %6355 = vmatpush2.msra.mxu0 0.0
    %6356 = vmatprep.subr.mxu0 0.0
    %6357 = vmatpush2.msra.mxu0 0.0
    %6358 = vmatprep.subr.mxu0 0.0
    %6359 = vmatpush2.msra.mxu0 0.0
    %6360 = vmatprep.subr.mxu0 0.0
    %6361 = vmatpush2.msra.mxu0 0.0
    %6362 = vmatprep.subr.mxu0 0.0
    %6363 = vmatpush2.msra.mxu0 0.0
    %6364 = vmatprep.mubr.f32.mxu0 0.0
    %v6365 = vand.u32 %v6144, 4294901760
    %v6366 = vsub.f32 %v6144, %v6365
    %6367 = vmatmul.mubr.f32.gmra.mxu0 %v6366
    %v6368 = vpop.f32.mrf.mxu0
    %v6369 = vadd.f32 %v6295, %v6368
    %v6370 = vpop.f32.mrf.mxu0
    %6371 = vdwg.mxu0
    %6372 = vmatprep.subr.mxu0 0.0
    %6373 = vmatpush1.msra.mxu0 0.0
    %6374 = vmatprep.subr.mxu0 0.0
    %6375 = vmatpush1.msra.mxu0 0.0
    %6376 = vmatprep.subr.mxu0 0.0
    %6377 = vmatpush1.msra.mxu0 0.0
    %6378 = vmatprep.subr.mxu0 0.0
    %6379 = vmatpush1.msra.mxu0 0.0
    %6380 = vmatprep.subr.mxu0 0.0
    %6381 = vmatpush1.msra.mxu0 0.0
    %6382 = vmatprep.subr.mxu0 0.0
    %6383 = vmatpush1.msra.mxu0 0.0
    %6384 = vmatprep.subr.mxu0 0.0
    %6385 = vmatpush1.msra.mxu0 0.0
    %6386 = vmatprep.subr.mxu0 0.0
    %6387 = vmatpush1.msra.mxu0 0.0
    %6388 = vmatprep.subr.mxu0 0.0
    %6389 = vmatpush1.msra.mxu0 0.0
    %6390 = vmatprep.subr.mxu0 0.0
    %6391 = vmatpush1.msra.mxu0 0.0
    %6392 = vmatprep.subr.mxu0 0.0
    %6393 = vmatpush1.msra.mxu0 0.0
    %6394 = vmatprep.subr.mxu0 0.0
    %6395 = vmatpush1.msra.mxu0 0.0
    %6396 = vmatprep.subr.mxu0 0.0
    %6397 = vmatpush1.msra.mxu0 0.0
    %6398 = vmatprep.subr.mxu0 0.0
    %6399 = vmatpush1.msra.mxu0 0.0
    %6400 = vmatprep.subr.mxu0 0.0
    %6401 = vmatpush1.msra.mxu0 0.0
    %6402 = vmatprep.subr.mxu0 0.0
    %v6403 = vand.u32 %v6141, 4294901760
    %6404 = vmatpush1.msra.mxu0 %v6403
    %6405 = vmatprep.subr.mxu0 0.0
    %6406 = vmatpush2.msra.mxu0 0.0
    %6407 = vmatprep.subr.mxu0 0.0
    %6408 = vmatpush2.msra.mxu0 0.0
    %6409 = vmatprep.subr.mxu0 0.0
    %6410 = vmatpush2.msra.mxu0 0.0
    %6411 = vmatprep.subr.mxu0 0.0
    %6412 = vmatpush2.msra.mxu0 0.0
    %6413 = vmatprep.subr.mxu0 0.0
    %6414 = vmatpush2.msra.mxu0 0.0
    %6415 = vmatprep.subr.mxu0 0.0
    %6416 = vmatpush2.msra.mxu0 0.0
    %6417 = vmatprep.subr.mxu0 0.0
    %6418 = vmatpush2.msra.mxu0 0.0
    %6419 = vmatprep.subr.mxu0 0.0
    %6420 = vmatpush2.msra.mxu0 0.0
    %6421 = vmatprep.subr.mxu0 0.0
    %6422 = vmatpush2.msra.mxu0 0.0
    %6423 = vmatprep.subr.mxu0 0.0
    %6424 = vmatpush2.msra.mxu0 0.0
    %6425 = vmatprep.subr.mxu0 0.0
    %6426 = vmatpush2.msra.mxu0 0.0
    %6427 = vmatprep.subr.mxu0 0.0
    %6428 = vmatpush2.msra.mxu0 0.0
    %6429 = vmatprep.subr.mxu0 0.0
    %6430 = vmatpush2.msra.mxu0 0.0
    %6431 = vmatprep.subr.mxu0 0.0
    %6432 = vmatpush2.msra.mxu0 0.0
    %6433 = vmatprep.subr.mxu0 0.0
    %6434 = vmatpush2.msra.mxu0 0.0
    %6435 = vmatprep.subr.mxu0 0.0
    %6436 = vmatpush2.msra.mxu0 0.0
    %6437 = vmatprep.mubr.f32.mxu0 0.0
    %v6438 = vand.u32 %v6144, 4294901760
    %v6439 = vsub.f32 %v6144, %v6438
    %v6440 = vand.u32 %v6439, 4294901760
    %6441 = vmatmul.mubr.f32.gmra.mxu0 %v6440
    %v6442 = vpop.f32.mrf.mxu0
    %v6443 = vadd.f32 %v6369, %v6442
    %v6444 = vpop.f32.mrf.mxu0
    %6445 = vdwg.mxu0
    %6446 = vmatprep.subr.mxu0 0.0
    %6447 = vmatpush1.msra.mxu0 0.0
    %6448 = vmatprep.subr.mxu0 0.0
    %6449 = vmatpush1.msra.mxu0 0.0
    %6450 = vmatprep.subr.mxu0 0.0
    %6451 = vmatpush1.msra.mxu0 0.0
    %6452 = vmatprep.subr.mxu0 0.0
    %6453 = vmatpush1.msra.mxu0 0.0
    %6454 = vmatprep.subr.mxu0 0.0
    %6455 = vmatpush1.msra.mxu0 0.0
    %6456 = vmatprep.subr.mxu0 0.0
    %6457 = vmatpush1.msra.mxu0 0.0
    %6458 = vmatprep.subr.mxu0 0.0
    %6459 = vmatpush1.msra.mxu0 0.0
    %6460 = vmatprep.subr.mxu0 0.0
    %6461 = vmatpush1.msra.mxu0 0.0
    %6462 = vmatprep.subr.mxu0 0.0
    %6463 = vmatpush1.msra.mxu0 0.0
    %6464 = vmatprep.subr.mxu0 0.0
    %6465 = vmatpush1.msra.mxu0 0.0
    %6466 = vmatprep.subr.mxu0 0.0
    %6467 = vmatpush1.msra.mxu0 0.0
    %6468 = vmatprep.subr.mxu0 0.0
    %6469 = vmatpush1.msra.mxu0 0.0
    %6470 = vmatprep.subr.mxu0 0.0
    %6471 = vmatpush1.msra.mxu0 0.0
    %6472 = vmatprep.subr.mxu0 0.0
    %6473 = vmatpush1.msra.mxu0 0.0
    %6474 = vmatprep.subr.mxu0 0.0
    %6475 = vmatpush1.msra.mxu0 0.0
    %6476 = vmatprep.subr.mxu0 0.0
    %v6477 = vand.u32 %v6141, 4294901760
    %v6478 = vsub.f32 %v6141, %v6477
    %v6479 = vand.u32 %v6478, 4294901760
    %6480 = vmatpush1.msra.mxu0 %v6479
    %6481 = vmatprep.subr.mxu0 0.0
    %6482 = vmatpush2.msra.mxu0 0.0
    %6483 = vmatprep.subr.mxu0 0.0
    %6484 = vmatpush2.msra.mxu0 0.0
    %6485 = vmatprep.subr.mxu0 0.0
    %6486 = vmatpush2.msra.mxu0 0.0
    %6487 = vmatprep.subr.mxu0 0.0
    %6488 = vmatpush2.msra.mxu0 0.0
    %6489 = vmatprep.subr.mxu0 0.0
    %6490 = vmatpush2.msra.mxu0 0.0
    %6491 = vmatprep.subr.mxu0 0.0
    %6492 = vmatpush2.msra.mxu0 0.0
    %6493 = vmatprep.subr.mxu0 0.0
    %6494 = vmatpush2.msra.mxu0 0.0
    %6495 = vmatprep.subr.mxu0 0.0
    %6496 = vmatpush2.msra.mxu0 0.0
    %6497 = vmatprep.subr.mxu0 0.0
    %6498 = vmatpush2.msra.mxu0 0.0
    %6499 = vmatprep.subr.mxu0 0.0
    %6500 = vmatpush2.msra.mxu0 0.0
    %6501 = vmatprep.subr.mxu0 0.0
    %6502 = vmatpush2.msra.mxu0 0.0
    %6503 = vmatprep.subr.mxu0 0.0
    %6504 = vmatpush2.msra.mxu0 0.0
    %6505 = vmatprep.subr.mxu0 0.0
    %6506 = vmatpush2.msra.mxu0 0.0
    %6507 = vmatprep.subr.mxu0 0.0
    %6508 = vmatpush2.msra.mxu0 0.0
    %6509 = vmatprep.subr.mxu0 0.0
    %6510 = vmatpush2.msra.mxu0 0.0
    %6511 = vmatprep.subr.mxu0 0.0
    %6512 = vmatpush2.msra.mxu0 0.0
    %6513 = vmatprep.mubr.f32.mxu0 0.0
    %v6514 = vand.u32 %v6144, 4294901760
    %6515 = vmatmul.mubr.f32.gmra.mxu0 %v6514
    %v6516 = vpop.f32.mrf.mxu0
    %v6517 = vadd.f32 %v6443, %v6516
    %v6518 = vpop.f32.mrf.mxu0
    %6519 = vdwg.mxu0
    %6520 = vmatprep.subr.mxu0 0.0
    %6521 = vmatpush1.msra.mxu0 0.0
    %6522 = vmatprep.subr.mxu0 0.0
    %6523 = vmatpush1.msra.mxu0 0.0
    %6524 = vmatprep.subr.mxu0 0.0
    %6525 = vmatpush1.msra.mxu0 0.0
    %6526 = vmatprep.subr.mxu0 0.0
    %6527 = vmatpush1.msra.mxu0 0.0
    %6528 = vmatprep.subr.mxu0 0.0
    %6529 = vmatpush1.msra.mxu0 0.0
    %6530 = vmatprep.subr.mxu0 0.0
    %6531 = vmatpush1.msra.mxu0 0.0
    %6532 = vmatprep.subr.mxu0 0.0
    %6533 = vmatpush1.msra.mxu0 0.0
    %6534 = vmatprep.subr.mxu0 0.0
    %6535 = vmatpush1.msra.mxu0 0.0
    %6536 = vmatprep.subr.mxu0 0.0
    %6537 = vmatpush1.msra.mxu0 0.0
    %6538 = vmatprep.subr.mxu0 0.0
    %6539 = vmatpush1.msra.mxu0 0.0
    %6540 = vmatprep.subr.mxu0 0.0
    %6541 = vmatpush1.msra.mxu0 0.0
    %6542 = vmatprep.subr.mxu0 0.0
    %6543 = vmatpush1.msra.mxu0 0.0
    %6544 = vmatprep.subr.mxu0 0.0
    %6545 = vmatpush1.msra.mxu0 0.0
    %6546 = vmatprep.subr.mxu0 0.0
    %6547 = vmatpush1.msra.mxu0 0.0
    %6548 = vmatprep.subr.mxu0 0.0
    %6549 = vmatpush1.msra.mxu0 0.0
    %6550 = vmatprep.subr.mxu0 0.0
    %v6551 = vand.u32 %v6141, 4294901760
    %6552 = vmatpush1.msra.mxu0 %v6551
    %6553 = vmatprep.subr.mxu0 0.0
    %6554 = vmatpush2.msra.mxu0 0.0
    %6555 = vmatprep.subr.mxu0 0.0
    %6556 = vmatpush2.msra.mxu0 0.0
    %6557 = vmatprep.subr.mxu0 0.0
    %6558 = vmatpush2.msra.mxu0 0.0
    %6559 = vmatprep.subr.mxu0 0.0
    %6560 = vmatpush2.msra.mxu0 0.0
    %6561 = vmatprep.subr.mxu0 0.0
    %6562 = vmatpush2.msra.mxu0 0.0
    %6563 = vmatprep.subr.mxu0 0.0
    %6564 = vmatpush2.msra.mxu0 0.0
    %6565 = vmatprep.subr.mxu0 0.0
    %6566 = vmatpush2.msra.mxu0 0.0
    %6567 = vmatprep.subr.mxu0 0.0
    %6568 = vmatpush2.msra.mxu0 0.0
    %6569 = vmatprep.subr.mxu0 0.0
    %6570 = vmatpush2.msra.mxu0 0.0
    %6571 = vmatprep.subr.mxu0 0.0
    %6572 = vmatpush2.msra.mxu0 0.0
    %6573 = vmatprep.subr.mxu0 0.0
    %6574 = vmatpush2.msra.mxu0 0.0
    %6575 = vmatprep.subr.mxu0 0.0
    %6576 = vmatpush2.msra.mxu0 0.0
    %6577 = vmatprep.subr.mxu0 0.0
    %6578 = vmatpush2.msra.mxu0 0.0
    %6579 = vmatprep.subr.mxu0 0.0
    %6580 = vmatpush2.msra.mxu0 0.0
    %6581 = vmatprep.subr.mxu0 0.0
    %6582 = vmatpush2.msra.mxu0 0.0
    %6583 = vmatprep.subr.mxu0 0.0
    %6584 = vmatpush2.msra.mxu0 0.0
    %6585 = vmatprep.mubr.f32.mxu0 0.0
    %v6586 = vand.u32 %v6144, 4294901760
    %6587 = vmatmul.mubr.f32.gmra.mxu0 %v6586
    %v6588 = vpop.f32.mrf.mxu0
    %v6589 = vadd.f32 %v6517, %v6588
    %v6590 = vpop.f32.mrf.mxu0
    %6591 = vdwg.mxu0
    %6592 = vrot.lane.b32.xlu0 %v622, 64
    %v6593 = vpop.permute.xlu0 %6592
    %v6596 = vsel %vm629, %v4329, 0
    %6598 = vmatprep.subr.mxu0 0.0
    %6599 = vmatpush1.msra.mxu0 0.0
    %6600 = vmatprep.subr.mxu0 0.0
    %6601 = vmatpush1.msra.mxu0 0.0
    %6602 = vmatprep.subr.mxu0 0.0
    %6603 = vmatpush1.msra.mxu0 0.0
    %6604 = vmatprep.subr.mxu0 0.0
    %6605 = vmatpush1.msra.mxu0 0.0
    %6606 = vmatprep.subr.mxu0 0.0
    %6607 = vmatpush1.msra.mxu0 0.0
    %6608 = vmatprep.subr.mxu0 0.0
    %6609 = vmatpush1.msra.mxu0 0.0
    %6610 = vmatprep.subr.mxu0 0.0
    %6611 = vmatpush1.msra.mxu0 0.0
    %6612 = vmatprep.subr.mxu0 0.0
    %6613 = vmatpush1.msra.mxu0 0.0
    %6614 = vmatprep.subr.mxu0 0.0
    %6615 = vmatpush1.msra.mxu0 0.0
    %6616 = vmatprep.subr.mxu0 0.0
    %6617 = vmatpush1.msra.mxu0 0.0
    %6618 = vmatprep.subr.mxu0 0.0
    %6619 = vmatpush1.msra.mxu0 0.0
    %6620 = vmatprep.subr.mxu0 0.0
    %6621 = vmatpush1.msra.mxu0 0.0
    %6622 = vmatprep.subr.mxu0 0.0
    %6623 = vmatpush1.msra.mxu0 0.0
    %6624 = vmatprep.subr.mxu0 0.0
    %6625 = vmatpush1.msra.mxu0 0.0
    %6626 = vmatprep.subr.mxu0 0.0
    %6627 = vmatpush1.msra.mxu0 0.0
    %6628 = vmatprep.subr.mxu0 0.0
    %v6629 = vand.u32 %v6593, 4294901760
    %6630 = vmatpush1.msra.mxu0 %v6629
    %6631 = vmatprep.subr.mxu0 0.0
    %6632 = vmatpush2.msra.mxu0 0.0
    %6633 = vmatprep.subr.mxu0 0.0
    %6634 = vmatpush2.msra.mxu0 0.0
    %6635 = vmatprep.subr.mxu0 0.0
    %6636 = vmatpush2.msra.mxu0 0.0
    %6637 = vmatprep.subr.mxu0 0.0
    %6638 = vmatpush2.msra.mxu0 0.0
    %6639 = vmatprep.subr.mxu0 0.0
    %6640 = vmatpush2.msra.mxu0 0.0
    %6641 = vmatprep.subr.mxu0 0.0
    %6642 = vmatpush2.msra.mxu0 0.0
    %6643 = vmatprep.subr.mxu0 0.0
    %6644 = vmatpush2.msra.mxu0 0.0
    %6645 = vmatprep.subr.mxu0 0.0
    %6646 = vmatpush2.msra.mxu0 0.0
    %6647 = vmatprep.subr.mxu0 0.0
    %6648 = vmatpush2.msra.mxu0 0.0
    %6649 = vmatprep.subr.mxu0 0.0
    %6650 = vmatpush2.msra.mxu0 0.0
    %6651 = vmatprep.subr.mxu0 0.0
    %6652 = vmatpush2.msra.mxu0 0.0
    %6653 = vmatprep.subr.mxu0 0.0
    %6654 = vmatpush2.msra.mxu0 0.0
    %6655 = vmatprep.subr.mxu0 0.0
    %6656 = vmatpush2.msra.mxu0 0.0
    %6657 = vmatprep.subr.mxu0 0.0
    %6658 = vmatpush2.msra.mxu0 0.0
    %6659 = vmatprep.subr.mxu0 0.0
    %6660 = vmatpush2.msra.mxu0 0.0
    %6661 = vmatprep.subr.mxu0 0.0
    %6662 = vmatpush2.msra.mxu0 0.0
    %6663 = vmatprep.mubr.f32.mxu0 0.0
    %v6664 = vand.u32 %v6596, 4294901760
    %v6665 = vsub.f32 %v6596, %v6664
    %v6666 = vand.u32 %v6665, 4294901760
    %v6667 = vsub.f32 %v6665, %v6666
    %v6668 = vand.u32 %v6667, 4294901760
    %6669 = vmatmul.mubr.f32.gmra.mxu0 %v6668
    %v6670 = vpop.f32.mrf.mxu0
    %v6671 = vadd.f32 0.0, %v6670
    %v6672 = vpop.f32.mrf.mxu0
    %6673 = vdwg.mxu0
    %6674 = vmatprep.subr.mxu0 0.0
    %6675 = vmatpush1.msra.mxu0 0.0
    %6676 = vmatprep.subr.mxu0 0.0
    %6677 = vmatpush1.msra.mxu0 0.0
    %6678 = vmatprep.subr.mxu0 0.0
    %6679 = vmatpush1.msra.mxu0 0.0
    %6680 = vmatprep.subr.mxu0 0.0
    %6681 = vmatpush1.msra.mxu0 0.0
    %6682 = vmatprep.subr.mxu0 0.0
    %6683 = vmatpush1.msra.mxu0 0.0
    %6684 = vmatprep.subr.mxu0 0.0
    %6685 = vmatpush1.msra.mxu0 0.0
    %6686 = vmatprep.subr.mxu0 0.0
    %6687 = vmatpush1.msra.mxu0 0.0
    %6688 = vmatprep.subr.mxu0 0.0
    %6689 = vmatpush1.msra.mxu0 0.0
    %6690 = vmatprep.subr.mxu0 0.0
    %6691 = vmatpush1.msra.mxu0 0.0
    %6692 = vmatprep.subr.mxu0 0.0
    %6693 = vmatpush1.msra.mxu0 0.0
    %6694 = vmatprep.subr.mxu0 0.0
    %6695 = vmatpush1.msra.mxu0 0.0
    %6696 = vmatprep.subr.mxu0 0.0
    %6697 = vmatpush1.msra.mxu0 0.0
    %6698 = vmatprep.subr.mxu0 0.0
    %6699 = vmatpush1.msra.mxu0 0.0
    %6700 = vmatprep.subr.mxu0 0.0
    %6701 = vmatpush1.msra.mxu0 0.0
    %6702 = vmatprep.subr.mxu0 0.0
    %6703 = vmatpush1.msra.mxu0 0.0
    %6704 = vmatprep.subr.mxu0 0.0
    %v6705 = vand.u32 %v6593, 4294901760
    %v6706 = vsub.f32 %v6593, %v6705
    %v6707 = vand.u32 %v6706, 4294901760
    %v6708 = vsub.f32 %v6706, %v6707
    %v6709 = vand.u32 %v6708, 4294901760
    %6710 = vmatpush1.msra.mxu0 %v6709
    %6711 = vmatprep.subr.mxu0 0.0
    %6712 = vmatpush2.msra.mxu0 0.0
    %6713 = vmatprep.subr.mxu0 0.0
    %6714 = vmatpush2.msra.mxu0 0.0
    %6715 = vmatprep.subr.mxu0 0.0
    %6716 = vmatpush2.msra.mxu0 0.0
    %6717 = vmatprep.subr.mxu0 0.0
    %6718 = vmatpush2.msra.mxu0 0.0
    %6719 = vmatprep.subr.mxu0 0.0
    %6720 = vmatpush2.msra.mxu0 0.0
    %6721 = vmatprep.subr.mxu0 0.0
    %6722 = vmatpush2.msra.mxu0 0.0
    %6723 = vmatprep.subr.mxu0 0.0
    %6724 = vmatpush2.msra.mxu0 0.0
    %6725 = vmatprep.subr.mxu0 0.0
    %6726 = vmatpush2.msra.mxu0 0.0
    %6727 = vmatprep.subr.mxu0 0.0
    %6728 = vmatpush2.msra.mxu0 0.0
    %6729 = vmatprep.subr.mxu0 0.0
    %6730 = vmatpush2.msra.mxu0 0.0
    %6731 = vmatprep.subr.mxu0 0.0
    %6732 = vmatpush2.msra.mxu0 0.0
    %6733 = vmatprep.subr.mxu0 0.0
    %6734 = vmatpush2.msra.mxu0 0.0
    %6735 = vmatprep.subr.mxu0 0.0
    %6736 = vmatpush2.msra.mxu0 0.0
    %6737 = vmatprep.subr.mxu0 0.0
    %6738 = vmatpush2.msra.mxu0 0.0
    %6739 = vmatprep.subr.mxu0 0.0
    %6740 = vmatpush2.msra.mxu0 0.0
    %6741 = vmatprep.subr.mxu0 0.0
    %6742 = vmatpush2.msra.mxu0 0.0
    %6743 = vmatprep.mubr.f32.mxu0 0.0
    %v6744 = vand.u32 %v6596, 4294901760
    %6745 = vmatmul.mubr.f32.gmra.mxu0 %v6744
    %v6746 = vpop.f32.mrf.mxu0
    %v6747 = vadd.f32 %v6671, %v6746
    %v6748 = vpop.f32.mrf.mxu0
    %6749 = vdwg.mxu0
    %6750 = vmatprep.subr.mxu0 0.0
    %6751 = vmatpush1.msra.mxu0 0.0
    %6752 = vmatprep.subr.mxu0 0.0
    %6753 = vmatpush1.msra.mxu0 0.0
    %6754 = vmatprep.subr.mxu0 0.0
    %6755 = vmatpush1.msra.mxu0 0.0
    %6756 = vmatprep.subr.mxu0 0.0
    %6757 = vmatpush1.msra.mxu0 0.0
    %6758 = vmatprep.subr.mxu0 0.0
    %6759 = vmatpush1.msra.mxu0 0.0
    %6760 = vmatprep.subr.mxu0 0.0
    %6761 = vmatpush1.msra.mxu0 0.0
    %6762 = vmatprep.subr.mxu0 0.0
    %6763 = vmatpush1.msra.mxu0 0.0
    %6764 = vmatprep.subr.mxu0 0.0
    %6765 = vmatpush1.msra.mxu0 0.0
    %6766 = vmatprep.subr.mxu0 0.0
    %6767 = vmatpush1.msra.mxu0 0.0
    %6768 = vmatprep.subr.mxu0 0.0
    %6769 = vmatpush1.msra.mxu0 0.0
    %6770 = vmatprep.subr.mxu0 0.0
    %6771 = vmatpush1.msra.mxu0 0.0
    %6772 = vmatprep.subr.mxu0 0.0
    %6773 = vmatpush1.msra.mxu0 0.0
    %6774 = vmatprep.subr.mxu0 0.0
    %6775 = vmatpush1.msra.mxu0 0.0
    %6776 = vmatprep.subr.mxu0 0.0
    %6777 = vmatpush1.msra.mxu0 0.0
    %6778 = vmatprep.subr.mxu0 0.0
    %6779 = vmatpush1.msra.mxu0 0.0
    %6780 = vmatprep.subr.mxu0 0.0
    %v6781 = vand.u32 %v6593, 4294901760
    %v6782 = vsub.f32 %v6593, %v6781
    %6783 = vmatpush1.msra.mxu0 %v6782
    %6784 = vmatprep.subr.mxu0 0.0
    %6785 = vmatpush2.msra.mxu0 0.0
    %6786 = vmatprep.subr.mxu0 0.0
    %6787 = vmatpush2.msra.mxu0 0.0
    %6788 = vmatprep.subr.mxu0 0.0
    %6789 = vmatpush2.msra.mxu0 0.0
    %6790 = vmatprep.subr.mxu0 0.0
    %6791 = vmatpush2.msra.mxu0 0.0
    %6792 = vmatprep.subr.mxu0 0.0
    %6793 = vmatpush2.msra.mxu0 0.0
    %6794 = vmatprep.subr.mxu0 0.0
    %6795 = vmatpush2.msra.mxu0 0.0
    %6796 = vmatprep.subr.mxu0 0.0
    %6797 = vmatpush2.msra.mxu0 0.0
    %6798 = vmatprep.subr.mxu0 0.0
    %6799 = vmatpush2.msra.mxu0 0.0
    %6800 = vmatprep.subr.mxu0 0.0
    %6801 = vmatpush2.msra.mxu0 0.0
    %6802 = vmatprep.subr.mxu0 0.0
    %6803 = vmatpush2.msra.mxu0 0.0
    %6804 = vmatprep.subr.mxu0 0.0
    %6805 = vmatpush2.msra.mxu0 0.0
    %6806 = vmatprep.subr.mxu0 0.0
    %6807 = vmatpush2.msra.mxu0 0.0
    %6808 = vmatprep.subr.mxu0 0.0
    %6809 = vmatpush2.msra.mxu0 0.0
    %6810 = vmatprep.subr.mxu0 0.0
    %6811 = vmatpush2.msra.mxu0 0.0
    %6812 = vmatprep.subr.mxu0 0.0
    %6813 = vmatpush2.msra.mxu0 0.0
    %6814 = vmatprep.subr.mxu0 0.0
    %6815 = vmatpush2.msra.mxu0 0.0
    %6816 = vmatprep.mubr.f32.mxu0 0.0
    %v6817 = vand.u32 %v6596, 4294901760
    %v6818 = vsub.f32 %v6596, %v6817
    %6819 = vmatmul.mubr.f32.gmra.mxu0 %v6818
    %v6820 = vpop.f32.mrf.mxu0
    %v6821 = vadd.f32 %v6747, %v6820
    %v6822 = vpop.f32.mrf.mxu0
    %6823 = vdwg.mxu0
    %6824 = vmatprep.subr.mxu0 0.0
    %6825 = vmatpush1.msra.mxu0 0.0
    %6826 = vmatprep.subr.mxu0 0.0
    %6827 = vmatpush1.msra.mxu0 0.0
    %6828 = vmatprep.subr.mxu0 0.0
    %6829 = vmatpush1.msra.mxu0 0.0
    %6830 = vmatprep.subr.mxu0 0.0
    %6831 = vmatpush1.msra.mxu0 0.0
    %6832 = vmatprep.subr.mxu0 0.0
    %6833 = vmatpush1.msra.mxu0 0.0
    %6834 = vmatprep.subr.mxu0 0.0
    %6835 = vmatpush1.msra.mxu0 0.0
    %6836 = vmatprep.subr.mxu0 0.0
    %6837 = vmatpush1.msra.mxu0 0.0
    %6838 = vmatprep.subr.mxu0 0.0
    %6839 = vmatpush1.msra.mxu0 0.0
    %6840 = vmatprep.subr.mxu0 0.0
    %6841 = vmatpush1.msra.mxu0 0.0
    %6842 = vmatprep.subr.mxu0 0.0
    %6843 = vmatpush1.msra.mxu0 0.0
    %6844 = vmatprep.subr.mxu0 0.0
    %6845 = vmatpush1.msra.mxu0 0.0
    %6846 = vmatprep.subr.mxu0 0.0
    %6847 = vmatpush1.msra.mxu0 0.0
    %6848 = vmatprep.subr.mxu0 0.0
    %6849 = vmatpush1.msra.mxu0 0.0
    %6850 = vmatprep.subr.mxu0 0.0
    %6851 = vmatpush1.msra.mxu0 0.0
    %6852 = vmatprep.subr.mxu0 0.0
    %6853 = vmatpush1.msra.mxu0 0.0
    %6854 = vmatprep.subr.mxu0 0.0
    %v6855 = vand.u32 %v6593, 4294901760
    %6856 = vmatpush1.msra.mxu0 %v6855
    %6857 = vmatprep.subr.mxu0 0.0
    %6858 = vmatpush2.msra.mxu0 0.0
    %6859 = vmatprep.subr.mxu0 0.0
    %6860 = vmatpush2.msra.mxu0 0.0
    %6861 = vmatprep.subr.mxu0 0.0
    %6862 = vmatpush2.msra.mxu0 0.0
    %6863 = vmatprep.subr.mxu0 0.0
    %6864 = vmatpush2.msra.mxu0 0.0
    %6865 = vmatprep.subr.mxu0 0.0
    %6866 = vmatpush2.msra.mxu0 0.0
    %6867 = vmatprep.subr.mxu0 0.0
    %6868 = vmatpush2.msra.mxu0 0.0
    %6869 = vmatprep.subr.mxu0 0.0
    %6870 = vmatpush2.msra.mxu0 0.0
    %6871 = vmatprep.subr.mxu0 0.0
    %6872 = vmatpush2.msra.mxu0 0.0
    %6873 = vmatprep.subr.mxu0 0.0
    %6874 = vmatpush2.msra.mxu0 0.0
    %6875 = vmatprep.subr.mxu0 0.0
    %6876 = vmatpush2.msra.mxu0 0.0
    %6877 = vmatprep.subr.mxu0 0.0
    %6878 = vmatpush2.msra.mxu0 0.0
    %6879 = vmatprep.subr.mxu0 0.0
    %6880 = vmatpush2.msra.mxu0 0.0
    %6881 = vmatprep.subr.mxu0 0.0
    %6882 = vmatpush2.msra.mxu0 0.0
    %6883 = vmatprep.subr.mxu0 0.0
    %6884 = vmatpush2.msra.mxu0 0.0
    %6885 = vmatprep.subr.mxu0 0.0
    %6886 = vmatpush2.msra.mxu0 0.0
    %6887 = vmatprep.subr.mxu0 0.0
    %6888 = vmatpush2.msra.mxu0 0.0
    %6889 = vmatprep.mubr.f32.mxu0 0.0
    %v6890 = vand.u32 %v6596, 4294901760
    %v6891 = vsub.f32 %v6596, %v6890
    %v6892 = vand.u32 %v6891, 4294901760
    %6893 = vmatmul.mubr.f32.gmra.mxu0 %v6892
    %v6894 = vpop.f32.mrf.mxu0
    %v6895 = vadd.f32 %v6821, %v6894
    %v6896 = vpop.f32.mrf.mxu0
    %6897 = vdwg.mxu0
    %6898 = vmatprep.subr.mxu0 0.0
    %6899 = vmatpush1.msra.mxu0 0.0
    %6900 = vmatprep.subr.mxu0 0.0
    %6901 = vmatpush1.msra.mxu0 0.0
    %6902 = vmatprep.subr.mxu0 0.0
    %6903 = vmatpush1.msra.mxu0 0.0
    %6904 = vmatprep.subr.mxu0 0.0
    %6905 = vmatpush1.msra.mxu0 0.0
    %6906 = vmatprep.subr.mxu0 0.0
    %6907 = vmatpush1.msra.mxu0 0.0
    %6908 = vmatprep.subr.mxu0 0.0
    %6909 = vmatpush1.msra.mxu0 0.0
    %6910 = vmatprep.subr.mxu0 0.0
    %6911 = vmatpush1.msra.mxu0 0.0
    %6912 = vmatprep.subr.mxu0 0.0
    %6913 = vmatpush1.msra.mxu0 0.0
    %6914 = vmatprep.subr.mxu0 0.0
    %6915 = vmatpush1.msra.mxu0 0.0
    %6916 = vmatprep.subr.mxu0 0.0
    %6917 = vmatpush1.msra.mxu0 0.0
    %6918 = vmatprep.subr.mxu0 0.0
    %6919 = vmatpush1.msra.mxu0 0.0
    %6920 = vmatprep.subr.mxu0 0.0
    %6921 = vmatpush1.msra.mxu0 0.0
    %6922 = vmatprep.subr.mxu0 0.0
    %6923 = vmatpush1.msra.mxu0 0.0
    %6924 = vmatprep.subr.mxu0 0.0
    %6925 = vmatpush1.msra.mxu0 0.0
    %6926 = vmatprep.subr.mxu0 0.0
    %6927 = vmatpush1.msra.mxu0 0.0
    %6928 = vmatprep.subr.mxu0 0.0
    %v6929 = vand.u32 %v6593, 4294901760
    %v6930 = vsub.f32 %v6593, %v6929
    %v6931 = vand.u32 %v6930, 4294901760
    %6932 = vmatpush1.msra.mxu0 %v6931
    %6933 = vmatprep.subr.mxu0 0.0
    %6934 = vmatpush2.msra.mxu0 0.0
    %6935 = vmatprep.subr.mxu0 0.0
    %6936 = vmatpush2.msra.mxu0 0.0
    %6937 = vmatprep.subr.mxu0 0.0
    %6938 = vmatpush2.msra.mxu0 0.0
    %6939 = vmatprep.subr.mxu0 0.0
    %6940 = vmatpush2.msra.mxu0 0.0
    %6941 = vmatprep.subr.mxu0 0.0
    %6942 = vmatpush2.msra.mxu0 0.0
    %6943 = vmatprep.subr.mxu0 0.0
    %6944 = vmatpush2.msra.mxu0 0.0
    %6945 = vmatprep.subr.mxu0 0.0
    %6946 = vmatpush2.msra.mxu0 0.0
    %6947 = vmatprep.subr.mxu0 0.0
    %6948 = vmatpush2.msra.mxu0 0.0
    %6949 = vmatprep.subr.mxu0 0.0
    %6950 = vmatpush2.msra.mxu0 0.0
    %6951 = vmatprep.subr.mxu0 0.0
    %6952 = vmatpush2.msra.mxu0 0.0
    %6953 = vmatprep.subr.mxu0 0.0
    %6954 = vmatpush2.msra.mxu0 0.0
    %6955 = vmatprep.subr.mxu0 0.0
    %6956 = vmatpush2.msra.mxu0 0.0
    %6957 = vmatprep.subr.mxu0 0.0
    %6958 = vmatpush2.msra.mxu0 0.0
    %6959 = vmatprep.subr.mxu0 0.0
    %6960 = vmatpush2.msra.mxu0 0.0
    %6961 = vmatprep.subr.mxu0 0.0
    %6962 = vmatpush2.msra.mxu0 0.0
    %6963 = vmatprep.subr.mxu0 0.0
    %6964 = vmatpush2.msra.mxu0 0.0
    %6965 = vmatprep.mubr.f32.mxu0 0.0
    %v6966 = vand.u32 %v6596, 4294901760
    %6967 = vmatmul.mubr.f32.gmra.mxu0 %v6966
    %v6968 = vpop.f32.mrf.mxu0
    %v6969 = vadd.f32 %v6895, %v6968
    %v6970 = vpop.f32.mrf.mxu0
    %6971 = vdwg.mxu0
    %6972 = vmatprep.subr.mxu0 0.0
    %6973 = vmatpush1.msra.mxu0 0.0
    %6974 = vmatprep.subr.mxu0 0.0
    %6975 = vmatpush1.msra.mxu0 0.0
    %6976 = vmatprep.subr.mxu0 0.0
    %6977 = vmatpush1.msra.mxu0 0.0
    %6978 = vmatprep.subr.mxu0 0.0
    %6979 = vmatpush1.msra.mxu0 0.0
    %6980 = vmatprep.subr.mxu0 0.0
    %6981 = vmatpush1.msra.mxu0 0.0
    %6982 = vmatprep.subr.mxu0 0.0
    %6983 = vmatpush1.msra.mxu0 0.0
    %6984 = vmatprep.subr.mxu0 0.0
    %6985 = vmatpush1.msra.mxu0 0.0
    %6986 = vmatprep.subr.mxu0 0.0
    %6987 = vmatpush1.msra.mxu0 0.0
    %6988 = vmatprep.subr.mxu0 0.0
    %6989 = vmatpush1.msra.mxu0 0.0
    %6990 = vmatprep.subr.mxu0 0.0
    %6991 = vmatpush1.msra.mxu0 0.0
    %6992 = vmatprep.subr.mxu0 0.0
    %6993 = vmatpush1.msra.mxu0 0.0
    %6994 = vmatprep.subr.mxu0 0.0
    %6995 = vmatpush1.msra.mxu0 0.0
    %6996 = vmatprep.subr.mxu0 0.0
    %6997 = vmatpush1.msra.mxu0 0.0
    %6998 = vmatprep.subr.mxu0 0.0
    %6999 = vmatpush1.msra.mxu0 0.0
    %7000 = vmatprep.subr.mxu0 0.0
    %7001 = vmatpush1.msra.mxu0 0.0
    %7002 = vmatprep.subr.mxu0 0.0
    %v7003 = vand.u32 %v6593, 4294901760
    %7004 = vmatpush1.msra.mxu0 %v7003
    %7005 = vmatprep.subr.mxu0 0.0
    %7006 = vmatpush2.msra.mxu0 0.0
    %7007 = vmatprep.subr.mxu0 0.0
    %7008 = vmatpush2.msra.mxu0 0.0
    %7009 = vmatprep.subr.mxu0 0.0
    %7010 = vmatpush2.msra.mxu0 0.0
    %7011 = vmatprep.subr.mxu0 0.0
    %7012 = vmatpush2.msra.mxu0 0.0
    %7013 = vmatprep.subr.mxu0 0.0
    %7014 = vmatpush2.msra.mxu0 0.0
    %7015 = vmatprep.subr.mxu0 0.0
    %7016 = vmatpush2.msra.mxu0 0.0
    %7017 = vmatprep.subr.mxu0 0.0
    %7018 = vmatpush2.msra.mxu0 0.0
    %7019 = vmatprep.subr.mxu0 0.0
    %7020 = vmatpush2.msra.mxu0 0.0
    %7021 = vmatprep.subr.mxu0 0.0
    %7022 = vmatpush2.msra.mxu0 0.0
    %7023 = vmatprep.subr.mxu0 0.0
    %7024 = vmatpush2.msra.mxu0 0.0
    %7025 = vmatprep.subr.mxu0 0.0
    %7026 = vmatpush2.msra.mxu0 0.0
    %7027 = vmatprep.subr.mxu0 0.0
    %7028 = vmatpush2.msra.mxu0 0.0
    %7029 = vmatprep.subr.mxu0 0.0
    %7030 = vmatpush2.msra.mxu0 0.0
    %7031 = vmatprep.subr.mxu0 0.0
    %7032 = vmatpush2.msra.mxu0 0.0
    %7033 = vmatprep.subr.mxu0 0.0
    %7034 = vmatpush2.msra.mxu0 0.0
    %7035 = vmatprep.subr.mxu0 0.0
    %7036 = vmatpush2.msra.mxu0 0.0
    %7037 = vmatprep.mubr.f32.mxu0 0.0
    %v7038 = vand.u32 %v6596, 4294901760
    %7039 = vmatmul.mubr.f32.gmra.mxu0 %v7038
    %v7040 = vpop.f32.mrf.mxu0
    %v7041 = vadd.f32 %v6969, %v7040
    %v7042 = vpop.f32.mrf.mxu0
    %7043 = vdwg.mxu0
    %7044 = vrot.lane.b32.xlu0 %v624, 64
    %v7045 = vpop.permute.xlu0 %7044
    %v7048 = vsel %vm629, %v4330, 0
    %7050 = vmatprep.subr.mxu0 0.0
    %7051 = vmatpush1.msra.mxu0 0.0
    %7052 = vmatprep.subr.mxu0 0.0
    %7053 = vmatpush1.msra.mxu0 0.0
    %7054 = vmatprep.subr.mxu0 0.0
    %7055 = vmatpush1.msra.mxu0 0.0
    %7056 = vmatprep.subr.mxu0 0.0
    %7057 = vmatpush1.msra.mxu0 0.0
    %7058 = vmatprep.subr.mxu0 0.0
    %7059 = vmatpush1.msra.mxu0 0.0
    %7060 = vmatprep.subr.mxu0 0.0
    %7061 = vmatpush1.msra.mxu0 0.0
    %7062 = vmatprep.subr.mxu0 0.0
    %7063 = vmatpush1.msra.mxu0 0.0
    %7064 = vmatprep.subr.mxu0 0.0
    %7065 = vmatpush1.msra.mxu0 0.0
    %7066 = vmatprep.subr.mxu0 0.0
    %7067 = vmatpush1.msra.mxu0 0.0
    %7068 = vmatprep.subr.mxu0 0.0
    %7069 = vmatpush1.msra.mxu0 0.0
    %7070 = vmatprep.subr.mxu0 0.0
    %7071 = vmatpush1.msra.mxu0 0.0
    %7072 = vmatprep.subr.mxu0 0.0
    %7073 = vmatpush1.msra.mxu0 0.0
    %7074 = vmatprep.subr.mxu0 0.0
    %7075 = vmatpush1.msra.mxu0 0.0
    %7076 = vmatprep.subr.mxu0 0.0
    %7077 = vmatpush1.msra.mxu0 0.0
    %7078 = vmatprep.subr.mxu0 0.0
    %7079 = vmatpush1.msra.mxu0 0.0
    %7080 = vmatprep.subr.mxu0 0.0
    %v7081 = vand.u32 %v7045, 4294901760
    %7082 = vmatpush1.msra.mxu0 %v7081
    %7083 = vmatprep.subr.mxu0 0.0
    %7084 = vmatpush2.msra.mxu0 0.0
    %7085 = vmatprep.subr.mxu0 0.0
    %7086 = vmatpush2.msra.mxu0 0.0
    %7087 = vmatprep.subr.mxu0 0.0
    %7088 = vmatpush2.msra.mxu0 0.0
    %7089 = vmatprep.subr.mxu0 0.0
    %7090 = vmatpush2.msra.mxu0 0.0
    %7091 = vmatprep.subr.mxu0 0.0
    %7092 = vmatpush2.msra.mxu0 0.0
    %7093 = vmatprep.subr.mxu0 0.0
    %7094 = vmatpush2.msra.mxu0 0.0
    %7095 = vmatprep.subr.mxu0 0.0
    %7096 = vmatpush2.msra.mxu0 0.0
    %7097 = vmatprep.subr.mxu0 0.0
    %7098 = vmatpush2.msra.mxu0 0.0
    %7099 = vmatprep.subr.mxu0 0.0
    %7100 = vmatpush2.msra.mxu0 0.0
    %7101 = vmatprep.subr.mxu0 0.0
    %7102 = vmatpush2.msra.mxu0 0.0
    %7103 = vmatprep.subr.mxu0 0.0
    %7104 = vmatpush2.msra.mxu0 0.0
    %7105 = vmatprep.subr.mxu0 0.0
    %7106 = vmatpush2.msra.mxu0 0.0
    %7107 = vmatprep.subr.mxu0 0.0
    %7108 = vmatpush2.msra.mxu0 0.0
    %7109 = vmatprep.subr.mxu0 0.0
    %7110 = vmatpush2.msra.mxu0 0.0
    %7111 = vmatprep.subr.mxu0 0.0
    %7112 = vmatpush2.msra.mxu0 0.0
    %7113 = vmatprep.subr.mxu0 0.0
    %7114 = vmatpush2.msra.mxu0 0.0
    %7115 = vmatprep.mubr.f32.mxu0 0.0
    %v7116 = vand.u32 %v7048, 4294901760
    %v7117 = vsub.f32 %v7048, %v7116
    %v7118 = vand.u32 %v7117, 4294901760
    %v7119 = vsub.f32 %v7117, %v7118
    %v7120 = vand.u32 %v7119, 4294901760
    %7121 = vmatmul.mubr.f32.gmra.mxu0 %v7120
    %v7122 = vpop.f32.mrf.mxu0
    %v7123 = vadd.f32 0.0, %v7122
    %v7124 = vpop.f32.mrf.mxu0
    %7125 = vdwg.mxu0
    %7126 = vmatprep.subr.mxu0 0.0
    %7127 = vmatpush1.msra.mxu0 0.0
    %7128 = vmatprep.subr.mxu0 0.0
    %7129 = vmatpush1.msra.mxu0 0.0
    %7130 = vmatprep.subr.mxu0 0.0
    %7131 = vmatpush1.msra.mxu0 0.0
    %7132 = vmatprep.subr.mxu0 0.0
    %7133 = vmatpush1.msra.mxu0 0.0
    %7134 = vmatprep.subr.mxu0 0.0
    %7135 = vmatpush1.msra.mxu0 0.0
    %7136 = vmatprep.subr.mxu0 0.0
    %7137 = vmatpush1.msra.mxu0 0.0
    %7138 = vmatprep.subr.mxu0 0.0
    %7139 = vmatpush1.msra.mxu0 0.0
    %7140 = vmatprep.subr.mxu0 0.0
    %7141 = vmatpush1.msra.mxu0 0.0
    %7142 = vmatprep.subr.mxu0 0.0
    %7143 = vmatpush1.msra.mxu0 0.0
    %7144 = vmatprep.subr.mxu0 0.0
    %7145 = vmatpush1.msra.mxu0 0.0
    %7146 = vmatprep.subr.mxu0 0.0
    %7147 = vmatpush1.msra.mxu0 0.0
    %7148 = vmatprep.subr.mxu0 0.0
    %7149 = vmatpush1.msra.mxu0 0.0
    %7150 = vmatprep.subr.mxu0 0.0
    %7151 = vmatpush1.msra.mxu0 0.0
    %7152 = vmatprep.subr.mxu0 0.0
    %7153 = vmatpush1.msra.mxu0 0.0
    %7154 = vmatprep.subr.mxu0 0.0
    %7155 = vmatpush1.msra.mxu0 0.0
    %7156 = vmatprep.subr.mxu0 0.0
    %v7157 = vand.u32 %v7045, 4294901760
    %v7158 = vsub.f32 %v7045, %v7157
    %v7159 = vand.u32 %v7158, 4294901760
    %v7160 = vsub.f32 %v7158, %v7159
    %v7161 = vand.u32 %v7160, 4294901760
    %7162 = vmatpush1.msra.mxu0 %v7161
    %7163 = vmatprep.subr.mxu0 0.0
    %7164 = vmatpush2.msra.mxu0 0.0
    %7165 = vmatprep.subr.mxu0 0.0
    %7166 = vmatpush2.msra.mxu0 0.0
    %7167 = vmatprep.subr.mxu0 0.0
    %7168 = vmatpush2.msra.mxu0 0.0
    %7169 = vmatprep.subr.mxu0 0.0
    %7170 = vmatpush2.msra.mxu0 0.0
    %7171 = vmatprep.subr.mxu0 0.0
    %7172 = vmatpush2.msra.mxu0 0.0
    %7173 = vmatprep.subr.mxu0 0.0
    %7174 = vmatpush2.msra.mxu0 0.0
    %7175 = vmatprep.subr.mxu0 0.0
    %7176 = vmatpush2.msra.mxu0 0.0
    %7177 = vmatprep.subr.mxu0 0.0
    %7178 = vmatpush2.msra.mxu0 0.0
    %7179 = vmatprep.subr.mxu0 0.0
    %7180 = vmatpush2.msra.mxu0 0.0
    %7181 = vmatprep.subr.mxu0 0.0
    %7182 = vmatpush2.msra.mxu0 0.0
    %7183 = vmatprep.subr.mxu0 0.0
    %7184 = vmatpush2.msra.mxu0 0.0
    %7185 = vmatprep.subr.mxu0 0.0
    %7186 = vmatpush2.msra.mxu0 0.0
    %7187 = vmatprep.subr.mxu0 0.0
    %7188 = vmatpush2.msra.mxu0 0.0
    %7189 = vmatprep.subr.mxu0 0.0
    %7190 = vmatpush2.msra.mxu0 0.0
    %7191 = vmatprep.subr.mxu0 0.0
    %7192 = vmatpush2.msra.mxu0 0.0
    %7193 = vmatprep.subr.mxu0 0.0
    %7194 = vmatpush2.msra.mxu0 0.0
    %7195 = vmatprep.mubr.f32.mxu0 0.0
    %v7196 = vand.u32 %v7048, 4294901760
    %7197 = vmatmul.mubr.f32.gmra.mxu0 %v7196
    %v7198 = vpop.f32.mrf.mxu0
    %v7199 = vadd.f32 %v7123, %v7198
    %v7200 = vpop.f32.mrf.mxu0
    %7201 = vdwg.mxu0
    %7202 = vmatprep.subr.mxu0 0.0
    %7203 = vmatpush1.msra.mxu0 0.0
    %7204 = vmatprep.subr.mxu0 0.0
    %7205 = vmatpush1.msra.mxu0 0.0
    %7206 = vmatprep.subr.mxu0 0.0
    %7207 = vmatpush1.msra.mxu0 0.0
    %7208 = vmatprep.subr.mxu0 0.0
    %7209 = vmatpush1.msra.mxu0 0.0
    %7210 = vmatprep.subr.mxu0 0.0
    %7211 = vmatpush1.msra.mxu0 0.0
    %7212 = vmatprep.subr.mxu0 0.0
    %7213 = vmatpush1.msra.mxu0 0.0
    %7214 = vmatprep.subr.mxu0 0.0
    %7215 = vmatpush1.msra.mxu0 0.0
    %7216 = vmatprep.subr.mxu0 0.0
    %7217 = vmatpush1.msra.mxu0 0.0
    %7218 = vmatprep.subr.mxu0 0.0
    %7219 = vmatpush1.msra.mxu0 0.0
    %7220 = vmatprep.subr.mxu0 0.0
    %7221 = vmatpush1.msra.mxu0 0.0
    %7222 = vmatprep.subr.mxu0 0.0
    %7223 = vmatpush1.msra.mxu0 0.0
    %7224 = vmatprep.subr.mxu0 0.0
    %7225 = vmatpush1.msra.mxu0 0.0
    %7226 = vmatprep.subr.mxu0 0.0
    %7227 = vmatpush1.msra.mxu0 0.0
    %7228 = vmatprep.subr.mxu0 0.0
    %7229 = vmatpush1.msra.mxu0 0.0
    %7230 = vmatprep.subr.mxu0 0.0
    %7231 = vmatpush1.msra.mxu0 0.0
    %7232 = vmatprep.subr.mxu0 0.0
    %v7233 = vand.u32 %v7045, 4294901760
    %v7234 = vsub.f32 %v7045, %v7233
    %7235 = vmatpush1.msra.mxu0 %v7234
    %7236 = vmatprep.subr.mxu0 0.0
    %7237 = vmatpush2.msra.mxu0 0.0
    %7238 = vmatprep.subr.mxu0 0.0
    %7239 = vmatpush2.msra.mxu0 0.0
    %7240 = vmatprep.subr.mxu0 0.0
    %7241 = vmatpush2.msra.mxu0 0.0
    %7242 = vmatprep.subr.mxu0 0.0
    %7243 = vmatpush2.msra.mxu0 0.0
    %7244 = vmatprep.subr.mxu0 0.0
    %7245 = vmatpush2.msra.mxu0 0.0
    %7246 = vmatprep.subr.mxu0 0.0
    %7247 = vmatpush2.msra.mxu0 0.0
    %7248 = vmatprep.subr.mxu0 0.0
    %7249 = vmatpush2.msra.mxu0 0.0
    %7250 = vmatprep.subr.mxu0 0.0
    %7251 = vmatpush2.msra.mxu0 0.0
    %7252 = vmatprep.subr.mxu0 0.0
    %7253 = vmatpush2.msra.mxu0 0.0
    %7254 = vmatprep.subr.mxu0 0.0
    %7255 = vmatpush2.msra.mxu0 0.0
    %7256 = vmatprep.subr.mxu0 0.0
    %7257 = vmatpush2.msra.mxu0 0.0
    %7258 = vmatprep.subr.mxu0 0.0
    %7259 = vmatpush2.msra.mxu0 0.0
    %7260 = vmatprep.subr.mxu0 0.0
    %7261 = vmatpush2.msra.mxu0 0.0
    %7262 = vmatprep.subr.mxu0 0.0
    %7263 = vmatpush2.msra.mxu0 0.0
    %7264 = vmatprep.subr.mxu0 0.0
    %7265 = vmatpush2.msra.mxu0 0.0
    %7266 = vmatprep.subr.mxu0 0.0
    %7267 = vmatpush2.msra.mxu0 0.0
    %7268 = vmatprep.mubr.f32.mxu0 0.0
    %v7269 = vand.u32 %v7048, 4294901760
    %v7270 = vsub.f32 %v7048, %v7269
    %7271 = vmatmul.mubr.f32.gmra.mxu0 %v7270
    %v7272 = vpop.f32.mrf.mxu0
    %v7273 = vadd.f32 %v7199, %v7272
    %v7274 = vpop.f32.mrf.mxu0
    %7275 = vdwg.mxu0
    %7276 = vmatprep.subr.mxu0 0.0
    %7277 = vmatpush1.msra.mxu0 0.0
    %7278 = vmatprep.subr.mxu0 0.0
    %7279 = vmatpush1.msra.mxu0 0.0
    %7280 = vmatprep.subr.mxu0 0.0
    %7281 = vmatpush1.msra.mxu0 0.0
    %7282 = vmatprep.subr.mxu0 0.0
    %7283 = vmatpush1.msra.mxu0 0.0
    %7284 = vmatprep.subr.mxu0 0.0
    %7285 = vmatpush1.msra.mxu0 0.0
    %7286 = vmatprep.subr.mxu0 0.0
    %7287 = vmatpush1.msra.mxu0 0.0
    %7288 = vmatprep.subr.mxu0 0.0
    %7289 = vmatpush1.msra.mxu0 0.0
    %7290 = vmatprep.subr.mxu0 0.0
    %7291 = vmatpush1.msra.mxu0 0.0
    %7292 = vmatprep.subr.mxu0 0.0
    %7293 = vmatpush1.msra.mxu0 0.0
    %7294 = vmatprep.subr.mxu0 0.0
    %7295 = vmatpush1.msra.mxu0 0.0
    %7296 = vmatprep.subr.mxu0 0.0
    %7297 = vmatpush1.msra.mxu0 0.0
    %7298 = vmatprep.subr.mxu0 0.0
    %7299 = vmatpush1.msra.mxu0 0.0
    %7300 = vmatprep.subr.mxu0 0.0
    %7301 = vmatpush1.msra.mxu0 0.0
    %7302 = vmatprep.subr.mxu0 0.0
    %7303 = vmatpush1.msra.mxu0 0.0
    %7304 = vmatprep.subr.mxu0 0.0
    %7305 = vmatpush1.msra.mxu0 0.0
    %7306 = vmatprep.subr.mxu0 0.0
    %v7307 = vand.u32 %v7045, 4294901760
    %7308 = vmatpush1.msra.mxu0 %v7307
    %7309 = vmatprep.subr.mxu0 0.0
    %7310 = vmatpush2.msra.mxu0 0.0
    %7311 = vmatprep.subr.mxu0 0.0
    %7312 = vmatpush2.msra.mxu0 0.0
    %7313 = vmatprep.subr.mxu0 0.0
    %7314 = vmatpush2.msra.mxu0 0.0
    %7315 = vmatprep.subr.mxu0 0.0
    %7316 = vmatpush2.msra.mxu0 0.0
    %7317 = vmatprep.subr.mxu0 0.0
    %7318 = vmatpush2.msra.mxu0 0.0
    %7319 = vmatprep.subr.mxu0 0.0
    %7320 = vmatpush2.msra.mxu0 0.0
    %7321 = vmatprep.subr.mxu0 0.0
    %7322 = vmatpush2.msra.mxu0 0.0
    %7323 = vmatprep.subr.mxu0 0.0
    %7324 = vmatpush2.msra.mxu0 0.0
    %7325 = vmatprep.subr.mxu0 0.0
    %7326 = vmatpush2.msra.mxu0 0.0
    %7327 = vmatprep.subr.mxu0 0.0
    %7328 = vmatpush2.msra.mxu0 0.0
    %7329 = vmatprep.subr.mxu0 0.0
    %7330 = vmatpush2.msra.mxu0 0.0
    %7331 = vmatprep.subr.mxu0 0.0
    %7332 = vmatpush2.msra.mxu0 0.0
    %7333 = vmatprep.subr.mxu0 0.0
    %7334 = vmatpush2.msra.mxu0 0.0
    %7335 = vmatprep.subr.mxu0 0.0
    %7336 = vmatpush2.msra.mxu0 0.0
    %7337 = vmatprep.subr.mxu0 0.0
    %7338 = vmatpush2.msra.mxu0 0.0
    %7339 = vmatprep.subr.mxu0 0.0
    %7340 = vmatpush2.msra.mxu0 0.0
    %7341 = vmatprep.mubr.f32.mxu0 0.0
    %v7342 = vand.u32 %v7048, 4294901760
    %v7343 = vsub.f32 %v7048, %v7342
    %v7344 = vand.u32 %v7343, 4294901760
    %7345 = vmatmul.mubr.f32.gmra.mxu0 %v7344
    %v7346 = vpop.f32.mrf.mxu0
    %v7347 = vadd.f32 %v7273, %v7346
    %v7348 = vpop.f32.mrf.mxu0
    %7349 = vdwg.mxu0
    %7350 = vmatprep.subr.mxu0 0.0
    %7351 = vmatpush1.msra.mxu0 0.0
    %7352 = vmatprep.subr.mxu0 0.0
    %7353 = vmatpush1.msra.mxu0 0.0
    %7354 = vmatprep.subr.mxu0 0.0
    %7355 = vmatpush1.msra.mxu0 0.0
    %7356 = vmatprep.subr.mxu0 0.0
    %7357 = vmatpush1.msra.mxu0 0.0
    %7358 = vmatprep.subr.mxu0 0.0
    %7359 = vmatpush1.msra.mxu0 0.0
    %7360 = vmatprep.subr.mxu0 0.0
    %7361 = vmatpush1.msra.mxu0 0.0
    %7362 = vmatprep.subr.mxu0 0.0
    %7363 = vmatpush1.msra.mxu0 0.0
    %7364 = vmatprep.subr.mxu0 0.0
    %7365 = vmatpush1.msra.mxu0 0.0
    %7366 = vmatprep.subr.mxu0 0.0
    %7367 = vmatpush1.msra.mxu0 0.0
    %7368 = vmatprep.subr.mxu0 0.0
    %7369 = vmatpush1.msra.mxu0 0.0
    %7370 = vmatprep.subr.mxu0 0.0
    %7371 = vmatpush1.msra.mxu0 0.0
    %7372 = vmatprep.subr.mxu0 0.0
    %7373 = vmatpush1.msra.mxu0 0.0
    %7374 = vmatprep.subr.mxu0 0.0
    %7375 = vmatpush1.msra.mxu0 0.0
    %7376 = vmatprep.subr.mxu0 0.0
    %7377 = vmatpush1.msra.mxu0 0.0
    %7378 = vmatprep.subr.mxu0 0.0
    %7379 = vmatpush1.msra.mxu0 0.0
    %7380 = vmatprep.subr.mxu0 0.0
    %v7381 = vand.u32 %v7045, 4294901760
    %v7382 = vsub.f32 %v7045, %v7381
    %v7383 = vand.u32 %v7382, 4294901760
    %7384 = vmatpush1.msra.mxu0 %v7383
    %7385 = vmatprep.subr.mxu0 0.0
    %7386 = vmatpush2.msra.mxu0 0.0
    %7387 = vmatprep.subr.mxu0 0.0
    %7388 = vmatpush2.msra.mxu0 0.0
    %7389 = vmatprep.subr.mxu0 0.0
    %7390 = vmatpush2.msra.mxu0 0.0
    %7391 = vmatprep.subr.mxu0 0.0
    %7392 = vmatpush2.msra.mxu0 0.0
    %7393 = vmatprep.subr.mxu0 0.0
    %7394 = vmatpush2.msra.mxu0 0.0
    %7395 = vmatprep.subr.mxu0 0.0
    %7396 = vmatpush2.msra.mxu0 0.0
    %7397 = vmatprep.subr.mxu0 0.0
    %7398 = vmatpush2.msra.mxu0 0.0
    %7399 = vmatprep.subr.mxu0 0.0
    %7400 = vmatpush2.msra.mxu0 0.0
    %7401 = vmatprep.subr.mxu0 0.0
    %7402 = vmatpush2.msra.mxu0 0.0
    %7403 = vmatprep.subr.mxu0 0.0
    %7404 = vmatpush2.msra.mxu0 0.0
    %7405 = vmatprep.subr.mxu0 0.0
    %7406 = vmatpush2.msra.mxu0 0.0
    %7407 = vmatprep.subr.mxu0 0.0
    %7408 = vmatpush2.msra.mxu0 0.0
    %7409 = vmatprep.subr.mxu0 0.0
    %7410 = vmatpush2.msra.mxu0 0.0
    %7411 = vmatprep.subr.mxu0 0.0
    %7412 = vmatpush2.msra.mxu0 0.0
    %7413 = vmatprep.subr.mxu0 0.0
    %7414 = vmatpush2.msra.mxu0 0.0
    %7415 = vmatprep.subr.mxu0 0.0
    %7416 = vmatpush2.msra.mxu0 0.0
    %7417 = vmatprep.mubr.f32.mxu0 0.0
    %v7418 = vand.u32 %v7048, 4294901760
    %7419 = vmatmul.mubr.f32.gmra.mxu0 %v7418
    %v7420 = vpop.f32.mrf.mxu0
    %v7421 = vadd.f32 %v7347, %v7420
    %v7422 = vpop.f32.mrf.mxu0
    %7423 = vdwg.mxu0
    %7424 = vmatprep.subr.mxu0 0.0
    %7425 = vmatpush1.msra.mxu0 0.0
    %7426 = vmatprep.subr.mxu0 0.0
    %7427 = vmatpush1.msra.mxu0 0.0
    %7428 = vmatprep.subr.mxu0 0.0
    %7429 = vmatpush1.msra.mxu0 0.0
    %7430 = vmatprep.subr.mxu0 0.0
    %7431 = vmatpush1.msra.mxu0 0.0
    %7432 = vmatprep.subr.mxu0 0.0
    %7433 = vmatpush1.msra.mxu0 0.0
    %7434 = vmatprep.subr.mxu0 0.0
    %7435 = vmatpush1.msra.mxu0 0.0
    %7436 = vmatprep.subr.mxu0 0.0
    %7437 = vmatpush1.msra.mxu0 0.0
    %7438 = vmatprep.subr.mxu0 0.0
    %7439 = vmatpush1.msra.mxu0 0.0
    %7440 = vmatprep.subr.mxu0 0.0
    %7441 = vmatpush1.msra.mxu0 0.0
    %7442 = vmatprep.subr.mxu0 0.0
    %7443 = vmatpush1.msra.mxu0 0.0
    %7444 = vmatprep.subr.mxu0 0.0
    %7445 = vmatpush1.msra.mxu0 0.0
    %7446 = vmatprep.subr.mxu0 0.0
    %7447 = vmatpush1.msra.mxu0 0.0
    %7448 = vmatprep.subr.mxu0 0.0
    %7449 = vmatpush1.msra.mxu0 0.0
    %7450 = vmatprep.subr.mxu0 0.0
    %7451 = vmatpush1.msra.mxu0 0.0
    %7452 = vmatprep.subr.mxu0 0.0
    %7453 = vmatpush1.msra.mxu0 0.0
    %7454 = vmatprep.subr.mxu0 0.0
    %v7455 = vand.u32 %v7045, 4294901760
    %7456 = vmatpush1.msra.mxu0 %v7455
    %7457 = vmatprep.subr.mxu0 0.0
    %7458 = vmatpush2.msra.mxu0 0.0
    %7459 = vmatprep.subr.mxu0 0.0
    %7460 = vmatpush2.msra.mxu0 0.0
    %7461 = vmatprep.subr.mxu0 0.0
    %7462 = vmatpush2.msra.mxu0 0.0
    %7463 = vmatprep.subr.mxu0 0.0
    %7464 = vmatpush2.msra.mxu0 0.0
    %7465 = vmatprep.subr.mxu0 0.0
    %7466 = vmatpush2.msra.mxu0 0.0
    %7467 = vmatprep.subr.mxu0 0.0
    %7468 = vmatpush2.msra.mxu0 0.0
    %7469 = vmatprep.subr.mxu0 0.0
    %7470 = vmatpush2.msra.mxu0 0.0
    %7471 = vmatprep.subr.mxu0 0.0
    %7472 = vmatpush2.msra.mxu0 0.0
    %7473 = vmatprep.subr.mxu0 0.0
    %7474 = vmatpush2.msra.mxu0 0.0
    %7475 = vmatprep.subr.mxu0 0.0
    %7476 = vmatpush2.msra.mxu0 0.0
    %7477 = vmatprep.subr.mxu0 0.0
    %7478 = vmatpush2.msra.mxu0 0.0
    %7479 = vmatprep.subr.mxu0 0.0
    %7480 = vmatpush2.msra.mxu0 0.0
    %7481 = vmatprep.subr.mxu0 0.0
    %7482 = vmatpush2.msra.mxu0 0.0
    %7483 = vmatprep.subr.mxu0 0.0
    %7484 = vmatpush2.msra.mxu0 0.0
    %7485 = vmatprep.subr.mxu0 0.0
    %7486 = vmatpush2.msra.mxu0 0.0
    %7487 = vmatprep.subr.mxu0 0.0
    %7488 = vmatpush2.msra.mxu0 0.0
    %7489 = vmatprep.mubr.f32.mxu0 0.0
    %v7490 = vand.u32 %v7048, 4294901760
    %7491 = vmatmul.mubr.f32.gmra.mxu0 %v7490
    %v7492 = vpop.f32.mrf.mxu0
    %v7493 = vadd.f32 %v7421, %v7492
    %v7494 = vpop.f32.mrf.mxu0
    %7495 = vdwg.mxu0
    %7496 = vrot.lane.b32.xlu0 %v626, 64
    %v7497 = vpop.permute.xlu0 %7496
    %v7500 = vsel %vm629, %v4331, 0
    %7502 = vmatprep.subr.mxu0 0.0
    %7503 = vmatpush1.msra.mxu0 0.0
    %7504 = vmatprep.subr.mxu0 0.0
    %7505 = vmatpush1.msra.mxu0 0.0
    %7506 = vmatprep.subr.mxu0 0.0
    %7507 = vmatpush1.msra.mxu0 0.0
    %7508 = vmatprep.subr.mxu0 0.0
    %7509 = vmatpush1.msra.mxu0 0.0
    %7510 = vmatprep.subr.mxu0 0.0
    %7511 = vmatpush1.msra.mxu0 0.0
    %7512 = vmatprep.subr.mxu0 0.0
    %7513 = vmatpush1.msra.mxu0 0.0
    %7514 = vmatprep.subr.mxu0 0.0
    %7515 = vmatpush1.msra.mxu0 0.0
    %7516 = vmatprep.subr.mxu0 0.0
    %7517 = vmatpush1.msra.mxu0 0.0
    %7518 = vmatprep.subr.mxu0 0.0
    %7519 = vmatpush1.msra.mxu0 0.0
    %7520 = vmatprep.subr.mxu0 0.0
    %7521 = vmatpush1.msra.mxu0 0.0
    %7522 = vmatprep.subr.mxu0 0.0
    %7523 = vmatpush1.msra.mxu0 0.0
    %7524 = vmatprep.subr.mxu0 0.0
    %7525 = vmatpush1.msra.mxu0 0.0
    %7526 = vmatprep.subr.mxu0 0.0
    %7527 = vmatpush1.msra.mxu0 0.0
    %7528 = vmatprep.subr.mxu0 0.0
    %7529 = vmatpush1.msra.mxu0 0.0
    %7530 = vmatprep.subr.mxu0 0.0
    %7531 = vmatpush1.msra.mxu0 0.0
    %7532 = vmatprep.subr.mxu0 0.0
    %v7533 = vand.u32 %v7497, 4294901760
    %7534 = vmatpush1.msra.mxu0 %v7533
    %7535 = vmatprep.subr.mxu0 0.0
    %7536 = vmatpush2.msra.mxu0 0.0
    %7537 = vmatprep.subr.mxu0 0.0
    %7538 = vmatpush2.msra.mxu0 0.0
    %7539 = vmatprep.subr.mxu0 0.0
    %7540 = vmatpush2.msra.mxu0 0.0
    %7541 = vmatprep.subr.mxu0 0.0
    %7542 = vmatpush2.msra.mxu0 0.0
    %7543 = vmatprep.subr.mxu0 0.0
    %7544 = vmatpush2.msra.mxu0 0.0
    %7545 = vmatprep.subr.mxu0 0.0
    %7546 = vmatpush2.msra.mxu0 0.0
    %7547 = vmatprep.subr.mxu0 0.0
    %7548 = vmatpush2.msra.mxu0 0.0
    %7549 = vmatprep.subr.mxu0 0.0
    %7550 = vmatpush2.msra.mxu0 0.0
    %7551 = vmatprep.subr.mxu0 0.0
    %7552 = vmatpush2.msra.mxu0 0.0
    %7553 = vmatprep.subr.mxu0 0.0
    %7554 = vmatpush2.msra.mxu0 0.0
    %7555 = vmatprep.subr.mxu0 0.0
    %7556 = vmatpush2.msra.mxu0 0.0
    %7557 = vmatprep.subr.mxu0 0.0
    %7558 = vmatpush2.msra.mxu0 0.0
    %7559 = vmatprep.subr.mxu0 0.0
    %7560 = vmatpush2.msra.mxu0 0.0
    %7561 = vmatprep.subr.mxu0 0.0
    %7562 = vmatpush2.msra.mxu0 0.0
    %7563 = vmatprep.subr.mxu0 0.0
    %7564 = vmatpush2.msra.mxu0 0.0
    %7565 = vmatprep.subr.mxu0 0.0
    %7566 = vmatpush2.msra.mxu0 0.0
    %7567 = vmatprep.mubr.f32.mxu0 0.0
    %v7568 = vand.u32 %v7500, 4294901760
    %v7569 = vsub.f32 %v7500, %v7568
    %v7570 = vand.u32 %v7569, 4294901760
    %v7571 = vsub.f32 %v7569, %v7570
    %v7572 = vand.u32 %v7571, 4294901760
    %7573 = vmatmul.mubr.f32.gmra.mxu0 %v7572
    %v7574 = vpop.f32.mrf.mxu0
    %v7575 = vadd.f32 0.0, %v7574
    %v7576 = vpop.f32.mrf.mxu0
    %7577 = vdwg.mxu0
    %7578 = vmatprep.subr.mxu0 0.0
    %7579 = vmatpush1.msra.mxu0 0.0
    %7580 = vmatprep.subr.mxu0 0.0
    %7581 = vmatpush1.msra.mxu0 0.0
    %7582 = vmatprep.subr.mxu0 0.0
    %7583 = vmatpush1.msra.mxu0 0.0
    %7584 = vmatprep.subr.mxu0 0.0
    %7585 = vmatpush1.msra.mxu0 0.0
    %7586 = vmatprep.subr.mxu0 0.0
    %7587 = vmatpush1.msra.mxu0 0.0
    %7588 = vmatprep.subr.mxu0 0.0
    %7589 = vmatpush1.msra.mxu0 0.0
    %7590 = vmatprep.subr.mxu0 0.0
    %7591 = vmatpush1.msra.mxu0 0.0
    %7592 = vmatprep.subr.mxu0 0.0
    %7593 = vmatpush1.msra.mxu0 0.0
    %7594 = vmatprep.subr.mxu0 0.0
    %7595 = vmatpush1.msra.mxu0 0.0
    %7596 = vmatprep.subr.mxu0 0.0
    %7597 = vmatpush1.msra.mxu0 0.0
    %7598 = vmatprep.subr.mxu0 0.0
    %7599 = vmatpush1.msra.mxu0 0.0
    %7600 = vmatprep.subr.mxu0 0.0
    %7601 = vmatpush1.msra.mxu0 0.0
    %7602 = vmatprep.subr.mxu0 0.0
    %7603 = vmatpush1.msra.mxu0 0.0
    %7604 = vmatprep.subr.mxu0 0.0
    %7605 = vmatpush1.msra.mxu0 0.0
    %7606 = vmatprep.subr.mxu0 0.0
    %7607 = vmatpush1.msra.mxu0 0.0
    %7608 = vmatprep.subr.mxu0 0.0
    %v7609 = vand.u32 %v7497, 4294901760
    %v7610 = vsub.f32 %v7497, %v7609
    %v7611 = vand.u32 %v7610, 4294901760
    %v7612 = vsub.f32 %v7610, %v7611
    %v7613 = vand.u32 %v7612, 4294901760
    %7614 = vmatpush1.msra.mxu0 %v7613
    %7615 = vmatprep.subr.mxu0 0.0
    %7616 = vmatpush2.msra.mxu0 0.0
    %7617 = vmatprep.subr.mxu0 0.0
    %7618 = vmatpush2.msra.mxu0 0.0
    %7619 = vmatprep.subr.mxu0 0.0
    %7620 = vmatpush2.msra.mxu0 0.0
    %7621 = vmatprep.subr.mxu0 0.0
    %7622 = vmatpush2.msra.mxu0 0.0
    %7623 = vmatprep.subr.mxu0 0.0
    %7624 = vmatpush2.msra.mxu0 0.0
    %7625 = vmatprep.subr.mxu0 0.0
    %7626 = vmatpush2.msra.mxu0 0.0
    %7627 = vmatprep.subr.mxu0 0.0
    %7628 = vmatpush2.msra.mxu0 0.0
    %7629 = vmatprep.subr.mxu0 0.0
    %7630 = vmatpush2.msra.mxu0 0.0
    %7631 = vmatprep.subr.mxu0 0.0
    %7632 = vmatpush2.msra.mxu0 0.0
    %7633 = vmatprep.subr.mxu0 0.0
    %7634 = vmatpush2.msra.mxu0 0.0
    %7635 = vmatprep.subr.mxu0 0.0
    %7636 = vmatpush2.msra.mxu0 0.0
    %7637 = vmatprep.subr.mxu0 0.0
    %7638 = vmatpush2.msra.mxu0 0.0
    %7639 = vmatprep.subr.mxu0 0.0
    %7640 = vmatpush2.msra.mxu0 0.0
    %7641 = vmatprep.subr.mxu0 0.0
    %7642 = vmatpush2.msra.mxu0 0.0
    %7643 = vmatprep.subr.mxu0 0.0
    %7644 = vmatpush2.msra.mxu0 0.0
    %7645 = vmatprep.subr.mxu0 0.0
    %7646 = vmatpush2.msra.mxu0 0.0
    %7647 = vmatprep.mubr.f32.mxu0 0.0
    %v7648 = vand.u32 %v7500, 4294901760
    %7649 = vmatmul.mubr.f32.gmra.mxu0 %v7648
    %v7650 = vpop.f32.mrf.mxu0
    %v7651 = vadd.f32 %v7575, %v7650
    %v7652 = vpop.f32.mrf.mxu0
    %7653 = vdwg.mxu0
    %7654 = vmatprep.subr.mxu0 0.0
    %7655 = vmatpush1.msra.mxu0 0.0
    %7656 = vmatprep.subr.mxu0 0.0
    %7657 = vmatpush1.msra.mxu0 0.0
    %7658 = vmatprep.subr.mxu0 0.0
    %7659 = vmatpush1.msra.mxu0 0.0
    %7660 = vmatprep.subr.mxu0 0.0
    %7661 = vmatpush1.msra.mxu0 0.0
    %7662 = vmatprep.subr.mxu0 0.0
    %7663 = vmatpush1.msra.mxu0 0.0
    %7664 = vmatprep.subr.mxu0 0.0
    %7665 = vmatpush1.msra.mxu0 0.0
    %7666 = vmatprep.subr.mxu0 0.0
    %7667 = vmatpush1.msra.mxu0 0.0
    %7668 = vmatprep.subr.mxu0 0.0
    %7669 = vmatpush1.msra.mxu0 0.0
    %7670 = vmatprep.subr.mxu0 0.0
    %7671 = vmatpush1.msra.mxu0 0.0
    %7672 = vmatprep.subr.mxu0 0.0
    %7673 = vmatpush1.msra.mxu0 0.0
    %7674 = vmatprep.subr.mxu0 0.0
    %7675 = vmatpush1.msra.mxu0 0.0
    %7676 = vmatprep.subr.mxu0 0.0
    %7677 = vmatpush1.msra.mxu0 0.0
    %7678 = vmatprep.subr.mxu0 0.0
    %7679 = vmatpush1.msra.mxu0 0.0
    %7680 = vmatprep.subr.mxu0 0.0
    %7681 = vmatpush1.msra.mxu0 0.0
    %7682 = vmatprep.subr.mxu0 0.0
    %7683 = vmatpush1.msra.mxu0 0.0
    %7684 = vmatprep.subr.mxu0 0.0
    %v7685 = vand.u32 %v7497, 4294901760
    %v7686 = vsub.f32 %v7497, %v7685
    %7687 = vmatpush1.msra.mxu0 %v7686
    %7688 = vmatprep.subr.mxu0 0.0
    %7689 = vmatpush2.msra.mxu0 0.0
    %7690 = vmatprep.subr.mxu0 0.0
    %7691 = vmatpush2.msra.mxu0 0.0
    %7692 = vmatprep.subr.mxu0 0.0
    %7693 = vmatpush2.msra.mxu0 0.0
    %7694 = vmatprep.subr.mxu0 0.0
    %7695 = vmatpush2.msra.mxu0 0.0
    %7696 = vmatprep.subr.mxu0 0.0
    %7697 = vmatpush2.msra.mxu0 0.0
    %7698 = vmatprep.subr.mxu0 0.0
    %7699 = vmatpush2.msra.mxu0 0.0
    %7700 = vmatprep.subr.mxu0 0.0
    %7701 = vmatpush2.msra.mxu0 0.0
    %7702 = vmatprep.subr.mxu0 0.0
    %7703 = vmatpush2.msra.mxu0 0.0
    %7704 = vmatprep.subr.mxu0 0.0
    %7705 = vmatpush2.msra.mxu0 0.0
    %7706 = vmatprep.subr.mxu0 0.0
    %7707 = vmatpush2.msra.mxu0 0.0
    %7708 = vmatprep.subr.mxu0 0.0
    %7709 = vmatpush2.msra.mxu0 0.0
    %7710 = vmatprep.subr.mxu0 0.0
    %7711 = vmatpush2.msra.mxu0 0.0
    %7712 = vmatprep.subr.mxu0 0.0
    %7713 = vmatpush2.msra.mxu0 0.0
    %7714 = vmatprep.subr.mxu0 0.0
    %7715 = vmatpush2.msra.mxu0 0.0
    %7716 = vmatprep.subr.mxu0 0.0
    %7717 = vmatpush2.msra.mxu0 0.0
    %7718 = vmatprep.subr.mxu0 0.0
    %7719 = vmatpush2.msra.mxu0 0.0
    %7720 = vmatprep.mubr.f32.mxu0 0.0
    %v7721 = vand.u32 %v7500, 4294901760
    %v7722 = vsub.f32 %v7500, %v7721
    %7723 = vmatmul.mubr.f32.gmra.mxu0 %v7722
    %v7724 = vpop.f32.mrf.mxu0
    %v7725 = vadd.f32 %v7651, %v7724
    %v7726 = vpop.f32.mrf.mxu0
    %7727 = vdwg.mxu0
    %7728 = vmatprep.subr.mxu0 0.0
    %7729 = vmatpush1.msra.mxu0 0.0
    %7730 = vmatprep.subr.mxu0 0.0
    %7731 = vmatpush1.msra.mxu0 0.0
    %7732 = vmatprep.subr.mxu0 0.0
    %7733 = vmatpush1.msra.mxu0 0.0
    %7734 = vmatprep.subr.mxu0 0.0
    %7735 = vmatpush1.msra.mxu0 0.0
    %7736 = vmatprep.subr.mxu0 0.0
    %7737 = vmatpush1.msra.mxu0 0.0
    %7738 = vmatprep.subr.mxu0 0.0
    %7739 = vmatpush1.msra.mxu0 0.0
    %7740 = vmatprep.subr.mxu0 0.0
    %7741 = vmatpush1.msra.mxu0 0.0
    %7742 = vmatprep.subr.mxu0 0.0
    %7743 = vmatpush1.msra.mxu0 0.0
    %7744 = vmatprep.subr.mxu0 0.0
    %7745 = vmatpush1.msra.mxu0 0.0
    %7746 = vmatprep.subr.mxu0 0.0
    %7747 = vmatpush1.msra.mxu0 0.0
    %7748 = vmatprep.subr.mxu0 0.0
    %7749 = vmatpush1.msra.mxu0 0.0
    %7750 = vmatprep.subr.mxu0 0.0
    %7751 = vmatpush1.msra.mxu0 0.0
    %7752 = vmatprep.subr.mxu0 0.0
    %7753 = vmatpush1.msra.mxu0 0.0
    %7754 = vmatprep.subr.mxu0 0.0
    %7755 = vmatpush1.msra.mxu0 0.0
    %7756 = vmatprep.subr.mxu0 0.0
    %7757 = vmatpush1.msra.mxu0 0.0
    %7758 = vmatprep.subr.mxu0 0.0
    %v7759 = vand.u32 %v7497, 4294901760
    %7760 = vmatpush1.msra.mxu0 %v7759
    %7761 = vmatprep.subr.mxu0 0.0
    %7762 = vmatpush2.msra.mxu0 0.0
    %7763 = vmatprep.subr.mxu0 0.0
    %7764 = vmatpush2.msra.mxu0 0.0
    %7765 = vmatprep.subr.mxu0 0.0
    %7766 = vmatpush2.msra.mxu0 0.0
    %7767 = vmatprep.subr.mxu0 0.0
    %7768 = vmatpush2.msra.mxu0 0.0
    %7769 = vmatprep.subr.mxu0 0.0
    %7770 = vmatpush2.msra.mxu0 0.0
    %7771 = vmatprep.subr.mxu0 0.0
    %7772 = vmatpush2.msra.mxu0 0.0
    %7773 = vmatprep.subr.mxu0 0.0
    %7774 = vmatpush2.msra.mxu0 0.0
    %7775 = vmatprep.subr.mxu0 0.0
    %7776 = vmatpush2.msra.mxu0 0.0
    %7777 = vmatprep.subr.mxu0 0.0
    %7778 = vmatpush2.msra.mxu0 0.0
    %7779 = vmatprep.subr.mxu0 0.0
    %7780 = vmatpush2.msra.mxu0 0.0
    %7781 = vmatprep.subr.mxu0 0.0
    %7782 = vmatpush2.msra.mxu0 0.0
    %7783 = vmatprep.subr.mxu0 0.0
    %7784 = vmatpush2.msra.mxu0 0.0
    %7785 = vmatprep.subr.mxu0 0.0
    %7786 = vmatpush2.msra.mxu0 0.0
    %7787 = vmatprep.subr.mxu0 0.0
    %7788 = vmatpush2.msra.mxu0 0.0
    %7789 = vmatprep.subr.mxu0 0.0
    %7790 = vmatpush2.msra.mxu0 0.0
    %7791 = vmatprep.subr.mxu0 0.0
    %7792 = vmatpush2.msra.mxu0 0.0
    %7793 = vmatprep.mubr.f32.mxu0 0.0
    %v7794 = vand.u32 %v7500, 4294901760
    %v7795 = vsub.f32 %v7500, %v7794
    %v7796 = vand.u32 %v7795, 4294901760
    %7797 = vmatmul.mubr.f32.gmra.mxu0 %v7796
    %v7798 = vpop.f32.mrf.mxu0
    %v7799 = vadd.f32 %v7725, %v7798
    %v7800 = vpop.f32.mrf.mxu0
    %7801 = vdwg.mxu0
    %7802 = vmatprep.subr.mxu0 0.0
    %7803 = vmatpush1.msra.mxu0 0.0
    %7804 = vmatprep.subr.mxu0 0.0
    %7805 = vmatpush1.msra.mxu0 0.0
    %7806 = vmatprep.subr.mxu0 0.0
    %7807 = vmatpush1.msra.mxu0 0.0
    %7808 = vmatprep.subr.mxu0 0.0
    %7809 = vmatpush1.msra.mxu0 0.0
    %7810 = vmatprep.subr.mxu0 0.0
    %7811 = vmatpush1.msra.mxu0 0.0
    %7812 = vmatprep.subr.mxu0 0.0
    %7813 = vmatpush1.msra.mxu0 0.0
    %7814 = vmatprep.subr.mxu0 0.0
    %7815 = vmatpush1.msra.mxu0 0.0
    %7816 = vmatprep.subr.mxu0 0.0
    %7817 = vmatpush1.msra.mxu0 0.0
    %7818 = vmatprep.subr.mxu0 0.0
    %7819 = vmatpush1.msra.mxu0 0.0
    %7820 = vmatprep.subr.mxu0 0.0
    %7821 = vmatpush1.msra.mxu0 0.0
    %7822 = vmatprep.subr.mxu0 0.0
    %7823 = vmatpush1.msra.mxu0 0.0
    %7824 = vmatprep.subr.mxu0 0.0
    %7825 = vmatpush1.msra.mxu0 0.0
    %7826 = vmatprep.subr.mxu0 0.0
    %7827 = vmatpush1.msra.mxu0 0.0
    %7828 = vmatprep.subr.mxu0 0.0
    %7829 = vmatpush1.msra.mxu0 0.0
    %7830 = vmatprep.subr.mxu0 0.0
    %7831 = vmatpush1.msra.mxu0 0.0
    %7832 = vmatprep.subr.mxu0 0.0
    %v7833 = vand.u32 %v7497, 4294901760
    %v7834 = vsub.f32 %v7497, %v7833
    %v7835 = vand.u32 %v7834, 4294901760
    %7836 = vmatpush1.msra.mxu0 %v7835
    %7837 = vmatprep.subr.mxu0 0.0
    %7838 = vmatpush2.msra.mxu0 0.0
    %7839 = vmatprep.subr.mxu0 0.0
    %7840 = vmatpush2.msra.mxu0 0.0
    %7841 = vmatprep.subr.mxu0 0.0
    %7842 = vmatpush2.msra.mxu0 0.0
    %7843 = vmatprep.subr.mxu0 0.0
    %7844 = vmatpush2.msra.mxu0 0.0
    %7845 = vmatprep.subr.mxu0 0.0
    %7846 = vmatpush2.msra.mxu0 0.0
    %7847 = vmatprep.subr.mxu0 0.0
    %7848 = vmatpush2.msra.mxu0 0.0
    %7849 = vmatprep.subr.mxu0 0.0
    %7850 = vmatpush2.msra.mxu0 0.0
    %7851 = vmatprep.subr.mxu0 0.0
    %7852 = vmatpush2.msra.mxu0 0.0
    %7853 = vmatprep.subr.mxu0 0.0
    %7854 = vmatpush2.msra.mxu0 0.0
    %7855 = vmatprep.subr.mxu0 0.0
    %7856 = vmatpush2.msra.mxu0 0.0
    %7857 = vmatprep.subr.mxu0 0.0
    %7858 = vmatpush2.msra.mxu0 0.0
    %7859 = vmatprep.subr.mxu0 0.0
    %7860 = vmatpush2.msra.mxu0 0.0
    %7861 = vmatprep.subr.mxu0 0.0
    %7862 = vmatpush2.msra.mxu0 0.0
    %7863 = vmatprep.subr.mxu0 0.0
    %7864 = vmatpush2.msra.mxu0 0.0
    %7865 = vmatprep.subr.mxu0 0.0
    %7866 = vmatpush2.msra.mxu0 0.0
    %7867 = vmatprep.subr.mxu0 0.0
    %7868 = vmatpush2.msra.mxu0 0.0
    %7869 = vmatprep.mubr.f32.mxu0 0.0
    %v7870 = vand.u32 %v7500, 4294901760
    %7871 = vmatmul.mubr.f32.gmra.mxu0 %v7870
    %v7872 = vpop.f32.mrf.mxu0
    %v7873 = vadd.f32 %v7799, %v7872
    %v7874 = vpop.f32.mrf.mxu0
    %7875 = vdwg.mxu0
    %7876 = vmatprep.subr.mxu0 0.0
    %7877 = vmatpush1.msra.mxu0 0.0
    %7878 = vmatprep.subr.mxu0 0.0
    %7879 = vmatpush1.msra.mxu0 0.0
    %7880 = vmatprep.subr.mxu0 0.0
    %7881 = vmatpush1.msra.mxu0 0.0
    %7882 = vmatprep.subr.mxu0 0.0
    %7883 = vmatpush1.msra.mxu0 0.0
    %7884 = vmatprep.subr.mxu0 0.0
    %7885 = vmatpush1.msra.mxu0 0.0
    %7886 = vmatprep.subr.mxu0 0.0
    %7887 = vmatpush1.msra.mxu0 0.0
    %7888 = vmatprep.subr.mxu0 0.0
    %7889 = vmatpush1.msra.mxu0 0.0
    %7890 = vmatprep.subr.mxu0 0.0
    %7891 = vmatpush1.msra.mxu0 0.0
    %7892 = vmatprep.subr.mxu0 0.0
    %7893 = vmatpush1.msra.mxu0 0.0
    %7894 = vmatprep.subr.mxu0 0.0
    %7895 = vmatpush1.msra.mxu0 0.0
    %7896 = vmatprep.subr.mxu0 0.0
    %7897 = vmatpush1.msra.mxu0 0.0
    %7898 = vmatprep.subr.mxu0 0.0
    %7899 = vmatpush1.msra.mxu0 0.0
    %7900 = vmatprep.subr.mxu0 0.0
    %7901 = vmatpush1.msra.mxu0 0.0
    %7902 = vmatprep.subr.mxu0 0.0
    %7903 = vmatpush1.msra.mxu0 0.0
    %7904 = vmatprep.subr.mxu0 0.0
    %7905 = vmatpush1.msra.mxu0 0.0
    %7906 = vmatprep.subr.mxu0 0.0
    %v7907 = vand.u32 %v7497, 4294901760
    %7908 = vmatpush1.msra.mxu0 %v7907
    %7909 = vmatprep.subr.mxu0 0.0
    %7910 = vmatpush2.msra.mxu0 0.0
    %7911 = vmatprep.subr.mxu0 0.0
    %7912 = vmatpush2.msra.mxu0 0.0
    %7913 = vmatprep.subr.mxu0 0.0
    %7914 = vmatpush2.msra.mxu0 0.0
    %7915 = vmatprep.subr.mxu0 0.0
    %7916 = vmatpush2.msra.mxu0 0.0
    %7917 = vmatprep.subr.mxu0 0.0
    %7918 = vmatpush2.msra.mxu0 0.0
    %7919 = vmatprep.subr.mxu0 0.0
    %7920 = vmatpush2.msra.mxu0 0.0
    %7921 = vmatprep.subr.mxu0 0.0
    %7922 = vmatpush2.msra.mxu0 0.0
    %7923 = vmatprep.subr.mxu0 0.0
    %7924 = vmatpush2.msra.mxu0 0.0
    %7925 = vmatprep.subr.mxu0 0.0
    %7926 = vmatpush2.msra.mxu0 0.0
    %7927 = vmatprep.subr.mxu0 0.0
    %7928 = vmatpush2.msra.mxu0 0.0
    %7929 = vmatprep.subr.mxu0 0.0
    %7930 = vmatpush2.msra.mxu0 0.0
    %7931 = vmatprep.subr.mxu0 0.0
    %7932 = vmatpush2.msra.mxu0 0.0
    %7933 = vmatprep.subr.mxu0 0.0
    %7934 = vmatpush2.msra.mxu0 0.0
    %7935 = vmatprep.subr.mxu0 0.0
    %7936 = vmatpush2.msra.mxu0 0.0
    %7937 = vmatprep.subr.mxu0 0.0
    %7938 = vmatpush2.msra.mxu0 0.0
    %7939 = vmatprep.subr.mxu0 0.0
    %7940 = vmatpush2.msra.mxu0 0.0
    %7941 = vmatprep.mubr.f32.mxu0 0.0
    %v7942 = vand.u32 %v7500, 4294901760
    %7943 = vmatmul.mubr.f32.gmra.mxu0 %v7942
    %v7944 = vpop.f32.mrf.mxu0
    %v7945 = vadd.f32 %v7873, %v7944
    %v7946 = vpop.f32.mrf.mxu0
    %7947 = vdwg.mxu0
    %v7948 = vld [vmem:[#allocation7] sm:$0xff]
    %v7949 = vld [vmem:[#allocation7 + $0x8] sm:$0xff]
    %v7951 = vsel %vm629, %v5685, 0
    %v7954 = vsel %vm629, %v6137, 0
    %7956 = vmatprep.subr.mxu0 0.0
    %7957 = vmatpush1.msra.mxu0 0.0
    %7958 = vmatprep.subr.mxu0 0.0
    %7959 = vmatpush1.msra.mxu0 0.0
    %7960 = vmatprep.subr.mxu0 0.0
    %7961 = vmatpush1.msra.mxu0 0.0
    %7962 = vmatprep.subr.mxu0 0.0
    %7963 = vmatpush1.msra.mxu0 0.0
    %7964 = vmatprep.subr.mxu0 0.0
    %7965 = vmatpush1.msra.mxu0 0.0
    %7966 = vmatprep.subr.mxu0 0.0
    %7967 = vmatpush1.msra.mxu0 0.0
    %7968 = vmatprep.subr.mxu0 0.0
    %7969 = vmatpush1.msra.mxu0 0.0
    %7970 = vmatprep.subr.mxu0 0.0
    %7971 = vmatpush1.msra.mxu0 0.0
    %7972 = vmatprep.subr.mxu0 0.0
    %7973 = vmatpush1.msra.mxu0 0.0
    %7974 = vmatprep.subr.mxu0 0.0
    %7975 = vmatpush1.msra.mxu0 0.0
    %7976 = vmatprep.subr.mxu0 0.0
    %7977 = vmatpush1.msra.mxu0 0.0
    %7978 = vmatprep.subr.mxu0 0.0
    %7979 = vmatpush1.msra.mxu0 0.0
    %7980 = vmatprep.subr.mxu0 0.0
    %7981 = vmatpush1.msra.mxu0 0.0
    %7982 = vmatprep.subr.mxu0 0.0
    %7983 = vmatpush1.msra.mxu0 0.0
    %7984 = vmatprep.subr.mxu0 0.0
    %7985 = vmatpush1.msra.mxu0 0.0
    %7986 = vmatprep.subr.mxu0 0.0
    %v7987 = vand.u32 %v7949, 4294901760
    %7988 = vmatpush1.msra.mxu0 %v7987
    %7989 = vmatprep.subr.mxu0 0.0
    %7990 = vmatpush2.msra.mxu0 0.0
    %7991 = vmatprep.subr.mxu0 0.0
    %7992 = vmatpush2.msra.mxu0 0.0
    %7993 = vmatprep.subr.mxu0 0.0
    %7994 = vmatpush2.msra.mxu0 0.0
    %7995 = vmatprep.subr.mxu0 0.0
    %7996 = vmatpush2.msra.mxu0 0.0
    %7997 = vmatprep.subr.mxu0 0.0
    %7998 = vmatpush2.msra.mxu0 0.0
    %7999 = vmatprep.subr.mxu0 0.0
    %8000 = vmatpush2.msra.mxu0 0.0
    %8001 = vmatprep.subr.mxu0 0.0
    %8002 = vmatpush2.msra.mxu0 0.0
    %8003 = vmatprep.subr.mxu0 0.0
    %8004 = vmatpush2.msra.mxu0 0.0
    %8005 = vmatprep.subr.mxu0 0.0
    %8006 = vmatpush2.msra.mxu0 0.0
    %8007 = vmatprep.subr.mxu0 0.0
    %8008 = vmatpush2.msra.mxu0 0.0
    %8009 = vmatprep.subr.mxu0 0.0
    %8010 = vmatpush2.msra.mxu0 0.0
    %8011 = vmatprep.subr.mxu0 0.0
    %8012 = vmatpush2.msra.mxu0 0.0
    %8013 = vmatprep.subr.mxu0 0.0
    %8014 = vmatpush2.msra.mxu0 0.0
    %8015 = vmatprep.subr.mxu0 0.0
    %8016 = vmatpush2.msra.mxu0 0.0
    %8017 = vmatprep.subr.mxu0 0.0
    %8018 = vmatpush2.msra.mxu0 0.0
    %8019 = vmatprep.subr.mxu0 0.0
    %8020 = vmatpush2.msra.mxu0 0.0
    %8021 = vmatprep.mubr.f32.mxu0 0.0
    %v8022 = vand.u32 %v7951, 4294901760
    %v8023 = vsub.f32 %v7951, %v8022
    %v8024 = vand.u32 %v8023, 4294901760
    %v8025 = vsub.f32 %v8023, %v8024
    %v8026 = vand.u32 %v8025, 4294901760
    %8027 = vmatmul.mubr.f32.gmra.mxu0 %v8026
    %v8028 = vpop.f32.mrf.mxu0
    %v8029 = vadd.f32 0.0, %v8028
    %v8030 = vpop.f32.mrf.mxu0
    %8031 = vmatprep.mubr.f32.mxu0 0.0
    %v8032 = vand.u32 %v7954, 4294901760
    %v8033 = vsub.f32 %v7954, %v8032
    %v8034 = vand.u32 %v8033, 4294901760
    %v8035 = vsub.f32 %v8033, %v8034
    %v8036 = vand.u32 %v8035, 4294901760
    %8037 = vmatmul.mubr.f32.gmra.mxu0 %v8036
    %v8038 = vpop.f32.mrf.mxu0
    %v8039 = vadd.f32 0.0, %v8038
    %v8040 = vpop.f32.mrf.mxu0
    %8041 = vdwg.mxu0
    %8042 = vmatprep.subr.mxu0 0.0
    %8043 = vmatpush1.msra.mxu0 0.0
    %8044 = vmatprep.subr.mxu0 0.0
    %8045 = vmatpush1.msra.mxu0 0.0
    %8046 = vmatprep.subr.mxu0 0.0
    %8047 = vmatpush1.msra.mxu0 0.0
    %8048 = vmatprep.subr.mxu0 0.0
    %8049 = vmatpush1.msra.mxu0 0.0
    %8050 = vmatprep.subr.mxu0 0.0
    %8051 = vmatpush1.msra.mxu0 0.0
    %8052 = vmatprep.subr.mxu0 0.0
    %8053 = vmatpush1.msra.mxu0 0.0
    %8054 = vmatprep.subr.mxu0 0.0
    %8055 = vmatpush1.msra.mxu0 0.0
    %8056 = vmatprep.subr.mxu0 0.0
    %8057 = vmatpush1.msra.mxu0 0.0
    %8058 = vmatprep.subr.mxu0 0.0
    %8059 = vmatpush1.msra.mxu0 0.0
    %8060 = vmatprep.subr.mxu0 0.0
    %8061 = vmatpush1.msra.mxu0 0.0
    %8062 = vmatprep.subr.mxu0 0.0
    %8063 = vmatpush1.msra.mxu0 0.0
    %8064 = vmatprep.subr.mxu0 0.0
    %8065 = vmatpush1.msra.mxu0 0.0
    %8066 = vmatprep.subr.mxu0 0.0
    %8067 = vmatpush1.msra.mxu0 0.0
    %8068 = vmatprep.subr.mxu0 0.0
    %8069 = vmatpush1.msra.mxu0 0.0
    %8070 = vmatprep.subr.mxu0 0.0
    %8071 = vmatpush1.msra.mxu0 0.0
    %8072 = vmatprep.subr.mxu0 0.0
    %v8073 = vand.u32 %v7949, 4294901760
    %v8074 = vsub.f32 %v7949, %v8073
    %v8075 = vand.u32 %v8074, 4294901760
    %v8076 = vsub.f32 %v8074, %v8075
    %v8077 = vand.u32 %v8076, 4294901760
    %8078 = vmatpush1.msra.mxu0 %v8077
    %8079 = vmatprep.subr.mxu0 0.0
    %8080 = vmatpush2.msra.mxu0 0.0
    %8081 = vmatprep.subr.mxu0 0.0
    %8082 = vmatpush2.msra.mxu0 0.0
    %8083 = vmatprep.subr.mxu0 0.0
    %8084 = vmatpush2.msra.mxu0 0.0
    %8085 = vmatprep.subr.mxu0 0.0
    %8086 = vmatpush2.msra.mxu0 0.0
    %8087 = vmatprep.subr.mxu0 0.0
    %8088 = vmatpush2.msra.mxu0 0.0
    %8089 = vmatprep.subr.mxu0 0.0
    %8090 = vmatpush2.msra.mxu0 0.0
    %8091 = vmatprep.subr.mxu0 0.0
    %8092 = vmatpush2.msra.mxu0 0.0
    %8093 = vmatprep.subr.mxu0 0.0
    %8094 = vmatpush2.msra.mxu0 0.0
    %8095 = vmatprep.subr.mxu0 0.0
    %8096 = vmatpush2.msra.mxu0 0.0
    %8097 = vmatprep.subr.mxu0 0.0
    %8098 = vmatpush2.msra.mxu0 0.0
    %8099 = vmatprep.subr.mxu0 0.0
    %8100 = vmatpush2.msra.mxu0 0.0
    %8101 = vmatprep.subr.mxu0 0.0
    %8102 = vmatpush2.msra.mxu0 0.0
    %8103 = vmatprep.subr.mxu0 0.0
    %8104 = vmatpush2.msra.mxu0 0.0
    %8105 = vmatprep.subr.mxu0 0.0
    %8106 = vmatpush2.msra.mxu0 0.0
    %8107 = vmatprep.subr.mxu0 0.0
    %8108 = vmatpush2.msra.mxu0 0.0
    %8109 = vmatprep.subr.mxu0 0.0
    %8110 = vmatpush2.msra.mxu0 0.0
    %8111 = vmatprep.mubr.f32.mxu0 0.0
    %v8112 = vand.u32 %v7951, 4294901760
    %8113 = vmatmul.mubr.f32.gmra.mxu0 %v8112
    %v8114 = vpop.f32.mrf.mxu0
    %v8115 = vadd.f32 %v8029, %v8114
    %v8116 = vpop.f32.mrf.mxu0
    %8117 = vmatprep.mubr.f32.mxu0 0.0
    %v8118 = vand.u32 %v7954, 4294901760
    %8119 = vmatmul.mubr.f32.gmra.mxu0 %v8118
    %v8120 = vpop.f32.mrf.mxu0
    %v8121 = vadd.f32 %v8039, %v8120
    %v8122 = vpop.f32.mrf.mxu0
    %8123 = vdwg.mxu0
    %8124 = vmatprep.subr.mxu0 0.0
    %8125 = vmatpush1.msra.mxu0 0.0
    %8126 = vmatprep.subr.mxu0 0.0
    %8127 = vmatpush1.msra.mxu0 0.0
    %8128 = vmatprep.subr.mxu0 0.0
    %8129 = vmatpush1.msra.mxu0 0.0
    %8130 = vmatprep.subr.mxu0 0.0
    %8131 = vmatpush1.msra.mxu0 0.0
    %8132 = vmatprep.subr.mxu0 0.0
    %8133 = vmatpush1.msra.mxu0 0.0
    %8134 = vmatprep.subr.mxu0 0.0
    %8135 = vmatpush1.msra.mxu0 0.0
    %8136 = vmatprep.subr.mxu0 0.0
    %8137 = vmatpush1.msra.mxu0 0.0
    %8138 = vmatprep.subr.mxu0 0.0
    %8139 = vmatpush1.msra.mxu0 0.0
    %8140 = vmatprep.subr.mxu0 0.0
    %8141 = vmatpush1.msra.mxu0 0.0
    %8142 = vmatprep.subr.mxu0 0.0
    %8143 = vmatpush1.msra.mxu0 0.0
    %8144 = vmatprep.subr.mxu0 0.0
    %8145 = vmatpush1.msra.mxu0 0.0
    %8146 = vmatprep.subr.mxu0 0.0
    %8147 = vmatpush1.msra.mxu0 0.0
    %8148 = vmatprep.subr.mxu0 0.0
    %8149 = vmatpush1.msra.mxu0 0.0
    %8150 = vmatprep.subr.mxu0 0.0
    %8151 = vmatpush1.msra.mxu0 0.0
    %8152 = vmatprep.subr.mxu0 0.0
    %8153 = vmatpush1.msra.mxu0 0.0
    %8154 = vmatprep.subr.mxu0 0.0
    %v8155 = vand.u32 %v7949, 4294901760
    %v8156 = vsub.f32 %v7949, %v8155
    %8157 = vmatpush1.msra.mxu0 %v8156
    %8158 = vmatprep.subr.mxu0 0.0
    %8159 = vmatpush2.msra.mxu0 0.0
    %8160 = vmatprep.subr.mxu0 0.0
    %8161 = vmatpush2.msra.mxu0 0.0
    %8162 = vmatprep.subr.mxu0 0.0
    %8163 = vmatpush2.msra.mxu0 0.0
    %8164 = vmatprep.subr.mxu0 0.0
    %8165 = vmatpush2.msra.mxu0 0.0
    %8166 = vmatprep.subr.mxu0 0.0
    %8167 = vmatpush2.msra.mxu0 0.0
    %8168 = vmatprep.subr.mxu0 0.0
    %8169 = vmatpush2.msra.mxu0 0.0
    %8170 = vmatprep.subr.mxu0 0.0
    %8171 = vmatpush2.msra.mxu0 0.0
    %8172 = vmatprep.subr.mxu0 0.0
    %8173 = vmatpush2.msra.mxu0 0.0
    %8174 = vmatprep.subr.mxu0 0.0
    %8175 = vmatpush2.msra.mxu0 0.0
    %8176 = vmatprep.subr.mxu0 0.0
    %8177 = vmatpush2.msra.mxu0 0.0
    %8178 = vmatprep.subr.mxu0 0.0
    %8179 = vmatpush2.msra.mxu0 0.0
    %8180 = vmatprep.subr.mxu0 0.0
    %8181 = vmatpush2.msra.mxu0 0.0
    %8182 = vmatprep.subr.mxu0 0.0
    %8183 = vmatpush2.msra.mxu0 0.0
    %8184 = vmatprep.subr.mxu0 0.0
    %8185 = vmatpush2.msra.mxu0 0.0
    %8186 = vmatprep.subr.mxu0 0.0
    %8187 = vmatpush2.msra.mxu0 0.0
    %8188 = vmatprep.subr.mxu0 0.0
    %8189 = vmatpush2.msra.mxu0 0.0
    %8190 = vmatprep.mubr.f32.mxu0 0.0
    %v8191 = vand.u32 %v7951, 4294901760
    %v8192 = vsub.f32 %v7951, %v8191
    %8193 = vmatmul.mubr.f32.gmra.mxu0 %v8192
    %v8194 = vpop.f32.mrf.mxu0
    %v8195 = vadd.f32 %v8115, %v8194
    %v8196 = vpop.f32.mrf.mxu0
    %8197 = vmatprep.mubr.f32.mxu0 0.0
    %v8198 = vand.u32 %v7954, 4294901760
    %v8199 = vsub.f32 %v7954, %v8198
    %8200 = vmatmul.mubr.f32.gmra.mxu0 %v8199
    %v8201 = vpop.f32.mrf.mxu0
    %v8202 = vadd.f32 %v8121, %v8201
    %v8203 = vpop.f32.mrf.mxu0
    %8204 = vdwg.mxu0
    %8205 = vmatprep.subr.mxu0 0.0
    %8206 = vmatpush1.msra.mxu0 0.0
    %8207 = vmatprep.subr.mxu0 0.0
    %8208 = vmatpush1.msra.mxu0 0.0
    %8209 = vmatprep.subr.mxu0 0.0
    %8210 = vmatpush1.msra.mxu0 0.0
    %8211 = vmatprep.subr.mxu0 0.0
    %8212 = vmatpush1.msra.mxu0 0.0
    %8213 = vmatprep.subr.mxu0 0.0
    %8214 = vmatpush1.msra.mxu0 0.0
    %8215 = vmatprep.subr.mxu0 0.0
    %8216 = vmatpush1.msra.mxu0 0.0
    %8217 = vmatprep.subr.mxu0 0.0
    %8218 = vmatpush1.msra.mxu0 0.0
    %8219 = vmatprep.subr.mxu0 0.0
    %8220 = vmatpush1.msra.mxu0 0.0
    %8221 = vmatprep.subr.mxu0 0.0
    %8222 = vmatpush1.msra.mxu0 0.0
    %8223 = vmatprep.subr.mxu0 0.0
    %8224 = vmatpush1.msra.mxu0 0.0
    %8225 = vmatprep.subr.mxu0 0.0
    %8226 = vmatpush1.msra.mxu0 0.0
    %8227 = vmatprep.subr.mxu0 0.0
    %8228 = vmatpush1.msra.mxu0 0.0
    %8229 = vmatprep.subr.mxu0 0.0
    %8230 = vmatpush1.msra.mxu0 0.0
    %8231 = vmatprep.subr.mxu0 0.0
    %8232 = vmatpush1.msra.mxu0 0.0
    %8233 = vmatprep.subr.mxu0 0.0
    %8234 = vmatpush1.msra.mxu0 0.0
    %8235 = vmatprep.subr.mxu0 0.0
    %v8236 = vand.u32 %v7949, 4294901760
    %8237 = vmatpush1.msra.mxu0 %v8236
    %8238 = vmatprep.subr.mxu0 0.0
    %8239 = vmatpush2.msra.mxu0 0.0
    %8240 = vmatprep.subr.mxu0 0.0
    %8241 = vmatpush2.msra.mxu0 0.0
    %8242 = vmatprep.subr.mxu0 0.0
    %8243 = vmatpush2.msra.mxu0 0.0
    %8244 = vmatprep.subr.mxu0 0.0
    %8245 = vmatpush2.msra.mxu0 0.0
    %8246 = vmatprep.subr.mxu0 0.0
    %8247 = vmatpush2.msra.mxu0 0.0
    %8248 = vmatprep.subr.mxu0 0.0
    %8249 = vmatpush2.msra.mxu0 0.0
    %8250 = vmatprep.subr.mxu0 0.0
    %8251 = vmatpush2.msra.mxu0 0.0
    %8252 = vmatprep.subr.mxu0 0.0
    %8253 = vmatpush2.msra.mxu0 0.0
    %8254 = vmatprep.subr.mxu0 0.0
    %8255 = vmatpush2.msra.mxu0 0.0
    %8256 = vmatprep.subr.mxu0 0.0
    %8257 = vmatpush2.msra.mxu0 0.0
    %8258 = vmatprep.subr.mxu0 0.0
    %8259 = vmatpush2.msra.mxu0 0.0
    %8260 = vmatprep.subr.mxu0 0.0
    %8261 = vmatpush2.msra.mxu0 0.0
    %8262 = vmatprep.subr.mxu0 0.0
    %8263 = vmatpush2.msra.mxu0 0.0
    %8264 = vmatprep.subr.mxu0 0.0
    %8265 = vmatpush2.msra.mxu0 0.0
    %8266 = vmatprep.subr.mxu0 0.0
    %8267 = vmatpush2.msra.mxu0 0.0
    %8268 = vmatprep.subr.mxu0 0.0
    %8269 = vmatpush2.msra.mxu0 0.0
    %8270 = vmatprep.mubr.f32.mxu0 0.0
    %v8271 = vand.u32 %v7951, 4294901760
    %v8272 = vsub.f32 %v7951, %v8271
    %v8273 = vand.u32 %v8272, 4294901760
    %8274 = vmatmul.mubr.f32.gmra.mxu0 %v8273
    %v8275 = vpop.f32.mrf.mxu0
    %v8276 = vadd.f32 %v8195, %v8275
    %v8277 = vpop.f32.mrf.mxu0
    %8278 = vmatprep.mubr.f32.mxu0 0.0
    %v8279 = vand.u32 %v7954, 4294901760
    %v8280 = vsub.f32 %v7954, %v8279
    %v8281 = vand.u32 %v8280, 4294901760
    %8282 = vmatmul.mubr.f32.gmra.mxu0 %v8281
    %v8283 = vpop.f32.mrf.mxu0
    %v8284 = vadd.f32 %v8202, %v8283
    %v8285 = vpop.f32.mrf.mxu0
    %8286 = vdwg.mxu0
    %8287 = vmatprep.subr.mxu0 0.0
    %8288 = vmatpush1.msra.mxu0 0.0
    %8289 = vmatprep.subr.mxu0 0.0
    %8290 = vmatpush1.msra.mxu0 0.0
    %8291 = vmatprep.subr.mxu0 0.0
    %8292 = vmatpush1.msra.mxu0 0.0
    %8293 = vmatprep.subr.mxu0 0.0
    %8294 = vmatpush1.msra.mxu0 0.0
    %8295 = vmatprep.subr.mxu0 0.0
    %8296 = vmatpush1.msra.mxu0 0.0
    %8297 = vmatprep.subr.mxu0 0.0
    %8298 = vmatpush1.msra.mxu0 0.0
    %8299 = vmatprep.subr.mxu0 0.0
    %8300 = vmatpush1.msra.mxu0 0.0
    %8301 = vmatprep.subr.mxu0 0.0
    %8302 = vmatpush1.msra.mxu0 0.0
    %8303 = vmatprep.subr.mxu0 0.0
    %8304 = vmatpush1.msra.mxu0 0.0
    %8305 = vmatprep.subr.mxu0 0.0
    %8306 = vmatpush1.msra.mxu0 0.0
    %8307 = vmatprep.subr.mxu0 0.0
    %8308 = vmatpush1.msra.mxu0 0.0
    %8309 = vmatprep.subr.mxu0 0.0
    %8310 = vmatpush1.msra.mxu0 0.0
    %8311 = vmatprep.subr.mxu0 0.0
    %8312 = vmatpush1.msra.mxu0 0.0
    %8313 = vmatprep.subr.mxu0 0.0
    %8314 = vmatpush1.msra.mxu0 0.0
    %8315 = vmatprep.subr.mxu0 0.0
    %8316 = vmatpush1.msra.mxu0 0.0
    %8317 = vmatprep.subr.mxu0 0.0
    %v8318 = vand.u32 %v7949, 4294901760
    %v8319 = vsub.f32 %v7949, %v8318
    %v8320 = vand.u32 %v8319, 4294901760
    %8321 = vmatpush1.msra.mxu0 %v8320
    %8322 = vmatprep.subr.mxu0 0.0
    %8323 = vmatpush2.msra.mxu0 0.0
    %8324 = vmatprep.subr.mxu0 0.0
    %8325 = vmatpush2.msra.mxu0 0.0
    %8326 = vmatprep.subr.mxu0 0.0
    %8327 = vmatpush2.msra.mxu0 0.0
    %8328 = vmatprep.subr.mxu0 0.0
    %8329 = vmatpush2.msra.mxu0 0.0
    %8330 = vmatprep.subr.mxu0 0.0
    %8331 = vmatpush2.msra.mxu0 0.0
    %8332 = vmatprep.subr.mxu0 0.0
    %8333 = vmatpush2.msra.mxu0 0.0
    %8334 = vmatprep.subr.mxu0 0.0
    %8335 = vmatpush2.msra.mxu0 0.0
    %8336 = vmatprep.subr.mxu0 0.0
    %8337 = vmatpush2.msra.mxu0 0.0
    %8338 = vmatprep.subr.mxu0 0.0
    %8339 = vmatpush2.msra.mxu0 0.0
    %8340 = vmatprep.subr.mxu0 0.0
    %8341 = vmatpush2.msra.mxu0 0.0
    %8342 = vmatprep.subr.mxu0 0.0
    %8343 = vmatpush2.msra.mxu0 0.0
    %8344 = vmatprep.subr.mxu0 0.0
    %8345 = vmatpush2.msra.mxu0 0.0
    %8346 = vmatprep.subr.mxu0 0.0
    %8347 = vmatpush2.msra.mxu0 0.0
    %8348 = vmatprep.subr.mxu0 0.0
    %8349 = vmatpush2.msra.mxu0 0.0
    %8350 = vmatprep.subr.mxu0 0.0
    %8351 = vmatpush2.msra.mxu0 0.0
    %8352 = vmatprep.subr.mxu0 0.0
    %8353 = vmatpush2.msra.mxu0 0.0
    %8354 = vmatprep.mubr.f32.mxu0 0.0
    %v8355 = vand.u32 %v7951, 4294901760
    %8356 = vmatmul.mubr.f32.gmra.mxu0 %v8355
    %v8357 = vpop.f32.mrf.mxu0
    %v8358 = vadd.f32 %v8276, %v8357
    %v8359 = vpop.f32.mrf.mxu0
    %8360 = vmatprep.mubr.f32.mxu0 0.0
    %v8361 = vand.u32 %v7954, 4294901760
    %8362 = vmatmul.mubr.f32.gmra.mxu0 %v8361
    %v8363 = vpop.f32.mrf.mxu0
    %v8364 = vadd.f32 %v8284, %v8363
    %v8365 = vpop.f32.mrf.mxu0
    %8366 = vdwg.mxu0
    %8367 = vmatprep.subr.mxu0 0.0
    %8368 = vmatpush1.msra.mxu0 0.0
    %8369 = vmatprep.subr.mxu0 0.0
    %8370 = vmatpush1.msra.mxu0 0.0
    %8371 = vmatprep.subr.mxu0 0.0
    %8372 = vmatpush1.msra.mxu0 0.0
    %8373 = vmatprep.subr.mxu0 0.0
    %8374 = vmatpush1.msra.mxu0 0.0
    %8375 = vmatprep.subr.mxu0 0.0
    %8376 = vmatpush1.msra.mxu0 0.0
    %8377 = vmatprep.subr.mxu0 0.0
    %8378 = vmatpush1.msra.mxu0 0.0
    %8379 = vmatprep.subr.mxu0 0.0
    %8380 = vmatpush1.msra.mxu0 0.0
    %8381 = vmatprep.subr.mxu0 0.0
    %8382 = vmatpush1.msra.mxu0 0.0
    %8383 = vmatprep.subr.mxu0 0.0
    %8384 = vmatpush1.msra.mxu0 0.0
    %8385 = vmatprep.subr.mxu0 0.0
    %8386 = vmatpush1.msra.mxu0 0.0
    %8387 = vmatprep.subr.mxu0 0.0
    %8388 = vmatpush1.msra.mxu0 0.0
    %8389 = vmatprep.subr.mxu0 0.0
    %8390 = vmatpush1.msra.mxu0 0.0
    %8391 = vmatprep.subr.mxu0 0.0
    %8392 = vmatpush1.msra.mxu0 0.0
    %8393 = vmatprep.subr.mxu0 0.0
    %8394 = vmatpush1.msra.mxu0 0.0
    %8395 = vmatprep.subr.mxu0 0.0
    %8396 = vmatpush1.msra.mxu0 0.0
    %8397 = vmatprep.subr.mxu0 0.0
    %v8398 = vand.u32 %v7949, 4294901760
    %8399 = vmatpush1.msra.mxu0 %v8398
    %8400 = vmatprep.subr.mxu0 0.0
    %8401 = vmatpush2.msra.mxu0 0.0
    %8402 = vmatprep.subr.mxu0 0.0
    %8403 = vmatpush2.msra.mxu0 0.0
    %8404 = vmatprep.subr.mxu0 0.0
    %8405 = vmatpush2.msra.mxu0 0.0
    %8406 = vmatprep.subr.mxu0 0.0
    %8407 = vmatpush2.msra.mxu0 0.0
    %8408 = vmatprep.subr.mxu0 0.0
    %8409 = vmatpush2.msra.mxu0 0.0
    %8410 = vmatprep.subr.mxu0 0.0
    %8411 = vmatpush2.msra.mxu0 0.0
    %8412 = vmatprep.subr.mxu0 0.0
    %8413 = vmatpush2.msra.mxu0 0.0
    %8414 = vmatprep.subr.mxu0 0.0
    %8415 = vmatpush2.msra.mxu0 0.0
    %8416 = vmatprep.subr.mxu0 0.0
    %8417 = vmatpush2.msra.mxu0 0.0
    %8418 = vmatprep.subr.mxu0 0.0
    %8419 = vmatpush2.msra.mxu0 0.0
    %8420 = vmatprep.subr.mxu0 0.0
    %8421 = vmatpush2.msra.mxu0 0.0
    %8422 = vmatprep.subr.mxu0 0.0
    %8423 = vmatpush2.msra.mxu0 0.0
    %8424 = vmatprep.subr.mxu0 0.0
    %8425 = vmatpush2.msra.mxu0 0.0
    %8426 = vmatprep.subr.mxu0 0.0
    %8427 = vmatpush2.msra.mxu0 0.0
    %8428 = vmatprep.subr.mxu0 0.0
    %8429 = vmatpush2.msra.mxu0 0.0
    %8430 = vmatprep.subr.mxu0 0.0
    %8431 = vmatpush2.msra.mxu0 0.0
    %8432 = vmatprep.mubr.f32.mxu0 0.0
    %v8433 = vand.u32 %v7951, 4294901760
    %8434 = vmatmul.mubr.f32.gmra.mxu0 %v8433
    %v8435 = vpop.f32.mrf.mxu0
    %v8436 = vadd.f32 %v8358, %v8435
    %v8437 = vpop.f32.mrf.mxu0
    %8438 = vmatprep.mubr.f32.mxu0 0.0
    %v8439 = vand.u32 %v7954, 4294901760
    %8440 = vmatmul.mubr.f32.gmra.mxu0 %v8439
    %v8441 = vpop.f32.mrf.mxu0
    %v8442 = vadd.f32 %v8364, %v8441
    %v8443 = vpop.f32.mrf.mxu0
    %8444 = vdwg.mxu0
    %v8446 = vsel %vm629, %v4781, 0
    %v8449 = vsel %vm629, %v5233, 0
    %8451 = vmatprep.subr.mxu0 0.0
    %8452 = vmatpush1.msra.mxu0 0.0
    %8453 = vmatprep.subr.mxu0 0.0
    %8454 = vmatpush1.msra.mxu0 0.0
    %8455 = vmatprep.subr.mxu0 0.0
    %8456 = vmatpush1.msra.mxu0 0.0
    %8457 = vmatprep.subr.mxu0 0.0
    %8458 = vmatpush1.msra.mxu0 0.0
    %8459 = vmatprep.subr.mxu0 0.0
    %8460 = vmatpush1.msra.mxu0 0.0
    %8461 = vmatprep.subr.mxu0 0.0
    %8462 = vmatpush1.msra.mxu0 0.0
    %8463 = vmatprep.subr.mxu0 0.0
    %8464 = vmatpush1.msra.mxu0 0.0
    %8465 = vmatprep.subr.mxu0 0.0
    %8466 = vmatpush1.msra.mxu0 0.0
    %8467 = vmatprep.subr.mxu0 0.0
    %8468 = vmatpush1.msra.mxu0 0.0
    %8469 = vmatprep.subr.mxu0 0.0
    %8470 = vmatpush1.msra.mxu0 0.0
    %8471 = vmatprep.subr.mxu0 0.0
    %8472 = vmatpush1.msra.mxu0 0.0
    %8473 = vmatprep.subr.mxu0 0.0
    %8474 = vmatpush1.msra.mxu0 0.0
    %8475 = vmatprep.subr.mxu0 0.0
    %8476 = vmatpush1.msra.mxu0 0.0
    %8477 = vmatprep.subr.mxu0 0.0
    %8478 = vmatpush1.msra.mxu0 0.0
    %8479 = vmatprep.subr.mxu0 0.0
    %8480 = vmatpush1.msra.mxu0 0.0
    %8481 = vmatprep.subr.mxu0 0.0
    %v8482 = vand.u32 %v7948, 4294901760
    %8483 = vmatpush1.msra.mxu0 %v8482
    %8484 = vmatprep.subr.mxu0 0.0
    %8485 = vmatpush2.msra.mxu0 0.0
    %8486 = vmatprep.subr.mxu0 0.0
    %8487 = vmatpush2.msra.mxu0 0.0
    %8488 = vmatprep.subr.mxu0 0.0
    %8489 = vmatpush2.msra.mxu0 0.0
    %8490 = vmatprep.subr.mxu0 0.0
    %8491 = vmatpush2.msra.mxu0 0.0
    %8492 = vmatprep.subr.mxu0 0.0
    %8493 = vmatpush2.msra.mxu0 0.0
    %8494 = vmatprep.subr.mxu0 0.0
    %8495 = vmatpush2.msra.mxu0 0.0
    %8496 = vmatprep.subr.mxu0 0.0
    %8497 = vmatpush2.msra.mxu0 0.0
    %8498 = vmatprep.subr.mxu0 0.0
    %8499 = vmatpush2.msra.mxu0 0.0
    %8500 = vmatprep.subr.mxu0 0.0
    %8501 = vmatpush2.msra.mxu0 0.0
    %8502 = vmatprep.subr.mxu0 0.0
    %8503 = vmatpush2.msra.mxu0 0.0
    %8504 = vmatprep.subr.mxu0 0.0
    %8505 = vmatpush2.msra.mxu0 0.0
    %8506 = vmatprep.subr.mxu0 0.0
    %8507 = vmatpush2.msra.mxu0 0.0
    %8508 = vmatprep.subr.mxu0 0.0
    %8509 = vmatpush2.msra.mxu0 0.0
    %8510 = vmatprep.subr.mxu0 0.0
    %8511 = vmatpush2.msra.mxu0 0.0
    %8512 = vmatprep.subr.mxu0 0.0
    %8513 = vmatpush2.msra.mxu0 0.0
    %8514 = vmatprep.subr.mxu0 0.0
    %8515 = vmatpush2.msra.mxu0 0.0
    %8516 = vmatprep.mubr.f32.mxu0 0.0
    %v8517 = vand.u32 %v8446, 4294901760
    %v8518 = vsub.f32 %v8446, %v8517
    %v8519 = vand.u32 %v8518, 4294901760
    %v8520 = vsub.f32 %v8518, %v8519
    %v8521 = vand.u32 %v8520, 4294901760
    %8522 = vmatmul.mubr.f32.gmra.mxu0 %v8521
    %v8523 = vpop.f32.mrf.mxu0
    %v8524 = vadd.f32 %v8436, %v8523
    %v8525 = vpop.f32.mrf.mxu0
    %8526 = vmatprep.mubr.f32.mxu0 0.0
    %v8527 = vand.u32 %v8449, 4294901760
    %v8528 = vsub.f32 %v8449, %v8527
    %v8529 = vand.u32 %v8528, 4294901760
    %v8530 = vsub.f32 %v8528, %v8529
    %v8531 = vand.u32 %v8530, 4294901760
    %8532 = vmatmul.mubr.f32.gmra.mxu0 %v8531
    %v8533 = vpop.f32.mrf.mxu0
    %v8534 = vadd.f32 %v8442, %v8533
    %v8535 = vpop.f32.mrf.mxu0
    %8536 = vdwg.mxu0
    %8537 = vmatprep.subr.mxu0 0.0
    %8538 = vmatpush1.msra.mxu0 0.0
    %8539 = vmatprep.subr.mxu0 0.0
    %8540 = vmatpush1.msra.mxu0 0.0
    %8541 = vmatprep.subr.mxu0 0.0
    %8542 = vmatpush1.msra.mxu0 0.0
    %8543 = vmatprep.subr.mxu0 0.0
    %8544 = vmatpush1.msra.mxu0 0.0
    %8545 = vmatprep.subr.mxu0 0.0
    %8546 = vmatpush1.msra.mxu0 0.0
    %8547 = vmatprep.subr.mxu0 0.0
    %8548 = vmatpush1.msra.mxu0 0.0
    %8549 = vmatprep.subr.mxu0 0.0
    %8550 = vmatpush1.msra.mxu0 0.0
    %8551 = vmatprep.subr.mxu0 0.0
    %8552 = vmatpush1.msra.mxu0 0.0
    %8553 = vmatprep.subr.mxu0 0.0
    %8554 = vmatpush1.msra.mxu0 0.0
    %8555 = vmatprep.subr.mxu0 0.0
    %8556 = vmatpush1.msra.mxu0 0.0
    %8557 = vmatprep.subr.mxu0 0.0
    %8558 = vmatpush1.msra.mxu0 0.0
    %8559 = vmatprep.subr.mxu0 0.0
    %8560 = vmatpush1.msra.mxu0 0.0
    %8561 = vmatprep.subr.mxu0 0.0
    %8562 = vmatpush1.msra.mxu0 0.0
    %8563 = vmatprep.subr.mxu0 0.0
    %8564 = vmatpush1.msra.mxu0 0.0
    %8565 = vmatprep.subr.mxu0 0.0
    %8566 = vmatpush1.msra.mxu0 0.0
    %8567 = vmatprep.subr.mxu0 0.0
    %v8568 = vand.u32 %v7948, 4294901760
    %v8569 = vsub.f32 %v7948, %v8568
    %v8570 = vand.u32 %v8569, 4294901760
    %v8571 = vsub.f32 %v8569, %v8570
    %v8572 = vand.u32 %v8571, 4294901760
    %8573 = vmatpush1.msra.mxu0 %v8572
    %8574 = vmatprep.subr.mxu0 0.0
    %8575 = vmatpush2.msra.mxu0 0.0
    %8576 = vmatprep.subr.mxu0 0.0
    %8577 = vmatpush2.msra.mxu0 0.0
    %8578 = vmatprep.subr.mxu0 0.0
    %8579 = vmatpush2.msra.mxu0 0.0
    %8580 = vmatprep.subr.mxu0 0.0
    %8581 = vmatpush2.msra.mxu0 0.0
    %8582 = vmatprep.subr.mxu0 0.0
    %8583 = vmatpush2.msra.mxu0 0.0
    %8584 = vmatprep.subr.mxu0 0.0
    %8585 = vmatpush2.msra.mxu0 0.0
    %8586 = vmatprep.subr.mxu0 0.0
    %8587 = vmatpush2.msra.mxu0 0.0
    %8588 = vmatprep.subr.mxu0 0.0
    %8589 = vmatpush2.msra.mxu0 0.0
    %8590 = vmatprep.subr.mxu0 0.0
    %8591 = vmatpush2.msra.mxu0 0.0
    %8592 = vmatprep.subr.mxu0 0.0
    %8593 = vmatpush2.msra.mxu0 0.0
    %8594 = vmatprep.subr.mxu0 0.0
    %8595 = vmatpush2.msra.mxu0 0.0
    %8596 = vmatprep.subr.mxu0 0.0
    %8597 = vmatpush2.msra.mxu0 0.0
    %8598 = vmatprep.subr.mxu0 0.0
    %8599 = vmatpush2.msra.mxu0 0.0
    %8600 = vmatprep.subr.mxu0 0.0
    %8601 = vmatpush2.msra.mxu0 0.0
    %8602 = vmatprep.subr.mxu0 0.0
    %8603 = vmatpush2.msra.mxu0 0.0
    %8604 = vmatprep.subr.mxu0 0.0
    %8605 = vmatpush2.msra.mxu0 0.0
    %8606 = vmatprep.mubr.f32.mxu0 0.0
    %v8607 = vand.u32 %v8446, 4294901760
    %8608 = vmatmul.mubr.f32.gmra.mxu0 %v8607
    %v8609 = vpop.f32.mrf.mxu0
    %v8610 = vadd.f32 %v8524, %v8609
    %v8611 = vpop.f32.mrf.mxu0
    %8612 = vmatprep.mubr.f32.mxu0 0.0
    %v8613 = vand.u32 %v8449, 4294901760
    %8614 = vmatmul.mubr.f32.gmra.mxu0 %v8613
    %v8615 = vpop.f32.mrf.mxu0
    %v8616 = vadd.f32 %v8534, %v8615
    %v8617 = vpop.f32.mrf.mxu0
    %8618 = vdwg.mxu0
    %8619 = vmatprep.subr.mxu0 0.0
    %8620 = vmatpush1.msra.mxu0 0.0
    %8621 = vmatprep.subr.mxu0 0.0
    %8622 = vmatpush1.msra.mxu0 0.0
    %8623 = vmatprep.subr.mxu0 0.0
    %8624 = vmatpush1.msra.mxu0 0.0
    %8625 = vmatprep.subr.mxu0 0.0
    %8626 = vmatpush1.msra.mxu0 0.0
    %8627 = vmatprep.subr.mxu0 0.0
    %8628 = vmatpush1.msra.mxu0 0.0
    %8629 = vmatprep.subr.mxu0 0.0
    %8630 = vmatpush1.msra.mxu0 0.0
    %8631 = vmatprep.subr.mxu0 0.0
    %8632 = vmatpush1.msra.mxu0 0.0
    %8633 = vmatprep.subr.mxu0 0.0
    %8634 = vmatpush1.msra.mxu0 0.0
    %8635 = vmatprep.subr.mxu0 0.0
    %8636 = vmatpush1.msra.mxu0 0.0
    %8637 = vmatprep.subr.mxu0 0.0
    %8638 = vmatpush1.msra.mxu0 0.0
    %8639 = vmatprep.subr.mxu0 0.0
    %8640 = vmatpush1.msra.mxu0 0.0
    %8641 = vmatprep.subr.mxu0 0.0
    %8642 = vmatpush1.msra.mxu0 0.0
    %8643 = vmatprep.subr.mxu0 0.0
    %8644 = vmatpush1.msra.mxu0 0.0
    %8645 = vmatprep.subr.mxu0 0.0
    %8646 = vmatpush1.msra.mxu0 0.0
    %8647 = vmatprep.subr.mxu0 0.0
    %8648 = vmatpush1.msra.mxu0 0.0
    %8649 = vmatprep.subr.mxu0 0.0
    %v8650 = vand.u32 %v7948, 4294901760
    %v8651 = vsub.f32 %v7948, %v8650
    %8652 = vmatpush1.msra.mxu0 %v8651
    %8653 = vmatprep.subr.mxu0 0.0
    %8654 = vmatpush2.msra.mxu0 0.0
    %8655 = vmatprep.subr.mxu0 0.0
    %8656 = vmatpush2.msra.mxu0 0.0
    %8657 = vmatprep.subr.mxu0 0.0
    %8658 = vmatpush2.msra.mxu0 0.0
    %8659 = vmatprep.subr.mxu0 0.0
    %8660 = vmatpush2.msra.mxu0 0.0
    %8661 = vmatprep.subr.mxu0 0.0
    %8662 = vmatpush2.msra.mxu0 0.0
    %8663 = vmatprep.subr.mxu0 0.0
    %8664 = vmatpush2.msra.mxu0 0.0
    %8665 = vmatprep.subr.mxu0 0.0
    %8666 = vmatpush2.msra.mxu0 0.0
    %8667 = vmatprep.subr.mxu0 0.0
    %8668 = vmatpush2.msra.mxu0 0.0
    %8669 = vmatprep.subr.mxu0 0.0
    %8670 = vmatpush2.msra.mxu0 0.0
    %8671 = vmatprep.subr.mxu0 0.0
    %8672 = vmatpush2.msra.mxu0 0.0
    %8673 = vmatprep.subr.mxu0 0.0
    %8674 = vmatpush2.msra.mxu0 0.0
    %8675 = vmatprep.subr.mxu0 0.0
    %8676 = vmatpush2.msra.mxu0 0.0
    %8677 = vmatprep.subr.mxu0 0.0
    %8678 = vmatpush2.msra.mxu0 0.0
    %8679 = vmatprep.subr.mxu0 0.0
    %8680 = vmatpush2.msra.mxu0 0.0
    %8681 = vmatprep.subr.mxu0 0.0
    %8682 = vmatpush2.msra.mxu0 0.0
    %8683 = vmatprep.subr.mxu0 0.0
    %8684 = vmatpush2.msra.mxu0 0.0
    %8685 = vmatprep.mubr.f32.mxu0 0.0
    %v8686 = vand.u32 %v8446, 4294901760
    %v8687 = vsub.f32 %v8446, %v8686
    %8688 = vmatmul.mubr.f32.gmra.mxu0 %v8687
    %v8689 = vpop.f32.mrf.mxu0
    %v8690 = vadd.f32 %v8610, %v8689
    %v8691 = vpop.f32.mrf.mxu0
    %8692 = vmatprep.mubr.f32.mxu0 0.0
    %v8693 = vand.u32 %v8449, 4294901760
    %v8694 = vsub.f32 %v8449, %v8693
    %8695 = vmatmul.mubr.f32.gmra.mxu0 %v8694
    %v8696 = vpop.f32.mrf.mxu0
    %v8697 = vadd.f32 %v8616, %v8696
    %v8698 = vpop.f32.mrf.mxu0
    %8699 = vdwg.mxu0
    %8700 = vmatprep.subr.mxu0 0.0
    %8701 = vmatpush1.msra.mxu0 0.0
    %8702 = vmatprep.subr.mxu0 0.0
    %8703 = vmatpush1.msra.mxu0 0.0
    %8704 = vmatprep.subr.mxu0 0.0
    %8705 = vmatpush1.msra.mxu0 0.0
    %8706 = vmatprep.subr.mxu0 0.0
    %8707 = vmatpush1.msra.mxu0 0.0
    %8708 = vmatprep.subr.mxu0 0.0
    %8709 = vmatpush1.msra.mxu0 0.0
    %8710 = vmatprep.subr.mxu0 0.0
    %8711 = vmatpush1.msra.mxu0 0.0
    %8712 = vmatprep.subr.mxu0 0.0
    %8713 = vmatpush1.msra.mxu0 0.0
    %8714 = vmatprep.subr.mxu0 0.0
    %8715 = vmatpush1.msra.mxu0 0.0
    %8716 = vmatprep.subr.mxu0 0.0
    %8717 = vmatpush1.msra.mxu0 0.0
    %8718 = vmatprep.subr.mxu0 0.0
    %8719 = vmatpush1.msra.mxu0 0.0
    %8720 = vmatprep.subr.mxu0 0.0
    %8721 = vmatpush1.msra.mxu0 0.0
    %8722 = vmatprep.subr.mxu0 0.0
    %8723 = vmatpush1.msra.mxu0 0.0
    %8724 = vmatprep.subr.mxu0 0.0
    %8725 = vmatpush1.msra.mxu0 0.0
    %8726 = vmatprep.subr.mxu0 0.0
    %8727 = vmatpush1.msra.mxu0 0.0
    %8728 = vmatprep.subr.mxu0 0.0
    %8729 = vmatpush1.msra.mxu0 0.0
    %8730 = vmatprep.subr.mxu0 0.0
    %v8731 = vand.u32 %v7948, 4294901760
    %8732 = vmatpush1.msra.mxu0 %v8731
    %8733 = vmatprep.subr.mxu0 0.0
    %8734 = vmatpush2.msra.mxu0 0.0
    %8735 = vmatprep.subr.mxu0 0.0
    %8736 = vmatpush2.msra.mxu0 0.0
    %8737 = vmatprep.subr.mxu0 0.0
    %8738 = vmatpush2.msra.mxu0 0.0
    %8739 = vmatprep.subr.mxu0 0.0
    %8740 = vmatpush2.msra.mxu0 0.0
    %8741 = vmatprep.subr.mxu0 0.0
    %8742 = vmatpush2.msra.mxu0 0.0
    %8743 = vmatprep.subr.mxu0 0.0
    %8744 = vmatpush2.msra.mxu0 0.0
    %8745 = vmatprep.subr.mxu0 0.0
    %8746 = vmatpush2.msra.mxu0 0.0
    %8747 = vmatprep.subr.mxu0 0.0
    %8748 = vmatpush2.msra.mxu0 0.0
    %8749 = vmatprep.subr.mxu0 0.0
    %8750 = vmatpush2.msra.mxu0 0.0
    %8751 = vmatprep.subr.mxu0 0.0
    %8752 = vmatpush2.msra.mxu0 0.0
    %8753 = vmatprep.subr.mxu0 0.0
    %8754 = vmatpush2.msra.mxu0 0.0
    %8755 = vmatprep.subr.mxu0 0.0
    %8756 = vmatpush2.msra.mxu0 0.0
    %8757 = vmatprep.subr.mxu0 0.0
    %8758 = vmatpush2.msra.mxu0 0.0
    %8759 = vmatprep.subr.mxu0 0.0
    %8760 = vmatpush2.msra.mxu0 0.0
    %8761 = vmatprep.subr.mxu0 0.0
    %8762 = vmatpush2.msra.mxu0 0.0
    %8763 = vmatprep.subr.mxu0 0.0
    %8764 = vmatpush2.msra.mxu0 0.0
    %8765 = vmatprep.mubr.f32.mxu0 0.0
    %v8766 = vand.u32 %v8446, 4294901760
    %v8767 = vsub.f32 %v8446, %v8766
    %v8768 = vand.u32 %v8767, 4294901760
    %8769 = vmatmul.mubr.f32.gmra.mxu0 %v8768
    %v8770 = vpop.f32.mrf.mxu0
    %v8771 = vadd.f32 %v8690, %v8770
    %v8772 = vpop.f32.mrf.mxu0
    %8773 = vmatprep.mubr.f32.mxu0 0.0
    %v8774 = vand.u32 %v8449, 4294901760
    %v8775 = vsub.f32 %v8449, %v8774
    %v8776 = vand.u32 %v8775, 4294901760
    %8777 = vmatmul.mubr.f32.gmra.mxu0 %v8776
    %v8778 = vpop.f32.mrf.mxu0
    %v8779 = vadd.f32 %v8697, %v8778
    %v8780 = vpop.f32.mrf.mxu0
    %8781 = vdwg.mxu0
    %8782 = vmatprep.subr.mxu0 0.0
    %8783 = vmatpush1.msra.mxu0 0.0
    %8784 = vmatprep.subr.mxu0 0.0
    %8785 = vmatpush1.msra.mxu0 0.0
    %8786 = vmatprep.subr.mxu0 0.0
    %8787 = vmatpush1.msra.mxu0 0.0
    %8788 = vmatprep.subr.mxu0 0.0
    %8789 = vmatpush1.msra.mxu0 0.0
    %8790 = vmatprep.subr.mxu0 0.0
    %8791 = vmatpush1.msra.mxu0 0.0
    %8792 = vmatprep.subr.mxu0 0.0
    %8793 = vmatpush1.msra.mxu0 0.0
    %8794 = vmatprep.subr.mxu0 0.0
    %8795 = vmatpush1.msra.mxu0 0.0
    %8796 = vmatprep.subr.mxu0 0.0
    %8797 = vmatpush1.msra.mxu0 0.0
    %8798 = vmatprep.subr.mxu0 0.0
    %8799 = vmatpush1.msra.mxu0 0.0
    %8800 = vmatprep.subr.mxu0 0.0
    %8801 = vmatpush1.msra.mxu0 0.0
    %8802 = vmatprep.subr.mxu0 0.0
    %8803 = vmatpush1.msra.mxu0 0.0
    %8804 = vmatprep.subr.mxu0 0.0
    %8805 = vmatpush1.msra.mxu0 0.0
    %8806 = vmatprep.subr.mxu0 0.0
    %8807 = vmatpush1.msra.mxu0 0.0
    %8808 = vmatprep.subr.mxu0 0.0
    %8809 = vmatpush1.msra.mxu0 0.0
    %8810 = vmatprep.subr.mxu0 0.0
    %8811 = vmatpush1.msra.mxu0 0.0
    %8812 = vmatprep.subr.mxu0 0.0
    %v8813 = vand.u32 %v7948, 4294901760
    %v8814 = vsub.f32 %v7948, %v8813
    %v8815 = vand.u32 %v8814, 4294901760
    %8816 = vmatpush1.msra.mxu0 %v8815
    %8817 = vmatprep.subr.mxu0 0.0
    %8818 = vmatpush2.msra.mxu0 0.0
    %8819 = vmatprep.subr.mxu0 0.0
    %8820 = vmatpush2.msra.mxu0 0.0
    %8821 = vmatprep.subr.mxu0 0.0
    %8822 = vmatpush2.msra.mxu0 0.0
    %8823 = vmatprep.subr.mxu0 0.0
    %8824 = vmatpush2.msra.mxu0 0.0
    %8825 = vmatprep.subr.mxu0 0.0
    %8826 = vmatpush2.msra.mxu0 0.0
    %8827 = vmatprep.subr.mxu0 0.0
    %8828 = vmatpush2.msra.mxu0 0.0
    %8829 = vmatprep.subr.mxu0 0.0
    %8830 = vmatpush2.msra.mxu0 0.0
    %8831 = vmatprep.subr.mxu0 0.0
    %8832 = vmatpush2.msra.mxu0 0.0
    %8833 = vmatprep.subr.mxu0 0.0
    %8834 = vmatpush2.msra.mxu0 0.0
    %8835 = vmatprep.subr.mxu0 0.0
    %8836 = vmatpush2.msra.mxu0 0.0
    %8837 = vmatprep.subr.mxu0 0.0
    %8838 = vmatpush2.msra.mxu0 0.0
    %8839 = vmatprep.subr.mxu0 0.0
    %8840 = vmatpush2.msra.mxu0 0.0
    %8841 = vmatprep.subr.mxu0 0.0
    %8842 = vmatpush2.msra.mxu0 0.0
    %8843 = vmatprep.subr.mxu0 0.0
    %8844 = vmatpush2.msra.mxu0 0.0
    %8845 = vmatprep.subr.mxu0 0.0
    %8846 = vmatpush2.msra.mxu0 0.0
    %8847 = vmatprep.subr.mxu0 0.0
    %8848 = vmatpush2.msra.mxu0 0.0
    %8849 = vmatprep.mubr.f32.mxu0 0.0
    %v8850 = vand.u32 %v8446, 4294901760
    %8851 = vmatmul.mubr.f32.gmra.mxu0 %v8850
    %v8852 = vpop.f32.mrf.mxu0
    %v8853 = vadd.f32 %v8771, %v8852
    %v8854 = vpop.f32.mrf.mxu0
    %8855 = vmatprep.mubr.f32.mxu0 0.0
    %v8856 = vand.u32 %v8449, 4294901760
    %8857 = vmatmul.mubr.f32.gmra.mxu0 %v8856
    %v8858 = vpop.f32.mrf.mxu0
    %v8859 = vadd.f32 %v8779, %v8858
    %v8860 = vpop.f32.mrf.mxu0
    %8861 = vdwg.mxu0
    %8862 = vmatprep.subr.mxu0 0.0
    %8863 = vmatpush1.msra.mxu0 0.0
    %8864 = vmatprep.subr.mxu0 0.0
    %8865 = vmatpush1.msra.mxu0 0.0
    %8866 = vmatprep.subr.mxu0 0.0
    %8867 = vmatpush1.msra.mxu0 0.0
    %8868 = vmatprep.subr.mxu0 0.0
    %8869 = vmatpush1.msra.mxu0 0.0
    %8870 = vmatprep.subr.mxu0 0.0
    %8871 = vmatpush1.msra.mxu0 0.0
    %8872 = vmatprep.subr.mxu0 0.0
    %8873 = vmatpush1.msra.mxu0 0.0
    %8874 = vmatprep.subr.mxu0 0.0
    %8875 = vmatpush1.msra.mxu0 0.0
    %8876 = vmatprep.subr.mxu0 0.0
    %8877 = vmatpush1.msra.mxu0 0.0
    %8878 = vmatprep.subr.mxu0 0.0
    %8879 = vmatpush1.msra.mxu0 0.0
    %8880 = vmatprep.subr.mxu0 0.0
    %8881 = vmatpush1.msra.mxu0 0.0
    %8882 = vmatprep.subr.mxu0 0.0
    %8883 = vmatpush1.msra.mxu0 0.0
    %8884 = vmatprep.subr.mxu0 0.0
    %8885 = vmatpush1.msra.mxu0 0.0
    %8886 = vmatprep.subr.mxu0 0.0
    %8887 = vmatpush1.msra.mxu0 0.0
    %8888 = vmatprep.subr.mxu0 0.0
    %8889 = vmatpush1.msra.mxu0 0.0
    %8890 = vmatprep.subr.mxu0 0.0
    %8891 = vmatpush1.msra.mxu0 0.0
    %8892 = vmatprep.subr.mxu0 0.0
    %v8893 = vand.u32 %v7948, 4294901760
    %8894 = vmatpush1.msra.mxu0 %v8893
    %8895 = vmatprep.subr.mxu0 0.0
    %8896 = vmatpush2.msra.mxu0 0.0
    %8897 = vmatprep.subr.mxu0 0.0
    %8898 = vmatpush2.msra.mxu0 0.0
    %8899 = vmatprep.subr.mxu0 0.0
    %8900 = vmatpush2.msra.mxu0 0.0
    %8901 = vmatprep.subr.mxu0 0.0
    %8902 = vmatpush2.msra.mxu0 0.0
    %8903 = vmatprep.subr.mxu0 0.0
    %8904 = vmatpush2.msra.mxu0 0.0
    %8905 = vmatprep.subr.mxu0 0.0
    %8906 = vmatpush2.msra.mxu0 0.0
    %8907 = vmatprep.subr.mxu0 0.0
    %8908 = vmatpush2.msra.mxu0 0.0
    %8909 = vmatprep.subr.mxu0 0.0
    %8910 = vmatpush2.msra.mxu0 0.0
    %8911 = vmatprep.subr.mxu0 0.0
    %8912 = vmatpush2.msra.mxu0 0.0
    %8913 = vmatprep.subr.mxu0 0.0
    %8914 = vmatpush2.msra.mxu0 0.0
    %8915 = vmatprep.subr.mxu0 0.0
    %8916 = vmatpush2.msra.mxu0 0.0
    %8917 = vmatprep.subr.mxu0 0.0
    %8918 = vmatpush2.msra.mxu0 0.0
    %8919 = vmatprep.subr.mxu0 0.0
    %8920 = vmatpush2.msra.mxu0 0.0
    %8921 = vmatprep.subr.mxu0 0.0
    %8922 = vmatpush2.msra.mxu0 0.0
    %8923 = vmatprep.subr.mxu0 0.0
    %8924 = vmatpush2.msra.mxu0 0.0
    %8925 = vmatprep.subr.mxu0 0.0
    %8926 = vmatpush2.msra.mxu0 0.0
    %8927 = vmatprep.mubr.f32.mxu0 0.0
    %v8928 = vand.u32 %v8446, 4294901760
    %8929 = vmatmul.mubr.f32.gmra.mxu0 %v8928
    %v8930 = vpop.f32.mrf.mxu0
    %v8931 = vadd.f32 %v8853, %v8930
    %v8932 = vpop.f32.mrf.mxu0
    %8933 = vmatprep.mubr.f32.mxu0 0.0
    %v8934 = vand.u32 %v8449, 4294901760
    %8935 = vmatmul.mubr.f32.gmra.mxu0 %v8934
    %v8936 = vpop.f32.mrf.mxu0
    %v8937 = vadd.f32 %v8859, %v8936
    %v8938 = vpop.f32.mrf.mxu0
    %8939 = vdwg.mxu0
    %v8940 = vld [vmem:[#allocation7 + $0x10] sm:$0xff]
    %v8942 = vsel %vm629, %v6589, 0
    %v8945 = vsel %vm629, %v7041, 0
    %8947 = vmatprep.subr.mxu0 0.0
    %8948 = vmatpush1.msra.mxu0 0.0
    %8949 = vmatprep.subr.mxu0 0.0
    %8950 = vmatpush1.msra.mxu0 0.0
    %8951 = vmatprep.subr.mxu0 0.0
    %8952 = vmatpush1.msra.mxu0 0.0
    %8953 = vmatprep.subr.mxu0 0.0
    %8954 = vmatpush1.msra.mxu0 0.0
    %8955 = vmatprep.subr.mxu0 0.0
    %8956 = vmatpush1.msra.mxu0 0.0
    %8957 = vmatprep.subr.mxu0 0.0
    %8958 = vmatpush1.msra.mxu0 0.0
    %8959 = vmatprep.subr.mxu0 0.0
    %8960 = vmatpush1.msra.mxu0 0.0
    %8961 = vmatprep.subr.mxu0 0.0
    %8962 = vmatpush1.msra.mxu0 0.0
    %8963 = vmatprep.subr.mxu0 0.0
    %8964 = vmatpush1.msra.mxu0 0.0
    %8965 = vmatprep.subr.mxu0 0.0
    %8966 = vmatpush1.msra.mxu0 0.0
    %8967 = vmatprep.subr.mxu0 0.0
    %8968 = vmatpush1.msra.mxu0 0.0
    %8969 = vmatprep.subr.mxu0 0.0
    %8970 = vmatpush1.msra.mxu0 0.0
    %8971 = vmatprep.subr.mxu0 0.0
    %8972 = vmatpush1.msra.mxu0 0.0
    %8973 = vmatprep.subr.mxu0 0.0
    %8974 = vmatpush1.msra.mxu0 0.0
    %8975 = vmatprep.subr.mxu0 0.0
    %8976 = vmatpush1.msra.mxu0 0.0
    %8977 = vmatprep.subr.mxu0 0.0
    %v8978 = vand.u32 %v8940, 4294901760
    %8979 = vmatpush1.msra.mxu0 %v8978
    %8980 = vmatprep.subr.mxu0 0.0
    %8981 = vmatpush2.msra.mxu0 0.0
    %8982 = vmatprep.subr.mxu0 0.0
    %8983 = vmatpush2.msra.mxu0 0.0
    %8984 = vmatprep.subr.mxu0 0.0
    %8985 = vmatpush2.msra.mxu0 0.0
    %8986 = vmatprep.subr.mxu0 0.0
    %8987 = vmatpush2.msra.mxu0 0.0
    %8988 = vmatprep.subr.mxu0 0.0
    %8989 = vmatpush2.msra.mxu0 0.0
    %8990 = vmatprep.subr.mxu0 0.0
    %8991 = vmatpush2.msra.mxu0 0.0
    %8992 = vmatprep.subr.mxu0 0.0
    %8993 = vmatpush2.msra.mxu0 0.0
    %8994 = vmatprep.subr.mxu0 0.0
    %8995 = vmatpush2.msra.mxu0 0.0
    %8996 = vmatprep.subr.mxu0 0.0
    %8997 = vmatpush2.msra.mxu0 0.0
    %8998 = vmatprep.subr.mxu0 0.0
    %8999 = vmatpush2.msra.mxu0 0.0
    %9000 = vmatprep.subr.mxu0 0.0
    %9001 = vmatpush2.msra.mxu0 0.0
    %9002 = vmatprep.subr.mxu0 0.0
    %9003 = vmatpush2.msra.mxu0 0.0
    %9004 = vmatprep.subr.mxu0 0.0
    %9005 = vmatpush2.msra.mxu0 0.0
    %9006 = vmatprep.subr.mxu0 0.0
    %9007 = vmatpush2.msra.mxu0 0.0
    %9008 = vmatprep.subr.mxu0 0.0
    %9009 = vmatpush2.msra.mxu0 0.0
    %9010 = vmatprep.subr.mxu0 0.0
    %9011 = vmatpush2.msra.mxu0 0.0
    %9012 = vmatprep.mubr.f32.mxu0 0.0
    %v9013 = vand.u32 %v8942, 4294901760
    %v9014 = vsub.f32 %v8942, %v9013
    %v9015 = vand.u32 %v9014, 4294901760
    %v9016 = vsub.f32 %v9014, %v9015
    %v9017 = vand.u32 %v9016, 4294901760
    %9018 = vmatmul.mubr.f32.gmra.mxu0 %v9017
    %v9019 = vpop.f32.mrf.mxu0
    %v9020 = vadd.f32 0.0, %v9019
    %v9021 = vpop.f32.mrf.mxu0
    %9022 = vmatprep.mubr.f32.mxu0 0.0
    %v9023 = vand.u32 %v8945, 4294901760
    %v9024 = vsub.f32 %v8945, %v9023
    %v9025 = vand.u32 %v9024, 4294901760
    %v9026 = vsub.f32 %v9024, %v9025
    %v9027 = vand.u32 %v9026, 4294901760
    %9028 = vmatmul.mubr.f32.gmra.mxu0 %v9027
    %v9029 = vpop.f32.mrf.mxu0
    %v9030 = vadd.f32 0.0, %v9029
    %v9031 = vpop.f32.mrf.mxu0
    %9032 = vdwg.mxu0
    %9033 = vmatprep.subr.mxu0 0.0
    %9034 = vmatpush1.msra.mxu0 0.0
    %9035 = vmatprep.subr.mxu0 0.0
    %9036 = vmatpush1.msra.mxu0 0.0
    %9037 = vmatprep.subr.mxu0 0.0
    %9038 = vmatpush1.msra.mxu0 0.0
    %9039 = vmatprep.subr.mxu0 0.0
    %9040 = vmatpush1.msra.mxu0 0.0
    %9041 = vmatprep.subr.mxu0 0.0
    %9042 = vmatpush1.msra.mxu0 0.0
    %9043 = vmatprep.subr.mxu0 0.0
    %9044 = vmatpush1.msra.mxu0 0.0
    %9045 = vmatprep.subr.mxu0 0.0
    %9046 = vmatpush1.msra.mxu0 0.0
    %9047 = vmatprep.subr.mxu0 0.0
    %9048 = vmatpush1.msra.mxu0 0.0
    %9049 = vmatprep.subr.mxu0 0.0
    %9050 = vmatpush1.msra.mxu0 0.0
    %9051 = vmatprep.subr.mxu0 0.0
    %9052 = vmatpush1.msra.mxu0 0.0
    %9053 = vmatprep.subr.mxu0 0.0
    %9054 = vmatpush1.msra.mxu0 0.0
    %9055 = vmatprep.subr.mxu0 0.0
    %9056 = vmatpush1.msra.mxu0 0.0
    %9057 = vmatprep.subr.mxu0 0.0
    %9058 = vmatpush1.msra.mxu0 0.0
    %9059 = vmatprep.subr.mxu0 0.0
    %9060 = vmatpush1.msra.mxu0 0.0
    %9061 = vmatprep.subr.mxu0 0.0
    %9062 = vmatpush1.msra.mxu0 0.0
    %9063 = vmatprep.subr.mxu0 0.0
    %v9064 = vand.u32 %v8940, 4294901760
    %v9065 = vsub.f32 %v8940, %v9064
    %v9066 = vand.u32 %v9065, 4294901760
    %v9067 = vsub.f32 %v9065, %v9066
    %v9068 = vand.u32 %v9067, 4294901760
    %9069 = vmatpush1.msra.mxu0 %v9068
    %9070 = vmatprep.subr.mxu0 0.0
    %9071 = vmatpush2.msra.mxu0 0.0
    %9072 = vmatprep.subr.mxu0 0.0
    %9073 = vmatpush2.msra.mxu0 0.0
    %9074 = vmatprep.subr.mxu0 0.0
    %9075 = vmatpush2.msra.mxu0 0.0
    %9076 = vmatprep.subr.mxu0 0.0
    %9077 = vmatpush2.msra.mxu0 0.0
    %9078 = vmatprep.subr.mxu0 0.0
    %9079 = vmatpush2.msra.mxu0 0.0
    %9080 = vmatprep.subr.mxu0 0.0
    %9081 = vmatpush2.msra.mxu0 0.0
    %9082 = vmatprep.subr.mxu0 0.0
    %9083 = vmatpush2.msra.mxu0 0.0
    %9084 = vmatprep.subr.mxu0 0.0
    %9085 = vmatpush2.msra.mxu0 0.0
    %9086 = vmatprep.subr.mxu0 0.0
    %9087 = vmatpush2.msra.mxu0 0.0
    %9088 = vmatprep.subr.mxu0 0.0
    %9089 = vmatpush2.msra.mxu0 0.0
    %9090 = vmatprep.subr.mxu0 0.0
    %9091 = vmatpush2.msra.mxu0 0.0
    %9092 = vmatprep.subr.mxu0 0.0
    %9093 = vmatpush2.msra.mxu0 0.0
    %9094 = vmatprep.subr.mxu0 0.0
    %9095 = vmatpush2.msra.mxu0 0.0
    %9096 = vmatprep.subr.mxu0 0.0
    %9097 = vmatpush2.msra.mxu0 0.0
    %9098 = vmatprep.subr.mxu0 0.0
    %9099 = vmatpush2.msra.mxu0 0.0
    %9100 = vmatprep.subr.mxu0 0.0
    %9101 = vmatpush2.msra.mxu0 0.0
    %9102 = vmatprep.mubr.f32.mxu0 0.0
    %v9103 = vand.u32 %v8942, 4294901760
    %9104 = vmatmul.mubr.f32.gmra.mxu0 %v9103
    %v9105 = vpop.f32.mrf.mxu0
    %v9106 = vadd.f32 %v9020, %v9105
    %v9107 = vpop.f32.mrf.mxu0
    %9108 = vmatprep.mubr.f32.mxu0 0.0
    %v9109 = vand.u32 %v8945, 4294901760
    %9110 = vmatmul.mubr.f32.gmra.mxu0 %v9109
    %v9111 = vpop.f32.mrf.mxu0
    %v9112 = vadd.f32 %v9030, %v9111
    %v9113 = vpop.f32.mrf.mxu0
    %9114 = vdwg.mxu0
    %9115 = vmatprep.subr.mxu0 0.0
    %9116 = vmatpush1.msra.mxu0 0.0
    %9117 = vmatprep.subr.mxu0 0.0
    %9118 = vmatpush1.msra.mxu0 0.0
    %9119 = vmatprep.subr.mxu0 0.0
    %9120 = vmatpush1.msra.mxu0 0.0
    %9121 = vmatprep.subr.mxu0 0.0
    %9122 = vmatpush1.msra.mxu0 0.0
    %9123 = vmatprep.subr.mxu0 0.0
    %9124 = vmatpush1.msra.mxu0 0.0
    %9125 = vmatprep.subr.mxu0 0.0
    %9126 = vmatpush1.msra.mxu0 0.0
    %9127 = vmatprep.subr.mxu0 0.0
    %9128 = vmatpush1.msra.mxu0 0.0
    %9129 = vmatprep.subr.mxu0 0.0
    %9130 = vmatpush1.msra.mxu0 0.0
    %9131 = vmatprep.subr.mxu0 0.0
    %9132 = vmatpush1.msra.mxu0 0.0
    %9133 = vmatprep.subr.mxu0 0.0
    %9134 = vmatpush1.msra.mxu0 0.0
    %9135 = vmatprep.subr.mxu0 0.0
    %9136 = vmatpush1.msra.mxu0 0.0
    %9137 = vmatprep.subr.mxu0 0.0
    %9138 = vmatpush1.msra.mxu0 0.0
    %9139 = vmatprep.subr.mxu0 0.0
    %9140 = vmatpush1.msra.mxu0 0.0
    %9141 = vmatprep.subr.mxu0 0.0
    %9142 = vmatpush1.msra.mxu0 0.0
    %9143 = vmatprep.subr.mxu0 0.0
    %9144 = vmatpush1.msra.mxu0 0.0
    %9145 = vmatprep.subr.mxu0 0.0
    %v9146 = vand.u32 %v8940, 4294901760
    %v9147 = vsub.f32 %v8940, %v9146
    %9148 = vmatpush1.msra.mxu0 %v9147
    %9149 = vmatprep.subr.mxu0 0.0
    %9150 = vmatpush2.msra.mxu0 0.0
    %9151 = vmatprep.subr.mxu0 0.0
    %9152 = vmatpush2.msra.mxu0 0.0
    %9153 = vmatprep.subr.mxu0 0.0
    %9154 = vmatpush2.msra.mxu0 0.0
    %9155 = vmatprep.subr.mxu0 0.0
    %9156 = vmatpush2.msra.mxu0 0.0
    %9157 = vmatprep.subr.mxu0 0.0
    %9158 = vmatpush2.msra.mxu0 0.0
    %9159 = vmatprep.subr.mxu0 0.0
    %9160 = vmatpush2.msra.mxu0 0.0
    %9161 = vmatprep.subr.mxu0 0.0
    %9162 = vmatpush2.msra.mxu0 0.0
    %9163 = vmatprep.subr.mxu0 0.0
    %9164 = vmatpush2.msra.mxu0 0.0
    %9165 = vmatprep.subr.mxu0 0.0
    %9166 = vmatpush2.msra.mxu0 0.0
    %9167 = vmatprep.subr.mxu0 0.0
    %9168 = vmatpush2.msra.mxu0 0.0
    %9169 = vmatprep.subr.mxu0 0.0
    %9170 = vmatpush2.msra.mxu0 0.0
    %9171 = vmatprep.subr.mxu0 0.0
    %9172 = vmatpush2.msra.mxu0 0.0
    %9173 = vmatprep.subr.mxu0 0.0
    %9174 = vmatpush2.msra.mxu0 0.0
    %9175 = vmatprep.subr.mxu0 0.0
    %9176 = vmatpush2.msra.mxu0 0.0
    %9177 = vmatprep.subr.mxu0 0.0
    %9178 = vmatpush2.msra.mxu0 0.0
    %9179 = vmatprep.subr.mxu0 0.0
    %9180 = vmatpush2.msra.mxu0 0.0
    %9181 = vmatprep.mubr.f32.mxu0 0.0
    %v9182 = vand.u32 %v8942, 4294901760
    %v9183 = vsub.f32 %v8942, %v9182
    %9184 = vmatmul.mubr.f32.gmra.mxu0 %v9183
    %v9185 = vpop.f32.mrf.mxu0
    %v9186 = vadd.f32 %v9106, %v9185
    %v9187 = vpop.f32.mrf.mxu0
    %9188 = vmatprep.mubr.f32.mxu0 0.0
    %v9189 = vand.u32 %v8945, 4294901760
    %v9190 = vsub.f32 %v8945, %v9189
    %9191 = vmatmul.mubr.f32.gmra.mxu0 %v9190
    %v9192 = vpop.f32.mrf.mxu0
    %v9193 = vadd.f32 %v9112, %v9192
    %v9194 = vpop.f32.mrf.mxu0
    %9195 = vdwg.mxu0
    %9196 = vmatprep.subr.mxu0 0.0
    %9197 = vmatpush1.msra.mxu0 0.0
    %9198 = vmatprep.subr.mxu0 0.0
    %9199 = vmatpush1.msra.mxu0 0.0
    %9200 = vmatprep.subr.mxu0 0.0
    %9201 = vmatpush1.msra.mxu0 0.0
    %9202 = vmatprep.subr.mxu0 0.0
    %9203 = vmatpush1.msra.mxu0 0.0
    %9204 = vmatprep.subr.mxu0 0.0
    %9205 = vmatpush1.msra.mxu0 0.0
    %9206 = vmatprep.subr.mxu0 0.0
    %9207 = vmatpush1.msra.mxu0 0.0
    %9208 = vmatprep.subr.mxu0 0.0
    %9209 = vmatpush1.msra.mxu0 0.0
    %9210 = vmatprep.subr.mxu0 0.0
    %9211 = vmatpush1.msra.mxu0 0.0
    %9212 = vmatprep.subr.mxu0 0.0
    %9213 = vmatpush1.msra.mxu0 0.0
    %9214 = vmatprep.subr.mxu0 0.0
    %9215 = vmatpush1.msra.mxu0 0.0
    %9216 = vmatprep.subr.mxu0 0.0
    %9217 = vmatpush1.msra.mxu0 0.0
    %9218 = vmatprep.subr.mxu0 0.0
    %9219 = vmatpush1.msra.mxu0 0.0
    %9220 = vmatprep.subr.mxu0 0.0
    %9221 = vmatpush1.msra.mxu0 0.0
    %9222 = vmatprep.subr.mxu0 0.0
    %9223 = vmatpush1.msra.mxu0 0.0
    %9224 = vmatprep.subr.mxu0 0.0
    %9225 = vmatpush1.msra.mxu0 0.0
    %9226 = vmatprep.subr.mxu0 0.0
    %v9227 = vand.u32 %v8940, 4294901760
    %9228 = vmatpush1.msra.mxu0 %v9227
    %9229 = vmatprep.subr.mxu0 0.0
    %9230 = vmatpush2.msra.mxu0 0.0
    %9231 = vmatprep.subr.mxu0 0.0
    %9232 = vmatpush2.msra.mxu0 0.0
    %9233 = vmatprep.subr.mxu0 0.0
    %9234 = vmatpush2.msra.mxu0 0.0
    %9235 = vmatprep.subr.mxu0 0.0
    %9236 = vmatpush2.msra.mxu0 0.0
    %9237 = vmatprep.subr.mxu0 0.0
    %9238 = vmatpush2.msra.mxu0 0.0
    %9239 = vmatprep.subr.mxu0 0.0
    %9240 = vmatpush2.msra.mxu0 0.0
    %9241 = vmatprep.subr.mxu0 0.0
    %9242 = vmatpush2.msra.mxu0 0.0
    %9243 = vmatprep.subr.mxu0 0.0
    %9244 = vmatpush2.msra.mxu0 0.0
    %9245 = vmatprep.subr.mxu0 0.0
    %9246 = vmatpush2.msra.mxu0 0.0
    %9247 = vmatprep.subr.mxu0 0.0
    %9248 = vmatpush2.msra.mxu0 0.0
    %9249 = vmatprep.subr.mxu0 0.0
    %9250 = vmatpush2.msra.mxu0 0.0
    %9251 = vmatprep.subr.mxu0 0.0
    %9252 = vmatpush2.msra.mxu0 0.0
    %9253 = vmatprep.subr.mxu0 0.0
    %9254 = vmatpush2.msra.mxu0 0.0
    %9255 = vmatprep.subr.mxu0 0.0
    %9256 = vmatpush2.msra.mxu0 0.0
    %9257 = vmatprep.subr.mxu0 0.0
    %9258 = vmatpush2.msra.mxu0 0.0
    %9259 = vmatprep.subr.mxu0 0.0
    %9260 = vmatpush2.msra.mxu0 0.0
    %9261 = vmatprep.mubr.f32.mxu0 0.0
    %v9262 = vand.u32 %v8942, 4294901760
    %v9263 = vsub.f32 %v8942, %v9262
    %v9264 = vand.u32 %v9263, 4294901760
    %9265 = vmatmul.mubr.f32.gmra.mxu0 %v9264
    %v9266 = vpop.f32.mrf.mxu0
    %v9267 = vadd.f32 %v9186, %v9266
    %v9268 = vpop.f32.mrf.mxu0
    %9269 = vmatprep.mubr.f32.mxu0 0.0
    %v9270 = vand.u32 %v8945, 4294901760
    %v9271 = vsub.f32 %v8945, %v9270
    %v9272 = vand.u32 %v9271, 4294901760
    %9273 = vmatmul.mubr.f32.gmra.mxu0 %v9272
    %v9274 = vpop.f32.mrf.mxu0
    %v9275 = vadd.f32 %v9193, %v9274
    %v9276 = vpop.f32.mrf.mxu0
    %9277 = vdwg.mxu0
    %9278 = vmatprep.subr.mxu0 0.0
    %9279 = vmatpush1.msra.mxu0 0.0
    %9280 = vmatprep.subr.mxu0 0.0
    %9281 = vmatpush1.msra.mxu0 0.0
    %9282 = vmatprep.subr.mxu0 0.0
    %9283 = vmatpush1.msra.mxu0 0.0
    %9284 = vmatprep.subr.mxu0 0.0
    %9285 = vmatpush1.msra.mxu0 0.0
    %9286 = vmatprep.subr.mxu0 0.0
    %9287 = vmatpush1.msra.mxu0 0.0
    %9288 = vmatprep.subr.mxu0 0.0
    %9289 = vmatpush1.msra.mxu0 0.0
    %9290 = vmatprep.subr.mxu0 0.0
    %9291 = vmatpush1.msra.mxu0 0.0
    %9292 = vmatprep.subr.mxu0 0.0
    %9293 = vmatpush1.msra.mxu0 0.0
    %9294 = vmatprep.subr.mxu0 0.0
    %9295 = vmatpush1.msra.mxu0 0.0
    %9296 = vmatprep.subr.mxu0 0.0
    %9297 = vmatpush1.msra.mxu0 0.0
    %9298 = vmatprep.subr.mxu0 0.0
    %9299 = vmatpush1.msra.mxu0 0.0
    %9300 = vmatprep.subr.mxu0 0.0
    %9301 = vmatpush1.msra.mxu0 0.0
    %9302 = vmatprep.subr.mxu0 0.0
    %9303 = vmatpush1.msra.mxu0 0.0
    %9304 = vmatprep.subr.mxu0 0.0
    %9305 = vmatpush1.msra.mxu0 0.0
    %9306 = vmatprep.subr.mxu0 0.0
    %9307 = vmatpush1.msra.mxu0 0.0
    %9308 = vmatprep.subr.mxu0 0.0
    %v9309 = vand.u32 %v8940, 4294901760
    %v9310 = vsub.f32 %v8940, %v9309
    %v9311 = vand.u32 %v9310, 4294901760
    %9312 = vmatpush1.msra.mxu0 %v9311
    %9313 = vmatprep.subr.mxu0 0.0
    %9314 = vmatpush2.msra.mxu0 0.0
    %9315 = vmatprep.subr.mxu0 0.0
    %9316 = vmatpush2.msra.mxu0 0.0
    %9317 = vmatprep.subr.mxu0 0.0
    %9318 = vmatpush2.msra.mxu0 0.0
    %9319 = vmatprep.subr.mxu0 0.0
    %9320 = vmatpush2.msra.mxu0 0.0
    %9321 = vmatprep.subr.mxu0 0.0
    %9322 = vmatpush2.msra.mxu0 0.0
    %9323 = vmatprep.subr.mxu0 0.0
    %9324 = vmatpush2.msra.mxu0 0.0
    %9325 = vmatprep.subr.mxu0 0.0
    %9326 = vmatpush2.msra.mxu0 0.0
    %9327 = vmatprep.subr.mxu0 0.0
    %9328 = vmatpush2.msra.mxu0 0.0
    %9329 = vmatprep.subr.mxu0 0.0
    %9330 = vmatpush2.msra.mxu0 0.0
    %9331 = vmatprep.subr.mxu0 0.0
    %9332 = vmatpush2.msra.mxu0 0.0
    %9333 = vmatprep.subr.mxu0 0.0
    %9334 = vmatpush2.msra.mxu0 0.0
    %9335 = vmatprep.subr.mxu0 0.0
    %9336 = vmatpush2.msra.mxu0 0.0
    %9337 = vmatprep.subr.mxu0 0.0
    %9338 = vmatpush2.msra.mxu0 0.0
    %9339 = vmatprep.subr.mxu0 0.0
    %9340 = vmatpush2.msra.mxu0 0.0
    %9341 = vmatprep.subr.mxu0 0.0
    %9342 = vmatpush2.msra.mxu0 0.0
    %9343 = vmatprep.subr.mxu0 0.0
    %9344 = vmatpush2.msra.mxu0 0.0
    %9345 = vmatprep.mubr.f32.mxu0 0.0
    %v9346 = vand.u32 %v8942, 4294901760
    %9347 = vmatmul.mubr.f32.gmra.mxu0 %v9346
    %v9348 = vpop.f32.mrf.mxu0
    %v9349 = vadd.f32 %v9267, %v9348
    %v9350 = vpop.f32.mrf.mxu0
    %9351 = vmatprep.mubr.f32.mxu0 0.0
    %v9352 = vand.u32 %v8945, 4294901760
    %9353 = vmatmul.mubr.f32.gmra.mxu0 %v9352
    %v9354 = vpop.f32.mrf.mxu0
    %v9355 = vadd.f32 %v9275, %v9354
    %v9356 = vpop.f32.mrf.mxu0
    %9357 = vdwg.mxu0
    %9358 = vmatprep.subr.mxu0 0.0
    %9359 = vmatpush1.msra.mxu0 0.0
    %9360 = vmatprep.subr.mxu0 0.0
    %9361 = vmatpush1.msra.mxu0 0.0
    %9362 = vmatprep.subr.mxu0 0.0
    %9363 = vmatpush1.msra.mxu0 0.0
    %9364 = vmatprep.subr.mxu0 0.0
    %9365 = vmatpush1.msra.mxu0 0.0
    %9366 = vmatprep.subr.mxu0 0.0
    %9367 = vmatpush1.msra.mxu0 0.0
    %9368 = vmatprep.subr.mxu0 0.0
    %9369 = vmatpush1.msra.mxu0 0.0
    %9370 = vmatprep.subr.mxu0 0.0
    %9371 = vmatpush1.msra.mxu0 0.0
    %9372 = vmatprep.subr.mxu0 0.0
    %9373 = vmatpush1.msra.mxu0 0.0
    %9374 = vmatprep.subr.mxu0 0.0
    %9375 = vmatpush1.msra.mxu0 0.0
    %9376 = vmatprep.subr.mxu0 0.0
    %9377 = vmatpush1.msra.mxu0 0.0
    %9378 = vmatprep.subr.mxu0 0.0
    %9379 = vmatpush1.msra.mxu0 0.0
    %9380 = vmatprep.subr.mxu0 0.0
    %9381 = vmatpush1.msra.mxu0 0.0
    %9382 = vmatprep.subr.mxu0 0.0
    %9383 = vmatpush1.msra.mxu0 0.0
    %9384 = vmatprep.subr.mxu0 0.0
    %9385 = vmatpush1.msra.mxu0 0.0
    %9386 = vmatprep.subr.mxu0 0.0
    %9387 = vmatpush1.msra.mxu0 0.0
    %9388 = vmatprep.subr.mxu0 0.0
    %v9389 = vand.u32 %v8940, 4294901760
    %9390 = vmatpush1.msra.mxu0 %v9389
    %9391 = vmatprep.subr.mxu0 0.0
    %9392 = vmatpush2.msra.mxu0 0.0
    %9393 = vmatprep.subr.mxu0 0.0
    %9394 = vmatpush2.msra.mxu0 0.0
    %9395 = vmatprep.subr.mxu0 0.0
    %9396 = vmatpush2.msra.mxu0 0.0
    %9397 = vmatprep.subr.mxu0 0.0
    %9398 = vmatpush2.msra.mxu0 0.0
    %9399 = vmatprep.subr.mxu0 0.0
    %9400 = vmatpush2.msra.mxu0 0.0
    %9401 = vmatprep.subr.mxu0 0.0
    %9402 = vmatpush2.msra.mxu0 0.0
    %9403 = vmatprep.subr.mxu0 0.0
    %9404 = vmatpush2.msra.mxu0 0.0
    %9405 = vmatprep.subr.mxu0 0.0
    %9406 = vmatpush2.msra.mxu0 0.0
    %9407 = vmatprep.subr.mxu0 0.0
    %9408 = vmatpush2.msra.mxu0 0.0
    %9409 = vmatprep.subr.mxu0 0.0
    %9410 = vmatpush2.msra.mxu0 0.0
    %9411 = vmatprep.subr.mxu0 0.0
    %9412 = vmatpush2.msra.mxu0 0.0
    %9413 = vmatprep.subr.mxu0 0.0
    %9414 = vmatpush2.msra.mxu0 0.0
    %9415 = vmatprep.subr.mxu0 0.0
    %9416 = vmatpush2.msra.mxu0 0.0
    %9417 = vmatprep.subr.mxu0 0.0
    %9418 = vmatpush2.msra.mxu0 0.0
    %9419 = vmatprep.subr.mxu0 0.0
    %9420 = vmatpush2.msra.mxu0 0.0
    %9421 = vmatprep.subr.mxu0 0.0
    %9422 = vmatpush2.msra.mxu0 0.0
    %9423 = vmatprep.mubr.f32.mxu0 0.0
    %v9424 = vand.u32 %v8942, 4294901760
    %9425 = vmatmul.mubr.f32.gmra.mxu0 %v9424
    %v9426 = vpop.f32.mrf.mxu0
    %v9427 = vadd.f32 %v9349, %v9426
    %v9428 = vpop.f32.mrf.mxu0
    %9429 = vmatprep.mubr.f32.mxu0 0.0
    %v9430 = vand.u32 %v8945, 4294901760
    %9431 = vmatmul.mubr.f32.gmra.mxu0 %v9430
    %v9432 = vpop.f32.mrf.mxu0
    %v9433 = vadd.f32 %v9355, %v9432
    %v9434 = vpop.f32.mrf.mxu0
    %9435 = vdwg.mxu0
    %v9436 = vadd.f32 %v8931, %v9427
    %v9437 = vadd.f32 %v8937, %v9433
    %v9438 = vld [vmem:[#allocation7 + $0x18] sm:$0xff]
    %v9440 = vsel %vm629, %v7493, 0
    %v9443 = vsel %vm629, %v7945, 0
    %9445 = vmatprep.subr.mxu0 0.0
    %9446 = vmatpush1.msra.mxu0 0.0
    %9447 = vmatprep.subr.mxu0 0.0
    %9448 = vmatpush1.msra.mxu0 0.0
    %9449 = vmatprep.subr.mxu0 0.0
    %9450 = vmatpush1.msra.mxu0 0.0
    %9451 = vmatprep.subr.mxu0 0.0
    %9452 = vmatpush1.msra.mxu0 0.0
    %9453 = vmatprep.subr.mxu0 0.0
    %9454 = vmatpush1.msra.mxu0 0.0
    %9455 = vmatprep.subr.mxu0 0.0
    %9456 = vmatpush1.msra.mxu0 0.0
    %9457 = vmatprep.subr.mxu0 0.0
    %9458 = vmatpush1.msra.mxu0 0.0
    %9459 = vmatprep.subr.mxu0 0.0
    %9460 = vmatpush1.msra.mxu0 0.0
    %9461 = vmatprep.subr.mxu0 0.0
    %9462 = vmatpush1.msra.mxu0 0.0
    %9463 = vmatprep.subr.mxu0 0.0
    %9464 = vmatpush1.msra.mxu0 0.0
    %9465 = vmatprep.subr.mxu0 0.0
    %9466 = vmatpush1.msra.mxu0 0.0
    %9467 = vmatprep.subr.mxu0 0.0
    %9468 = vmatpush1.msra.mxu0 0.0
    %9469 = vmatprep.subr.mxu0 0.0
    %9470 = vmatpush1.msra.mxu0 0.0
    %9471 = vmatprep.subr.mxu0 0.0
    %9472 = vmatpush1.msra.mxu0 0.0
    %9473 = vmatprep.subr.mxu0 0.0
    %9474 = vmatpush1.msra.mxu0 0.0
    %9475 = vmatprep.subr.mxu0 0.0
    %v9476 = vand.u32 %v9438, 4294901760
    %9477 = vmatpush1.msra.mxu0 %v9476
    %9478 = vmatprep.subr.mxu0 0.0
    %9479 = vmatpush2.msra.mxu0 0.0
    %9480 = vmatprep.subr.mxu0 0.0
    %9481 = vmatpush2.msra.mxu0 0.0
    %9482 = vmatprep.subr.mxu0 0.0
    %9483 = vmatpush2.msra.mxu0 0.0
    %9484 = vmatprep.subr.mxu0 0.0
    %9485 = vmatpush2.msra.mxu0 0.0
    %9486 = vmatprep.subr.mxu0 0.0
    %9487 = vmatpush2.msra.mxu0 0.0
    %9488 = vmatprep.subr.mxu0 0.0
    %9489 = vmatpush2.msra.mxu0 0.0
    %9490 = vmatprep.subr.mxu0 0.0
    %9491 = vmatpush2.msra.mxu0 0.0
    %9492 = vmatprep.subr.mxu0 0.0
    %9493 = vmatpush2.msra.mxu0 0.0
    %9494 = vmatprep.subr.mxu0 0.0
    %9495 = vmatpush2.msra.mxu0 0.0
    %9496 = vmatprep.subr.mxu0 0.0
    %9497 = vmatpush2.msra.mxu0 0.0
    %9498 = vmatprep.subr.mxu0 0.0
    %9499 = vmatpush2.msra.mxu0 0.0
    %9500 = vmatprep.subr.mxu0 0.0
    %9501 = vmatpush2.msra.mxu0 0.0
    %9502 = vmatprep.subr.mxu0 0.0
    %9503 = vmatpush2.msra.mxu0 0.0
    %9504 = vmatprep.subr.mxu0 0.0
    %9505 = vmatpush2.msra.mxu0 0.0
    %9506 = vmatprep.subr.mxu0 0.0
    %9507 = vmatpush2.msra.mxu0 0.0
    %9508 = vmatprep.subr.mxu0 0.0
    %9509 = vmatpush2.msra.mxu0 0.0
    %9510 = vmatprep.mubr.f32.mxu0 0.0
    %v9511 = vand.u32 %v9440, 4294901760
    %v9512 = vsub.f32 %v9440, %v9511
    %v9513 = vand.u32 %v9512, 4294901760
    %v9514 = vsub.f32 %v9512, %v9513
    %v9515 = vand.u32 %v9514, 4294901760
    %9516 = vmatmul.mubr.f32.gmra.mxu0 %v9515
    %v9517 = vpop.f32.mrf.mxu0
    %v9518 = vadd.f32 0.0, %v9517
    %v9519 = vpop.f32.mrf.mxu0
    %9520 = vmatprep.mubr.f32.mxu0 0.0
    %v9521 = vand.u32 %v9443, 4294901760
    %v9522 = vsub.f32 %v9443, %v9521
    %v9523 = vand.u32 %v9522, 4294901760
    %v9524 = vsub.f32 %v9522, %v9523
    %v9525 = vand.u32 %v9524, 4294901760
    %9526 = vmatmul.mubr.f32.gmra.mxu0 %v9525
    %v9527 = vpop.f32.mrf.mxu0
    %v9528 = vadd.f32 0.0, %v9527
    %v9529 = vpop.f32.mrf.mxu0
    %9530 = vdwg.mxu0
    %9531 = vmatprep.subr.mxu0 0.0
    %9532 = vmatpush1.msra.mxu0 0.0
    %9533 = vmatprep.subr.mxu0 0.0
    %9534 = vmatpush1.msra.mxu0 0.0
    %9535 = vmatprep.subr.mxu0 0.0
    %9536 = vmatpush1.msra.mxu0 0.0
    %9537 = vmatprep.subr.mxu0 0.0
    %9538 = vmatpush1.msra.mxu0 0.0
    %9539 = vmatprep.subr.mxu0 0.0
    %9540 = vmatpush1.msra.mxu0 0.0
    %9541 = vmatprep.subr.mxu0 0.0
    %9542 = vmatpush1.msra.mxu0 0.0
    %9543 = vmatprep.subr.mxu0 0.0
    %9544 = vmatpush1.msra.mxu0 0.0
    %9545 = vmatprep.subr.mxu0 0.0
    %9546 = vmatpush1.msra.mxu0 0.0
    %9547 = vmatprep.subr.mxu0 0.0
    %9548 = vmatpush1.msra.mxu0 0.0
    %9549 = vmatprep.subr.mxu0 0.0
    %9550 = vmatpush1.msra.mxu0 0.0
    %9551 = vmatprep.subr.mxu0 0.0
    %9552 = vmatpush1.msra.mxu0 0.0
    %9553 = vmatprep.subr.mxu0 0.0
    %9554 = vmatpush1.msra.mxu0 0.0
    %9555 = vmatprep.subr.mxu0 0.0
    %9556 = vmatpush1.msra.mxu0 0.0
    %9557 = vmatprep.subr.mxu0 0.0
    %9558 = vmatpush1.msra.mxu0 0.0
    %9559 = vmatprep.subr.mxu0 0.0
    %9560 = vmatpush1.msra.mxu0 0.0
    %9561 = vmatprep.subr.mxu0 0.0
    %v9562 = vand.u32 %v9438, 4294901760
    %v9563 = vsub.f32 %v9438, %v9562
    %v9564 = vand.u32 %v9563, 4294901760
    %v9565 = vsub.f32 %v9563, %v9564
    %v9566 = vand.u32 %v9565, 4294901760
    %9567 = vmatpush1.msra.mxu0 %v9566
    %9568 = vmatprep.subr.mxu0 0.0
    %9569 = vmatpush2.msra.mxu0 0.0
    %9570 = vmatprep.subr.mxu0 0.0
    %9571 = vmatpush2.msra.mxu0 0.0
    %9572 = vmatprep.subr.mxu0 0.0
    %9573 = vmatpush2.msra.mxu0 0.0
    %9574 = vmatprep.subr.mxu0 0.0
    %9575 = vmatpush2.msra.mxu0 0.0
    %9576 = vmatprep.subr.mxu0 0.0
    %9577 = vmatpush2.msra.mxu0 0.0
    %9578 = vmatprep.subr.mxu0 0.0
    %9579 = vmatpush2.msra.mxu0 0.0
    %9580 = vmatprep.subr.mxu0 0.0
    %9581 = vmatpush2.msra.mxu0 0.0
    %9582 = vmatprep.subr.mxu0 0.0
    %9583 = vmatpush2.msra.mxu0 0.0
    %9584 = vmatprep.subr.mxu0 0.0
    %9585 = vmatpush2.msra.mxu0 0.0
    %9586 = vmatprep.subr.mxu0 0.0
    %9587 = vmatpush2.msra.mxu0 0.0
    %9588 = vmatprep.subr.mxu0 0.0
    %9589 = vmatpush2.msra.mxu0 0.0
    %9590 = vmatprep.subr.mxu0 0.0
    %9591 = vmatpush2.msra.mxu0 0.0
    %9592 = vmatprep.subr.mxu0 0.0
    %9593 = vmatpush2.msra.mxu0 0.0
    %9594 = vmatprep.subr.mxu0 0.0
    %9595 = vmatpush2.msra.mxu0 0.0
    %9596 = vmatprep.subr.mxu0 0.0
    %9597 = vmatpush2.msra.mxu0 0.0
    %9598 = vmatprep.subr.mxu0 0.0
    %9599 = vmatpush2.msra.mxu0 0.0
    %9600 = vmatprep.mubr.f32.mxu0 0.0
    %v9601 = vand.u32 %v9440, 4294901760
    %9602 = vmatmul.mubr.f32.gmra.mxu0 %v9601
    %v9603 = vpop.f32.mrf.mxu0
    %v9604 = vadd.f32 %v9518, %v9603
    %v9605 = vpop.f32.mrf.mxu0
    %9606 = vmatprep.mubr.f32.mxu0 0.0
    %v9607 = vand.u32 %v9443, 4294901760
    %9608 = vmatmul.mubr.f32.gmra.mxu0 %v9607
    %v9609 = vpop.f32.mrf.mxu0
    %v9610 = vadd.f32 %v9528, %v9609
    %v9611 = vpop.f32.mrf.mxu0
    %9612 = vdwg.mxu0
    %9613 = vmatprep.subr.mxu0 0.0
    %9614 = vmatpush1.msra.mxu0 0.0
    %9615 = vmatprep.subr.mxu0 0.0
    %9616 = vmatpush1.msra.mxu0 0.0
    %9617 = vmatprep.subr.mxu0 0.0
    %9618 = vmatpush1.msra.mxu0 0.0
    %9619 = vmatprep.subr.mxu0 0.0
    %9620 = vmatpush1.msra.mxu0 0.0
    %9621 = vmatprep.subr.mxu0 0.0
    %9622 = vmatpush1.msra.mxu0 0.0
    %9623 = vmatprep.subr.mxu0 0.0
    %9624 = vmatpush1.msra.mxu0 0.0
    %9625 = vmatprep.subr.mxu0 0.0
    %9626 = vmatpush1.msra.mxu0 0.0
    %9627 = vmatprep.subr.mxu0 0.0
    %9628 = vmatpush1.msra.mxu0 0.0
    %9629 = vmatprep.subr.mxu0 0.0
    %9630 = vmatpush1.msra.mxu0 0.0
    %9631 = vmatprep.subr.mxu0 0.0
    %9632 = vmatpush1.msra.mxu0 0.0
    %9633 = vmatprep.subr.mxu0 0.0
    %9634 = vmatpush1.msra.mxu0 0.0
    %9635 = vmatprep.subr.mxu0 0.0
    %9636 = vmatpush1.msra.mxu0 0.0
    %9637 = vmatprep.subr.mxu0 0.0
    %9638 = vmatpush1.msra.mxu0 0.0
    %9639 = vmatprep.subr.mxu0 0.0
    %9640 = vmatpush1.msra.mxu0 0.0
    %9641 = vmatprep.subr.mxu0 0.0
    %9642 = vmatpush1.msra.mxu0 0.0
    %9643 = vmatprep.subr.mxu0 0.0
    %v9644 = vand.u32 %v9438, 4294901760
    %v9645 = vsub.f32 %v9438, %v9644
    %9646 = vmatpush1.msra.mxu0 %v9645
    %9647 = vmatprep.subr.mxu0 0.0
    %9648 = vmatpush2.msra.mxu0 0.0
    %9649 = vmatprep.subr.mxu0 0.0
    %9650 = vmatpush2.msra.mxu0 0.0
    %9651 = vmatprep.subr.mxu0 0.0
    %9652 = vmatpush2.msra.mxu0 0.0
    %9653 = vmatprep.subr.mxu0 0.0
    %9654 = vmatpush2.msra.mxu0 0.0
    %9655 = vmatprep.subr.mxu0 0.0
    %9656 = vmatpush2.msra.mxu0 0.0
    %9657 = vmatprep.subr.mxu0 0.0
    %9658 = vmatpush2.msra.mxu0 0.0
    %9659 = vmatprep.subr.mxu0 0.0
    %9660 = vmatpush2.msra.mxu0 0.0
    %9661 = vmatprep.subr.mxu0 0.0
    %9662 = vmatpush2.msra.mxu0 0.0
    %9663 = vmatprep.subr.mxu0 0.0
    %9664 = vmatpush2.msra.mxu0 0.0
    %9665 = vmatprep.subr.mxu0 0.0
    %9666 = vmatpush2.msra.mxu0 0.0
    %9667 = vmatprep.subr.mxu0 0.0
    %9668 = vmatpush2.msra.mxu0 0.0
    %9669 = vmatprep.subr.mxu0 0.0
    %9670 = vmatpush2.msra.mxu0 0.0
    %9671 = vmatprep.subr.mxu0 0.0
    %9672 = vmatpush2.msra.mxu0 0.0
    %9673 = vmatprep.subr.mxu0 0.0
    %9674 = vmatpush2.msra.mxu0 0.0
    %9675 = vmatprep.subr.mxu0 0.0
    %9676 = vmatpush2.msra.mxu0 0.0
    %9677 = vmatprep.subr.mxu0 0.0
    %9678 = vmatpush2.msra.mxu0 0.0
    %9679 = vmatprep.mubr.f32.mxu0 0.0
    %v9680 = vand.u32 %v9440, 4294901760
    %v9681 = vsub.f32 %v9440, %v9680
    %9682 = vmatmul.mubr.f32.gmra.mxu0 %v9681
    %v9683 = vpop.f32.mrf.mxu0
    %v9684 = vadd.f32 %v9604, %v9683
    %v9685 = vpop.f32.mrf.mxu0
    %9686 = vmatprep.mubr.f32.mxu0 0.0
    %v9687 = vand.u32 %v9443, 4294901760
    %v9688 = vsub.f32 %v9443, %v9687
    %9689 = vmatmul.mubr.f32.gmra.mxu0 %v9688
    %v9690 = vpop.f32.mrf.mxu0
    %v9691 = vadd.f32 %v9610, %v9690
    %v9692 = vpop.f32.mrf.mxu0
    %9693 = vdwg.mxu0
    %9694 = vmatprep.subr.mxu0 0.0
    %9695 = vmatpush1.msra.mxu0 0.0
    %9696 = vmatprep.subr.mxu0 0.0
    %9697 = vmatpush1.msra.mxu0 0.0
    %9698 = vmatprep.subr.mxu0 0.0
    %9699 = vmatpush1.msra.mxu0 0.0
    %9700 = vmatprep.subr.mxu0 0.0
    %9701 = vmatpush1.msra.mxu0 0.0
    %9702 = vmatprep.subr.mxu0 0.0
    %9703 = vmatpush1.msra.mxu0 0.0
    %9704 = vmatprep.subr.mxu0 0.0
    %9705 = vmatpush1.msra.mxu0 0.0
    %9706 = vmatprep.subr.mxu0 0.0
    %9707 = vmatpush1.msra.mxu0 0.0
    %9708 = vmatprep.subr.mxu0 0.0
    %9709 = vmatpush1.msra.mxu0 0.0
    %9710 = vmatprep.subr.mxu0 0.0
    %9711 = vmatpush1.msra.mxu0 0.0
    %9712 = vmatprep.subr.mxu0 0.0
    %9713 = vmatpush1.msra.mxu0 0.0
    %9714 = vmatprep.subr.mxu0 0.0
    %9715 = vmatpush1.msra.mxu0 0.0
    %9716 = vmatprep.subr.mxu0 0.0
    %9717 = vmatpush1.msra.mxu0 0.0
    %9718 = vmatprep.subr.mxu0 0.0
    %9719 = vmatpush1.msra.mxu0 0.0
    %9720 = vmatprep.subr.mxu0 0.0
    %9721 = vmatpush1.msra.mxu0 0.0
    %9722 = vmatprep.subr.mxu0 0.0
    %9723 = vmatpush1.msra.mxu0 0.0
    %9724 = vmatprep.subr.mxu0 0.0
    %v9725 = vand.u32 %v9438, 4294901760
    %9726 = vmatpush1.msra.mxu0 %v9725
    %9727 = vmatprep.subr.mxu0 0.0
    %9728 = vmatpush2.msra.mxu0 0.0
    %9729 = vmatprep.subr.mxu0 0.0
    %9730 = vmatpush2.msra.mxu0 0.0
    %9731 = vmatprep.subr.mxu0 0.0
    %9732 = vmatpush2.msra.mxu0 0.0
    %9733 = vmatprep.subr.mxu0 0.0
    %9734 = vmatpush2.msra.mxu0 0.0
    %9735 = vmatprep.subr.mxu0 0.0
    %9736 = vmatpush2.msra.mxu0 0.0
    %9737 = vmatprep.subr.mxu0 0.0
    %9738 = vmatpush2.msra.mxu0 0.0
    %9739 = vmatprep.subr.mxu0 0.0
    %9740 = vmatpush2.msra.mxu0 0.0
    %9741 = vmatprep.subr.mxu0 0.0
    %9742 = vmatpush2.msra.mxu0 0.0
    %9743 = vmatprep.subr.mxu0 0.0
    %9744 = vmatpush2.msra.mxu0 0.0
    %9745 = vmatprep.subr.mxu0 0.0
    %9746 = vmatpush2.msra.mxu0 0.0
    %9747 = vmatprep.subr.mxu0 0.0
    %9748 = vmatpush2.msra.mxu0 0.0
    %9749 = vmatprep.subr.mxu0 0.0
    %9750 = vmatpush2.msra.mxu0 0.0
    %9751 = vmatprep.subr.mxu0 0.0
    %9752 = vmatpush2.msra.mxu0 0.0
    %9753 = vmatprep.subr.mxu0 0.0
    %9754 = vmatpush2.msra.mxu0 0.0
    %9755 = vmatprep.subr.mxu0 0.0
    %9756 = vmatpush2.msra.mxu0 0.0
    %9757 = vmatprep.subr.mxu0 0.0
    %9758 = vmatpush2.msra.mxu0 0.0
    %9759 = vmatprep.mubr.f32.mxu0 0.0
    %v9760 = vand.u32 %v9440, 4294901760
    %v9761 = vsub.f32 %v9440, %v9760
    %v9762 = vand.u32 %v9761, 4294901760
    %9763 = vmatmul.mubr.f32.gmra.mxu0 %v9762
    %v9764 = vpop.f32.mrf.mxu0
    %v9765 = vadd.f32 %v9684, %v9764
    %v9766 = vpop.f32.mrf.mxu0
    %9767 = vmatprep.mubr.f32.mxu0 0.0
    %v9768 = vand.u32 %v9443, 4294901760
    %v9769 = vsub.f32 %v9443, %v9768
    %v9770 = vand.u32 %v9769, 4294901760
    %9771 = vmatmul.mubr.f32.gmra.mxu0 %v9770
    %v9772 = vpop.f32.mrf.mxu0
    %v9773 = vadd.f32 %v9691, %v9772
    %v9774 = vpop.f32.mrf.mxu0
    %9775 = vdwg.mxu0
    %9776 = vmatprep.subr.mxu0 0.0
    %9777 = vmatpush1.msra.mxu0 0.0
    %9778 = vmatprep.subr.mxu0 0.0
    %9779 = vmatpush1.msra.mxu0 0.0
    %9780 = vmatprep.subr.mxu0 0.0
    %9781 = vmatpush1.msra.mxu0 0.0
    %9782 = vmatprep.subr.mxu0 0.0
    %9783 = vmatpush1.msra.mxu0 0.0
    %9784 = vmatprep.subr.mxu0 0.0
    %9785 = vmatpush1.msra.mxu0 0.0
    %9786 = vmatprep.subr.mxu0 0.0
    %9787 = vmatpush1.msra.mxu0 0.0
    %9788 = vmatprep.subr.mxu0 0.0
    %9789 = vmatpush1.msra.mxu0 0.0
    %9790 = vmatprep.subr.mxu0 0.0
    %9791 = vmatpush1.msra.mxu0 0.0
    %9792 = vmatprep.subr.mxu0 0.0
    %9793 = vmatpush1.msra.mxu0 0.0
    %9794 = vmatprep.subr.mxu0 0.0
    %9795 = vmatpush1.msra.mxu0 0.0
    %9796 = vmatprep.subr.mxu0 0.0
    %9797 = vmatpush1.msra.mxu0 0.0
    %9798 = vmatprep.subr.mxu0 0.0
    %9799 = vmatpush1.msra.mxu0 0.0
    %9800 = vmatprep.subr.mxu0 0.0
    %9801 = vmatpush1.msra.mxu0 0.0
    %9802 = vmatprep.subr.mxu0 0.0
    %9803 = vmatpush1.msra.mxu0 0.0
    %9804 = vmatprep.subr.mxu0 0.0
    %9805 = vmatpush1.msra.mxu0 0.0
    %9806 = vmatprep.subr.mxu0 0.0
    %v9807 = vand.u32 %v9438, 4294901760
    %v9808 = vsub.f32 %v9438, %v9807
    %v9809 = vand.u32 %v9808, 4294901760
    %9810 = vmatpush1.msra.mxu0 %v9809
    %9811 = vmatprep.subr.mxu0 0.0
    %9812 = vmatpush2.msra.mxu0 0.0
    %9813 = vmatprep.subr.mxu0 0.0
    %9814 = vmatpush2.msra.mxu0 0.0
    %9815 = vmatprep.subr.mxu0 0.0
    %9816 = vmatpush2.msra.mxu0 0.0
    %9817 = vmatprep.subr.mxu0 0.0
    %9818 = vmatpush2.msra.mxu0 0.0
    %9819 = vmatprep.subr.mxu0 0.0
    %9820 = vmatpush2.msra.mxu0 0.0
    %9821 = vmatprep.subr.mxu0 0.0
    %9822 = vmatpush2.msra.mxu0 0.0
    %9823 = vmatprep.subr.mxu0 0.0
    %9824 = vmatpush2.msra.mxu0 0.0
    %9825 = vmatprep.subr.mxu0 0.0
    %9826 = vmatpush2.msra.mxu0 0.0
    %9827 = vmatprep.subr.mxu0 0.0
    %9828 = vmatpush2.msra.mxu0 0.0
    %9829 = vmatprep.subr.mxu0 0.0
    %9830 = vmatpush2.msra.mxu0 0.0
    %9831 = vmatprep.subr.mxu0 0.0
    %9832 = vmatpush2.msra.mxu0 0.0
    %9833 = vmatprep.subr.mxu0 0.0
    %9834 = vmatpush2.msra.mxu0 0.0
    %9835 = vmatprep.subr.mxu0 0.0
    %9836 = vmatpush2.msra.mxu0 0.0
    %9837 = vmatprep.subr.mxu0 0.0
    %9838 = vmatpush2.msra.mxu0 0.0
    %9839 = vmatprep.subr.mxu0 0.0
    %9840 = vmatpush2.msra.mxu0 0.0
    %9841 = vmatprep.subr.mxu0 0.0
    %9842 = vmatpush2.msra.mxu0 0.0
    %9843 = vmatprep.mubr.f32.mxu0 0.0
    %v9844 = vand.u32 %v9440, 4294901760
    %9845 = vmatmul.mubr.f32.gmra.mxu0 %v9844
    %v9846 = vpop.f32.mrf.mxu0
    %v9847 = vadd.f32 %v9765, %v9846
    %v9848 = vpop.f32.mrf.mxu0
    %9849 = vmatprep.mubr.f32.mxu0 0.0
    %v9850 = vand.u32 %v9443, 4294901760
    %9851 = vmatmul.mubr.f32.gmra.mxu0 %v9850
    %v9852 = vpop.f32.mrf.mxu0
    %v9853 = vadd.f32 %v9773, %v9852
    %v9854 = vpop.f32.mrf.mxu0
    %9855 = vdwg.mxu0
    %9856 = vmatprep.subr.mxu0 0.0
    %9857 = vmatpush1.msra.mxu0 0.0
    %9858 = vmatprep.subr.mxu0 0.0
    %9859 = vmatpush1.msra.mxu0 0.0
    %9860 = vmatprep.subr.mxu0 0.0
    %9861 = vmatpush1.msra.mxu0 0.0
    %9862 = vmatprep.subr.mxu0 0.0
    %9863 = vmatpush1.msra.mxu0 0.0
    %9864 = vmatprep.subr.mxu0 0.0
    %9865 = vmatpush1.msra.mxu0 0.0
    %9866 = vmatprep.subr.mxu0 0.0
    %9867 = vmatpush1.msra.mxu0 0.0
    %9868 = vmatprep.subr.mxu0 0.0
    %9869 = vmatpush1.msra.mxu0 0.0
    %9870 = vmatprep.subr.mxu0 0.0
    %9871 = vmatpush1.msra.mxu0 0.0
    %9872 = vmatprep.subr.mxu0 0.0
    %9873 = vmatpush1.msra.mxu0 0.0
    %9874 = vmatprep.subr.mxu0 0.0
    %9875 = vmatpush1.msra.mxu0 0.0
    %9876 = vmatprep.subr.mxu0 0.0
    %9877 = vmatpush1.msra.mxu0 0.0
    %9878 = vmatprep.subr.mxu0 0.0
    %9879 = vmatpush1.msra.mxu0 0.0
    %9880 = vmatprep.subr.mxu0 0.0
    %9881 = vmatpush1.msra.mxu0 0.0
    %9882 = vmatprep.subr.mxu0 0.0
    %9883 = vmatpush1.msra.mxu0 0.0
    %9884 = vmatprep.subr.mxu0 0.0
    %9885 = vmatpush1.msra.mxu0 0.0
    %9886 = vmatprep.subr.mxu0 0.0
    %v9887 = vand.u32 %v9438, 4294901760
    %9888 = vmatpush1.msra.mxu0 %v9887
    %9889 = vmatprep.subr.mxu0 0.0
    %9890 = vmatpush2.msra.mxu0 0.0
    %9891 = vmatprep.subr.mxu0 0.0
    %9892 = vmatpush2.msra.mxu0 0.0
    %9893 = vmatprep.subr.mxu0 0.0
    %9894 = vmatpush2.msra.mxu0 0.0
    %9895 = vmatprep.subr.mxu0 0.0
    %9896 = vmatpush2.msra.mxu0 0.0
    %9897 = vmatprep.subr.mxu0 0.0
    %9898 = vmatpush2.msra.mxu0 0.0
    %9899 = vmatprep.subr.mxu0 0.0
    %9900 = vmatpush2.msra.mxu0 0.0
    %9901 = vmatprep.subr.mxu0 0.0
    %9902 = vmatpush2.msra.mxu0 0.0
    %9903 = vmatprep.subr.mxu0 0.0
    %9904 = vmatpush2.msra.mxu0 0.0
    %9905 = vmatprep.subr.mxu0 0.0
    %9906 = vmatpush2.msra.mxu0 0.0
    %9907 = vmatprep.subr.mxu0 0.0
    %9908 = vmatpush2.msra.mxu0 0.0
    %9909 = vmatprep.subr.mxu0 0.0
    %9910 = vmatpush2.msra.mxu0 0.0
    %9911 = vmatprep.subr.mxu0 0.0
    %9912 = vmatpush2.msra.mxu0 0.0
    %9913 = vmatprep.subr.mxu0 0.0
    %9914 = vmatpush2.msra.mxu0 0.0
    %9915 = vmatprep.subr.mxu0 0.0
    %9916 = vmatpush2.msra.mxu0 0.0
    %9917 = vmatprep.subr.mxu0 0.0
    %9918 = vmatpush2.msra.mxu0 0.0
    %9919 = vmatprep.subr.mxu0 0.0
    %9920 = vmatpush2.msra.mxu0 0.0
    %9921 = vmatprep.mubr.f32.mxu0 0.0
    %v9922 = vand.u32 %v9440, 4294901760
    %9923 = vmatmul.mubr.f32.gmra.mxu0 %v9922
    %v9924 = vpop.f32.mrf.mxu0
    %v9925 = vadd.f32 %v9847, %v9924
    %v9926 = vpop.f32.mrf.mxu0
    %9927 = vmatprep.mubr.f32.mxu0 0.0
    %v9928 = vand.u32 %v9443, 4294901760
    %9929 = vmatmul.mubr.f32.gmra.mxu0 %v9928
    %v9930 = vpop.f32.mrf.mxu0
    %v9931 = vadd.f32 %v9853, %v9930
    %v9932 = vpop.f32.mrf.mxu0
    %9933 = vdwg.mxu0
    %v9934 = vadd.f32 %v9436, %v9925
    %v9935 = vadd.f32 %v9437, %v9931
    %v9936 = vld [vmem:[%s4] sm:$0x1]
    %v9937 = vld [vmem:[%s4 + $0x1] sm:$0x1]
    %v9938 = vld [vmem:[%s4 + $0x2] sm:$0x1]
    %v9939 = vadd.f32 %v65, %v9934
    %v9940 = vadd.f32 %v66, %v9935
    %v9941 = vlaneseq
    %v9942 = vshrl.u32 %v9941, 7
    %v9943 = vsub.s32 0, %v9942
    %v9944 = vrot.slane %v9936, %v9943
    %v9945 = vadd.f32 %v9939, %v9944
    %v9946 = vadd.f32 %v9940, %v9944
    %v9947 = vsel %vm78, %v9945, 0.0
    %9948 = vadd.xlane.f32.xlu0 %v9947
    %v9949 = vpop.xlane.xlu0 %9948
    %v9950 = vsel %vm78, %v9946, 0.0
    %9951 = vadd.xlane.f32.xlu0 %v9950
    %v9952 = vpop.xlane.xlu0 %9951
    %v9953 = vrcp.pop 32.0
    %v9954 = vmul.f32 %v9949, %v9953
    %v9955 = vmul.f32 %v9952, %v9953
    %v9956 = vsub.f32 %v9945, %v9954
    %v9957 = vsub.f32 %v9946, %v9955
    %v9958 = vmul.f32 %v9956, %v9956
    %v9959 = vmul.f32 %v9957, %v9957
    %v9960 = vsel %vm78, %v9958, 0.0
    %9961 = vadd.xlane.f32.xlu0 %v9960
    %v9962 = vpop.xlane.xlu0 %9961
    %v9963 = vsel %vm78, %v9959, 0.0
    %9964 = vadd.xlane.f32.xlu0 %v9963
    %v9965 = vpop.xlane.xlu0 %9964
    %v9966 = vmul.f32 %v9962, %v9953
    %v9967 = vmul.f32 %v9965, %v9953
    %v9968 = vadd.f32 %v9966, 1e-05
    %v9969 = vadd.f32 %v9967, 1e-05
    %v9970 = vrsqrt.pop %v9968
    %v9971 = vrsqrt.pop %v9969
    %v9972 = vmul.f32 %v9956, %v9970
    %v9973 = vmul.f32 %v9957, %v9971
    %v9974 = vlaneseq
    %v9975 = vshrl.u32 %v9974, 7
    %v9976 = vsub.s32 0, %v9975
    %v9977 = vrot.slane %v9937, %v9976
    %v9978 = vmul.f32 %v9972, %v9977
    %v9979 = vmul.f32 %v9973, %v9977
    %v9980 = vlaneseq
    %v9981 = vshrl.u32 %v9980, 7
    %v9982 = vsub.s32 0, %v9981
    %v9983 = vrot.slane %v9938, %v9982
    %v9984 = vadd.f32 %v9978, %v9983
    %v9985 = vadd.f32 %v9979, %v9983
    %9986 = vst.msk [vmem:[#allocation8] sm:$0xff] %vm78, %v9984
    %9987 = vst.msk [vmem:[#allocation8 + $0x8] sm:$0xff] %vm78, %v9985
    %v9988 = vsel %vm629, %v4324, 0.0
    %v9989 = vsel %vm629, %v4326, 0.0
    %v9990 = vadd.f32 %v9988, %v9989
    %v9991 = vsel %vm629, %v4328, 0.0
    %v9992 = vadd.f32 %v9990, %v9991
    %v9993 = vsel %vm629, %v4330, 0.0
    %v9994 = vadd.f32 %v9992, %v9993
    %v9995 = vsel %vm629, %v4325, 0.0
    %v9996 = vsel %vm629, %v4327, 0.0
    %v9997 = vadd.f32 %v9995, %v9996
    %v9998 = vsel %vm629, %v4329, 0.0
    %v9999 = vadd.f32 %v9997, %v9998
    %v10000 = vsel %vm629, %v4331, 0.0
    %v10001 = vadd.f32 %v9999, %v10000
    %v10002 = vrcp.pop 4.0
    %v10003 = vmul.f32 %v9994, %v10002
    %v10004 = vmul.f32 %v10001, %v10002
    %10005 = vst.msk [vmem:[#allocation9] sm:$0xff] %vm629, %v10003
    %10006 = vst.msk [vmem:[#allocation9 + $0x8] sm:$0xff] %vm629, %v10004
    // Predicated region
    $region34: #{tpu_custom_call.1} parent=1 // pred_check
      _
    $region35: #{tpu_custom_call.1} parent=1 // pred_check_branch
      %10008 = sbr.rel (0) target = $region37
    $region36: #{tpu_custom_call.1} parent=1 // pred_region
      %s10010 = ssub.s32 256, 256
      %10011 = vsyncadd [#allocation4], %s10010
      %s10012 = sshll.u32 [#allocation8], 4
      %s10013 = int_to_ptr.vmem [resolvable:$true] %s10012
      %10018 = dma.vmem_to_hbm [thread:$0]  %s10013, 256, %s5, [#allocation4], 128, 128, 8
    $region37: #{tpu_custom_call.1} parent=1 // pred_fallthru
      _
    // Predicated region
    $region38: #{tpu_custom_call.1} parent=1 // pred_check
      _
    $region39: #{tpu_custom_call.1} parent=1 // pred_check_branch
      %10020 = sbr.rel (0) target = $region41
    $region40: #{tpu_custom_call.1} parent=1 // pred_region
      %s10022 = ssub.s32 256, 256
      %10023 = vsyncadd [#allocation10], %s10022
      %s10024 = sshll.u32 [#allocation9], 4
      %s10025 = int_to_ptr.vmem [resolvable:$true] %s10024
      %10030 = dma.vmem_to_hbm [thread:$0]  %s10025, 256, %s6, [#allocation10], 128, 128, 8
    $region41: #{tpu_custom_call.1} parent=1 // pred_fallthru
      _
    // Predicated region
    $region42: #{tpu_custom_call.1} parent=1 // pred_check
      _
    $region43: #{tpu_custom_call.1} parent=1 // pred_check_branch
      %10032 = sbr.rel (0) target = $region45
    $region44: #{tpu_custom_call.1} parent=1 // pred_region
      %10033 = dma.done [#allocation4], 256
    $region45: #{tpu_custom_call.1} parent=1 // pred_fallthru
      _
    // Predicated region
    $region46: #{tpu_custom_call.1} parent=1 // pred_check
      _
    $region47: #{tpu_custom_call.1} parent=1 // pred_check_branch
      %10035 = sbr.rel (0) target = $region49
    $region48: #{tpu_custom_call.1} parent=1 // pred_region
      %10036 = dma.done [#allocation10], 256
    $region49: #{tpu_custom_call.1} parent=1 // pred_fallthru
      _
    %10037 = vsyncpa [#allocation3], 1
    %10038 = vsyncpa [#allocation6], 1
    %10039 = vsyncpa [#allocation4], 1
    %10040 = vsyncpa [#allocation10], 1

</llo_original>
